<compile_context>
chip_gen: v5e
topology: v5e:2x2
jax: 0.10.0
libtpu: 0.0.40
codegen_flags: <defaults>
</compile_context>

<pallas_src>
import functools

import numpy as np
import jax
import jax.numpy as jnp
from jax.experimental import pallas as pl
from jax.experimental.pallas import tpu as pltpu


# --------------------------- fused conv-conv-pool stage ---------------------------

def _stage_kernel(xp_ref, wa_ref, ba_ref, wb_ref, bb_ref, mask_ref, pool_ref,
                  o_ref, y1p_ref, *, H, W):
    """conv3x3+bias+ReLU -> conv3x3+bias+ReLU -> 2x2 maxpool for ONE image.

    xp_ref   : (1, (H+3)*(W+2), Cin)   zero-padded input, spatially flattened, bf16
    wa_ref   : (9, Cin, Cmid)          conv_a weights, tap-major (ky*3+kx), bf16
    ba_ref   : (1, Cmid)               conv_a bias, f32
    wb_ref   : (9, Cmid, Cmid)         conv_b weights, bf16
    bb_ref   : (1, Cmid)               conv_b bias, f32
    mask_ref : (H*(W+2), 1)            1.0 on real columns, 0.0 on the 2 pad columns
    pool_ref : (H//2*W//2, X)          0/1 row-selection matrix (pool compaction)
    o_ref    : (1, H//2*W//2, Cmid)    pooled output, bf16
    y1p_ref  : VMEM ((H+3)*(W+2), Cmid) f32 scratch: re-padded conv_a output
    """
    WP = W + 2
    NR = H * WP                       # conv output rows (incl. 2 junk pad columns/row)
    X = NR - WP - 1
    Cmid = o_ref.shape[-1]
    f32 = jnp.float32

    # f32 working copy so row slices at odd offsets stay simple/unpacked.
    xp = xp_ref[0].astype(f32)        # (LP, Cin)

    # ---- conv_a: 9 row-shifted bf16 matmuls, f32 accumulation -------------------
    acc = jnp.zeros((NR, Cmid), f32)
    for ky in range(3):
        for kx in range(3):
            sh = ky * WP + kx
            lhs = xp[sh:sh + NR, :].astype(jnp.bfloat16)
            acc = acc + jnp.dot(lhs, wa_ref[ky * 3 + kx],
                                preferred_element_type=f32)
    # bias + ReLU; zero the 2 junk columns so they cannot leak into conv_b.
    y1 = jnp.maximum(acc + ba_ref[...], 0.0) * mask_ref[...]

    # ---- re-pad conv_a output inside VMEM (zero border) for conv_b --------------
    y1p_ref[...] = jnp.zeros(y1p_ref.shape, f32)
    y1p_ref[WP + 1:WP + 1 + NR, :] = y1
    y1p = y1p_ref[...]

    # ---- conv_b ------------------------------------------------------------------
    acc2 = jnp.zeros((NR, Cmid), f32)
    for ky in range(3):
        for kx in range(3):
            sh = ky * WP + kx
            lhs = y1p[sh:sh + NR, :].astype(jnp.bfloat16)
            acc2 = acc2 + jnp.dot(lhs, wb_ref[ky * 3 + kx],
                                  preferred_element_type=f32)
    y2 = jnp.maximum(acc2 + bb_ref[...], 0.0)

    # ---- fused 2x2 max-pool --------------------------------------------------------
    # max over the 2x2 window = elementwise max of 4 row-shifted slices ...
    m = jnp.maximum(jnp.maximum(y2[0:X, :], y2[1:1 + X, :]),
                    jnp.maximum(y2[WP:WP + X, :], y2[WP + 1:WP + 1 + X, :]))
    # ... then compact rows (h2*W2+w2) <- (2*h2*WP + 2*w2) via an exact 0/1 matmul.
    pooled = jnp.dot(pool_ref[...], m.astype(jnp.bfloat16),
                     preferred_element_type=f32)
    o_ref[0, :, :] = pooled.astype(o_ref.dtype)
    # TODO(synk): nn.Dropout (drop1) after the pool is identity in eval mode;
    # training-mode RNG dropout is not implemented.


def conv_pool_stage(x_nhwc, wa, ba, wb, bb):
    """x:(B,H,W,Cin) bf16 -> pooled (B,H//2,W//2,Cout) bf16 with a single pallas_call."""
    B, H, W, Cin = x_nhwc.shape
    assert H % 2 == 0 and W % 2 == 0
    Cout = wa.shape[-1]
    WP = W + 2
    NR = H * WP
    LP = (H + 3) * WP                 # pad: 1 top, 2 bottom, 1 left, 1 right
    X = NR - WP - 1
    H2, W2 = H // 2, W // 2

    xp = jnp.pad(x_nhwc, ((0, 0), (1, 2), (1, 1), (0, 0))).reshape(B, LP, Cin)
    wa9 = wa.reshape(9, Cin, Cout)
    wb9 = wb.reshape(9, Cout, Cout)

    # Small constant helper matrices (baked into the executable).
    col = np.arange(NR) % WP
    mask = jnp.asarray((col < W).astype(np.float32).reshape(NR, 1))
    sel = np.zeros((H2 * W2, X), np.float32)
    src = (2 * np.arange(H2)[:, None] * WP + 2 * np.arange(W2)[None, :]).reshape(-1)
    sel[np.arange(H2 * W2), src] = 1.0
    pool = jnp.asarray(sel, dtype=jnp.bfloat16)

    out = pl.pallas_call(
        functools.partial(_stage_kernel, H=H, W=W),
        out_shape=jax.ShapeDtypeStruct((B, H2 * W2, Cout), jnp.bfloat16),
        grid_spec=pltpu.PrefetchScalarGridSpec(
            num_scalar_prefetch=0,
            grid=(B,),
            in_specs=[
                pl.BlockSpec((1, LP, Cin), lambda b: (b, 0, 0)),
                pl.BlockSpec((9, Cin, Cout), lambda b: (0, 0, 0)),
                pl.BlockSpec((1, Cout), lambda b: (0, 0)),
                pl.BlockSpec((9, Cout, Cout), lambda b: (0, 0, 0)),
                pl.BlockSpec((1, Cout), lambda b: (0, 0)),
                pl.BlockSpec((NR, 1), lambda b: (0, 0)),
                pl.BlockSpec((H2 * W2, X), lambda b: (0, 0)),
            ],
            out_specs=pl.BlockSpec((1, H2 * W2, Cout), lambda b: (b, 0, 0)),
            scratch_shapes=[pltpu.VMEM((LP, Cout), jnp.float32)],
        ),
        compiler_params=pltpu.CompilerParams(
            dimension_semantics=("parallel",)),   # grid=(B,) -> both v7x TCs busy
    )(xp, wa9, ba, wb9, bb, mask, pool)
    return out.reshape(B, H2, W2, Cout)


# ------------------------------ fused fc1 + task heads -----------------------------

def _fc_heads_kernel(h_ref, w1_ref, b1_ref, w2_ref, b2_ref, o_ref):
    a = jnp.dot(h_ref[...], w1_ref[...], preferred_element_type=jnp.float32)
    a = jnp.maximum(a + b1_ref[...], 0.0)
    # TODO(synk): drop2 (nn.Dropout(0.5)) is identity in eval mode; not implemented
    # for training.
    a = a.astype(jnp.bfloat16)
    o = jnp.dot(a, w2_ref[...], preferred_element_type=jnp.float32) + b2_ref[...]
    o_ref[...] = o.astype(o_ref.dtype)


def fc_heads(h, w1, b1, w2, b2):
    """relu(h @ w1 + b1) @ w2 + b2 ; heads fused into one lane-dense matmul."""
    B, K1 = h.shape
    N1 = w1.shape[1]
    N2 = w2.shape[1]
    return pl.pallas_call(
        _fc_heads_kernel,
        out_shape=jax.ShapeDtypeStruct((B, N2), jnp.float32),
        grid_spec=pltpu.PrefetchScalarGridSpec(
            num_scalar_prefetch=0,
            grid=(1,),
            in_specs=[
                pl.BlockSpec((B, K1), lambda i: (0, 0)),
                pl.BlockSpec((K1, N1), lambda i: (0, 0)),
                pl.BlockSpec((1, N1), lambda i: (0, 0)),
                pl.BlockSpec((N1, N2), lambda i: (0, 0)),
                pl.BlockSpec((1, N2), lambda i: (0, 0)),
            ],
            out_specs=pl.BlockSpec((B, N2), lambda i: (0, 0)),
        ),
        compiler_params=pltpu.CompilerParams(
            dimension_semantics=("arbitrary",)),
    )(h, w1, b1, w2, b2)


# ----------------------------------- parameters ------------------------------------

def init_params(key, ncha, size, task_info):
    """Synthetic params matching Conv_Net's shapes, stored bf16 (weights) / f32 (biases)."""
    assert size % 8 == 0
    chans = [(ncha, 32), (32, 32), (32, 64), (64, 64), (64, 128), (128, 128)]
    keys = jax.random.split(key, 2 * len(chans) + 2 + len(task_info))
    params = {}
    for i, (cin, cout) in enumerate(chans):
        wscale = 1.0 / np.sqrt(9.0 * cin)
        params[f"w{i+1}"] = (wscale * jax.random.normal(
            keys[2 * i], (3, 3, cin, cout), jnp.float32)).astype(jnp.bfloat16)  # HWIO
        params[f"b{i+1}"] = 0.1 * jax.random.normal(keys[2 * i + 1], (1, cout), jnp.float32)

    s = size // 2 // 2 // 2
    fc_in = s * s * 128
    k0 = 2 * len(chans)
    w_chw = (1.0 / np.sqrt(fc_in)) * jax.random.normal(keys[k0], (fc_in, 256), jnp.float32)
    # One-time row permutation: PyTorch flattens NCHW (c,h,w); our activations flatten
    # NHWC (h,w,c).  Permuting fc1_w once removes the runtime activation transpose.
    w_nhwc = w_chw.reshape(128, s, s, 256).transpose(1, 2, 0, 3).reshape(fc_in, 256)
    params["fc1_w"] = w_nhwc.astype(jnp.bfloat16)
    params["fc1_b"] = 0.1 * jax.random.normal(keys[k0 + 1], (1, 256), jnp.float32)

    # Fused task heads: concat along N, zero-pad N up to a multiple of 128 lanes.
    n_total = sum(n for _t, n in task_info)
    n_pad = int(np.ceil(n_total / 128.0)) * 128
    hw, hb = [], []
    for j, (_t, n) in enumerate(task_info):
        kj = keys[k0 + 2 + j]
        hw.append((1.0 / np.sqrt(256.0)) * jax.random.normal(kj, (256, n), jnp.float32))
        hb.append(0.1 * jax.random.normal(jax.random.fold_in(kj, 1), (1, n), jnp.float32))
    params["heads_w"] = jnp.pad(jnp.concatenate(hw, axis=1),
                                ((0, 0), (0, n_pad - n_total))).astype(jnp.bfloat16)
    params["heads_b"] = jnp.pad(jnp.concatenate(hb, axis=1),
                                ((0, 0), (0, n_pad - n_total)))
    return params


# ------------------------------------- forward -------------------------------------

def conv_net_forward(params, x_nchw, task_info):
    """Replicates Conv_Net.forward (eval mode). Returns a list of per-task logits."""
    B = x_nchw.shape[0]
    h = jnp.transpose(x_nchw, (0, 2, 3, 1)).astype(jnp.bfloat16)   # NCHW -> NHWC, bf16
    h = conv_pool_stage(h, params["w1"], params["b1"], params["w2"], params["b2"])
    h = conv_pool_stage(h, params["w3"], params["b3"], params["w4"], params["b4"])
    h = conv_pool_stage(h, params["w5"], params["b5"], params["w6"], params["b6"])
    hflat = h.reshape(B, -1)                    # NHWC flatten; fc1_w pre-permuted to match
    logits = fc_heads(hflat, params["fc1_w"], params["fc1_b"],
                      params["heads_w"], params["heads_b"])
    ys, off = [], 0
    for _t, n in task_info:
        ys.append(logits[:, off:off + n])
        off += n
    return ys


# -------------------------- pure-JAX reference (same casts) ------------------------

def reference_forward(params, x_nchw, task_info):
    f32 = jnp.float32
    bf16 = jnp.bfloat16

    def conv(h, w, b):
        out = jax.lax.conv_general_dilated(
            h, w.astype(f32), window_strides=(1, 1), padding="SAME",
            dimension_numbers=("NHWC", "HWIO", "NHWC"),
            precision=jax.lax.Precision.HIGHEST)
        return jnp.maximum(out + b.reshape(1, 1, 1, -1), 0.0)

    def pool(h):
        return jnp.maximum(jnp.maximum(h[:, 0::2, 0::2, :], h[:, 0::2, 1::2, :]),
                           jnp.maximum(h[:, 1::2, 0::2, :], h[:, 1::2, 1::2, :]))

    h = jnp.transpose(x_nchw, (0, 2, 3, 1)).astype(bf16).astype(f32)
    for i in (1, 3, 5):
        h = conv(h, params[f"w{i}"], params[f"b{i}"])
        h = h.astype(bf16).astype(f32)          # kernel feeds conv_b with bf16(y1)
        h = conv(h, params[f"w{i+1}"], params[f"b{i+1}"])
        h = pool(h)
        h = h.astype(bf16).astype(f32)          # stage output stored as bf16
    B = x_nchw.shape[0]
    hf = h.reshape(B, -1)
    a = jnp.maximum(hf @ params["fc1_w"].astype(f32) + params["fc1_b"], 0.0)
    a = a.astype(bf16).astype(f32)
    logits = a @ params["heads_w"].astype(f32) + params["heads_b"]
    ys, off = [], 0
    for _t, n in task_info:
        ys.append(logits[:, off:off + n])
        off += n
    return ys


# --------------------------------------- main --------------------------------------

if __name__ == "__main__":
    key = jax.random.PRNGKey(0)
    kx, kp = jax.random.split(key)

    batch, ncha, size = 2, 4, 16
    task_info = [(0, 10), (1, 5)]

    x = jax.random.normal(kx, (batch, ncha, size, size), jnp.float32)   # NCHW
    params = init_params(kp, ncha, size, task_info)

    fwd = jax.jit(functools.partial(conv_net_forward, task_info=task_info))
    ys = fwd(params, x)
    ys = [jax.block_until_ready(y) for y in ys]

    expected = [(batch, n) for _t, n in task_info]
    got = [tuple(y.shape) for y in ys]
    assert got == expected, (got, expected)
    assert all(bool(jnp.isfinite(y).all()) for y in ys)

    ys_ref = reference_forward(params, x, task_info)
    max_diff = max(float(jnp.max(jnp.abs(a.astype(jnp.float32) - b)))
                   for a, b in zip(ys, ys_ref))
    assert max_diff < 5e-2, f"mismatch vs reference: {max_diff}"

    print("KERNEL_OK")
</pallas_src>

<mosaic_0001>
module attributes {stable_mosaic.version = 11 : i64} {
  func.func @_stage_kernel(%arg0: i32, %arg1: memref<1x342x4xbf16, #tpu.memory_space<vmem>>, %arg2: memref<9x4x32xbf16, #tpu.memory_space<vmem>>, %arg3: memref<1x32xf32, #tpu.memory_space<vmem>>, %arg4: memref<9x32x32xbf16, #tpu.memory_space<vmem>>, %arg5: memref<1x32xf32, #tpu.memory_space<vmem>>, %arg6: memref<288x1xf32, #tpu.memory_space<vmem>>, %arg7: memref<64x269xbf16, #tpu.memory_space<vmem>>, %arg8: memref<1x64x32xbf16, #tpu.memory_space<vmem>>, %arg9: memref<342x32xf32, #tpu.memory_space<vmem>>) attributes {dimension_semantics = [#tpu.dimension_semantics<parallel>], iteration_bounds = array<i64: 2>, scalar_prefetch = 0 : i64, scratch_operands = 1 : i64, tpu.core_type = #tpu.core_type<tc>, window_params = [{transform_indices = @transform_0, window_bounds = array<i64: 1, 342, 4>}, {pipeline_mode = #tpu.pipeline_mode<synchronous>, transform_indices = @transform_1, window_bounds = array<i64: 9, 4, 32>}, {pipeline_mode = #tpu.pipeline_mode<synchronous>, transform_indices = @transform_2, window_bounds = array<i64: 1, 32>}, {pipeline_mode = #tpu.pipeline_mode<synchronous>, transform_indices = @transform_3, window_bounds = array<i64: 9, 32, 32>}, {pipeline_mode = #tpu.pipeline_mode<synchronous>, transform_indices = @transform_4, window_bounds = array<i64: 1, 32>}, {pipeline_mode = #tpu.pipeline_mode<synchronous>, transform_indices = @transform_5, window_bounds = array<i64: 288, 1>}, {pipeline_mode = #tpu.pipeline_mode<synchronous>, transform_indices = @transform_6, window_bounds = array<i64: 64, 269>}, {transform_indices = @transform_7, window_bounds = array<i64: 1, 64, 32>}]} {
    %c0 = arith.constant 0 : index
    %c0_0 = arith.constant 0 : index
    %c0_1 = arith.constant 0 : index
    %0 = vector.load %arg1[%c0, %c0_0, %c0_1] : memref<1x342x4xbf16, #tpu.memory_space<vmem>>, vector<1x342x4xbf16>
    %1 = vector.shape_cast %0 : vector<1x342x4xbf16> to vector<342x4xbf16>
    %2 = arith.extf %1 : vector<342x4xbf16> to vector<342x4xf32>
    %cst = arith.constant 0.000000e+00 : f32
    %3 = vector.broadcast %cst : f32 to vector<288x32xf32>
    %4 = vector.extract_strided_slice %2 {offsets = [0, 0], sizes = [288, 4], strides = [1, 1]} : vector<342x4xf32> to vector<288x4xf32>
    %5 = arith.truncf %4 : vector<288x4xf32> to vector<288x4xbf16>
    %c0_2 = arith.constant 0 : index
    %c0_3 = arith.constant 0 : index
    %c0_4 = arith.constant 0 : index
    %6 = vector.load %arg2[%c0_2, %c0_3, %c0_4] : memref<9x4x32xbf16, #tpu.memory_space<vmem>>, vector<1x4x32xbf16>
    %7 = vector.shape_cast %6 : vector<1x4x32xbf16> to vector<4x32xbf16>
    %cst_5 = arith.constant dense<0.000000e+00> : vector<288x32xf32>
    %8 = tpu.matmul %5, %7, %cst_5 {dimension_numbers = #tpu.dot_dimension_numbers<[1], [0], [0], [1], [0, 0, 1, 1], [], []>} : vector<288x4xbf16>, vector<4x32xbf16>, vector<288x32xf32> -> vector<288x32xf32>
    %9 = arith.addf %3, %8 : vector<288x32xf32>
    %10 = vector.extract_strided_slice %2 {offsets = [1, 0], sizes = [288, 4], strides = [1, 1]} : vector<342x4xf32> to vector<288x4xf32>
    %11 = arith.truncf %10 : vector<288x4xf32> to vector<288x4xbf16>
    %c1 = arith.constant 1 : index
    %c0_6 = arith.constant 0 : index
    %c0_7 = arith.constant 0 : index
    %12 = vector.load %arg2[%c1, %c0_6, %c0_7] : memref<9x4x32xbf16, #tpu.memory_space<vmem>>, vector<1x4x32xbf16>
    %13 = vector.shape_cast %12 : vector<1x4x32xbf16> to vector<4x32xbf16>
    %cst_8 = arith.constant dense<0.000000e+00> : vector<288x32xf32>
    %14 = tpu.matmul %11, %13, %cst_8 {dimension_numbers = #tpu.dot_dimension_numbers<[1], [0], [0], [1], [0, 0, 1, 1], [], []>} : vector<288x4xbf16>, vector<4x32xbf16>, vector<288x32xf32> -> vector<288x32xf32>
    %15 = arith.addf %9, %14 : vector<288x32xf32>
    %16 = vector.extract_strided_slice %2 {offsets = [2, 0], sizes = [288, 4], strides = [1, 1]} : vector<342x4xf32> to vector<288x4xf32>
    %17 = arith.truncf %16 : vector<288x4xf32> to vector<288x4xbf16>
    %c2 = arith.constant 2 : index
    %c0_9 = arith.constant 0 : index
    %c0_10 = arith.constant 0 : index
    %18 = vector.load %arg2[%c2, %c0_9, %c0_10] : memref<9x4x32xbf16, #tpu.memory_space<vmem>>, vector<1x4x32xbf16>
    %19 = vector.shape_cast %18 : vector<1x4x32xbf16> to vector<4x32xbf16>
    %cst_11 = arith.constant dense<0.000000e+00> : vector<288x32xf32>
    %20 = tpu.matmul %17, %19, %cst_11 {dimension_numbers = #tpu.dot_dimension_numbers<[1], [0], [0], [1], [0, 0, 1, 1], [], []>} : vector<288x4xbf16>, vector<4x32xbf16>, vector<288x32xf32> -> vector<288x32xf32>
    %21 = arith.addf %15, %20 : vector<288x32xf32>
    %22 = vector.extract_strided_slice %2 {offsets = [18, 0], sizes = [288, 4], strides = [1, 1]} : vector<342x4xf32> to vector<288x4xf32>
    %23 = arith.truncf %22 : vector<288x4xf32> to vector<288x4xbf16>
    %c3 = arith.constant 3 : index
    %c0_12 = arith.constant 0 : index
    %c0_13 = arith.constant 0 : index
    %24 = vector.load %arg2[%c3, %c0_12, %c0_13] : memref<9x4x32xbf16, #tpu.memory_space<vmem>>, vector<1x4x32xbf16>
    %25 = vector.shape_cast %24 : vector<1x4x32xbf16> to vector<4x32xbf16>
    %cst_14 = arith.constant dense<0.000000e+00> : vector<288x32xf32>
    %26 = tpu.matmul %23, %25, %cst_14 {dimension_numbers = #tpu.dot_dimension_numbers<[1], [0], [0], [1], [0, 0, 1, 1], [], []>} : vector<288x4xbf16>, vector<4x32xbf16>, vector<288x32xf32> -> vector<288x32xf32>
    %27 = arith.addf %21, %26 : vector<288x32xf32>
    %28 = vector.extract_strided_slice %2 {offsets = [19, 0], sizes = [288, 4], strides = [1, 1]} : vector<342x4xf32> to vector<288x4xf32>
    %29 = arith.truncf %28 : vector<288x4xf32> to vector<288x4xbf16>
    %c4 = arith.constant 4 : index
    %c0_15 = arith.constant 0 : index
    %c0_16 = arith.constant 0 : index
    %30 = vector.load %arg2[%c4, %c0_15, %c0_16] : memref<9x4x32xbf16, #tpu.memory_space<vmem>>, vector<1x4x32xbf16>
    %31 = vector.shape_cast %30 : vector<1x4x32xbf16> to vector<4x32xbf16>
    %cst_17 = arith.constant dense<0.000000e+00> : vector<288x32xf32>
    %32 = tpu.matmul %29, %31, %cst_17 {dimension_numbers = #tpu.dot_dimension_numbers<[1], [0], [0], [1], [0, 0, 1, 1], [], []>} : vector<288x4xbf16>, vector<4x32xbf16>, vector<288x32xf32> -> vector<288x32xf32>
    %33 = arith.addf %27, %32 : vector<288x32xf32>
    %34 = vector.extract_strided_slice %2 {offsets = [20, 0], sizes = [288, 4], strides = [1, 1]} : vector<342x4xf32> to vector<288x4xf32>
    %35 = arith.truncf %34 : vector<288x4xf32> to vector<288x4xbf16>
    %c5 = arith.constant 5 : index
    %c0_18 = arith.constant 0 : index
    %c0_19 = arith.constant 0 : index
    %36 = vector.load %arg2[%c5, %c0_18, %c0_19] : memref<9x4x32xbf16, #tpu.memory_space<vmem>>, vector<1x4x32xbf16>
    %37 = vector.shape_cast %36 : vector<1x4x32xbf16> to vector<4x32xbf16>
    %cst_20 = arith.constant dense<0.000000e+00> : vector<288x32xf32>
    %38 = tpu.matmul %35, %37, %cst_20 {dimension_numbers = #tpu.dot_dimension_numbers<[1], [0], [0], [1], [0, 0, 1, 1], [], []>} : vector<288x4xbf16>, vector<4x32xbf16>, vector<288x32xf32> -> vector<288x32xf32>
    %39 = arith.addf %33, %38 : vector<288x32xf32>
    %40 = vector.extract_strided_slice %2 {offsets = [36, 0], sizes = [288, 4], strides = [1, 1]} : vector<342x4xf32> to vector<288x4xf32>
    %41 = arith.truncf %40 : vector<288x4xf32> to vector<288x4xbf16>
    %c6 = arith.constant 6 : index
    %c0_21 = arith.constant 0 : index
    %c0_22 = arith.constant 0 : index
    %42 = vector.load %arg2[%c6, %c0_21, %c0_22] : memref<9x4x32xbf16, #tpu.memory_space<vmem>>, vector<1x4x32xbf16>
    %43 = vector.shape_cast %42 : vector<1x4x32xbf16> to vector<4x32xbf16>
    %cst_23 = arith.constant dense<0.000000e+00> : vector<288x32xf32>
    %44 = tpu.matmul %41, %43, %cst_23 {dimension_numbers = #tpu.dot_dimension_numbers<[1], [0], [0], [1], [0, 0, 1, 1], [], []>} : vector<288x4xbf16>, vector<4x32xbf16>, vector<288x32xf32> -> vector<288x32xf32>
    %45 = arith.addf %39, %44 : vector<288x32xf32>
    %46 = vector.extract_strided_slice %2 {offsets = [37, 0], sizes = [288, 4], strides = [1, 1]} : vector<342x4xf32> to vector<288x4xf32>
    %47 = arith.truncf %46 : vector<288x4xf32> to vector<288x4xbf16>
    %c7 = arith.constant 7 : index
    %c0_24 = arith.constant 0 : index
    %c0_25 = arith.constant 0 : index
    %48 = vector.load %arg2[%c7, %c0_24, %c0_25] : memref<9x4x32xbf16, #tpu.memory_space<vmem>>, vector<1x4x32xbf16>
    %49 = vector.shape_cast %48 : vector<1x4x32xbf16> to vector<4x32xbf16>
    %cst_26 = arith.constant dense<0.000000e+00> : vector<288x32xf32>
    %50 = tpu.matmul %47, %49, %cst_26 {dimension_numbers = #tpu.dot_dimension_numbers<[1], [0], [0], [1], [0, 0, 1, 1], [], []>} : vector<288x4xbf16>, vector<4x32xbf16>, vector<288x32xf32> -> vector<288x32xf32>
    %51 = arith.addf %45, %50 : vector<288x32xf32>
    %52 = vector.extract_strided_slice %2 {offsets = [38, 0], sizes = [288, 4], strides = [1, 1]} : vector<342x4xf32> to vector<288x4xf32>
    %53 = arith.truncf %52 : vector<288x4xf32> to vector<288x4xbf16>
    %c8 = arith.constant 8 : index
    %c0_27 = arith.constant 0 : index
    %c0_28 = arith.constant 0 : index
    %54 = vector.load %arg2[%c8, %c0_27, %c0_28] : memref<9x4x32xbf16, #tpu.memory_space<vmem>>, vector<1x4x32xbf16>
    %55 = vector.shape_cast %54 : vector<1x4x32xbf16> to vector<4x32xbf16>
    %cst_29 = arith.constant dense<0.000000e+00> : vector<288x32xf32>
    %56 = tpu.matmul %53, %55, %cst_29 {dimension_numbers = #tpu.dot_dimension_numbers<[1], [0], [0], [1], [0, 0, 1, 1], [], []>} : vector<288x4xbf16>, vector<4x32xbf16>, vector<288x32xf32> -> vector<288x32xf32>
    %57 = arith.addf %51, %56 : vector<288x32xf32>
    %c0_30 = arith.constant 0 : index
    %c0_31 = arith.constant 0 : index
    %58 = vector.load %arg3[%c0_30, %c0_31] : memref<1x32xf32, #tpu.memory_space<vmem>>, vector<1x32xf32>
    %59 = vector.broadcast %58 : vector<1x32xf32> to vector<288x32xf32>
    %60 = arith.addf %57, %59 : vector<288x32xf32>
    %cst_32 = arith.constant 0.000000e+00 : f32
    %61 = vector.broadcast %cst_32 : f32 to vector<288x32xf32>
    %62 = arith.maximumf %60, %61 : vector<288x32xf32>
    %c0_33 = arith.constant 0 : index
    %c0_34 = arith.constant 0 : index
    %63 = vector.load %arg6[%c0_33, %c0_34] : memref<288x1xf32, #tpu.memory_space<vmem>>, vector<288x1xf32>
    %64 = vector.broadcast %63 : vector<288x1xf32> to vector<288x32xf32>
    %65 = arith.mulf %62, %64 : vector<288x32xf32>
    %cst_35 = arith.constant 0.000000e+00 : f32
    %66 = vector.broadcast %cst_35 : f32 to vector<342x32xf32>
    %c0_36 = arith.constant 0 : index
    %c0_37 = arith.constant 0 : index
    %67 = vector.load %arg9[%c0_36, %c0_37] : memref<342x32xf32, #tpu.memory_space<vmem>>, vector<342x32xf32>
    tpu.vector_store %arg9[%c0_36, %c0_37], %66 {strides = array<i32>} : memref<342x32xf32, #tpu.memory_space<vmem>>, vector<342x32xf32>,
    %c19 = arith.constant 19 : index
    %c0_38 = arith.constant 0 : index
    %68 = vector.load %arg9[%c19, %c0_38] : memref<342x32xf32, #tpu.memory_space<vmem>>, vector<288x32xf32>
    tpu.vector_store %arg9[%c19, %c0_38], %65 {strides = array<i32>} : memref<342x32xf32, #tpu.memory_space<vmem>>, vector<288x32xf32>,
    %c0_39 = arith.constant 0 : index
    %c0_40 = arith.constant 0 : index
    %69 = vector.load %arg9[%c0_39, %c0_40] : memref<342x32xf32, #tpu.memory_space<vmem>>, vector<342x32xf32>
    %cst_41 = arith.constant 0.000000e+00 : f32
    %70 = vector.broadcast %cst_41 : f32 to vector<288x32xf32>
    %71 = vector.extract_strided_slice %69 {offsets = [0, 0], sizes = [288, 32], strides = [1, 1]} : vector<342x32xf32> to vector<288x32xf32>
    %72 = arith.truncf %71 : vector<288x32xf32> to vector<288x32xbf16>
    %c0_42 = arith.constant 0 : index
    %c0_43 = arith.constant 0 : index
    %c0_44 = arith.constant 0 : index
    %73 = vector.load %arg4[%c0_42, %c0_43, %c0_44] : memref<9x32x32xbf16, #tpu.memory_space<vmem>>, vector<1x32x32xbf16>
    %74 = vector.shape_cast %73 : vector<1x32x32xbf16> to vector<32x32xbf16>
    %cst_45 = arith.constant dense<0.000000e+00> : vector<288x32xf32>
    %75 = tpu.matmul %72, %74, %cst_45 {dimension_numbers = #tpu.dot_dimension_numbers<[1], [0], [0], [1], [0, 0, 1, 1], [], []>} : vector<288x32xbf16>, vector<32x32xbf16>, vector<288x32xf32> -> vector<288x32xf32>
    %76 = arith.addf %70, %75 : vector<288x32xf32>
    %77 = vector.extract_strided_slice %69 {offsets = [1, 0], sizes = [288, 32], strides = [1, 1]} : vector<342x32xf32> to vector<288x32xf32>
    %78 = arith.truncf %77 : vector<288x32xf32> to vector<288x32xbf16>
    %c1_46 = arith.constant 1 : index
    %c0_47 = arith.constant 0 : index
    %c0_48 = arith.constant 0 : index
    %79 = vector.load %arg4[%c1_46, %c0_47, %c0_48] : memref<9x32x32xbf16, #tpu.memory_space<vmem>>, vector<1x32x32xbf16>
    %80 = vector.shape_cast %79 : vector<1x32x32xbf16> to vector<32x32xbf16>
    %cst_49 = arith.constant dense<0.000000e+00> : vector<288x32xf32>
    %81 = tpu.matmul %78, %80, %cst_49 {dimension_numbers = #tpu.dot_dimension_numbers<[1], [0], [0], [1], [0, 0, 1, 1], [], []>} : vector<288x32xbf16>, vector<32x32xbf16>, vector<288x32xf32> -> vector<288x32xf32>
    %82 = arith.addf %76, %81 : vector<288x32xf32>
    %83 = vector.extract_strided_slice %69 {offsets = [2, 0], sizes = [288, 32], strides = [1, 1]} : vector<342x32xf32> to vector<288x32xf32>
    %84 = arith.truncf %83 : vector<288x32xf32> to vector<288x32xbf16>
    %c2_50 = arith.constant 2 : index
    %c0_51 = arith.constant 0 : index
    %c0_52 = arith.constant 0 : index
    %85 = vector.load %arg4[%c2_50, %c0_51, %c0_52] : memref<9x32x32xbf16, #tpu.memory_space<vmem>>, vector<1x32x32xbf16>
    %86 = vector.shape_cast %85 : vector<1x32x32xbf16> to vector<32x32xbf16>
    %cst_53 = arith.constant dense<0.000000e+00> : vector<288x32xf32>
    %87 = tpu.matmul %84, %86, %cst_53 {dimension_numbers = #tpu.dot_dimension_numbers<[1], [0], [0], [1], [0, 0, 1, 1], [], []>} : vector<288x32xbf16>, vector<32x32xbf16>, vector<288x32xf32> -> vector<288x32xf32>
    %88 = arith.addf %82, %87 : vector<288x32xf32>
    %89 = vector.extract_strided_slice %69 {offsets = [18, 0], sizes = [288, 32], strides = [1, 1]} : vector<342x32xf32> to vector<288x32xf32>
    %90 = arith.truncf %89 : vector<288x32xf32> to vector<288x32xbf16>
    %c3_54 = arith.constant 3 : index
    %c0_55 = arith.constant 0 : index
    %c0_56 = arith.constant 0 : index
    %91 = vector.load %arg4[%c3_54, %c0_55, %c0_56] : memref<9x32x32xbf16, #tpu.memory_space<vmem>>, vector<1x32x32xbf16>
    %92 = vector.shape_cast %91 : vector<1x32x32xbf16> to vector<32x32xbf16>
    %cst_57 = arith.constant dense<0.000000e+00> : vector<288x32xf32>
    %93 = tpu.matmul %90, %92, %cst_57 {dimension_numbers = #tpu.dot_dimension_numbers<[1], [0], [0], [1], [0, 0, 1, 1], [], []>} : vector<288x32xbf16>, vector<32x32xbf16>, vector<288x32xf32> -> vector<288x32xf32>
    %94 = arith.addf %88, %93 : vector<288x32xf32>
    %95 = vector.extract_strided_slice %69 {offsets = [19, 0], sizes = [288, 32], strides = [1, 1]} : vector<342x32xf32> to vector<288x32xf32>
    %96 = arith.truncf %95 : vector<288x32xf32> to vector<288x32xbf16>
    %c4_58 = arith.constant 4 : index
    %c0_59 = arith.constant 0 : index
    %c0_60 = arith.constant 0 : index
    %97 = vector.load %arg4[%c4_58, %c0_59, %c0_60] : memref<9x32x32xbf16, #tpu.memory_space<vmem>>, vector<1x32x32xbf16>
    %98 = vector.shape_cast %97 : vector<1x32x32xbf16> to vector<32x32xbf16>
    %cst_61 = arith.constant dense<0.000000e+00> : vector<288x32xf32>
    %99 = tpu.matmul %96, %98, %cst_61 {dimension_numbers = #tpu.dot_dimension_numbers<[1], [0], [0], [1], [0, 0, 1, 1], [], []>} : vector<288x32xbf16>, vector<32x32xbf16>, vector<288x32xf32> -> vector<288x32xf32>
    %100 = arith.addf %94, %99 : vector<288x32xf32>
    %101 = vector.extract_strided_slice %69 {offsets = [20, 0], sizes = [288, 32], strides = [1, 1]} : vector<342x32xf32> to vector<288x32xf32>
    %102 = arith.truncf %101 : vector<288x32xf32> to vector<288x32xbf16>
    %c5_62 = arith.constant 5 : index
    %c0_63 = arith.constant 0 : index
    %c0_64 = arith.constant 0 : index
    %103 = vector.load %arg4[%c5_62, %c0_63, %c0_64] : memref<9x32x32xbf16, #tpu.memory_space<vmem>>, vector<1x32x32xbf16>
    %104 = vector.shape_cast %103 : vector<1x32x32xbf16> to vector<32x32xbf16>
    %cst_65 = arith.constant dense<0.000000e+00> : vector<288x32xf32>
    %105 = tpu.matmul %102, %104, %cst_65 {dimension_numbers = #tpu.dot_dimension_numbers<[1], [0], [0], [1], [0, 0, 1, 1], [], []>} : vector<288x32xbf16>, vector<32x32xbf16>, vector<288x32xf32> -> vector<288x32xf32>
    %106 = arith.addf %100, %105 : vector<288x32xf32>
    %107 = vector.extract_strided_slice %69 {offsets = [36, 0], sizes = [288, 32], strides = [1, 1]} : vector<342x32xf32> to vector<288x32xf32>
    %108 = arith.truncf %107 : vector<288x32xf32> to vector<288x32xbf16>
    %c6_66 = arith.constant 6 : index
    %c0_67 = arith.constant 0 : index
    %c0_68 = arith.constant 0 : index
    %109 = vector.load %arg4[%c6_66, %c0_67, %c0_68] : memref<9x32x32xbf16, #tpu.memory_space<vmem>>, vector<1x32x32xbf16>
    %110 = vector.shape_cast %109 : vector<1x32x32xbf16> to vector<32x32xbf16>
    %cst_69 = arith.constant dense<0.000000e+00> : vector<288x32xf32>
    %111 = tpu.matmul %108, %110, %cst_69 {dimension_numbers = #tpu.dot_dimension_numbers<[1], [0], [0], [1], [0, 0, 1, 1], [], []>} : vector<288x32xbf16>, vector<32x32xbf16>, vector<288x32xf32> -> vector<288x32xf32>
    %112 = arith.addf %106, %111 : vector<288x32xf32>
    %113 = vector.extract_strided_slice %69 {offsets = [37, 0], sizes = [288, 32], strides = [1, 1]} : vector<342x32xf32> to vector<288x32xf32>
    %114 = arith.truncf %113 : vector<288x32xf32> to vector<288x32xbf16>
    %c7_70 = arith.constant 7 : index
    %c0_71 = arith.constant 0 : index
    %c0_72 = arith.constant 0 : index
    %115 = vector.load %arg4[%c7_70, %c0_71, %c0_72] : memref<9x32x32xbf16, #tpu.memory_space<vmem>>, vector<1x32x32xbf16>
    %116 = vector.shape_cast %115 : vector<1x32x32xbf16> to vector<32x32xbf16>
    %cst_73 = arith.constant dense<0.000000e+00> : vector<288x32xf32>
    %117 = tpu.matmul %114, %116, %cst_73 {dimension_numbers = #tpu.dot_dimension_numbers<[1], [0], [0], [1], [0, 0, 1, 1], [], []>} : vector<288x32xbf16>, vector<32x32xbf16>, vector<288x32xf32> -> vector<288x32xf32>
    %118 = arith.addf %112, %117 : vector<288x32xf32>
    %119 = vector.extract_strided_slice %69 {offsets = [38, 0], sizes = [288, 32], strides = [1, 1]} : vector<342x32xf32> to vector<288x32xf32>
    %120 = arith.truncf %119 : vector<288x32xf32> to vector<288x32xbf16>
    %c8_74 = arith.constant 8 : index
    %c0_75 = arith.constant 0 : index
    %c0_76 = arith.constant 0 : index
    %121 = vector.load %arg4[%c8_74, %c0_75, %c0_76] : memref<9x32x32xbf16, #tpu.memory_space<vmem>>, vector<1x32x32xbf16>
    %122 = vector.shape_cast %121 : vector<1x32x32xbf16> to vector<32x32xbf16>
    %cst_77 = arith.constant dense<0.000000e+00> : vector<288x32xf32>
    %123 = tpu.matmul %120, %122, %cst_77 {dimension_numbers = #tpu.dot_dimension_numbers<[1], [0], [0], [1], [0, 0, 1, 1], [], []>} : vector<288x32xbf16>, vector<32x32xbf16>, vector<288x32xf32> -> vector<288x32xf32>
    %124 = arith.addf %118, %123 : vector<288x32xf32>
    %c0_78 = arith.constant 0 : index
    %c0_79 = arith.constant 0 : index
    %125 = vector.load %arg5[%c0_78, %c0_79] : memref<1x32xf32, #tpu.memory_space<vmem>>, vector<1x32xf32>
    %126 = vector.broadcast %125 : vector<1x32xf32> to vector<288x32xf32>
    %127 = arith.addf %124, %126 : vector<288x32xf32>
    %cst_80 = arith.constant 0.000000e+00 : f32
    %128 = vector.broadcast %cst_80 : f32 to vector<288x32xf32>
    %129 = arith.maximumf %127, %128 : vector<288x32xf32>
    %130 = vector.extract_strided_slice %129 {offsets = [0, 0], sizes = [269, 32], strides = [1, 1]} : vector<288x32xf32> to vector<269x32xf32>
    %131 = vector.extract_strided_slice %129 {offsets = [1, 0], sizes = [269, 32], strides = [1, 1]} : vector<288x32xf32> to vector<269x32xf32>
    %132 = arith.maximumf %130, %131 : vector<269x32xf32>
    %133 = vector.extract_strided_slice %129 {offsets = [18, 0], sizes = [269, 32], strides = [1, 1]} : vector<288x32xf32> to vector<269x32xf32>
    %134 = vector.extract_strided_slice %129 {offsets = [19, 0], sizes = [269, 32], strides = [1, 1]} : vector<288x32xf32> to vector<269x32xf32>
    %135 = arith.maximumf %133, %134 : vector<269x32xf32>
    %136 = arith.maximumf %132, %135 : vector<269x32xf32>
    %c0_81 = arith.constant 0 : index
    %c0_82 = arith.constant 0 : index
    %137 = vector.load %arg7[%c0_81, %c0_82] : memref<64x269xbf16, #tpu.memory_space<vmem>>, vector<64x269xbf16>
    %138 = arith.truncf %136 : vector<269x32xf32> to vector<269x32xbf16>
    %cst_83 = arith.constant dense<0.000000e+00> : vector<64x32xf32>
    %139 = tpu.matmul %137, %138, %cst_83 {dimension_numbers = #tpu.dot_dimension_numbers<[1], [0], [0], [1], [0, 0, 1, 1], [], []>} : vector<64x269xbf16>, vector<269x32xbf16>, vector<64x32xf32> -> vector<64x32xf32>
    %140 = arith.truncf %139 : vector<64x32xf32> to vector<64x32xbf16>
    %c0_84 = arith.constant 0 : index
    %c0_85 = arith.constant 0 : index
    %c0_86 = arith.constant 0 : index
    %141 = vector.load %arg8[%c0_84, %c0_85, %c0_86] : memref<1x64x32xbf16, #tpu.memory_space<vmem>>, vector<1x64x32xbf16>
    %142 = vector.shape_cast %141 : vector<1x64x32xbf16> to vector<64x32xbf16>
    %143 = vector.shape_cast %140 : vector<64x32xbf16> to vector<1x64x32xbf16>
    tpu.vector_store %arg8[%c0_84, %c0_85, %c0_86], %143 {strides = array<i32>} : memref<1x64x32xbf16, #tpu.memory_space<vmem>>, vector<1x64x32xbf16>,
    return
  }
  func.func @transform_0(%arg0: i32) -> (i32, i32, i32) {
    %c0_i32 = arith.constant 0 : i32
    %c0_i32_0 = arith.constant 0 : i32
    %c0_i32_1 = arith.constant 0 : i32
    return %arg0, %c0_i32, %c0_i32_0 : i32, i32, i32
  }
  func.func @transform_1(%arg0: i32) -> (i32, i32, i32) {
    %c0_i32 = arith.constant 0 : i32
    %c0_i32_0 = arith.constant 0 : i32
    %c0_i32_1 = arith.constant 0 : i32
    %c0_i32_2 = arith.constant 0 : i32
    return %c0_i32, %c0_i32_0, %c0_i32_1 : i32, i32, i32
  }
  func.func @transform_2(%arg0: i32) -> (i32, i32) {
    %c0_i32 = arith.constant 0 : i32
    %c0_i32_0 = arith.constant 0 : i32
    %c0_i32_1 = arith.constant 0 : i32
    return %c0_i32, %c0_i32_0 : i32, i32
  }
  func.func @transform_3(%arg0: i32) -> (i32, i32, i32) {
    %c0_i32 = arith.constant 0 : i32
    %c0_i32_0 = arith.constant 0 : i32
    %c0_i32_1 = arith.constant 0 : i32
    %c0_i32_2 = arith.constant 0 : i32
    return %c0_i32, %c0_i32_0, %c0_i32_1 : i32, i32, i32
  }
  func.func @transform_4(%arg0: i32) -> (i32, i32) {
    %c0_i32 = arith.constant 0 : i32
    %c0_i32_0 = arith.constant 0 : i32
    %c0_i32_1 = arith.constant 0 : i32
    return %c0_i32, %c0_i32_0 : i32, i32
  }
  func.func @transform_5(%arg0: i32) -> (i32, i32) {
    %c0_i32 = arith.constant 0 : i32
    %c0_i32_0 = arith.constant 0 : i32
    %c0_i32_1 = arith.constant 0 : i32
    return %c0_i32, %c0_i32_0 : i32, i32
  }
  func.func @transform_6(%arg0: i32) -> (i32, i32) {
    %c0_i32 = arith.constant 0 : i32
    %c0_i32_0 = arith.constant 0 : i32
    %c0_i32_1 = arith.constant 0 : i32
    return %c0_i32, %c0_i32_0 : i32, i32
  }
  func.func @transform_7(%arg0: i32) -> (i32, i32, i32) {
    %c0_i32 = arith.constant 0 : i32
    %c0_i32_0 = arith.constant 0 : i32
    %c0_i32_1 = arith.constant 0 : i32
    return %arg0, %c0_i32, %c0_i32_0 : i32, i32, i32
  }
}

module attributes {stable_mosaic.version = 11 : i64} {
  func.func @_stage_kernel(%arg0: i32, %arg1: memref<1x110x32xbf16, #tpu.memory_space<vmem>>, %arg2: memref<9x32x64xbf16, #tpu.memory_space<vmem>>, %arg3: memref<1x64xf32, #tpu.memory_space<vmem>>, %arg4: memref<9x64x64xbf16, #tpu.memory_space<vmem>>, %arg5: memref<1x64xf32, #tpu.memory_space<vmem>>, %arg6: memref<80x1xf32, #tpu.memory_space<vmem>>, %arg7: memref<16x69xbf16, #tpu.memory_space<vmem>>, %arg8: memref<1x16x64xbf16, #tpu.memory_space<vmem>>, %arg9: memref<110x64xf32, #tpu.memory_space<vmem>>) attributes {dimension_semantics = [#tpu.dimension_semantics<parallel>], iteration_bounds = array<i64: 2>, scalar_prefetch = 0 : i64, scratch_operands = 1 : i64, tpu.core_type = #tpu.core_type<tc>, window_params = [{transform_indices = @transform_0, window_bounds = array<i64: 1, 110, 32>}, {pipeline_mode = #tpu.pipeline_mode<synchronous>, transform_indices = @transform_1, window_bounds = array<i64: 9, 32, 64>}, {pipeline_mode = #tpu.pipeline_mode<synchronous>, transform_indices = @transform_2, window_bounds = array<i64: 1, 64>}, {pipeline_mode = #tpu.pipeline_mode<synchronous>, transform_indices = @transform_3, window_bounds = array<i64: 9, 64, 64>}, {pipeline_mode = #tpu.pipeline_mode<synchronous>, transform_indices = @transform_4, window_bounds = array<i64: 1, 64>}, {pipeline_mode = #tpu.pipeline_mode<synchronous>, transform_indices = @transform_5, window_bounds = array<i64: 80, 1>}, {pipeline_mode = #tpu.pipeline_mode<synchronous>, transform_indices = @transform_6, window_bounds = array<i64: 16, 69>}, {transform_indices = @transform_7, window_bounds = array<i64: 1, 16, 64>}]} {
    %c0 = arith.constant 0 : index
    %c0_0 = arith.constant 0 : index
    %c0_1 = arith.constant 0 : index
    %0 = vector.load %arg1[%c0, %c0_0, %c0_1] : memref<1x110x32xbf16, #tpu.memory_space<vmem>>, vector<1x110x32xbf16>
    %1 = vector.shape_cast %0 : vector<1x110x32xbf16> to vector<110x32xbf16>
    %2 = arith.extf %1 : vector<110x32xbf16> to vector<110x32xf32>
    %cst = arith.constant 0.000000e+00 : f32
    %3 = vector.broadcast %cst : f32 to vector<80x64xf32>
    %4 = vector.extract_strided_slice %2 {offsets = [0, 0], sizes = [80, 32], strides = [1, 1]} : vector<110x32xf32> to vector<80x32xf32>
    %5 = arith.truncf %4 : vector<80x32xf32> to vector<80x32xbf16>
    %c0_2 = arith.constant 0 : index
    %c0_3 = arith.constant 0 : index
    %c0_4 = arith.constant 0 : index
    %6 = vector.load %arg2[%c0_2, %c0_3, %c0_4] : memref<9x32x64xbf16, #tpu.memory_space<vmem>>, vector<1x32x64xbf16>
    %7 = vector.shape_cast %6 : vector<1x32x64xbf16> to vector<32x64xbf16>
    %cst_5 = arith.constant dense<0.000000e+00> : vector<80x64xf32>
    %8 = tpu.matmul %5, %7, %cst_5 {dimension_numbers = #tpu.dot_dimension_numbers<[1], [0], [0], [1], [0, 0, 1, 1], [], []>} : vector<80x32xbf16>, vector<32x64xbf16>, vector<80x64xf32> -> vector<80x64xf32>
    %9 = arith.addf %3, %8 : vector<80x64xf32>
    %10 = vector.extract_strided_slice %2 {offsets = [1, 0], sizes = [80, 32], strides = [1, 1]} : vector<110x32xf32> to vector<80x32xf32>
    %11 = arith.truncf %10 : vector<80x32xf32> to vector<80x32xbf16>
    %c1 = arith.constant 1 : index
    %c0_6 = arith.constant 0 : index
    %c0_7 = arith.constant 0 : index
    %12 = vector.load %arg2[%c1, %c0_6, %c0_7] : memref<9x32x64xbf16, #tpu.memory_space<vmem>>, vector<1x32x64xbf16>
    %13 = vector.shape_cast %12 : vector<1x32x64xbf16> to vector<32x64xbf16>
    %cst_8 = arith.constant dense<0.000000e+00> : vector<80x64xf32>
    %14 = tpu.matmul %11, %13, %cst_8 {dimension_numbers = #tpu.dot_dimension_numbers<[1], [0], [0], [1], [0, 0, 1, 1], [], []>} : vector<80x32xbf16>, vector<32x64xbf16>, vector<80x64xf32> -> vector<80x64xf32>
    %15 = arith.addf %9, %14 : vector<80x64xf32>
    %16 = vector.extract_strided_slice %2 {offsets = [2, 0], sizes = [80, 32], strides = [1, 1]} : vector<110x32xf32> to vector<80x32xf32>
    %17 = arith.truncf %16 : vector<80x32xf32> to vector<80x32xbf16>
    %c2 = arith.constant 2 : index
    %c0_9 = arith.constant 0 : index
    %c0_10 = arith.constant 0 : index
    %18 = vector.load %arg2[%c2, %c0_9, %c0_10] : memref<9x32x64xbf16, #tpu.memory_space<vmem>>, vector<1x32x64xbf16>
    %19 = vector.shape_cast %18 : vector<1x32x64xbf16> to vector<32x64xbf16>
    %cst_11 = arith.constant dense<0.000000e+00> : vector<80x64xf32>
    %20 = tpu.matmul %17, %19, %cst_11 {dimension_numbers = #tpu.dot_dimension_numbers<[1], [0], [0], [1], [0, 0, 1, 1], [], []>} : vector<80x32xbf16>, vector<32x64xbf16>, vector<80x64xf32> -> vector<80x64xf32>
    %21 = arith.addf %15, %20 : vector<80x64xf32>
    %22 = vector.extract_strided_slice %2 {offsets = [10, 0], sizes = [80, 32], strides = [1, 1]} : vector<110x32xf32> to vector<80x32xf32>
    %23 = arith.truncf %22 : vector<80x32xf32> to vector<80x32xbf16>
    %c3 = arith.constant 3 : index
    %c0_12 = arith.constant 0 : index
    %c0_13 = arith.constant 0 : index
    %24 = vector.load %arg2[%c3, %c0_12, %c0_13] : memref<9x32x64xbf16, #tpu.memory_space<vmem>>, vector<1x32x64xbf16>
    %25 = vector.shape_cast %24 : vector<1x32x64xbf16> to vector<32x64xbf16>
    %cst_14 = arith.constant dense<0.000000e+00> : vector<80x64xf32>
    %26 = tpu.matmul %23, %25, %cst_14 {dimension_numbers = #tpu.dot_dimension_numbers<[1], [0], [0], [1], [0, 0, 1, 1], [], []>} : vector<80x32xbf16>, vector<32x64xbf16>, vector<80x64xf32> -> vector<80x64xf32>
    %27 = arith.addf %21, %26 : vector<80x64xf32>
    %28 = vector.extract_strided_slice %2 {offsets = [11, 0], sizes = [80, 32], strides = [1, 1]} : vector<110x32xf32> to vector<80x32xf32>
    %29 = arith.truncf %28 : vector<80x32xf32> to vector<80x32xbf16>
    %c4 = arith.constant 4 : index
    %c0_15 = arith.constant 0 : index
    %c0_16 = arith.constant 0 : index
    %30 = vector.load %arg2[%c4, %c0_15, %c0_16] : memref<9x32x64xbf16, #tpu.memory_space<vmem>>, vector<1x32x64xbf16>
    %31 = vector.shape_cast %30 : vector<1x32x64xbf16> to vector<32x64xbf16>
    %cst_17 = arith.constant dense<0.000000e+00> : vector<80x64xf32>
    %32 = tpu.matmul %29, %31, %cst_17 {dimension_numbers = #tpu.dot_dimension_numbers<[1], [0], [0], [1], [0, 0, 1, 1], [], []>} : vector<80x32xbf16>, vector<32x64xbf16>, vector<80x64xf32> -> vector<80x64xf32>
    %33 = arith.addf %27, %32 : vector<80x64xf32>
    %34 = vector.extract_strided_slice %2 {offsets = [12, 0], sizes = [80, 32], strides = [1, 1]} : vector<110x32xf32> to vector<80x32xf32>
    %35 = arith.truncf %34 : vector<80x32xf32> to vector<80x32xbf16>
    %c5 = arith.constant 5 : index
    %c0_18 = arith.constant 0 : index
    %c0_19 = arith.constant 0 : index
    %36 = vector.load %arg2[%c5, %c0_18, %c0_19] : memref<9x32x64xbf16, #tpu.memory_space<vmem>>, vector<1x32x64xbf16>
    %37 = vector.shape_cast %36 : vector<1x32x64xbf16> to vector<32x64xbf16>
    %cst_20 = arith.constant dense<0.000000e+00> : vector<80x64xf32>
    %38 = tpu.matmul %35, %37, %cst_20 {dimension_numbers = #tpu.dot_dimension_numbers<[1], [0], [0], [1], [0, 0, 1, 1], [], []>} : vector<80x32xbf16>, vector<32x64xbf16>, vector<80x64xf32> -> vector<80x64xf32>
    %39 = arith.addf %33, %38 : vector<80x64xf32>
    %40 = vector.extract_strided_slice %2 {offsets = [20, 0], sizes = [80, 32], strides = [1, 1]} : vector<110x32xf32> to vector<80x32xf32>
    %41 = arith.truncf %40 : vector<80x32xf32> to vector<80x32xbf16>
    %c6 = arith.constant 6 : index
    %c0_21 = arith.constant 0 : index
    %c0_22 = arith.constant 0 : index
    %42 = vector.load %arg2[%c6, %c0_21, %c0_22] : memref<9x32x64xbf16, #tpu.memory_space<vmem>>, vector<1x32x64xbf16>
    %43 = vector.shape_cast %42 : vector<1x32x64xbf16> to vector<32x64xbf16>
    %cst_23 = arith.constant dense<0.000000e+00> : vector<80x64xf32>
    %44 = tpu.matmul %41, %43, %cst_23 {dimension_numbers = #tpu.dot_dimension_numbers<[1], [0], [0], [1], [0, 0, 1, 1], [], []>} : vector<80x32xbf16>, vector<32x64xbf16>, vector<80x64xf32> -> vector<80x64xf32>
    %45 = arith.addf %39, %44 : vector<80x64xf32>
    %46 = vector.extract_strided_slice %2 {offsets = [21, 0], sizes = [80, 32], strides = [1, 1]} : vector<110x32xf32> to vector<80x32xf32>
    %47 = arith.truncf %46 : vector<80x32xf32> to vector<80x32xbf16>
    %c7 = arith.constant 7 : index
    %c0_24 = arith.constant 0 : index
    %c0_25 = arith.constant 0 : index
    %48 = vector.load %arg2[%c7, %c0_24, %c0_25] : memref<9x32x64xbf16, #tpu.memory_space<vmem>>, vector<1x32x64xbf16>
    %49 = vector.shape_cast %48 : vector<1x32x64xbf16> to vector<32x64xbf16>
    %cst_26 = arith.constant dense<0.000000e+00> : vector<80x64xf32>
    %50 = tpu.matmul %47, %49, %cst_26 {dimension_numbers = #tpu.dot_dimension_numbers<[1], [0], [0], [1], [0, 0, 1, 1], [], []>} : vector<80x32xbf16>, vector<32x64xbf16>, vector<80x64xf32> -> vector<80x64xf32>
    %51 = arith.addf %45, %50 : vector<80x64xf32>
    %52 = vector.extract_strided_slice %2 {offsets = [22, 0], sizes = [80, 32], strides = [1, 1]} : vector<110x32xf32> to vector<80x32xf32>
    %53 = arith.truncf %52 : vector<80x32xf32> to vector<80x32xbf16>
    %c8 = arith.constant 8 : index
    %c0_27 = arith.constant 0 : index
    %c0_28 = arith.constant 0 : index
    %54 = vector.load %arg2[%c8, %c0_27, %c0_28] : memref<9x32x64xbf16, #tpu.memory_space<vmem>>, vector<1x32x64xbf16>
    %55 = vector.shape_cast %54 : vector<1x32x64xbf16> to vector<32x64xbf16>
    %cst_29 = arith.constant dense<0.000000e+00> : vector<80x64xf32>
    %56 = tpu.matmul %53, %55, %cst_29 {dimension_numbers = #tpu.dot_dimension_numbers<[1], [0], [0], [1], [0, 0, 1, 1], [], []>} : vector<80x32xbf16>, vector<32x64xbf16>, vector<80x64xf32> -> vector<80x64xf32>
    %57 = arith.addf %51, %56 : vector<80x64xf32>
    %c0_30 = arith.constant 0 : index
    %c0_31 = arith.constant 0 : index
    %58 = vector.load %arg3[%c0_30, %c0_31] : memref<1x64xf32, #tpu.memory_space<vmem>>, vector<1x64xf32>
    %59 = vector.broadcast %58 : vector<1x64xf32> to vector<80x64xf32>
    %60 = arith.addf %57, %59 : vector<80x64xf32>
    %cst_32 = arith.constant 0.000000e+00 : f32
    %61 = vector.broadcast %cst_32 : f32 to vector<80x64xf32>
    %62 = arith.maximumf %60, %61 : vector<80x64xf32>
    %c0_33 = arith.constant 0 : index
    %c0_34 = arith.constant 0 : index
    %63 = vector.load %arg6[%c0_33, %c0_34] : memref<80x1xf32, #tpu.memory_space<vmem>>, vector<80x1xf32>
    %64 = vector.broadcast %63 : vector<80x1xf32> to vector<80x64xf32>
    %65 = arith.mulf %62, %64 : vector<80x64xf32>
    %cst_35 = arith.constant 0.000000e+00 : f32
    %66 = vector.broadcast %cst_35 : f32 to vector<110x64xf32>
    %c0_36 = arith.constant 0 : index
    %c0_37 = arith.constant 0 : index
    %67 = vector.load %arg9[%c0_36, %c0_37] : memref<110x64xf32, #tpu.memory_space<vmem>>, vector<110x64xf32>
    tpu.vector_store %arg9[%c0_36, %c0_37], %66 {strides = array<i32>} : memref<110x64xf32, #tpu.memory_space<vmem>>, vector<110x64xf32>,
    %c11 = arith.constant 11 : index
    %c0_38 = arith.constant 0 : index
    %68 = vector.load %arg9[%c11, %c0_38] : memref<110x64xf32, #tpu.memory_space<vmem>>, vector<80x64xf32>
    tpu.vector_store %arg9[%c11, %c0_38], %65 {strides = array<i32>} : memref<110x64xf32, #tpu.memory_space<vmem>>, vector<80x64xf32>,
    %c0_39 = arith.constant 0 : index
    %c0_40 = arith.constant 0 : index
    %69 = vector.load %arg9[%c0_39, %c0_40] : memref<110x64xf32, #tpu.memory_space<vmem>>, vector<110x64xf32>
    %cst_41 = arith.constant 0.000000e+00 : f32
    %70 = vector.broadcast %cst_41 : f32 to vector<80x64xf32>
    %71 = vector.extract_strided_slice %69 {offsets = [0, 0], sizes = [80, 64], strides = [1, 1]} : vector<110x64xf32> to vector<80x64xf32>
    %72 = arith.truncf %71 : vector<80x64xf32> to vector<80x64xbf16>
    %c0_42 = arith.constant 0 : index
    %c0_43 = arith.constant 0 : index
    %c0_44 = arith.constant 0 : index
    %73 = vector.load %arg4[%c0_42, %c0_43, %c0_44] : memref<9x64x64xbf16, #tpu.memory_space<vmem>>, vector<1x64x64xbf16>
    %74 = vector.shape_cast %73 : vector<1x64x64xbf16> to vector<64x64xbf16>
    %cst_45 = arith.constant dense<0.000000e+00> : vector<80x64xf32>
    %75 = tpu.matmul %72, %74, %cst_45 {dimension_numbers = #tpu.dot_dimension_numbers<[1], [0], [0], [1], [0, 0, 1, 1], [], []>} : vector<80x64xbf16>, vector<64x64xbf16>, vector<80x64xf32> -> vector<80x64xf32>
    %76 = arith.addf %70, %75 : vector<80x64xf32>
    %77 = vector.extract_strided_slice %69 {offsets = [1, 0], sizes = [80, 64], strides = [1, 1]} : vector<110x64xf32> to vector<80x64xf32>
    %78 = arith.truncf %77 : vector<80x64xf32> to vector<80x64xbf16>
    %c1_46 = arith.constant 1 : index
    %c0_47 = arith.constant 0 : index
    %c0_48 = arith.constant 0 : index
    %79 = vector.load %arg4[%c1_46, %c0_47, %c0_48] : memref<9x64x64xbf16, #tpu.memory_space<vmem>>, vector<1x64x64xbf16>
    %80 = vector.shape_cast %79 : vector<1x64x64xbf16> to vector<64x64xbf16>
    %cst_49 = arith.constant dense<0.000000e+00> : vector<80x64xf32>
    %81 = tpu.matmul %78, %80, %cst_49 {dimension_numbers = #tpu.dot_dimension_numbers<[1], [0], [0], [1], [0, 0, 1, 1], [], []>} : vector<80x64xbf16>, vector<64x64xbf16>, vector<80x64xf32> -> vector<80x64xf32>
    %82 = arith.addf %76, %81 : vector<80x64xf32>
    %83 = vector.extract_strided_slice %69 {offsets = [2, 0], sizes = [80, 64], strides = [1, 1]} : vector<110x64xf32> to vector<80x64xf32>
    %84 = arith.truncf %83 : vector<80x64xf32> to vector<80x64xbf16>
    %c2_50 = arith.constant 2 : index
    %c0_51 = arith.constant 0 : index
    %c0_52 = arith.constant 0 : index
    %85 = vector.load %arg4[%c2_50, %c0_51, %c0_52] : memref<9x64x64xbf16, #tpu.memory_space<vmem>>, vector<1x64x64xbf16>
    %86 = vector.shape_cast %85 : vector<1x64x64xbf16> to vector<64x64xbf16>
    %cst_53 = arith.constant dense<0.000000e+00> : vector<80x64xf32>
    %87 = tpu.matmul %84, %86, %cst_53 {dimension_numbers = #tpu.dot_dimension_numbers<[1], [0], [0], [1], [0, 0, 1, 1], [], []>} : vector<80x64xbf16>, vector<64x64xbf16>, vector<80x64xf32> -> vector<80x64xf32>
    %88 = arith.addf %82, %87 : vector<80x64xf32>
    %89 = vector.extract_strided_slice %69 {offsets = [10, 0], sizes = [80, 64], strides = [1, 1]} : vector<110x64xf32> to vector<80x64xf32>
    %90 = arith.truncf %89 : vector<80x64xf32> to vector<80x64xbf16>
    %c3_54 = arith.constant 3 : index
    %c0_55 = arith.constant 0 : index
    %c0_56 = arith.constant 0 : index
    %91 = vector.load %arg4[%c3_54, %c0_55, %c0_56] : memref<9x64x64xbf16, #tpu.memory_space<vmem>>, vector<1x64x64xbf16>
    %92 = vector.shape_cast %91 : vector<1x64x64xbf16> to vector<64x64xbf16>
    %cst_57 = arith.constant dense<0.000000e+00> : vector<80x64xf32>
    %93 = tpu.matmul %90, %92, %cst_57 {dimension_numbers = #tpu.dot_dimension_numbers<[1], [0], [0], [1], [0, 0, 1, 1], [], []>} : vector<80x64xbf16>, vector<64x64xbf16>, vector<80x64xf32> -> vector<80x64xf32>
    %94 = arith.addf %88, %93 : vector<80x64xf32>
    %95 = vector.extract_strided_slice %69 {offsets = [11, 0], sizes = [80, 64], strides = [1, 1]} : vector<110x64xf32> to vector<80x64xf32>
    %96 = arith.truncf %95 : vector<80x64xf32> to vector<80x64xbf16>
    %c4_58 = arith.constant 4 : index
    %c0_59 = arith.constant 0 : index
    %c0_60 = arith.constant 0 : index
    %97 = vector.load %arg4[%c4_58, %c0_59, %c0_60] : memref<9x64x64xbf16, #tpu.memory_space<vmem>>, vector<1x64x64xbf16>
    %98 = vector.shape_cast %97 : vector<1x64x64xbf16> to vector<64x64xbf16>
    %cst_61 = arith.constant dense<0.000000e+00> : vector<80x64xf32>
    %99 = tpu.matmul %96, %98, %cst_61 {dimension_numbers = #tpu.dot_dimension_numbers<[1], [0], [0], [1], [0, 0, 1, 1], [], []>} : vector<80x64xbf16>, vector<64x64xbf16>, vector<80x64xf32> -> vector<80x64xf32>
    %100 = arith.addf %94, %99 : vector<80x64xf32>
    %101 = vector.extract_strided_slice %69 {offsets = [12, 0], sizes = [80, 64], strides = [1, 1]} : vector<110x64xf32> to vector<80x64xf32>
    %102 = arith.truncf %101 : vector<80x64xf32> to vector<80x64xbf16>
    %c5_62 = arith.constant 5 : index
    %c0_63 = arith.constant 0 : index
    %c0_64 = arith.constant 0 : index
    %103 = vector.load %arg4[%c5_62, %c0_63, %c0_64] : memref<9x64x64xbf16, #tpu.memory_space<vmem>>, vector<1x64x64xbf16>
    %104 = vector.shape_cast %103 : vector<1x64x64xbf16> to vector<64x64xbf16>
    %cst_65 = arith.constant dense<0.000000e+00> : vector<80x64xf32>
    %105 = tpu.matmul %102, %104, %cst_65 {dimension_numbers = #tpu.dot_dimension_numbers<[1], [0], [0], [1], [0, 0, 1, 1], [], []>} : vector<80x64xbf16>, vector<64x64xbf16>, vector<80x64xf32> -> vector<80x64xf32>
    %106 = arith.addf %100, %105 : vector<80x64xf32>
    %107 = vector.extract_strided_slice %69 {offsets = [20, 0], sizes = [80, 64], strides = [1, 1]} : vector<110x64xf32> to vector<80x64xf32>
    %108 = arith.truncf %107 : vector<80x64xf32> to vector<80x64xbf16>
    %c6_66 = arith.constant 6 : index
    %c0_67 = arith.constant 0 : index
    %c0_68 = arith.constant 0 : index
    %109 = vector.load %arg4[%c6_66, %c0_67, %c0_68] : memref<9x64x64xbf16, #tpu.memory_space<vmem>>, vector<1x64x64xbf16>
    %110 = vector.shape_cast %109 : vector<1x64x64xbf16> to vector<64x64xbf16>
    %cst_69 = arith.constant dense<0.000000e+00> : vector<80x64xf32>
    %111 = tpu.matmul %108, %110, %cst_69 {dimension_numbers = #tpu.dot_dimension_numbers<[1], [0], [0], [1], [0, 0, 1, 1], [], []>} : vector<80x64xbf16>, vector<64x64xbf16>, vector<80x64xf32> -> vector<80x64xf32>
    %112 = arith.addf %106, %111 : vector<80x64xf32>
    %113 = vector.extract_strided_slice %69 {offsets = [21, 0], sizes = [80, 64], strides = [1, 1]} : vector<110x64xf32> to vector<80x64xf32>
    %114 = arith.truncf %113 : vector<80x64xf32> to vector<80x64xbf16>
    %c7_70 = arith.constant 7 : index
    %c0_71 = arith.constant 0 : index
    %c0_72 = arith.constant 0 : index
    %115 = vector.load %arg4[%c7_70, %c0_71, %c0_72] : memref<9x64x64xbf16, #tpu.memory_space<vmem>>, vector<1x64x64xbf16>
    %116 = vector.shape_cast %115 : vector<1x64x64xbf16> to vector<64x64xbf16>
    %cst_73 = arith.constant dense<0.000000e+00> : vector<80x64xf32>
    %117 = tpu.matmul %114, %116, %cst_73 {dimension_numbers = #tpu.dot_dimension_numbers<[1], [0], [0], [1], [0, 0, 1, 1], [], []>} : vector<80x64xbf16>, vector<64x64xbf16>, vector<80x64xf32> -> vector<80x64xf32>
    %118 = arith.addf %112, %117 : vector<80x64xf32>
    %119 = vector.extract_strided_slice %69 {offsets = [22, 0], sizes = [80, 64], strides = [1, 1]} : vector<110x64xf32> to vector<80x64xf32>
    %120 = arith.truncf %119 : vector<80x64xf32> to vector<80x64xbf16>
    %c8_74 = arith.constant 8 : index
    %c0_75 = arith.constant 0 : index
    %c0_76 = arith.constant 0 : index
    %121 = vector.load %arg4[%c8_74, %c0_75, %c0_76] : memref<9x64x64xbf16, #tpu.memory_space<vmem>>, vector<1x64x64xbf16>
    %122 = vector.shape_cast %121 : vector<1x64x64xbf16> to vector<64x64xbf16>
    %cst_77 = arith.constant dense<0.000000e+00> : vector<80x64xf32>
    %123 = tpu.matmul %120, %122, %cst_77 {dimension_numbers = #tpu.dot_dimension_numbers<[1], [0], [0], [1], [0, 0, 1, 1], [], []>} : vector<80x64xbf16>, vector<64x64xbf16>, vector<80x64xf32> -> vector<80x64xf32>
    %124 = arith.addf %118, %123 : vector<80x64xf32>
    %c0_78 = arith.constant 0 : index
    %c0_79 = arith.constant 0 : index
    %125 = vector.load %arg5[%c0_78, %c0_79] : memref<1x64xf32, #tpu.memory_space<vmem>>, vector<1x64xf32>
    %126 = vector.broadcast %125 : vector<1x64xf32> to vector<80x64xf32>
    %127 = arith.addf %124, %126 : vector<80x64xf32>
    %cst_80 = arith.constant 0.000000e+00 : f32
    %128 = vector.broadcast %cst_80 : f32 to vector<80x64xf32>
    %129 = arith.maximumf %127, %128 : vector<80x64xf32>
    %130 = vector.extract_strided_slice %129 {offsets = [0, 0], sizes = [69, 64], strides = [1, 1]} : vector<80x64xf32> to vector<69x64xf32>
    %131 = vector.extract_strided_slice %129 {offsets = [1, 0], sizes = [69, 64], strides = [1, 1]} : vector<80x64xf32> to vector<69x64xf32>
    %132 = arith.maximumf %130, %131 : vector<69x64xf32>
    %133 = vector.extract_strided_slice %129 {offsets = [10, 0], sizes = [69, 64], strides = [1, 1]} : vector<80x64xf32> to vector<69x64xf32>
    %134 = vector.extract_strided_slice %129 {offsets = [11, 0], sizes = [69, 64], strides = [1, 1]} : vector<80x64xf32> to vector<69x64xf32>
    %135 = arith.maximumf %133, %134 : vector<69x64xf32>
    %136 = arith.maximumf %132, %135 : vector<69x64xf32>
    %c0_81 = arith.constant 0 : index
    %c0_82 = arith.constant 0 : index
    %137 = vector.load %arg7[%c0_81, %c0_82] : memref<16x69xbf16, #tpu.memory_space<vmem>>, vector<16x69xbf16>
    %138 = arith.truncf %136 : vector<69x64xf32> to vector<69x64xbf16>
    %cst_83 = arith.constant dense<0.000000e+00> : vector<16x64xf32>
    %139 = tpu.matmul %137, %138, %cst_83 {dimension_numbers = #tpu.dot_dimension_numbers<[1], [0], [0], [1], [0, 0, 1, 1], [], []>} : vector<16x69xbf16>, vector<69x64xbf16>, vector<16x64xf32> -> vector<16x64xf32>
    %140 = arith.truncf %139 : vector<16x64xf32> to vector<16x64xbf16>
    %c0_84 = arith.constant 0 : index
    %c0_85 = arith.constant 0 : index
    %c0_86 = arith.constant 0 : index
    %141 = vector.load %arg8[%c0_84, %c0_85, %c0_86] : memref<1x16x64xbf16, #tpu.memory_space<vmem>>, vector<1x16x64xbf16>
    %142 = vector.shape_cast %141 : vector<1x16x64xbf16> to vector<16x64xbf16>
    %143 = vector.shape_cast %140 : vector<16x64xbf16> to vector<1x16x64xbf16>
    tpu.vector_store %arg8[%c0_84, %c0_85, %c0_86], %143 {strides = array<i32>} : memref<1x16x64xbf16, #tpu.memory_space<vmem>>, vector<1x16x64xbf16>,
    return
  }
  func.func @transform_0(%arg0: i32) -> (i32, i32, i32) {
    %c0_i32 = arith.constant 0 : i32
    %c0_i32_0 = arith.constant 0 : i32
    %c0_i32_1 = arith.constant 0 : i32
    return %arg0, %c0_i32, %c0_i32_0 : i32, i32, i32
  }
  func.func @transform_1(%arg0: i32) -> (i32, i32, i32) {
    %c0_i32 = arith.constant 0 : i32
    %c0_i32_0 = arith.constant 0 : i32
    %c0_i32_1 = arith.constant 0 : i32
    %c0_i32_2 = arith.constant 0 : i32
    return %c0_i32, %c0_i32_0, %c0_i32_1 : i32, i32, i32
  }
  func.func @transform_2(%arg0: i32) -> (i32, i32) {
    %c0_i32 = arith.constant 0 : i32
    %c0_i32_0 = arith.constant 0 : i32
    %c0_i32_1 = arith.constant 0 : i32
    return %c0_i32, %c0_i32_0 : i32, i32
  }
  func.func @transform_3(%arg0: i32) -> (i32, i32, i32) {
    %c0_i32 = arith.constant 0 : i32
    %c0_i32_0 = arith.constant 0 : i32
    %c0_i32_1 = arith.constant 0 : i32
    %c0_i32_2 = arith.constant 0 : i32
    return %c0_i32, %c0_i32_0, %c0_i32_1 : i32, i32, i32
  }
  func.func @transform_4(%arg0: i32) -> (i32, i32) {
    %c0_i32 = arith.constant 0 : i32
    %c0_i32_0 = arith.constant 0 : i32
    %c0_i32_1 = arith.constant 0 : i32
    return %c0_i32, %c0_i32_0 : i32, i32
  }
  func.func @transform_5(%arg0: i32) -> (i32, i32) {
    %c0_i32 = arith.constant 0 : i32
    %c0_i32_0 = arith.constant 0 : i32
    %c0_i32_1 = arith.constant 0 : i32
    return %c0_i32, %c0_i32_0 : i32, i32
  }
  func.func @transform_6(%arg0: i32) -> (i32, i32) {
    %c0_i32 = arith.constant 0 : i32
    %c0_i32_0 = arith.constant 0 : i32
    %c0_i32_1 = arith.constant 0 : i32
    return %c0_i32, %c0_i32_0 : i32, i32
  }
  func.func @transform_7(%arg0: i32) -> (i32, i32, i32) {
    %c0_i32 = arith.constant 0 : i32
    %c0_i32_0 = arith.constant 0 : i32
    %c0_i32_1 = arith.constant 0 : i32
    return %arg0, %c0_i32, %c0_i32_0 : i32, i32, i32
  }
}

module attributes {stable_mosaic.version = 11 : i64} {
  func.func @_fc_heads_kernel(%arg0: i32, %arg1: memref<2x512xbf16, #tpu.memory_space<vmem>>, %arg2: memref<512x256xbf16, #tpu.memory_space<vmem>>, %arg3: memref<1x256xf32, #tpu.memory_space<vmem>>, %arg4: memref<256x128xbf16, #tpu.memory_space<vmem>>, %arg5: memref<1x128xf32, #tpu.memory_space<vmem>>, %arg6: memref<2x128xf32, #tpu.memory_space<vmem>>) attributes {dimension_semantics = [#tpu.dimension_semantics<arbitrary>], iteration_bounds = array<i64: 1>, scalar_prefetch = 0 : i64, scratch_operands = 0 : i64, tpu.core_type = #tpu.core_type<tc>, window_params = [{pipeline_mode = #tpu.pipeline_mode<synchronous>, transform_indices = @transform_0, window_bounds = array<i64: 2, 512>}, {pipeline_mode = #tpu.pipeline_mode<synchronous>, transform_indices = @transform_1, window_bounds = array<i64: 512, 256>}, {pipeline_mode = #tpu.pipeline_mode<synchronous>, transform_indices = @transform_2, window_bounds = array<i64: 1, 256>}, {pipeline_mode = #tpu.pipeline_mode<synchronous>, transform_indices = @transform_3, window_bounds = array<i64: 256, 128>}, {pipeline_mode = #tpu.pipeline_mode<synchronous>, transform_indices = @transform_4, window_bounds = array<i64: 1, 128>}, {pipeline_mode = #tpu.pipeline_mode<synchronous>, transform_indices = @transform_5, window_bounds = array<i64: 2, 128>}]} {
    %c0 = arith.constant 0 : index
    %c0_0 = arith.constant 0 : index
    %0 = vector.load %arg1[%c0, %c0_0] : memref<2x512xbf16, #tpu.memory_space<vmem>>, vector<2x512xbf16>
    %c0_1 = arith.constant 0 : index
    %c0_2 = arith.constant 0 : index
    %1 = vector.load %arg2[%c0_1, %c0_2] : memref<512x256xbf16, #tpu.memory_space<vmem>>, vector<512x256xbf16>
    %cst = arith.constant dense<0.000000e+00> : vector<2x256xf32>
    %2 = tpu.matmul %0, %1, %cst {dimension_numbers = #tpu.dot_dimension_numbers<[1], [0], [0], [1], [0, 0, 1, 1], [], []>} : vector<2x512xbf16>, vector<512x256xbf16>, vector<2x256xf32> -> vector<2x256xf32>
    %c0_3 = arith.constant 0 : index
    %c0_4 = arith.constant 0 : index
    %3 = vector.load %arg3[%c0_3, %c0_4] : memref<1x256xf32, #tpu.memory_space<vmem>>, vector<1x256xf32>
    %4 = vector.broadcast %3 : vector<1x256xf32> to vector<2x256xf32>
    %5 = arith.addf %2, %4 : vector<2x256xf32>
    %cst_5 = arith.constant 0.000000e+00 : f32
    %6 = vector.broadcast %cst_5 : f32 to vector<2x256xf32>
    %7 = arith.maximumf %5, %6 : vector<2x256xf32>
    %8 = arith.truncf %7 : vector<2x256xf32> to vector<2x256xbf16>
    %c0_6 = arith.constant 0 : index
    %c0_7 = arith.constant 0 : index
    %9 = vector.load %arg4[%c0_6, %c0_7] : memref<256x128xbf16, #tpu.memory_space<vmem>>, vector<256x128xbf16>
    %cst_8 = arith.constant dense<0.000000e+00> : vector<2x128xf32>
    %10 = tpu.matmul %8, %9, %cst_8 {dimension_numbers = #tpu.dot_dimension_numbers<[1], [0], [0], [1], [0, 0, 1, 1], [], []>} : vector<2x256xbf16>, vector<256x128xbf16>, vector<2x128xf32> -> vector<2x128xf32>
    %c0_9 = arith.constant 0 : index
    %c0_10 = arith.constant 0 : index
    %11 = vector.load %arg5[%c0_9, %c0_10] : memref<1x128xf32, #tpu.memory_space<vmem>>, vector<1x128xf32>
    %12 = vector.broadcast %11 : vector<1x128xf32> to vector<2x128xf32>
    %13 = arith.addf %10, %12 : vector<2x128xf32>
    %c0_11 = arith.constant 0 : index
    %c0_12 = arith.constant 0 : index
    %14 = vector.load %arg6[%c0_11, %c0_12] : memref<2x128xf32, #tpu.memory_space<vmem>>, vector<2x128xf32>
    tpu.vector_store %arg6[%c0_11, %c0_12], %13 {strides = array<i32>} : memref<2x128xf32, #tpu.memory_space<vmem>>, vector<2x128xf32>,
    return
  }
  func.func @transform_0(%arg0: i32) -> (i32, i32) {
    %c0_i32 = arith.constant 0 : i32
    %c0_i32_0 = arith.constant 0 : i32
    %c0_i32_1 = arith.constant 0 : i32
    return %c0_i32, %c0_i32_0 : i32, i32
  }
  func.func @transform_1(%arg0: i32) -> (i32, i32) {
    %c0_i32 = arith.constant 0 : i32
    %c0_i32_0 = arith.constant 0 : i32
    %c0_i32_1 = arith.constant 0 : i32
    return %c0_i32, %c0_i32_0 : i32, i32
  }
  func.func @transform_2(%arg0: i32) -> (i32, i32) {
    %c0_i32 = arith.constant 0 : i32
    %c0_i32_0 = arith.constant 0 : i32
    %c0_i32_1 = arith.constant 0 : i32
    return %c0_i32, %c0_i32_0 : i32, i32
  }
  func.func @transform_3(%arg0: i32) -> (i32, i32) {
    %c0_i32 = arith.constant 0 : i32
    %c0_i32_0 = arith.constant 0 : i32
    %c0_i32_1 = arith.constant 0 : i32
    return %c0_i32, %c0_i32_0 : i32, i32
  }
  func.func @transform_4(%arg0: i32) -> (i32, i32) {
    %c0_i32 = arith.constant 0 : i32
    %c0_i32_0 = arith.constant 0 : i32
    %c0_i32_1 = arith.constant 0 : i32
    return %c0_i32, %c0_i32_0 : i32, i32
  }
  func.func @transform_5(%arg0: i32) -> (i32, i32) {
    %c0_i32 = arith.constant 0 : i32
    %c0_i32_0 = arith.constant 0 : i32
    %c0_i32_1 = arith.constant 0 : i32
    return %c0_i32, %c0_i32_0 : i32, i32
  }
}

module attributes {stable_mosaic.version = 11 : i64} {
  func.func @_stage_kernel(%arg0: i32, %arg1: memref<1x42x64xbf16, #tpu.memory_space<vmem>>, %arg2: memref<9x64x128xbf16, #tpu.memory_space<vmem>>, %arg3: memref<1x128xf32, #tpu.memory_space<vmem>>, %arg4: memref<9x128x128xbf16, #tpu.memory_space<vmem>>, %arg5: memref<1x128xf32, #tpu.memory_space<vmem>>, %arg6: memref<24x1xf32, #tpu.memory_space<vmem>>, %arg7: memref<4x17xbf16, #tpu.memory_space<vmem>>, %arg8: memref<1x4x128xbf16, #tpu.memory_space<vmem>>, %arg9: memref<42x128xf32, #tpu.memory_space<vmem>>) attributes {dimension_semantics = [#tpu.dimension_semantics<parallel>], iteration_bounds = array<i64: 2>, scalar_prefetch = 0 : i64, scratch_operands = 1 : i64, tpu.core_type = #tpu.core_type<tc>, window_params = [{transform_indices = @transform_0, window_bounds = array<i64: 1, 42, 64>}, {pipeline_mode = #tpu.pipeline_mode<synchronous>, transform_indices = @transform_1, window_bounds = array<i64: 9, 64, 128>}, {pipeline_mode = #tpu.pipeline_mode<synchronous>, transform_indices = @transform_2, window_bounds = array<i64: 1, 128>}, {pipeline_mode = #tpu.pipeline_mode<synchronous>, transform_indices = @transform_3, window_bounds = array<i64: 9, 128, 128>}, {pipeline_mode = #tpu.pipeline_mode<synchronous>, transform_indices = @transform_4, window_bounds = array<i64: 1, 128>}, {pipeline_mode = #tpu.pipeline_mode<synchronous>, transform_indices = @transform_5, window_bounds = array<i64: 24, 1>}, {pipeline_mode = #tpu.pipeline_mode<synchronous>, transform_indices = @transform_6, window_bounds = array<i64: 4, 17>}, {transform_indices = @transform_7, window_bounds = array<i64: 1, 4, 128>}]} {
    %c0 = arith.constant 0 : index
    %c0_0 = arith.constant 0 : index
    %c0_1 = arith.constant 0 : index
    %0 = vector.load %arg1[%c0, %c0_0, %c0_1] : memref<1x42x64xbf16, #tpu.memory_space<vmem>>, vector<1x42x64xbf16>
    %1 = vector.shape_cast %0 : vector<1x42x64xbf16> to vector<42x64xbf16>
    %2 = arith.extf %1 : vector<42x64xbf16> to vector<42x64xf32>
    %cst = arith.constant 0.000000e+00 : f32
    %3 = vector.broadcast %cst : f32 to vector<24x128xf32>
    %4 = vector.extract_strided_slice %2 {offsets = [0, 0], sizes = [24, 64], strides = [1, 1]} : vector<42x64xf32> to vector<24x64xf32>
    %5 = arith.truncf %4 : vector<24x64xf32> to vector<24x64xbf16>
    %c0_2 = arith.constant 0 : index
    %c0_3 = arith.constant 0 : index
    %c0_4 = arith.constant 0 : index
    %6 = vector.load %arg2[%c0_2, %c0_3, %c0_4] : memref<9x64x128xbf16, #tpu.memory_space<vmem>>, vector<1x64x128xbf16>
    %7 = vector.shape_cast %6 : vector<1x64x128xbf16> to vector<64x128xbf16>
    %cst_5 = arith.constant dense<0.000000e+00> : vector<24x128xf32>
    %8 = tpu.matmul %5, %7, %cst_5 {dimension_numbers = #tpu.dot_dimension_numbers<[1], [0], [0], [1], [0, 0, 1, 1], [], []>} : vector<24x64xbf16>, vector<64x128xbf16>, vector<24x128xf32> -> vector<24x128xf32>
    %9 = arith.addf %3, %8 : vector<24x128xf32>
    %10 = vector.extract_strided_slice %2 {offsets = [1, 0], sizes = [24, 64], strides = [1, 1]} : vector<42x64xf32> to vector<24x64xf32>
    %11 = arith.truncf %10 : vector<24x64xf32> to vector<24x64xbf16>
    %c1 = arith.constant 1 : index
    %c0_6 = arith.constant 0 : index
    %c0_7 = arith.constant 0 : index
    %12 = vector.load %arg2[%c1, %c0_6, %c0_7] : memref<9x64x128xbf16, #tpu.memory_space<vmem>>, vector<1x64x128xbf16>
    %13 = vector.shape_cast %12 : vector<1x64x128xbf16> to vector<64x128xbf16>
    %cst_8 = arith.constant dense<0.000000e+00> : vector<24x128xf32>
    %14 = tpu.matmul %11, %13, %cst_8 {dimension_numbers = #tpu.dot_dimension_numbers<[1], [0], [0], [1], [0, 0, 1, 1], [], []>} : vector<24x64xbf16>, vector<64x128xbf16>, vector<24x128xf32> -> vector<24x128xf32>
    %15 = arith.addf %9, %14 : vector<24x128xf32>
    %16 = vector.extract_strided_slice %2 {offsets = [2, 0], sizes = [24, 64], strides = [1, 1]} : vector<42x64xf32> to vector<24x64xf32>
    %17 = arith.truncf %16 : vector<24x64xf32> to vector<24x64xbf16>
    %c2 = arith.constant 2 : index
    %c0_9 = arith.constant 0 : index
    %c0_10 = arith.constant 0 : index
    %18 = vector.load %arg2[%c2, %c0_9, %c0_10] : memref<9x64x128xbf16, #tpu.memory_space<vmem>>, vector<1x64x128xbf16>
    %19 = vector.shape_cast %18 : vector<1x64x128xbf16> to vector<64x128xbf16>
    %cst_11 = arith.constant dense<0.000000e+00> : vector<24x128xf32>
    %20 = tpu.matmul %17, %19, %cst_11 {dimension_numbers = #tpu.dot_dimension_numbers<[1], [0], [0], [1], [0, 0, 1, 1], [], []>} : vector<24x64xbf16>, vector<64x128xbf16>, vector<24x128xf32> -> vector<24x128xf32>
    %21 = arith.addf %15, %20 : vector<24x128xf32>
    %22 = vector.extract_strided_slice %2 {offsets = [6, 0], sizes = [24, 64], strides = [1, 1]} : vector<42x64xf32> to vector<24x64xf32>
    %23 = arith.truncf %22 : vector<24x64xf32> to vector<24x64xbf16>
    %c3 = arith.constant 3 : index
    %c0_12 = arith.constant 0 : index
    %c0_13 = arith.constant 0 : index
    %24 = vector.load %arg2[%c3, %c0_12, %c0_13] : memref<9x64x128xbf16, #tpu.memory_space<vmem>>, vector<1x64x128xbf16>
    %25 = vector.shape_cast %24 : vector<1x64x128xbf16> to vector<64x128xbf16>
    %cst_14 = arith.constant dense<0.000000e+00> : vector<24x128xf32>
    %26 = tpu.matmul %23, %25, %cst_14 {dimension_numbers = #tpu.dot_dimension_numbers<[1], [0], [0], [1], [0, 0, 1, 1], [], []>} : vector<24x64xbf16>, vector<64x128xbf16>, vector<24x128xf32> -> vector<24x128xf32>
    %27 = arith.addf %21, %26 : vector<24x128xf32>
    %28 = vector.extract_strided_slice %2 {offsets = [7, 0], sizes = [24, 64], strides = [1, 1]} : vector<42x64xf32> to vector<24x64xf32>
    %29 = arith.truncf %28 : vector<24x64xf32> to vector<24x64xbf16>
    %c4 = arith.constant 4 : index
    %c0_15 = arith.constant 0 : index
    %c0_16 = arith.constant 0 : index
    %30 = vector.load %arg2[%c4, %c0_15, %c0_16] : memref<9x64x128xbf16, #tpu.memory_space<vmem>>, vector<1x64x128xbf16>
    %31 = vector.shape_cast %30 : vector<1x64x128xbf16> to vector<64x128xbf16>
    %cst_17 = arith.constant dense<0.000000e+00> : vector<24x128xf32>
    %32 = tpu.matmul %29, %31, %cst_17 {dimension_numbers = #tpu.dot_dimension_numbers<[1], [0], [0], [1], [0, 0, 1, 1], [], []>} : vector<24x64xbf16>, vector<64x128xbf16>, vector<24x128xf32> -> vector<24x128xf32>
    %33 = arith.addf %27, %32 : vector<24x128xf32>
    %34 = vector.extract_strided_slice %2 {offsets = [8, 0], sizes = [24, 64], strides = [1, 1]} : vector<42x64xf32> to vector<24x64xf32>
    %35 = arith.truncf %34 : vector<24x64xf32> to vector<24x64xbf16>
    %c5 = arith.constant 5 : index
    %c0_18 = arith.constant 0 : index
    %c0_19 = arith.constant 0 : index
    %36 = vector.load %arg2[%c5, %c0_18, %c0_19] : memref<9x64x128xbf16, #tpu.memory_space<vmem>>, vector<1x64x128xbf16>
    %37 = vector.shape_cast %36 : vector<1x64x128xbf16> to vector<64x128xbf16>
    %cst_20 = arith.constant dense<0.000000e+00> : vector<24x128xf32>
    %38 = tpu.matmul %35, %37, %cst_20 {dimension_numbers = #tpu.dot_dimension_numbers<[1], [0], [0], [1], [0, 0, 1, 1], [], []>} : vector<24x64xbf16>, vector<64x128xbf16>, vector<24x128xf32> -> vector<24x128xf32>
    %39 = arith.addf %33, %38 : vector<24x128xf32>
    %40 = vector.extract_strided_slice %2 {offsets = [12, 0], sizes = [24, 64], strides = [1, 1]} : vector<42x64xf32> to vector<24x64xf32>
    %41 = arith.truncf %40 : vector<24x64xf32> to vector<24x64xbf16>
    %c6 = arith.constant 6 : index
    %c0_21 = arith.constant 0 : index
    %c0_22 = arith.constant 0 : index
    %42 = vector.load %arg2[%c6, %c0_21, %c0_22] : memref<9x64x128xbf16, #tpu.memory_space<vmem>>, vector<1x64x128xbf16>
    %43 = vector.shape_cast %42 : vector<1x64x128xbf16> to vector<64x128xbf16>
    %cst_23 = arith.constant dense<0.000000e+00> : vector<24x128xf32>
    %44 = tpu.matmul %41, %43, %cst_23 {dimension_numbers = #tpu.dot_dimension_numbers<[1], [0], [0], [1], [0, 0, 1, 1], [], []>} : vector<24x64xbf16>, vector<64x128xbf16>, vector<24x128xf32> -> vector<24x128xf32>
    %45 = arith.addf %39, %44 : vector<24x128xf32>
    %46 = vector.extract_strided_slice %2 {offsets = [13, 0], sizes = [24, 64], strides = [1, 1]} : vector<42x64xf32> to vector<24x64xf32>
    %47 = arith.truncf %46 : vector<24x64xf32> to vector<24x64xbf16>
    %c7 = arith.constant 7 : index
    %c0_24 = arith.constant 0 : index
    %c0_25 = arith.constant 0 : index
    %48 = vector.load %arg2[%c7, %c0_24, %c0_25] : memref<9x64x128xbf16, #tpu.memory_space<vmem>>, vector<1x64x128xbf16>
    %49 = vector.shape_cast %48 : vector<1x64x128xbf16> to vector<64x128xbf16>
    %cst_26 = arith.constant dense<0.000000e+00> : vector<24x128xf32>
    %50 = tpu.matmul %47, %49, %cst_26 {dimension_numbers = #tpu.dot_dimension_numbers<[1], [0], [0], [1], [0, 0, 1, 1], [], []>} : vector<24x64xbf16>, vector<64x128xbf16>, vector<24x128xf32> -> vector<24x128xf32>
    %51 = arith.addf %45, %50 : vector<24x128xf32>
    %52 = vector.extract_strided_slice %2 {offsets = [14, 0], sizes = [24, 64], strides = [1, 1]} : vector<42x64xf32> to vector<24x64xf32>
    %53 = arith.truncf %52 : vector<24x64xf32> to vector<24x64xbf16>
    %c8 = arith.constant 8 : index
    %c0_27 = arith.constant 0 : index
    %c0_28 = arith.constant 0 : index
    %54 = vector.load %arg2[%c8, %c0_27, %c0_28] : memref<9x64x128xbf16, #tpu.memory_space<vmem>>, vector<1x64x128xbf16>
    %55 = vector.shape_cast %54 : vector<1x64x128xbf16> to vector<64x128xbf16>
    %cst_29 = arith.constant dense<0.000000e+00> : vector<24x128xf32>
    %56 = tpu.matmul %53, %55, %cst_29 {dimension_numbers = #tpu.dot_dimension_numbers<[1], [0], [0], [1], [0, 0, 1, 1], [], []>} : vector<24x64xbf16>, vector<64x128xbf16>, vector<24x128xf32> -> vector<24x128xf32>
    %57 = arith.addf %51, %56 : vector<24x128xf32>
    %c0_30 = arith.constant 0 : index
    %c0_31 = arith.constant 0 : index
    %58 = vector.load %arg3[%c0_30, %c0_31] : memref<1x128xf32, #tpu.memory_space<vmem>>, vector<1x128xf32>
    %59 = vector.broadcast %58 : vector<1x128xf32> to vector<24x128xf32>
    %60 = arith.addf %57, %59 : vector<24x128xf32>
    %cst_32 = arith.constant 0.000000e+00 : f32
    %61 = vector.broadcast %cst_32 : f32 to vector<24x128xf32>
    %62 = arith.maximumf %60, %61 : vector<24x128xf32>
    %c0_33 = arith.constant 0 : index
    %c0_34 = arith.constant 0 : index
    %63 = vector.load %arg6[%c0_33, %c0_34] : memref<24x1xf32, #tpu.memory_space<vmem>>, vector<24x1xf32>
    %64 = vector.broadcast %63 : vector<24x1xf32> to vector<24x128xf32>
    %65 = arith.mulf %62, %64 : vector<24x128xf32>
    %cst_35 = arith.constant 0.000000e+00 : f32
    %66 = vector.broadcast %cst_35 : f32 to vector<42x128xf32>
    %c0_36 = arith.constant 0 : index
    %c0_37 = arith.constant 0 : index
    %67 = vector.load %arg9[%c0_36, %c0_37] : memref<42x128xf32, #tpu.memory_space<vmem>>, vector<42x128xf32>
    tpu.vector_store %arg9[%c0_36, %c0_37], %66 {strides = array<i32>} : memref<42x128xf32, #tpu.memory_space<vmem>>, vector<42x128xf32>,
    %c7_38 = arith.constant 7 : index
    %c0_39 = arith.constant 0 : index
    %68 = vector.load %arg9[%c7_38, %c0_39] : memref<42x128xf32, #tpu.memory_space<vmem>>, vector<24x128xf32>
    tpu.vector_store %arg9[%c7_38, %c0_39], %65 {strides = array<i32>} : memref<42x128xf32, #tpu.memory_space<vmem>>, vector<24x128xf32>,
    %c0_40 = arith.constant 0 : index
    %c0_41 = arith.constant 0 : index
    %69 = vector.load %arg9[%c0_40, %c0_41] : memref<42x128xf32, #tpu.memory_space<vmem>>, vector<42x128xf32>
    %cst_42 = arith.constant 0.000000e+00 : f32
    %70 = vector.broadcast %cst_42 : f32 to vector<24x128xf32>
    %71 = vector.extract_strided_slice %69 {offsets = [0, 0], sizes = [24, 128], strides = [1, 1]} : vector<42x128xf32> to vector<24x128xf32>
    %72 = arith.truncf %71 : vector<24x128xf32> to vector<24x128xbf16>
    %c0_43 = arith.constant 0 : index
    %c0_44 = arith.constant 0 : index
    %c0_45 = arith.constant 0 : index
    %73 = vector.load %arg4[%c0_43, %c0_44, %c0_45] : memref<9x128x128xbf16, #tpu.memory_space<vmem>>, vector<1x128x128xbf16>
    %74 = vector.shape_cast %73 : vector<1x128x128xbf16> to vector<128x128xbf16>
    %cst_46 = arith.constant dense<0.000000e+00> : vector<24x128xf32>
    %75 = tpu.matmul %72, %74, %cst_46 {dimension_numbers = #tpu.dot_dimension_numbers<[1], [0], [0], [1], [0, 0, 1, 1], [], []>} : vector<24x128xbf16>, vector<128x128xbf16>, vector<24x128xf32> -> vector<24x128xf32>
    %76 = arith.addf %70, %75 : vector<24x128xf32>
    %77 = vector.extract_strided_slice %69 {offsets = [1, 0], sizes = [24, 128], strides = [1, 1]} : vector<42x128xf32> to vector<24x128xf32>
    %78 = arith.truncf %77 : vector<24x128xf32> to vector<24x128xbf16>
    %c1_47 = arith.constant 1 : index
    %c0_48 = arith.constant 0 : index
    %c0_49 = arith.constant 0 : index
    %79 = vector.load %arg4[%c1_47, %c0_48, %c0_49] : memref<9x128x128xbf16, #tpu.memory_space<vmem>>, vector<1x128x128xbf16>
    %80 = vector.shape_cast %79 : vector<1x128x128xbf16> to vector<128x128xbf16>
    %cst_50 = arith.constant dense<0.000000e+00> : vector<24x128xf32>
    %81 = tpu.matmul %78, %80, %cst_50 {dimension_numbers = #tpu.dot_dimension_numbers<[1], [0], [0], [1], [0, 0, 1, 1], [], []>} : vector<24x128xbf16>, vector<128x128xbf16>, vector<24x128xf32> -> vector<24x128xf32>
    %82 = arith.addf %76, %81 : vector<24x128xf32>
    %83 = vector.extract_strided_slice %69 {offsets = [2, 0], sizes = [24, 128], strides = [1, 1]} : vector<42x128xf32> to vector<24x128xf32>
    %84 = arith.truncf %83 : vector<24x128xf32> to vector<24x128xbf16>
    %c2_51 = arith.constant 2 : index
    %c0_52 = arith.constant 0 : index
    %c0_53 = arith.constant 0 : index
    %85 = vector.load %arg4[%c2_51, %c0_52, %c0_53] : memref<9x128x128xbf16, #tpu.memory_space<vmem>>, vector<1x128x128xbf16>
    %86 = vector.shape_cast %85 : vector<1x128x128xbf16> to vector<128x128xbf16>
    %cst_54 = arith.constant dense<0.000000e+00> : vector<24x128xf32>
    %87 = tpu.matmul %84, %86, %cst_54 {dimension_numbers = #tpu.dot_dimension_numbers<[1], [0], [0], [1], [0, 0, 1, 1], [], []>} : vector<24x128xbf16>, vector<128x128xbf16>, vector<24x128xf32> -> vector<24x128xf32>
    %88 = arith.addf %82, %87 : vector<24x128xf32>
    %89 = vector.extract_strided_slice %69 {offsets = [6, 0], sizes = [24, 128], strides = [1, 1]} : vector<42x128xf32> to vector<24x128xf32>
    %90 = arith.truncf %89 : vector<24x128xf32> to vector<24x128xbf16>
    %c3_55 = arith.constant 3 : index
    %c0_56 = arith.constant 0 : index
    %c0_57 = arith.constant 0 : index
    %91 = vector.load %arg4[%c3_55, %c0_56, %c0_57] : memref<9x128x128xbf16, #tpu.memory_space<vmem>>, vector<1x128x128xbf16>
    %92 = vector.shape_cast %91 : vector<1x128x128xbf16> to vector<128x128xbf16>
    %cst_58 = arith.constant dense<0.000000e+00> : vector<24x128xf32>
    %93 = tpu.matmul %90, %92, %cst_58 {dimension_numbers = #tpu.dot_dimension_numbers<[1], [0], [0], [1], [0, 0, 1, 1], [], []>} : vector<24x128xbf16>, vector<128x128xbf16>, vector<24x128xf32> -> vector<24x128xf32>
    %94 = arith.addf %88, %93 : vector<24x128xf32>
    %95 = vector.extract_strided_slice %69 {offsets = [7, 0], sizes = [24, 128], strides = [1, 1]} : vector<42x128xf32> to vector<24x128xf32>
    %96 = arith.truncf %95 : vector<24x128xf32> to vector<24x128xbf16>
    %c4_59 = arith.constant 4 : index
    %c0_60 = arith.constant 0 : index
    %c0_61 = arith.constant 0 : index
    %97 = vector.load %arg4[%c4_59, %c0_60, %c0_61] : memref<9x128x128xbf16, #tpu.memory_space<vmem>>, vector<1x128x128xbf16>
    %98 = vector.shape_cast %97 : vector<1x128x128xbf16> to vector<128x128xbf16>
    %cst_62 = arith.constant dense<0.000000e+00> : vector<24x128xf32>
    %99 = tpu.matmul %96, %98, %cst_62 {dimension_numbers = #tpu.dot_dimension_numbers<[1], [0], [0], [1], [0, 0, 1, 1], [], []>} : vector<24x128xbf16>, vector<128x128xbf16>, vector<24x128xf32> -> vector<24x128xf32>
    %100 = arith.addf %94, %99 : vector<24x128xf32>
    %101 = vector.extract_strided_slice %69 {offsets = [8, 0], sizes = [24, 128], strides = [1, 1]} : vector<42x128xf32> to vector<24x128xf32>
    %102 = arith.truncf %101 : vector<24x128xf32> to vector<24x128xbf16>
    %c5_63 = arith.constant 5 : index
    %c0_64 = arith.constant 0 : index
    %c0_65 = arith.constant 0 : index
    %103 = vector.load %arg4[%c5_63, %c0_64, %c0_65] : memref<9x128x128xbf16, #tpu.memory_space<vmem>>, vector<1x128x128xbf16>
    %104 = vector.shape_cast %103 : vector<1x128x128xbf16> to vector<128x128xbf16>
    %cst_66 = arith.constant dense<0.000000e+00> : vector<24x128xf32>
    %105 = tpu.matmul %102, %104, %cst_66 {dimension_numbers = #tpu.dot_dimension_numbers<[1], [0], [0], [1], [0, 0, 1, 1], [], []>} : vector<24x128xbf16>, vector<128x128xbf16>, vector<24x128xf32> -> vector<24x128xf32>
    %106 = arith.addf %100, %105 : vector<24x128xf32>
    %107 = vector.extract_strided_slice %69 {offsets = [12, 0], sizes = [24, 128], strides = [1, 1]} : vector<42x128xf32> to vector<24x128xf32>
    %108 = arith.truncf %107 : vector<24x128xf32> to vector<24x128xbf16>
    %c6_67 = arith.constant 6 : index
    %c0_68 = arith.constant 0 : index
    %c0_69 = arith.constant 0 : index
    %109 = vector.load %arg4[%c6_67, %c0_68, %c0_69] : memref<9x128x128xbf16, #tpu.memory_space<vmem>>, vector<1x128x128xbf16>
    %110 = vector.shape_cast %109 : vector<1x128x128xbf16> to vector<128x128xbf16>
    %cst_70 = arith.constant dense<0.000000e+00> : vector<24x128xf32>
    %111 = tpu.matmul %108, %110, %cst_70 {dimension_numbers = #tpu.dot_dimension_numbers<[1], [0], [0], [1], [0, 0, 1, 1], [], []>} : vector<24x128xbf16>, vector<128x128xbf16>, vector<24x128xf32> -> vector<24x128xf32>
    %112 = arith.addf %106, %111 : vector<24x128xf32>
    %113 = vector.extract_strided_slice %69 {offsets = [13, 0], sizes = [24, 128], strides = [1, 1]} : vector<42x128xf32> to vector<24x128xf32>
    %114 = arith.truncf %113 : vector<24x128xf32> to vector<24x128xbf16>
    %c7_71 = arith.constant 7 : index
    %c0_72 = arith.constant 0 : index
    %c0_73 = arith.constant 0 : index
    %115 = vector.load %arg4[%c7_71, %c0_72, %c0_73] : memref<9x128x128xbf16, #tpu.memory_space<vmem>>, vector<1x128x128xbf16>
    %116 = vector.shape_cast %115 : vector<1x128x128xbf16> to vector<128x128xbf16>
    %cst_74 = arith.constant dense<0.000000e+00> : vector<24x128xf32>
    %117 = tpu.matmul %114, %116, %cst_74 {dimension_numbers = #tpu.dot_dimension_numbers<[1], [0], [0], [1], [0, 0, 1, 1], [], []>} : vector<24x128xbf16>, vector<128x128xbf16>, vector<24x128xf32> -> vector<24x128xf32>
    %118 = arith.addf %112, %117 : vector<24x128xf32>
    %119 = vector.extract_strided_slice %69 {offsets = [14, 0], sizes = [24, 128], strides = [1, 1]} : vector<42x128xf32> to vector<24x128xf32>
    %120 = arith.truncf %119 : vector<24x128xf32> to vector<24x128xbf16>
    %c8_75 = arith.constant 8 : index
    %c0_76 = arith.constant 0 : index
    %c0_77 = arith.constant 0 : index
    %121 = vector.load %arg4[%c8_75, %c0_76, %c0_77] : memref<9x128x128xbf16, #tpu.memory_space<vmem>>, vector<1x128x128xbf16>
    %122 = vector.shape_cast %121 : vector<1x128x128xbf16> to vector<128x128xbf16>
    %cst_78 = arith.constant dense<0.000000e+00> : vector<24x128xf32>
    %123 = tpu.matmul %120, %122, %cst_78 {dimension_numbers = #tpu.dot_dimension_numbers<[1], [0], [0], [1], [0, 0, 1, 1], [], []>} : vector<24x128xbf16>, vector<128x128xbf16>, vector<24x128xf32> -> vector<24x128xf32>
    %124 = arith.addf %118, %123 : vector<24x128xf32>
    %c0_79 = arith.constant 0 : index
    %c0_80 = arith.constant 0 : index
    %125 = vector.load %arg5[%c0_79, %c0_80] : memref<1x128xf32, #tpu.memory_space<vmem>>, vector<1x128xf32>
    %126 = vector.broadcast %125 : vector<1x128xf32> to vector<24x128xf32>
    %127 = arith.addf %124, %126 : vector<24x128xf32>
    %cst_81 = arith.constant 0.000000e+00 : f32
    %128 = vector.broadcast %cst_81 : f32 to vector<24x128xf32>
    %129 = arith.maximumf %127, %128 : vector<24x128xf32>
    %130 = vector.extract_strided_slice %129 {offsets = [0, 0], sizes = [17, 128], strides = [1, 1]} : vector<24x128xf32> to vector<17x128xf32>
    %131 = vector.extract_strided_slice %129 {offsets = [1, 0], sizes = [17, 128], strides = [1, 1]} : vector<24x128xf32> to vector<17x128xf32>
    %132 = arith.maximumf %130, %131 : vector<17x128xf32>
    %133 = vector.extract_strided_slice %129 {offsets = [6, 0], sizes = [17, 128], strides = [1, 1]} : vector<24x128xf32> to vector<17x128xf32>
    %134 = vector.extract_strided_slice %129 {offsets = [7, 0], sizes = [17, 128], strides = [1, 1]} : vector<24x128xf32> to vector<17x128xf32>
    %135 = arith.maximumf %133, %134 : vector<17x128xf32>
    %136 = arith.maximumf %132, %135 : vector<17x128xf32>
    %c0_82 = arith.constant 0 : index
    %c0_83 = arith.constant 0 : index
    %137 = vector.load %arg7[%c0_82, %c0_83] : memref<4x17xbf16, #tpu.memory_space<vmem>>, vector<4x17xbf16>
    %138 = arith.truncf %136 : vector<17x128xf32> to vector<17x128xbf16>
    %cst_84 = arith.constant dense<0.000000e+00> : vector<4x128xf32>
    %139 = tpu.matmul %137, %138, %cst_84 {dimension_numbers = #tpu.dot_dimension_numbers<[1], [0], [0], [1], [0, 0, 1, 1], [], []>} : vector<4x17xbf16>, vector<17x128xbf16>, vector<4x128xf32> -> vector<4x128xf32>
    %140 = arith.truncf %139 : vector<4x128xf32> to vector<4x128xbf16>
    %c0_85 = arith.constant 0 : index
    %c0_86 = arith.constant 0 : index
    %c0_87 = arith.constant 0 : index
    %141 = vector.load %arg8[%c0_85, %c0_86, %c0_87] : memref<1x4x128xbf16, #tpu.memory_space<vmem>>, vector<1x4x128xbf16>
    %142 = vector.shape_cast %141 : vector<1x4x128xbf16> to vector<4x128xbf16>
    %143 = vector.shape_cast %140 : vector<4x128xbf16> to vector<1x4x128xbf16>
    tpu.vector_store %arg8[%c0_85, %c0_86, %c0_87], %143 {strides = array<i32>} : memref<1x4x128xbf16, #tpu.memory_space<vmem>>, vector<1x4x128xbf16>,
    return
  }
  func.func @transform_0(%arg0: i32) -> (i32, i32, i32) {
    %c0_i32 = arith.constant 0 : i32
    %c0_i32_0 = arith.constant 0 : i32
    %c0_i32_1 = arith.constant 0 : i32
    return %arg0, %c0_i32, %c0_i32_0 : i32, i32, i32
  }
  func.func @transform_1(%arg0: i32) -> (i32, i32, i32) {
    %c0_i32 = arith.constant 0 : i32
    %c0_i32_0 = arith.constant 0 : i32
    %c0_i32_1 = arith.constant 0 : i32
    %c0_i32_2 = arith.constant 0 : i32
    return %c0_i32, %c0_i32_0, %c0_i32_1 : i32, i32, i32
  }
  func.func @transform_2(%arg0: i32) -> (i32, i32) {
    %c0_i32 = arith.constant 0 : i32
    %c0_i32_0 = arith.constant 0 : i32
    %c0_i32_1 = arith.constant 0 : i32
    return %c0_i32, %c0_i32_0 : i32, i32
  }
  func.func @transform_3(%arg0: i32) -> (i32, i32, i32) {
    %c0_i32 = arith.constant 0 : i32
    %c0_i32_0 = arith.constant 0 : i32
    %c0_i32_1 = arith.constant 0 : i32
    %c0_i32_2 = arith.constant 0 : i32
    return %c0_i32, %c0_i32_0, %c0_i32_1 : i32, i32, i32
  }
  func.func @transform_4(%arg0: i32) -> (i32, i32) {
    %c0_i32 = arith.constant 0 : i32
    %c0_i32_0 = arith.constant 0 : i32
    %c0_i32_1 = arith.constant 0 : i32
    return %c0_i32, %c0_i32_0 : i32, i32
  }
  func.func @transform_5(%arg0: i32) -> (i32, i32) {
    %c0_i32 = arith.constant 0 : i32
    %c0_i32_0 = arith.constant 0 : i32
    %c0_i32_1 = arith.constant 0 : i32
    return %c0_i32, %c0_i32_0 : i32, i32
  }
  func.func @transform_6(%arg0: i32) -> (i32, i32) {
    %c0_i32 = arith.constant 0 : i32
    %c0_i32_0 = arith.constant 0 : i32
    %c0_i32_1 = arith.constant 0 : i32
    return %c0_i32, %c0_i32_0 : i32, i32
  }
  func.func @transform_7(%arg0: i32) -> (i32, i32, i32) {
    %c0_i32 = arith.constant 0 : i32
    %c0_i32_0 = arith.constant 0 : i32
    %c0_i32_1 = arith.constant 0 : i32
    return %arg0, %c0_i32, %c0_i32_0 : i32, i32, i32
  }
}

</mosaic_0001>

<llo_original>
// kernel: conv_net_forward.7
$region0: #{conv_net_forward.7}
  #allocation0 [shape = 'u32[]', space=smem, size = 0x4, offset = 0x4, fixed_abs, tag = 'smem constant byte address 0x4 - core index']
  #allocation1 [shape = 'u32[72,128]{1,0:T(1,128)}', space=vmem, size = 0x9000, scoped, tag = 'internal scratch']
  %s0 = inlined_call_operand.vmem [shape: bf16[2,512], index: 0, kind: input, shape index: {}]
  %s1 = inlined_call_operand.vmem [shape: bf16[512,256], index: 1, kind: input, shape index: {}]
  %s2 = inlined_call_operand.vmem [shape: f32[1,256], index: 2, kind: input, shape index: {}]
  %s3 = inlined_call_operand.hbm [shape: bf16[256,128], index: 3, kind: input, shape index: {}]
  %s4 = inlined_call_operand.hbm [shape: f32[1,128], index: 4, kind: input, shape index: {}]
  %s5 = inlined_call_operand.vmem [shape: f32[2,128], index: 5, kind: output, shape index: {}]
  %s6 = sld [smem:[#allocation0]]
  $region38: #{conv_net_forward.7} parent=0
    _
  %s8 = ssub.s32 1, %s6
  %s9 = scalar_select 0, %s8, %s6
  $region1: #{conv_net_forward.7} parent=0
    #allocation2 [shape = 'u8[65536]{0}', space=vmem, size = 0x10000, scoped, tag = 'input window, operand 3, single buffered']
    #allocation3 [shape = 's32[1]{0}', space=sflag, size = 0x4, scoped, tag = 'scoped memory for conv_net_forward.7']
    #allocation4 [shape = 'u8[512]{0}', space=vmem, size = 0x400, scoped, tag = 'input window, operand 4, single buffered']
    #allocation5 [shape = 's32[1]{0}', space=sflag, size = 0x4, scoped, tag = 'scoped memory for conv_net_forward.7']
    %10 = vsyncpa [#allocation3], 0
    %11 = vsyncpa [#allocation5], 0
    // Predicated region
    $region2: #{conv_net_forward.7} parent=1 // pred_check
      _
    $region3: #{conv_net_forward.7} parent=1 // pred_check_branch
      %13 = sbr.rel (0) target = $region5
    $region4: #{conv_net_forward.7} parent=1 // pred_region
      _
    $region5: #{conv_net_forward.7} parent=1 // pred_fallthru
      _
    // Predicated region
    $region6: #{conv_net_forward.7} parent=1 // pred_check
      _
    $region7: #{conv_net_forward.7} parent=1 // pred_check_branch
      %15 = sbr.rel (0) target = $region9
    $region8: #{conv_net_forward.7} parent=1 // pred_region
      _
    $region9: #{conv_net_forward.7} parent=1 // pred_fallthru
      _
    // Predicated region
    $region10: #{conv_net_forward.7} parent=1 // pred_check
      _
    $region11: #{conv_net_forward.7} parent=1 // pred_check_branch
      %17 = sbr.rel (0) target = $region13
    $region12: #{conv_net_forward.7} parent=1 // pred_region
      _
    $region13: #{conv_net_forward.7} parent=1 // pred_fallthru
      _
    // Predicated region
    $region14: #{conv_net_forward.7} parent=1 // pred_check
      _
    $region15: #{conv_net_forward.7} parent=1 // pred_check_branch
      %19 = sbr.rel (0) target = $region17
    $region16: #{conv_net_forward.7} parent=1 // pred_region
      %21 = vsyncadd [#allocation3], 0
      %s22 = sshll.u32 %s3, 4
      %s23 = int_to_ptr.hbm [resolvable:$true] %s22
      %s24 = sshll.u32 [#allocation2], 4
      %s25 = int_to_ptr.vmem [resolvable:$true] %s24
      %30 = dma.hbm_to_vmem [thread:$0]  %s23, 2048, %s25, [#allocation3], 64, 64, 4
    $region17: #{conv_net_forward.7} parent=1 // pred_fallthru
      _
    // Predicated region
    $region18: #{conv_net_forward.7} parent=1 // pred_check
      _
    $region19: #{conv_net_forward.7} parent=1 // pred_check_branch
      %32 = sbr.rel (0) target = $region21
    $region20: #{conv_net_forward.7} parent=1 // pred_region
      %34 = vsyncadd [#allocation5], 0
      %s36 = sshll.u32 %s4, 4
      %s37 = int_to_ptr.hbm [resolvable:$true] %s36
      %s38 = sshll.u32 [#allocation4], 4
      %s39 = int_to_ptr.vmem [resolvable:$true] %s38
      %41 = dma.hbm_to_vmem [thread:$0]  %s37, 16, %s39, [#allocation5]
    $region21: #{conv_net_forward.7} parent=1 // pred_fallthru
      _
    // Predicated region
    $region22: #{conv_net_forward.7} parent=1 // pred_check
      _
    $region23: #{conv_net_forward.7} parent=1 // pred_check_branch
      %43 = sbr.rel (0) target = $region25
    $region24: #{conv_net_forward.7} parent=1 // pred_region
      %45 = dma.done [#allocation3], 2048
    $region25: #{conv_net_forward.7} parent=1 // pred_fallthru
      _
    // Predicated region
    $region26: #{conv_net_forward.7} parent=1 // pred_check
      _
    $region27: #{conv_net_forward.7} parent=1 // pred_check_branch
      %47 = sbr.rel (0) target = $region29
    $region28: #{conv_net_forward.7} parent=1 // pred_region
      %49 = dma.done [#allocation5], 16
    $region29: #{conv_net_forward.7} parent=1 // pred_fallthru
      _
    %v50 = vld [vmem:[%s0] sm:$0xf]
    %v51 = vld [vmem:[%s1] sm:$0xff]
    %v52 = vld [vmem:[%s1 + $0x8] sm:$0xff]
    %v53 = vld [vmem:[%s1 + $0x10] sm:$0xff]
    %v54 = vld [vmem:[%s1 + $0x18] sm:$0xff]
    %v55 = vld [vmem:[%s1 + $0x20] sm:$0xff]
    %v56 = vld [vmem:[%s1 + $0x28] sm:$0xff]
    %v57 = vld [vmem:[%s1 + $0x30] sm:$0xff]
    %v58 = vld [vmem:[%s1 + $0x38] sm:$0xff]
    %v59 = vld [vmem:[%s1 + $0x40] sm:$0xff]
    %v60 = vld [vmem:[%s1 + $0x48] sm:$0xff]
    %v61 = vld [vmem:[%s1 + $0x50] sm:$0xff]
    %v62 = vld [vmem:[%s1 + $0x58] sm:$0xff]
    %v63 = vld [vmem:[%s1 + $0x60] sm:$0xff]
    %v64 = vld [vmem:[%s1 + $0x68] sm:$0xff]
    %v65 = vld [vmem:[%s1 + $0x70] sm:$0xff]
    %v66 = vld [vmem:[%s1 + $0x78] sm:$0xff]
    %v67 = vld [vmem:[%s1 + $0x80] sm:$0xff]
    %v68 = vld [vmem:[%s1 + $0x88] sm:$0xff]
    %v69 = vld [vmem:[%s1 + $0x90] sm:$0xff]
    %v70 = vld [vmem:[%s1 + $0x98] sm:$0xff]
    %v71 = vld [vmem:[%s1 + $0xa0] sm:$0xff]
    %v72 = vld [vmem:[%s1 + $0xa8] sm:$0xff]
    %v73 = vld [vmem:[%s1 + $0xb0] sm:$0xff]
    %v74 = vld [vmem:[%s1 + $0xb8] sm:$0xff]
    %v75 = vld [vmem:[%s1 + $0xc0] sm:$0xff]
    %v76 = vld [vmem:[%s1 + $0xc8] sm:$0xff]
    %v77 = vld [vmem:[%s1 + $0xd0] sm:$0xff]
    %v78 = vld [vmem:[%s1 + $0xd8] sm:$0xff]
    %v79 = vld [vmem:[%s1 + $0xe0] sm:$0xff]
    %v80 = vld [vmem:[%s1 + $0xe8] sm:$0xff]
    %v81 = vld [vmem:[%s1 + $0xf0] sm:$0xff]
    %v82 = vld [vmem:[%s1 + $0xf8] sm:$0xff]
    %v83 = vld [vmem:[%s1 + $0x100] sm:$0xff]
    %v84 = vld [vmem:[%s1 + $0x108] sm:$0xff]
    %v85 = vld [vmem:[%s1 + $0x110] sm:$0xff]
    %v86 = vld [vmem:[%s1 + $0x118] sm:$0xff]
    %v87 = vld [vmem:[%s1 + $0x120] sm:$0xff]
    %v88 = vld [vmem:[%s1 + $0x128] sm:$0xff]
    %v89 = vld [vmem:[%s1 + $0x130] sm:$0xff]
    %v90 = vld [vmem:[%s1 + $0x138] sm:$0xff]
    %v91 = vld [vmem:[%s1 + $0x140] sm:$0xff]
    %v92 = vld [vmem:[%s1 + $0x148] sm:$0xff]
    %v93 = vld [vmem:[%s1 + $0x150] sm:$0xff]
    %v94 = vld [vmem:[%s1 + $0x158] sm:$0xff]
    %v95 = vld [vmem:[%s1 + $0x160] sm:$0xff]
    %v96 = vld [vmem:[%s1 + $0x168] sm:$0xff]
    %v97 = vld [vmem:[%s1 + $0x170] sm:$0xff]
    %v98 = vld [vmem:[%s1 + $0x178] sm:$0xff]
    %v99 = vld [vmem:[%s1 + $0x180] sm:$0xff]
    %v100 = vld [vmem:[%s1 + $0x188] sm:$0xff]
    %v101 = vld [vmem:[%s1 + $0x190] sm:$0xff]
    %v102 = vld [vmem:[%s1 + $0x198] sm:$0xff]
    %v103 = vld [vmem:[%s1 + $0x1a0] sm:$0xff]
    %v104 = vld [vmem:[%s1 + $0x1a8] sm:$0xff]
    %v105 = vld [vmem:[%s1 + $0x1b0] sm:$0xff]
    %v106 = vld [vmem:[%s1 + $0x1b8] sm:$0xff]
    %v107 = vld [vmem:[%s1 + $0x1c0] sm:$0xff]
    %v108 = vld [vmem:[%s1 + $0x1c8] sm:$0xff]
    %v109 = vld [vmem:[%s1 + $0x1d0] sm:$0xff]
    %v110 = vld [vmem:[%s1 + $0x1d8] sm:$0xff]
    %v111 = vld [vmem:[%s1 + $0x1e0] sm:$0xff]
    %v112 = vld [vmem:[%s1 + $0x1e8] sm:$0xff]
    %v113 = vld [vmem:[%s1 + $0x1f0] sm:$0xff]
    %v114 = vld [vmem:[%s1 + $0x1f8] sm:$0xff]
    %v115 = vld [vmem:[%s2] sm:$0x3]
    %v117 = vperm.slane %v115, 0
    %v118 = vperm.slane %v115, 1
    %122 = vst [vmem:[#allocation1] ss:$9 sm:$0xff] %v50
    %v123 = vld [vmem:[#allocation1] sm:$0xff]
    %v124 = vld [vmem:[#allocation1 + $0x9] sm:$0xff]
    %v125 = vld [vmem:[#allocation1 + $0x12] sm:$0xff]
    %v126 = vld [vmem:[#allocation1 + $0x1b] sm:$0xff]
    %v195 = vunpack.c.l.b16 %v51
    %v196 = vunpack.c.h.b16 %v51
    %v197 = vunpack.c.l.b16 %v52
    %v198 = vunpack.c.h.b16 %v52
    %v199 = vunpack.c.l.b16 %v53
    %v200 = vunpack.c.h.b16 %v53
    %v201 = vunpack.c.l.b16 %v54
    %v202 = vunpack.c.h.b16 %v54
    %v203 = vunpack.c.l.b16 %v55
    %v204 = vunpack.c.h.b16 %v55
    %v205 = vunpack.c.l.b16 %v56
    %v206 = vunpack.c.h.b16 %v56
    %v207 = vunpack.c.l.b16 %v57
    %v208 = vunpack.c.h.b16 %v57
    %v209 = vunpack.c.l.b16 %v58
    %v210 = vunpack.c.h.b16 %v58
    %v211 = vunpack.c.l.b16 %v59
    %v212 = vunpack.c.h.b16 %v59
    %v213 = vunpack.c.l.b16 %v60
    %v214 = vunpack.c.h.b16 %v60
    %v215 = vunpack.c.l.b16 %v61
    %v216 = vunpack.c.h.b16 %v61
    %v217 = vunpack.c.l.b16 %v62
    %v218 = vunpack.c.h.b16 %v62
    %v219 = vunpack.c.l.b16 %v63
    %v220 = vunpack.c.h.b16 %v63
    %v221 = vunpack.c.l.b16 %v64
    %v222 = vunpack.c.h.b16 %v64
    %v223 = vunpack.c.l.b16 %v65
    %v224 = vunpack.c.h.b16 %v65
    %v225 = vunpack.c.l.b16 %v66
    %v226 = vunpack.c.h.b16 %v66
    %v227 = vunpack.c.l.b16 %v67
    %v228 = vunpack.c.h.b16 %v67
    %v229 = vunpack.c.l.b16 %v68
    %v230 = vunpack.c.h.b16 %v68
    %v231 = vunpack.c.l.b16 %v69
    %v232 = vunpack.c.h.b16 %v69
    %v233 = vunpack.c.l.b16 %v70
    %v234 = vunpack.c.h.b16 %v70
    %v235 = vunpack.c.l.b16 %v71
    %v236 = vunpack.c.h.b16 %v71
    %v237 = vunpack.c.l.b16 %v72
    %v238 = vunpack.c.h.b16 %v72
    %v239 = vunpack.c.l.b16 %v73
    %v240 = vunpack.c.h.b16 %v73
    %v241 = vunpack.c.l.b16 %v74
    %v242 = vunpack.c.h.b16 %v74
    %v243 = vunpack.c.l.b16 %v75
    %v244 = vunpack.c.h.b16 %v75
    %v245 = vunpack.c.l.b16 %v76
    %v246 = vunpack.c.h.b16 %v76
    %v247 = vunpack.c.l.b16 %v77
    %v248 = vunpack.c.h.b16 %v77
    %v249 = vunpack.c.l.b16 %v78
    %v250 = vunpack.c.h.b16 %v78
    %v251 = vunpack.c.l.b16 %v79
    %v252 = vunpack.c.h.b16 %v79
    %v253 = vunpack.c.l.b16 %v80
    %v254 = vunpack.c.h.b16 %v80
    %v255 = vunpack.c.l.b16 %v81
    %v256 = vunpack.c.h.b16 %v81
    %v257 = vunpack.c.l.b16 %v82
    %v258 = vunpack.c.h.b16 %v82
    %v259 = vunpack.c.l.b16 %v83
    %v260 = vunpack.c.h.b16 %v83
    %v261 = vunpack.c.l.b16 %v84
    %v262 = vunpack.c.h.b16 %v84
    %v263 = vunpack.c.l.b16 %v85
    %v264 = vunpack.c.h.b16 %v85
    %v265 = vunpack.c.l.b16 %v86
    %v266 = vunpack.c.h.b16 %v86
    %v267 = vunpack.c.l.b16 %v87
    %v268 = vunpack.c.h.b16 %v87
    %v269 = vunpack.c.l.b16 %v88
    %v270 = vunpack.c.h.b16 %v88
    %v271 = vunpack.c.l.b16 %v89
    %v272 = vunpack.c.h.b16 %v89
    %v273 = vunpack.c.l.b16 %v90
    %v274 = vunpack.c.h.b16 %v90
    %v275 = vunpack.c.l.b16 %v91
    %v276 = vunpack.c.h.b16 %v91
    %v277 = vunpack.c.l.b16 %v92
    %v278 = vunpack.c.h.b16 %v92
    %v279 = vunpack.c.l.b16 %v93
    %v280 = vunpack.c.h.b16 %v93
    %v281 = vunpack.c.l.b16 %v94
    %v282 = vunpack.c.h.b16 %v94
    %v283 = vunpack.c.l.b16 %v95
    %v284 = vunpack.c.h.b16 %v95
    %v285 = vunpack.c.l.b16 %v96
    %v286 = vunpack.c.h.b16 %v96
    %v287 = vunpack.c.l.b16 %v97
    %v288 = vunpack.c.h.b16 %v97
    %v289 = vunpack.c.l.b16 %v98
    %v290 = vunpack.c.h.b16 %v98
    %v291 = vunpack.c.l.b16 %v99
    %v292 = vunpack.c.h.b16 %v99
    %v293 = vunpack.c.l.b16 %v100
    %v294 = vunpack.c.h.b16 %v100
    %v295 = vunpack.c.l.b16 %v101
    %v296 = vunpack.c.h.b16 %v101
    %v297 = vunpack.c.l.b16 %v102
    %v298 = vunpack.c.h.b16 %v102
    %v299 = vunpack.c.l.b16 %v103
    %v300 = vunpack.c.h.b16 %v103
    %v301 = vunpack.c.l.b16 %v104
    %v302 = vunpack.c.h.b16 %v104
    %v303 = vunpack.c.l.b16 %v105
    %v304 = vunpack.c.h.b16 %v105
    %v305 = vunpack.c.l.b16 %v106
    %v306 = vunpack.c.h.b16 %v106
    %v307 = vunpack.c.l.b16 %v107
    %v308 = vunpack.c.h.b16 %v107
    %v309 = vunpack.c.l.b16 %v108
    %v310 = vunpack.c.h.b16 %v108
    %v311 = vunpack.c.l.b16 %v109
    %v312 = vunpack.c.h.b16 %v109
    %v313 = vunpack.c.l.b16 %v110
    %v314 = vunpack.c.h.b16 %v110
    %v315 = vunpack.c.l.b16 %v111
    %v316 = vunpack.c.h.b16 %v111
    %v317 = vunpack.c.l.b16 %v112
    %v318 = vunpack.c.h.b16 %v112
    %v319 = vunpack.c.l.b16 %v113
    %v320 = vunpack.c.h.b16 %v113
    %v321 = vunpack.c.l.b16 %v114
    %v322 = vunpack.c.h.b16 %v114
    %v323 = vpack.c.b16 %v197, %v195
    %v324 = vpack.c.b16 %v198, %v196
    %v325 = vpack.c.b16 %v201, %v199
    %v326 = vpack.c.b16 %v202, %v200
    %v327 = vpack.c.b16 %v205, %v203
    %v328 = vpack.c.b16 %v206, %v204
    %v329 = vpack.c.b16 %v209, %v207
    %v330 = vpack.c.b16 %v210, %v208
    %v331 = vpack.c.b16 %v213, %v211
    %v332 = vpack.c.b16 %v214, %v212
    %v333 = vpack.c.b16 %v217, %v215
    %v334 = vpack.c.b16 %v218, %v216
    %v335 = vpack.c.b16 %v221, %v219
    %v336 = vpack.c.b16 %v222, %v220
    %v337 = vpack.c.b16 %v225, %v223
    %v338 = vpack.c.b16 %v226, %v224
    %v339 = vpack.c.b16 %v229, %v227
    %v340 = vpack.c.b16 %v230, %v228
    %v341 = vpack.c.b16 %v233, %v231
    %v342 = vpack.c.b16 %v234, %v232
    %v343 = vpack.c.b16 %v237, %v235
    %v344 = vpack.c.b16 %v238, %v236
    %v345 = vpack.c.b16 %v241, %v239
    %v346 = vpack.c.b16 %v242, %v240
    %v347 = vpack.c.b16 %v245, %v243
    %v348 = vpack.c.b16 %v246, %v244
    %v349 = vpack.c.b16 %v249, %v247
    %v350 = vpack.c.b16 %v250, %v248
    %v351 = vpack.c.b16 %v253, %v251
    %v352 = vpack.c.b16 %v254, %v252
    %v353 = vpack.c.b16 %v257, %v255
    %v354 = vpack.c.b16 %v258, %v256
    %v355 = vpack.c.b16 %v261, %v259
    %v356 = vpack.c.b16 %v262, %v260
    %v357 = vpack.c.b16 %v265, %v263
    %v358 = vpack.c.b16 %v266, %v264
    %v359 = vpack.c.b16 %v269, %v267
    %v360 = vpack.c.b16 %v270, %v268
    %v361 = vpack.c.b16 %v273, %v271
    %v362 = vpack.c.b16 %v274, %v272
    %v363 = vpack.c.b16 %v277, %v275
    %v364 = vpack.c.b16 %v278, %v276
    %v365 = vpack.c.b16 %v281, %v279
    %v366 = vpack.c.b16 %v282, %v280
    %v367 = vpack.c.b16 %v285, %v283
    %v368 = vpack.c.b16 %v286, %v284
    %v369 = vpack.c.b16 %v289, %v287
    %v370 = vpack.c.b16 %v290, %v288
    %v371 = vpack.c.b16 %v293, %v291
    %v372 = vpack.c.b16 %v294, %v292
    %v373 = vpack.c.b16 %v297, %v295
    %v374 = vpack.c.b16 %v298, %v296
    %v375 = vpack.c.b16 %v301, %v299
    %v376 = vpack.c.b16 %v302, %v300
    %v377 = vpack.c.b16 %v305, %v303
    %v378 = vpack.c.b16 %v306, %v304
    %v379 = vpack.c.b16 %v309, %v307
    %v380 = vpack.c.b16 %v310, %v308
    %v381 = vpack.c.b16 %v313, %v311
    %v382 = vpack.c.b16 %v314, %v312
    %v383 = vpack.c.b16 %v317, %v315
    %v384 = vpack.c.b16 %v318, %v316
    %v385 = vpack.c.b16 %v321, %v319
    %v386 = vpack.c.b16 %v322, %v320
    %451 = vmatpush.bf16.msra.mxu0 %v337
    %452 = vmatpush.bf16.msra.mxu0 %v335
    %453 = vmatpush.bf16.msra.mxu0 %v333
    %454 = vmatpush.bf16.msra.mxu0 %v331
    %455 = vmatpush.bf16.msra.mxu0 %v329
    %456 = vmatpush.bf16.msra.mxu0 %v327
    %457 = vmatpush.bf16.msra.mxu0 %v325
    %458 = vmatpush.bf16.msra.mxu0 %v323
    %459 = vmatmul.bf16.gmra.mxu0 %v123
    %v460 = vpop.f32.mrf.mxu0
    %v461 = vadd.f32 %v117, %v460
    %v462 = vpop.f32.mrf.mxu0
    %463 = vdwg.mxu0
    %464 = vmatpush.bf16.msra.mxu0 %v353
    %465 = vmatpush.bf16.msra.mxu0 %v351
    %466 = vmatpush.bf16.msra.mxu0 %v349
    %467 = vmatpush.bf16.msra.mxu0 %v347
    %468 = vmatpush.bf16.msra.mxu0 %v345
    %469 = vmatpush.bf16.msra.mxu0 %v343
    %470 = vmatpush.bf16.msra.mxu0 %v341
    %471 = vmatpush.bf16.msra.mxu0 %v339
    %472 = vmatmul.bf16.gmra.mxu0 %v124
    %v473 = vpop.f32.mrf.mxu0
    %v474 = vadd.f32 %v461, %v473
    %v475 = vpop.f32.mrf.mxu0
    %476 = vdwg.mxu0
    %477 = vmatpush.bf16.msra.mxu0 %v369
    %478 = vmatpush.bf16.msra.mxu0 %v367
    %479 = vmatpush.bf16.msra.mxu0 %v365
    %480 = vmatpush.bf16.msra.mxu0 %v363
    %481 = vmatpush.bf16.msra.mxu0 %v361
    %482 = vmatpush.bf16.msra.mxu0 %v359
    %483 = vmatpush.bf16.msra.mxu0 %v357
    %484 = vmatpush.bf16.msra.mxu0 %v355
    %485 = vmatmul.bf16.gmra.mxu0 %v125
    %v486 = vpop.f32.mrf.mxu0
    %v487 = vadd.f32 %v474, %v486
    %v488 = vpop.f32.mrf.mxu0
    %489 = vdwg.mxu0
    %490 = vmatpush.bf16.msra.mxu0 %v385
    %491 = vmatpush.bf16.msra.mxu0 %v383
    %492 = vmatpush.bf16.msra.mxu0 %v381
    %493 = vmatpush.bf16.msra.mxu0 %v379
    %494 = vmatpush.bf16.msra.mxu0 %v377
    %495 = vmatpush.bf16.msra.mxu0 %v375
    %496 = vmatpush.bf16.msra.mxu0 %v373
    %497 = vmatpush.bf16.msra.mxu0 %v371
    %498 = vmatmul.bf16.gmra.mxu0 %v126
    %v499 = vpop.f32.mrf.mxu0
    %v500 = vadd.f32 %v487, %v499
    %v501 = vpop.f32.mrf.mxu0
    %502 = vdwg.mxu0
    %503 = vmatpush.bf16.msra.mxu0 %v338
    %504 = vmatpush.bf16.msra.mxu0 %v336
    %505 = vmatpush.bf16.msra.mxu0 %v334
    %506 = vmatpush.bf16.msra.mxu0 %v332
    %507 = vmatpush.bf16.msra.mxu0 %v330
    %508 = vmatpush.bf16.msra.mxu0 %v328
    %509 = vmatpush.bf16.msra.mxu0 %v326
    %510 = vmatpush.bf16.msra.mxu0 %v324
    %511 = vmatmul.bf16.gmra.mxu0 %v123
    %v512 = vpop.f32.mrf.mxu0
    %v513 = vadd.f32 %v118, %v512
    %v514 = vpop.f32.mrf.mxu0
    %515 = vdwg.mxu0
    %516 = vmatpush.bf16.msra.mxu0 %v354
    %517 = vmatpush.bf16.msra.mxu0 %v352
    %518 = vmatpush.bf16.msra.mxu0 %v350
    %519 = vmatpush.bf16.msra.mxu0 %v348
    %520 = vmatpush.bf16.msra.mxu0 %v346
    %521 = vmatpush.bf16.msra.mxu0 %v344
    %522 = vmatpush.bf16.msra.mxu0 %v342
    %523 = vmatpush.bf16.msra.mxu0 %v340
    %524 = vmatmul.bf16.gmra.mxu0 %v124
    %v525 = vpop.f32.mrf.mxu0
    %v526 = vadd.f32 %v513, %v525
    %v527 = vpop.f32.mrf.mxu0
    %528 = vdwg.mxu0
    %529 = vmatpush.bf16.msra.mxu0 %v370
    %530 = vmatpush.bf16.msra.mxu0 %v368
    %531 = vmatpush.bf16.msra.mxu0 %v366
    %532 = vmatpush.bf16.msra.mxu0 %v364
    %533 = vmatpush.bf16.msra.mxu0 %v362
    %534 = vmatpush.bf16.msra.mxu0 %v360
    %535 = vmatpush.bf16.msra.mxu0 %v358
    %536 = vmatpush.bf16.msra.mxu0 %v356
    %537 = vmatmul.bf16.gmra.mxu0 %v125
    %v538 = vpop.f32.mrf.mxu0
    %v539 = vadd.f32 %v526, %v538
    %v540 = vpop.f32.mrf.mxu0
    %541 = vdwg.mxu0
    %542 = vmatpush.bf16.msra.mxu0 %v386
    %543 = vmatpush.bf16.msra.mxu0 %v384
    %544 = vmatpush.bf16.msra.mxu0 %v382
    %545 = vmatpush.bf16.msra.mxu0 %v380
    %546 = vmatpush.bf16.msra.mxu0 %v378
    %547 = vmatpush.bf16.msra.mxu0 %v376
    %548 = vmatpush.bf16.msra.mxu0 %v374
    %549 = vmatpush.bf16.msra.mxu0 %v372
    %550 = vmatmul.bf16.gmra.mxu0 %v126
    %v551 = vpop.f32.mrf.mxu0
    %v552 = vadd.f32 %v539, %v551
    %v553 = vpop.f32.mrf.mxu0
    %554 = vdwg.mxu0
    %v555 = vmax.f32 %v500, 0.0
    %v556 = vmax.f32 %v552, 0.0
    %v557 = vpack.c.bf16 %v555, %v555
    %v558 = vpack.c.bf16 %v556, %v556
    %v559 = vld [vmem:[#allocation2] sm:$0xf]
    %v560 = vld [vmem:[#allocation2 + $0x4] sm:$0xf]
    %v561 = vld [vmem:[#allocation2 + $0x8] sm:$0xf]
    %v562 = vld [vmem:[#allocation2 + $0xc] sm:$0xf]
    %v563 = vld [vmem:[#allocation2 + $0x10] sm:$0xf]
    %v564 = vld [vmem:[#allocation2 + $0x14] sm:$0xf]
    %v565 = vld [vmem:[#allocation2 + $0x18] sm:$0xf]
    %v566 = vld [vmem:[#allocation2 + $0x1c] sm:$0xf]
    %v567 = vld [vmem:[#allocation2 + $0x20] sm:$0xf]
    %v568 = vld [vmem:[#allocation2 + $0x24] sm:$0xf]
    %v569 = vld [vmem:[#allocation2 + $0x28] sm:$0xf]
    %v570 = vld [vmem:[#allocation2 + $0x2c] sm:$0xf]
    %v571 = vld [vmem:[#allocation2 + $0x30] sm:$0xf]
    %v572 = vld [vmem:[#allocation2 + $0x34] sm:$0xf]
    %v573 = vld [vmem:[#allocation2 + $0x38] sm:$0xf]
    %v574 = vld [vmem:[#allocation2 + $0x3c] sm:$0xf]
    %v575 = vld [vmem:[#allocation2 + $0x40] sm:$0xf]
    %v576 = vld [vmem:[#allocation2 + $0x44] sm:$0xf]
    %v577 = vld [vmem:[#allocation2 + $0x48] sm:$0xf]
    %v578 = vld [vmem:[#allocation2 + $0x4c] sm:$0xf]
    %v579 = vld [vmem:[#allocation2 + $0x50] sm:$0xf]
    %v580 = vld [vmem:[#allocation2 + $0x54] sm:$0xf]
    %v581 = vld [vmem:[#allocation2 + $0x58] sm:$0xf]
    %v582 = vld [vmem:[#allocation2 + $0x5c] sm:$0xf]
    %v583 = vld [vmem:[#allocation2 + $0x60] sm:$0xf]
    %v584 = vld [vmem:[#allocation2 + $0x64] sm:$0xf]
    %v585 = vld [vmem:[#allocation2 + $0x68] sm:$0xf]
    %v586 = vld [vmem:[#allocation2 + $0x6c] sm:$0xf]
    %v587 = vld [vmem:[#allocation2 + $0x70] sm:$0xf]
    %v588 = vld [vmem:[#allocation2 + $0x74] sm:$0xf]
    %v589 = vld [vmem:[#allocation2 + $0x78] sm:$0xf]
    %v590 = vld [vmem:[#allocation2 + $0x7c] sm:$0xf]
    %v591 = vld [vmem:[#allocation4] sm:$0x1]
    %v593 = vperm.slane %v591, 0
    %v627 = vunpack.c.l.b16 %v559
    %v628 = vunpack.c.l.b16 %v560
    %v629 = vunpack.c.l.b16 %v561
    %v630 = vunpack.c.l.b16 %v562
    %v631 = vunpack.c.l.b16 %v563
    %v632 = vunpack.c.l.b16 %v564
    %v633 = vunpack.c.l.b16 %v565
    %v634 = vunpack.c.l.b16 %v566
    %v635 = vunpack.c.l.b16 %v567
    %v636 = vunpack.c.l.b16 %v568
    %v637 = vunpack.c.l.b16 %v569
    %v638 = vunpack.c.l.b16 %v570
    %v639 = vunpack.c.l.b16 %v571
    %v640 = vunpack.c.l.b16 %v572
    %v641 = vunpack.c.l.b16 %v573
    %v642 = vunpack.c.l.b16 %v574
    %v643 = vunpack.c.l.b16 %v575
    %v644 = vunpack.c.l.b16 %v576
    %v645 = vunpack.c.l.b16 %v577
    %v646 = vunpack.c.l.b16 %v578
    %v647 = vunpack.c.l.b16 %v579
    %v648 = vunpack.c.l.b16 %v580
    %v649 = vunpack.c.l.b16 %v581
    %v650 = vunpack.c.l.b16 %v582
    %v651 = vunpack.c.l.b16 %v583
    %v652 = vunpack.c.l.b16 %v584
    %v653 = vunpack.c.l.b16 %v585
    %v654 = vunpack.c.l.b16 %v586
    %v655 = vunpack.c.l.b16 %v587
    %v656 = vunpack.c.l.b16 %v588
    %v657 = vunpack.c.l.b16 %v589
    %v658 = vunpack.c.l.b16 %v590
    %v659 = vpack.c.b16 %v628, %v627
    %v660 = vpack.c.b16 %v630, %v629
    %v661 = vpack.c.b16 %v632, %v631
    %v662 = vpack.c.b16 %v634, %v633
    %v663 = vpack.c.b16 %v636, %v635
    %v664 = vpack.c.b16 %v638, %v637
    %v665 = vpack.c.b16 %v640, %v639
    %v666 = vpack.c.b16 %v642, %v641
    %v667 = vpack.c.b16 %v644, %v643
    %v668 = vpack.c.b16 %v646, %v645
    %v669 = vpack.c.b16 %v648, %v647
    %v670 = vpack.c.b16 %v650, %v649
    %v671 = vpack.c.b16 %v652, %v651
    %v672 = vpack.c.b16 %v654, %v653
    %v673 = vpack.c.b16 %v656, %v655
    %v674 = vpack.c.b16 %v658, %v657
    %691 = vmatpush.bf16.msra.mxu0 %v666
    %692 = vmatpush.bf16.msra.mxu0 %v665
    %693 = vmatpush.bf16.msra.mxu0 %v664
    %694 = vmatpush.bf16.msra.mxu0 %v663
    %695 = vmatpush.bf16.msra.mxu0 %v662
    %696 = vmatpush.bf16.msra.mxu0 %v661
    %697 = vmatpush.bf16.msra.mxu0 %v660
    %698 = vmatpush.bf16.msra.mxu0 %v659
    %699 = vmatmul.bf16.gmra.mxu0 %v557
    %v700 = vpop.f32.mrf.mxu0
    %v701 = vadd.f32 %v593, %v700
    %v702 = vpop.f32.mrf.mxu0
    %703 = vdwg.mxu0
    %704 = vmatpush.bf16.msra.mxu0 %v674
    %705 = vmatpush.bf16.msra.mxu0 %v673
    %706 = vmatpush.bf16.msra.mxu0 %v672
    %707 = vmatpush.bf16.msra.mxu0 %v671
    %708 = vmatpush.bf16.msra.mxu0 %v670
    %709 = vmatpush.bf16.msra.mxu0 %v669
    %710 = vmatpush.bf16.msra.mxu0 %v668
    %711 = vmatpush.bf16.msra.mxu0 %v667
    %712 = vmatmul.bf16.gmra.mxu0 %v558
    %v713 = vpop.f32.mrf.mxu0
    %v714 = vadd.f32 %v701, %v713
    %v715 = vpop.f32.mrf.mxu0
    %716 = vdwg.mxu0
    %717 = vst [vmem:[%s5] sm:$0x3] %v714
    // Predicated region
    $region30: #{conv_net_forward.7} parent=1 // pred_check
      _
    $region31: #{conv_net_forward.7} parent=1 // pred_check_branch
      %719 = sbr.rel (0) target = $region33
    $region32: #{conv_net_forward.7} parent=1 // pred_region
      _
    $region33: #{conv_net_forward.7} parent=1 // pred_fallthru
      _
    // Predicated region
    $region34: #{conv_net_forward.7} parent=1 // pred_check
      _
    $region35: #{conv_net_forward.7} parent=1 // pred_check_branch
      %721 = sbr.rel (0) target = $region37
    $region36: #{conv_net_forward.7} parent=1 // pred_region
      _
    $region37: #{conv_net_forward.7} parent=1 // pred_fallthru
      _
    %722 = vsyncpa [#allocation3], 1
    %723 = vsyncpa [#allocation5], 1

// kernel: conv_net_forward.5
$region0: #{conv_net_forward.5}
  #allocation0 [shape = 'u32[]', space=smem, size = 0x4, offset = 0x4, fixed_abs, tag = 'smem constant byte address 0x4 - core index']
  #allocation1 [shape = 'u32[72,128]{1,0:T(1,128)}', space=vmem, size = 0x9000, scoped, tag = 'internal scratch']
  #allocation2 [shape = 'f32[110,64]{1,0:T(8,128)}', space=vmem, size = 0xe000, scoped, tag = 'scratch operand']
  %s0 = inlined_call_operand.vmem [shape: bf16[2,110,32], index: 0, kind: input, shape index: {}]
  %s1 = inlined_call_operand.hbm [shape: bf16[9,32,64], index: 1, kind: input, shape index: {}]
  %s2 = inlined_call_operand.hbm [shape: f32[1,64], index: 2, kind: input, shape index: {}]
  %s3 = inlined_call_operand.vmem [shape: bf16[9,64,64], index: 3, kind: input, shape index: {}]
  %s4 = inlined_call_operand.hbm [shape: f32[1,64], index: 4, kind: input, shape index: {}]
  %s5 = inlined_call_operand.hbm [shape: f32[80,1], index: 5, kind: input, shape index: {}]
  %s6 = inlined_call_operand.vmem [shape: bf16[16,69], index: 6, kind: input, shape index: {}]
  %s7 = inlined_call_operand.vmem [shape: bf16[2,16,64], index: 7, kind: output, shape index: {}]
  %s8 = sld [smem:[#allocation0]]
  $region77: #{conv_net_forward.5} parent=0
    _
  %s10 = ssub.s32 1, %s8
  %s11 = scalar_select 0, %s10, %s8
  $region1: #{conv_net_forward.5} parent=0
    #allocation3 [shape = 'u8[73728]{0}', space=vmem, size = 0x12000, scoped, tag = 'input window, operand 1, single buffered']
    #allocation4 [shape = 's32[2]{0}', space=sflag, size = 0x8, scoped, tag = 'scoped memory for conv_net_forward.5']
    #allocation5 [shape = 'u8[512]{0}', space=vmem, size = 0x400, scoped, tag = 'input window, operand 2, single buffered']
    #allocation6 [shape = 's32[1]{0}', space=sflag, size = 0x4, scoped, tag = 'scoped memory for conv_net_forward.5']
    #allocation7 [shape = 'u8[512]{0}', space=vmem, size = 0x400, scoped, tag = 'input window, operand 4, single buffered']
    #allocation8 [shape = 'u8[40960]{0}', space=vmem, size = 0xa000, scoped, tag = 'input window, operand 5, single buffered']
    #allocation9 [shape = 's32[1]{0}', space=sflag, size = 0x4, scoped, tag = 'scoped memory for conv_net_forward.5']
    %12 = vsyncpa [#allocation4], 0
    %13 = vsyncpa [#allocation6], 0
    %14 = vsyncpa [#allocation9], 0
    loop: start=0, step=1, limit=4
    $region2: #{conv_net_forward.5} parent=1 // loop_pre_header
      _
    $region3: #{conv_net_forward.5} parent=1 // loop_header
      %s16 = sphi 0, %s20
      %p17 = scmp.ge.s32.totalorder %s16, 4
      %s26 = sphi 0, %s28
      %s29 = sphi 0, %s26
      %s30 = sphi 0, %s29
      %s46 = sphi 0, %s30
      %s50 = sphi 0, %s50
      %s52 = sphi 0, %s50
      %s53 = sphi 0, %s52
      %s67 = sphi 0, %s53
      %s71 = sphi 0, %s71
      %s73 = sphi 0, %s71
      %s74 = sphi 0, %s73
      %s88 = sphi 0, %s74
      %s92 = sphi 0, %s92
      %s94 = sphi 0, %s92
      %s95 = sphi 0, %s94
      %s109 = sphi 0, %s95
      %s113 = sphi 0, %s113
      %s115 = sphi 0, %s113
      %s116 = sphi 0, %s115
      %s130 = sphi 0, %s116
      %s134 = sphi 0, %s134
      %s136 = sphi 0, %s134
      %s137 = sphi 0, %s136
      %s151 = sphi 0, %s137
      %s155 = sphi 0, %s155
      %s157 = sphi 0, %s155
      %s158 = sphi 0, %s157
      %s172 = sphi 0, %s158
      %s178 = sphi 0, %s180
      %s181 = sphi 0, %s178
      %s182 = sphi 0, %s181
      %s198 = sphi 0, %s182
    $region4: #{conv_net_forward.5} parent=1 // loop_header_branch
      %19 = sbr.rel (%p17) target = $region8
    $region5: #{conv_net_forward.5} parent=1 // loop_body
      %s21 = ssub.s32 %s16, 1
      %s22 = ssub.s32 %s16, 2
      %s23 = sadd.s32 %s16, 1
      %s24 = ssub.s32 %s16, %s23
      %p25 = scmp.eq.s32.totalorder %s24, 0
      %s27 = sadd.s32 %s26, 1
      %s28 = scalar_select %p25, %s26, %s27
      %p31 = pneg %p25
      %p32 = scmp.eq.s32.totalorder %s16, 1
      %p33 = por %p31, %p32
      %p34 = scmp.ne.s32.totalorder %s26, %s29
      %p35 = scmp.eq.s32.totalorder %s16, 0
      %p36 = por %p34, %p35
      %p37 = scmp.ne.s32.totalorder %s26, %s29
      %p38 = scmp.eq.s32.totalorder %s21, 1
      %p39 = por %p37, %p38
      %p40 = scmp.ne.s32.totalorder %s29, %s30
      %p41 = scmp.eq.s32.totalorder %s21, 0
      %p42 = por %p40, %p41
      %p43 = scmp.ne.s32.totalorder %s29, %s30
      %p44 = scmp.eq.s32.totalorder %s22, 1
      %p45 = por %p43, %p44
      %p47 = scmp.ne.s32.totalorder %s30, %s46
      %p48 = scmp.eq.s32.totalorder %s22, 0
      %p49 = por %p47, %p48
      %s51 = sadd.s32 %s50, 1
      %p54 = scmp.eq.s32.totalorder %s16, 1
      %p55 = scmp.ne.s32.totalorder %s50, %s52
      %p56 = scmp.eq.s32.totalorder %s16, 0
      %p57 = por %p55, %p56
      %p58 = scmp.ne.s32.totalorder %s50, %s52
      %p59 = scmp.eq.s32.totalorder %s21, 1
      %p60 = por %p58, %p59
      %p61 = scmp.ne.s32.totalorder %s52, %s53
      %p62 = scmp.eq.s32.totalorder %s21, 0
      %p63 = por %p61, %p62
      %p64 = scmp.ne.s32.totalorder %s52, %s53
      %p65 = scmp.eq.s32.totalorder %s22, 1
      %p66 = por %p64, %p65
      %p68 = scmp.ne.s32.totalorder %s53, %s67
      %p69 = scmp.eq.s32.totalorder %s22, 0
      %p70 = por %p68, %p69
      %s72 = sadd.s32 %s71, 1
      %p75 = scmp.eq.s32.totalorder %s16, 1
      %p76 = scmp.ne.s32.totalorder %s71, %s73
      %p77 = scmp.eq.s32.totalorder %s16, 0
      %p78 = por %p76, %p77
      %p79 = scmp.ne.s32.totalorder %s71, %s73
      %p80 = scmp.eq.s32.totalorder %s21, 1
      %p81 = por %p79, %p80
      %p82 = scmp.ne.s32.totalorder %s73, %s74
      %p83 = scmp.eq.s32.totalorder %s21, 0
      %p84 = por %p82, %p83
      %p85 = scmp.ne.s32.totalorder %s73, %s74
      %p86 = scmp.eq.s32.totalorder %s22, 1
      %p87 = por %p85, %p86
      %p89 = scmp.ne.s32.totalorder %s74, %s88
      %p90 = scmp.eq.s32.totalorder %s22, 0
      %p91 = por %p89, %p90
      %s93 = sadd.s32 %s92, 1
      %p96 = scmp.eq.s32.totalorder %s16, 1
      %p97 = scmp.ne.s32.totalorder %s92, %s94
      %p98 = scmp.eq.s32.totalorder %s16, 0
      %p99 = por %p97, %p98
      %p100 = scmp.ne.s32.totalorder %s92, %s94
      %p101 = scmp.eq.s32.totalorder %s21, 1
      %p102 = por %p100, %p101
      %p103 = scmp.ne.s32.totalorder %s94, %s95
      %p104 = scmp.eq.s32.totalorder %s21, 0
      %p105 = por %p103, %p104
      %p106 = scmp.ne.s32.totalorder %s94, %s95
      %p107 = scmp.eq.s32.totalorder %s22, 1
      %p108 = por %p106, %p107
      %p110 = scmp.ne.s32.totalorder %s95, %s109
      %p111 = scmp.eq.s32.totalorder %s22, 0
      %p112 = por %p110, %p111
      %s114 = sadd.s32 %s113, 1
      %p117 = scmp.eq.s32.totalorder %s16, 1
      %p118 = scmp.ne.s32.totalorder %s113, %s115
      %p119 = scmp.eq.s32.totalorder %s16, 0
      %p120 = por %p118, %p119
      %p121 = scmp.ne.s32.totalorder %s113, %s115
      %p122 = scmp.eq.s32.totalorder %s21, 1
      %p123 = por %p121, %p122
      %p124 = scmp.ne.s32.totalorder %s115, %s116
      %p125 = scmp.eq.s32.totalorder %s21, 0
      %p126 = por %p124, %p125
      %p127 = scmp.ne.s32.totalorder %s115, %s116
      %p128 = scmp.eq.s32.totalorder %s22, 1
      %p129 = por %p127, %p128
      %p131 = scmp.ne.s32.totalorder %s116, %s130
      %p132 = scmp.eq.s32.totalorder %s22, 0
      %p133 = por %p131, %p132
      %s135 = sadd.s32 %s134, 1
      %p138 = scmp.eq.s32.totalorder %s16, 1
      %p139 = scmp.ne.s32.totalorder %s134, %s136
      %p140 = scmp.eq.s32.totalorder %s16, 0
      %p141 = por %p139, %p140
      %p142 = scmp.ne.s32.totalorder %s134, %s136
      %p143 = scmp.eq.s32.totalorder %s21, 1
      %p144 = por %p142, %p143
      %p145 = scmp.ne.s32.totalorder %s136, %s137
      %p146 = scmp.eq.s32.totalorder %s21, 0
      %p147 = por %p145, %p146
      %p148 = scmp.ne.s32.totalorder %s136, %s137
      %p149 = scmp.eq.s32.totalorder %s22, 1
      %p150 = por %p148, %p149
      %p152 = scmp.ne.s32.totalorder %s137, %s151
      %p153 = scmp.eq.s32.totalorder %s22, 0
      %p154 = por %p152, %p153
      %s156 = sadd.s32 %s155, 1
      %p159 = scmp.eq.s32.totalorder %s16, 1
      %p160 = scmp.ne.s32.totalorder %s155, %s157
      %p161 = scmp.eq.s32.totalorder %s16, 0
      %p162 = por %p160, %p161
      %p163 = scmp.ne.s32.totalorder %s155, %s157
      %p164 = scmp.eq.s32.totalorder %s21, 1
      %p165 = por %p163, %p164
      %p166 = scmp.ne.s32.totalorder %s157, %s158
      %p167 = scmp.eq.s32.totalorder %s21, 0
      %p168 = por %p166, %p167
      %p169 = scmp.ne.s32.totalorder %s157, %s158
      %p170 = scmp.eq.s32.totalorder %s22, 1
      %p171 = por %p169, %p170
      %p173 = scmp.ne.s32.totalorder %s158, %s172
      %p174 = scmp.eq.s32.totalorder %s22, 0
      %p175 = por %p173, %p174
      %s176 = ssub.s32 %s16, %s23
      %p177 = scmp.eq.s32.totalorder %s176, 0
      %s179 = sadd.s32 %s178, 1
      %s180 = scalar_select %p177, %s178, %s179
      %p183 = pneg %p177
      %p184 = scmp.eq.s32.totalorder %s16, 1
      %p185 = por %p183, %p184
      %p186 = scmp.ne.s32.totalorder %s178, %s181
      %p187 = scmp.eq.s32.totalorder %s16, 0
      %p188 = por %p186, %p187
      %p189 = scmp.ne.s32.totalorder %s178, %s181
      %p190 = scmp.eq.s32.totalorder %s21, 1
      %p191 = por %p189, %p190
      %p192 = scmp.ne.s32.totalorder %s181, %s182
      %p193 = scmp.eq.s32.totalorder %s21, 0
      %p194 = por %p192, %p193
      %p195 = scmp.ne.s32.totalorder %s181, %s182
      %p196 = scmp.eq.s32.totalorder %s22, 1
      %p197 = por %p195, %p196
      %p199 = scmp.ne.s32.totalorder %s182, %s198
      %p200 = scmp.eq.s32.totalorder %s22, 0
      %p201 = por %p199, %p200
      %p202 = scmp.le.s32.totalorder 1, %s16
      %p203 = scmp.lt.s32.totalorder %s16, 3
      %p204 = pnand %p202, %p203
      %p205 = pneg %p204
      // Predicated region
      $region9: #{conv_net_forward.5} parent=5 // pred_check
        _
      $region10: #{conv_net_forward.5} parent=5 // pred_check_branch
        %207 = sbr.rel (%p204) target = $region12
      $region11: #{conv_net_forward.5} parent=5 // pred_region
        %s208 = ssub.s32 %s16, 1
        // Predicated region
        $region13: #{conv_net_forward.5} parent=11 // pred_check
          %p209 = pneg %p63
        $region14: #{conv_net_forward.5} parent=11 // pred_check_branch
          %211 = sbr.rel (%p209) target = $region16
        $region15: #{conv_net_forward.5} parent=11 // pred_region
          %213 = vsyncadd [#allocation4], 0
          %s214 = sshll.u32 %s1, 4
          %s215 = int_to_ptr.hbm [resolvable:$true] %s214
          %s216 = sshll.u32 [#allocation3], 4
          %s217 = int_to_ptr.vmem [resolvable:$true] %s216
          %222 = dma.hbm_to_vmem [thread:$0]  %s215, 2304, %s217, [#allocation4], 64, 64, 4
        $region16: #{conv_net_forward.5} parent=11 // pred_fallthru
          _
        // Predicated region
        $region17: #{conv_net_forward.5} parent=11 // pred_check
          %p223 = pneg %p84
        $region18: #{conv_net_forward.5} parent=11 // pred_check_branch
          %225 = sbr.rel (%p223) target = $region20
        $region19: #{conv_net_forward.5} parent=11 // pred_region
          %227 = vsyncadd [#allocation6], 0
          %s229 = sshll.u32 %s2, 4
          %s230 = int_to_ptr.hbm [resolvable:$true] %s229
          %s231 = sshll.u32 [#allocation5], 4
          %s232 = int_to_ptr.vmem [resolvable:$true] %s231
          %234 = dma.hbm_to_vmem [thread:$0]  %s230, 16, %s232, [#allocation6]
        $region20: #{conv_net_forward.5} parent=11 // pred_fallthru
          _
        // Predicated region
        $region21: #{conv_net_forward.5} parent=11 // pred_check
          %p235 = pneg %p105
        $region22: #{conv_net_forward.5} parent=11 // pred_check_branch
          %237 = sbr.rel (%p235) target = $region24
        $region23: #{conv_net_forward.5} parent=11 // pred_region
          _
        $region24: #{conv_net_forward.5} parent=11 // pred_fallthru
          _
        // Predicated region
        $region25: #{conv_net_forward.5} parent=11 // pred_check
          %p238 = pneg %p126
        $region26: #{conv_net_forward.5} parent=11 // pred_check_branch
          %240 = sbr.rel (%p238) target = $region28
        $region27: #{conv_net_forward.5} parent=11 // pred_region
          %242 = vsyncadd [#allocation6], 0
          %s244 = sshll.u32 %s4, 4
          %s245 = int_to_ptr.hbm [resolvable:$true] %s244
          %s246 = sshll.u32 [#allocation7], 4
          %s247 = int_to_ptr.vmem [resolvable:$true] %s246
          %249 = dma.hbm_to_vmem [thread:$0]  %s245, 16, %s247, [#allocation6]
        $region28: #{conv_net_forward.5} parent=11 // pred_fallthru
          _
        // Predicated region
        $region29: #{conv_net_forward.5} parent=11 // pred_check
          %p250 = pneg %p147
        $region30: #{conv_net_forward.5} parent=11 // pred_check_branch
          %252 = sbr.rel (%p250) target = $region32
        $region31: #{conv_net_forward.5} parent=11 // pred_region
          %254 = vsyncadd [#allocation9], 0
          %s255 = sshll.u32 %s5, 4
          %s256 = int_to_ptr.hbm [resolvable:$true] %s255
          %s257 = sshll.u32 [#allocation8], 4
          %s258 = int_to_ptr.vmem [resolvable:$true] %s257
          %263 = dma.hbm_to_vmem [thread:$0]  %s256, 1280, %s258, [#allocation9], 128, 128, 8
        $region32: #{conv_net_forward.5} parent=11 // pred_fallthru
          _
        // Predicated region
        $region33: #{conv_net_forward.5} parent=11 // pred_check
          %p264 = pneg %p168
        $region34: #{conv_net_forward.5} parent=11 // pred_check_branch
          %266 = sbr.rel (%p264) target = $region36
        $region35: #{conv_net_forward.5} parent=11 // pred_region
          _
        $region36: #{conv_net_forward.5} parent=11 // pred_fallthru
          _
      $region12: #{conv_net_forward.5} parent=5 // pred_fallthru
        _
      %p267 = scmp.lt.s32.totalorder %s16, 2
      // Predicated region
      $region37: #{conv_net_forward.5} parent=5 // pred_check
        %p268 = pneg %p267
      $region38: #{conv_net_forward.5} parent=5 // pred_check_branch
        %270 = sbr.rel (%p268) target = $region40
      $region39: #{conv_net_forward.5} parent=5 // pred_region
        // Predicated region
        $region41: #{conv_net_forward.5} parent=39 // pred_check
          %p271 = pneg %p36
        $region42: #{conv_net_forward.5} parent=39 // pred_check_branch
          %273 = sbr.rel (%p271) target = $region44
        $region43: #{conv_net_forward.5} parent=39 // pred_region
          %p274 = scmp.lt.s32.totalorder %s16, 1
          %s275 = scalar_select %p274, %s16, 1
          %s276 = smul.addr %s275, 14
          %s277 = smul.addr %s276, 4
          %s278 = scalar_lea.vmem %s0, %s277
        $region44: #{conv_net_forward.5} parent=39 // pred_fallthru
          _
      $region40: #{conv_net_forward.5} parent=5 // pred_fallthru
        _
      %p279 = scmp.le.s32.totalorder 1, %s16
      %p280 = scmp.lt.s32.totalorder %s16, 3
      %p281 = pnand %p279, %p280
      %p282 = pneg %p281
      // Predicated region
      $region45: #{conv_net_forward.5} parent=5 // pred_check
        _
      $region46: #{conv_net_forward.5} parent=5 // pred_check_branch
        %284 = sbr.rel (%p281) target = $region48
      $region47: #{conv_net_forward.5} parent=5 // pred_region
        %s285 = ssub.s32 %s16, 1
        // Predicated region
        $region49: #{conv_net_forward.5} parent=47 // pred_check
          %p286 = pneg %p63
        $region50: #{conv_net_forward.5} parent=47 // pred_check_branch
          %288 = sbr.rel (%p286) target = $region52
        $region51: #{conv_net_forward.5} parent=47 // pred_region
          %290 = dma.done [#allocation4], 2304
        $region52: #{conv_net_forward.5} parent=47 // pred_fallthru
          _
        // Predicated region
        $region53: #{conv_net_forward.5} parent=47 // pred_check
          %p291 = pneg %p84
        $region54: #{conv_net_forward.5} parent=47 // pred_check_branch
          %293 = sbr.rel (%p291) target = $region56
        $region55: #{conv_net_forward.5} parent=47 // pred_region
          %295 = dma.done [#allocation6], 16
        $region56: #{conv_net_forward.5} parent=47 // pred_fallthru
          _
        // Predicated region
        $region57: #{conv_net_forward.5} parent=47 // pred_check
          %p296 = pneg %p126
        $region58: #{conv_net_forward.5} parent=47 // pred_check_branch
          %298 = sbr.rel (%p296) target = $region60
        $region59: #{conv_net_forward.5} parent=47 // pred_region
          %300 = dma.done [#allocation6], 16
        $region60: #{conv_net_forward.5} parent=47 // pred_fallthru
          _
        // Predicated region
        $region61: #{conv_net_forward.5} parent=47 // pred_check
          %p301 = pneg %p147
        $region62: #{conv_net_forward.5} parent=47 // pred_check_branch
          %303 = sbr.rel (%p301) target = $region64
        $region63: #{conv_net_forward.5} parent=47 // pred_region
          %305 = dma.done [#allocation9], 1280
        $region64: #{conv_net_forward.5} parent=47 // pred_fallthru
          _
        %p306 = scmp.lt.s32.totalorder %s21, 1
        %s307 = scalar_select %p306, %s21, 1
        %s308 = smul.addr %s307, 14
        %s309 = smul.addr %s308, 4
        %s310 = scalar_lea.vmem %s0, %s309
        %p311 = pneg %p42
        %p312 = pneg %p39
        %p313 = pneg %p63
        %p314 = pneg %p60
        %p315 = pneg %p84
        %p316 = pneg %p81
        %p317 = pneg %p105
        %p318 = pneg %p102
        %p319 = pneg %p126
        %p320 = pneg %p123
        %p321 = pneg %p147
        %p322 = pneg %p144
        %p323 = pneg %p168
        %p324 = pneg %p165
        %p325 = pneg %p194
        %p326 = pneg %p191
        %p327 = scmp.lt.s32.totalorder %s21, 1
        %s328 = scalar_select %p327, %s21, 1
        %s329 = smul.addr %s328, 2
        %s330 = smul.addr %s329, 4
        %s331 = scalar_lea.vmem %s7, %s330
        %p332 = scmp.lt.s32.totalorder %s21, 1
        %s333 = scalar_select %p332, %s21, 1
        %s334 = smul.addr %s333, 14
        %s335 = smul.addr %s334, 4
        %s336 = scalar_lea.vmem %s0, %s335
        %p337 = scmp.lt.s32.totalorder %s21, 1
        %s338 = scalar_select %p337, %s21, 1
        %s339 = smul.addr %s338, 2
        %s340 = smul.addr %s339, 4
        %s341 = scalar_lea.vmem %s7, %s340
        %v343 = vld [vmem:[%s336] sm:$0xf]
        %v344 = vld [vmem:[%s336 + $0x4] sm:$0xf]
        %v345 = vld [vmem:[%s336 + $0x8] sm:$0xf]
        %v346 = vld [vmem:[%s336 + $0xc] sm:$0xf]
        %v347 = vld [vmem:[%s336 + $0x10] sm:$0xf]
        %v348 = vld [vmem:[%s336 + $0x14] sm:$0xf]
        %v349 = vld [vmem:[%s336 + $0x18] sm:$0xf]
        %v350 = vld [vmem:[%s336 + $0x1c] sm:$0xf]
        %v351 = vld [vmem:[%s336 + $0x20] sm:$0xf]
        %v352 = vld [vmem:[%s336 + $0x24] sm:$0xf]
        %v353 = vld [vmem:[%s336 + $0x28] sm:$0xf]
        %v354 = vld [vmem:[%s336 + $0x2c] sm:$0xf]
        %v355 = vld [vmem:[%s336 + $0x30] sm:$0xf]
        %v356 = vunpack.c.l.bf16 %v343
        %v357 = vunpack.c.l.bf16 %v344
        %v358 = vunpack.c.l.bf16 %v345
        %v359 = vunpack.c.l.bf16 %v346
        %v360 = vunpack.c.l.bf16 %v347
        %v361 = vunpack.c.l.bf16 %v348
        %v362 = vunpack.c.l.bf16 %v349
        %v363 = vunpack.c.l.bf16 %v350
        %v364 = vunpack.c.l.bf16 %v351
        %v365 = vunpack.c.l.bf16 %v352
        %v366 = vunpack.c.l.bf16 %v353
        %v367 = vunpack.c.l.bf16 %v354
        %v368 = vunpack.c.l.bf16 %v355
        %v369 = vpack.c.bf16 %v357, %v356
        %v370 = vpack.c.bf16 %v359, %v358
        %v371 = vpack.c.bf16 %v361, %v360
        %v372 = vpack.c.bf16 %v363, %v362
        %v373 = vpack.c.bf16 %v365, %v364
        %v374 = vld [vmem:[#allocation3] sm:$0xf]
        %v375 = vld [vmem:[#allocation3 + $0x4] sm:$0xf]
        %v376 = vld [vmem:[#allocation3 + $0x8] sm:$0xf]
        %v377 = vld [vmem:[#allocation3 + $0xc] sm:$0xf]
        %v378 = vpack.c.bf16 %v366, %v366
        %s379 = scalar_lea.vmem [#allocation3], 16
        %v380 = vld [vmem:[%s379] sm:$0xf]
        %v381 = vld [vmem:[%s379 + $0x4] sm:$0xf]
        %v382 = vld [vmem:[%s379 + $0x8] sm:$0xf]
        %v383 = vld [vmem:[%s379 + $0xc] sm:$0xf]
        %vm384 = vsmask.f32 7424
        %v386 = vshrl.u32 %v369, 16
        %v388 = vshll.u32 %v369, 16
        %v390 = vrot.slane %v388, 1
        %v391 = vor.u32 %v386, %v390
        %v393 = vshll.u32 %v370, 16
        %v395 = vrot.slane %v393, 1
        %v396 = vsel %vm384, %v391, %v395
        %v397 = vshrl.u32 %v370, 16
        %v399 = vor.u32 %v397, %v395
        %v401 = vshll.u32 %v371, 16
        %v403 = vrot.slane %v401, 1
        %v404 = vsel %vm384, %v399, %v403
        %v405 = vshrl.u32 %v371, 16
        %v407 = vor.u32 %v405, %v403
        %v409 = vshll.u32 %v372, 16
        %v411 = vrot.slane %v409, 1
        %v412 = vsel %vm384, %v407, %v411
        %v413 = vshrl.u32 %v372, 16
        %v415 = vor.u32 %v413, %v411
        %v417 = vshll.u32 %v373, 16
        %v419 = vrot.slane %v417, 1
        %v420 = vsel %vm384, %v415, %v419
        %v421 = vshrl.u32 %v373, 16
        %v423 = vor.u32 %v421, %v419
        %v425 = vshll.u32 %v378, 16
        %v427 = vrot.slane %v425, 1
        %v428 = vsel %vm384, %v423, %v427
        %v433 = vunpack.c.l.b16 %v380
        %v434 = vunpack.c.l.b16 %v381
        %v435 = vunpack.c.l.b16 %v382
        %v436 = vunpack.c.l.b16 %v383
        %v437 = vpack.c.b16 %v434, %v433
        %v438 = vpack.c.b16 %v436, %v435
        %vm441 = vcmask 261120
        %v443 = vsel %vm441, %v396, 0
        %v446 = vsel %vm441, %v404, 0
        %v449 = vsel %vm441, %v412, 0
        %v452 = vsel %vm441, %v420, 0
        %v455 = vsel %vm441, %v428, 0
        %457 = vmatpush.bf16.msra.mxu0 0
        %458 = vmatpush.bf16.msra.mxu0 0
        %459 = vmatpush.bf16.msra.mxu0 0
        %460 = vmatpush.bf16.msra.mxu0 0
        %461 = vmatpush.bf16.msra.mxu0 0
        %462 = vmatpush.bf16.msra.mxu0 0
        %463 = vmatpush.bf16.msra.mxu0 %v438
        %464 = vmatpush.bf16.msra.mxu0 %v437
        %465 = vmatmul.bf16.gmra.mxu0 %v443
        %v466 = vpop.f32.mrf.mxu0
        %v467 = vadd.f32 0.0, %v466
        %v468 = vpop.f32.mrf.mxu0
        %v469 = vadd.f32 0.0, %v468
        %470 = vmatmul.bf16.gmra.mxu0 %v446
        %v471 = vpop.f32.mrf.mxu0
        %v472 = vadd.f32 0.0, %v471
        %v473 = vpop.f32.mrf.mxu0
        %v474 = vadd.f32 0.0, %v473
        %475 = vmatmul.bf16.gmra.mxu0 %v449
        %v476 = vpop.f32.mrf.mxu0
        %v477 = vadd.f32 0.0, %v476
        %v478 = vpop.f32.mrf.mxu0
        %v479 = vadd.f32 0.0, %v478
        %480 = vmatmul.bf16.gmra.mxu0 %v452
        %v481 = vpop.f32.mrf.mxu0
        %v482 = vadd.f32 0.0, %v481
        %v483 = vpop.f32.mrf.mxu0
        %v484 = vadd.f32 0.0, %v483
        %485 = vmatmul.bf16.gmra.mxu0 %v455
        %v486 = vpop.f32.mrf.mxu0
        %v487 = vadd.f32 0.0, %v486
        %v488 = vpop.f32.mrf.mxu0
        %v489 = vadd.f32 0.0, %v488
        %490 = vdwg.mxu0
        %v495 = vunpack.c.l.b16 %v374
        %v496 = vunpack.c.l.b16 %v375
        %v497 = vunpack.c.l.b16 %v376
        %v498 = vunpack.c.l.b16 %v377
        %v499 = vpack.c.b16 %v496, %v495
        %v500 = vpack.c.b16 %v498, %v497
        %v503 = vsel %vm441, %v369, 0
        %v505 = vsel %vm441, %v370, 0
        %v507 = vsel %vm441, %v371, 0
        %v509 = vsel %vm441, %v372, 0
        %v511 = vsel %vm441, %v373, 0
        %513 = vmatpush.bf16.msra.mxu0 0
        %514 = vmatpush.bf16.msra.mxu0 0
        %515 = vmatpush.bf16.msra.mxu0 0
        %516 = vmatpush.bf16.msra.mxu0 0
        %517 = vmatpush.bf16.msra.mxu0 0
        %518 = vmatpush.bf16.msra.mxu0 0
        %519 = vmatpush.bf16.msra.mxu0 %v500
        %520 = vmatpush.bf16.msra.mxu0 %v499
        %521 = vmatmul.bf16.gmra.mxu0 %v503
        %v522 = vpop.f32.mrf.mxu0
        %v523 = vadd.f32 %v467, %v522
        %v524 = vpop.f32.mrf.mxu0
        %v525 = vadd.f32 %v469, %v524
        %526 = vmatmul.bf16.gmra.mxu0 %v505
        %v527 = vpop.f32.mrf.mxu0
        %v528 = vadd.f32 %v472, %v527
        %v529 = vpop.f32.mrf.mxu0
        %v530 = vadd.f32 %v474, %v529
        %531 = vmatmul.bf16.gmra.mxu0 %v507
        %v532 = vpop.f32.mrf.mxu0
        %v533 = vadd.f32 %v477, %v532
        %v534 = vpop.f32.mrf.mxu0
        %v535 = vadd.f32 %v479, %v534
        %536 = vmatmul.bf16.gmra.mxu0 %v509
        %v537 = vpop.f32.mrf.mxu0
        %v538 = vadd.f32 %v482, %v537
        %v539 = vpop.f32.mrf.mxu0
        %v540 = vadd.f32 %v484, %v539
        %541 = vmatmul.bf16.gmra.mxu0 %v511
        %v542 = vpop.f32.mrf.mxu0
        %v543 = vadd.f32 %v487, %v542
        %v544 = vpop.f32.mrf.mxu0
        %v545 = vadd.f32 %v489, %v544
        %546 = vdwg.mxu0
        %s547 = scalar_lea.vmem [#allocation3], 32
        %v548 = vld [vmem:[%s547] sm:$0xf]
        %v549 = vld [vmem:[%s547 + $0x4] sm:$0xf]
        %v550 = vld [vmem:[%s547 + $0x8] sm:$0xf]
        %v551 = vld [vmem:[%s547 + $0xc] sm:$0xf]
        %vm558 = vcmask 1046528
        %v559 = vrot.slane %v369, 1
        %v560 = vrot.slane %v370, 1
        %v561 = vsel %vm558, %v559, %v560
        %v562 = vrot.slane %v371, 1
        %v563 = vsel %vm558, %v560, %v562
        %v564 = vrot.slane %v372, 1
        %v565 = vsel %vm558, %v562, %v564
        %v566 = vrot.slane %v373, 1
        %v567 = vsel %vm558, %v564, %v566
        %v568 = vrot.slane %v378, 1
        %v569 = vsel %vm558, %v566, %v568
        %v574 = vunpack.c.l.b16 %v548
        %v575 = vunpack.c.l.b16 %v549
        %v576 = vunpack.c.l.b16 %v550
        %v577 = vunpack.c.l.b16 %v551
        %v578 = vpack.c.b16 %v575, %v574
        %v579 = vpack.c.b16 %v577, %v576
        %v583 = vsel %vm441, %v561, 0
        %v586 = vsel %vm441, %v563, 0
        %v589 = vsel %vm441, %v565, 0
        %v592 = vsel %vm441, %v567, 0
        %v595 = vsel %vm441, %v569, 0
        %597 = vmatpush.bf16.msra.mxu0 0
        %598 = vmatpush.bf16.msra.mxu0 0
        %599 = vmatpush.bf16.msra.mxu0 0
        %600 = vmatpush.bf16.msra.mxu0 0
        %601 = vmatpush.bf16.msra.mxu0 0
        %602 = vmatpush.bf16.msra.mxu0 0
        %603 = vmatpush.bf16.msra.mxu0 %v579
        %604 = vmatpush.bf16.msra.mxu0 %v578
        %605 = vmatmul.bf16.gmra.mxu0 %v583
        %v606 = vpop.f32.mrf.mxu0
        %v607 = vadd.f32 0.0, %v606
        %v608 = vpop.f32.mrf.mxu0
        %v609 = vadd.f32 0.0, %v608
        %610 = vmatmul.bf16.gmra.mxu0 %v586
        %v611 = vpop.f32.mrf.mxu0
        %v612 = vadd.f32 0.0, %v611
        %v613 = vpop.f32.mrf.mxu0
        %v614 = vadd.f32 0.0, %v613
        %615 = vmatmul.bf16.gmra.mxu0 %v589
        %v616 = vpop.f32.mrf.mxu0
        %v617 = vadd.f32 0.0, %v616
        %v618 = vpop.f32.mrf.mxu0
        %v619 = vadd.f32 0.0, %v618
        %620 = vmatmul.bf16.gmra.mxu0 %v592
        %v621 = vpop.f32.mrf.mxu0
        %v622 = vadd.f32 0.0, %v621
        %v623 = vpop.f32.mrf.mxu0
        %v624 = vadd.f32 0.0, %v623
        %625 = vmatmul.bf16.gmra.mxu0 %v595
        %v626 = vpop.f32.mrf.mxu0
        %v627 = vadd.f32 0.0, %v626
        %v628 = vpop.f32.mrf.mxu0
        %v629 = vadd.f32 0.0, %v628
        %630 = vdwg.mxu0
        %v631 = vadd.f32 %v523, %v607
        %v632 = vadd.f32 %v525, %v609
        %v633 = vadd.f32 %v528, %v612
        %v634 = vadd.f32 %v530, %v614
        %v635 = vadd.f32 %v533, %v617
        %v636 = vadd.f32 %v535, %v619
        %v637 = vadd.f32 %v538, %v622
        %v638 = vadd.f32 %v540, %v624
        %v639 = vadd.f32 %v543, %v627
        %v640 = vadd.f32 %v545, %v629
        %v641 = vpack.c.bf16 %v358, %v357
        %v642 = vpack.c.bf16 %v360, %v359
        %v643 = vpack.c.bf16 %v362, %v361
        %v644 = vpack.c.bf16 %v364, %v363
        %v645 = vpack.c.bf16 %v366, %v365
        %v646 = vpack.c.bf16 %v367, %v367
        %s647 = scalar_lea.vmem [#allocation3], 48
        %v648 = vld [vmem:[%s647] sm:$0xf]
        %v649 = vld [vmem:[%s647 + $0x4] sm:$0xf]
        %v650 = vld [vmem:[%s647 + $0x8] sm:$0xf]
        %v651 = vld [vmem:[%s647 + $0xc] sm:$0xf]
        %v658 = vrot.slane %v641, 1
        %v659 = vrot.slane %v642, 1
        %v660 = vsel %vm558, %v658, %v659
        %v661 = vrot.slane %v643, 1
        %v662 = vsel %vm558, %v659, %v661
        %v663 = vrot.slane %v644, 1
        %v664 = vsel %vm558, %v661, %v663
        %v665 = vrot.slane %v645, 1
        %v666 = vsel %vm558, %v663, %v665
        %v667 = vrot.slane %v646, 1
        %v668 = vsel %vm558, %v665, %v667
        %v673 = vunpack.c.l.b16 %v648
        %v674 = vunpack.c.l.b16 %v649
        %v675 = vunpack.c.l.b16 %v650
        %v676 = vunpack.c.l.b16 %v651
        %v677 = vpack.c.b16 %v674, %v673
        %v678 = vpack.c.b16 %v676, %v675
        %v682 = vsel %vm441, %v660, 0
        %v685 = vsel %vm441, %v662, 0
        %v688 = vsel %vm441, %v664, 0
        %v691 = vsel %vm441, %v666, 0
        %v694 = vsel %vm441, %v668, 0
        %696 = vmatpush.bf16.msra.mxu0 0
        %697 = vmatpush.bf16.msra.mxu0 0
        %698 = vmatpush.bf16.msra.mxu0 0
        %699 = vmatpush.bf16.msra.mxu0 0
        %700 = vmatpush.bf16.msra.mxu0 0
        %701 = vmatpush.bf16.msra.mxu0 0
        %702 = vmatpush.bf16.msra.mxu0 %v678
        %703 = vmatpush.bf16.msra.mxu0 %v677
        %704 = vmatmul.bf16.gmra.mxu0 %v682
        %v705 = vpop.f32.mrf.mxu0
        %v706 = vadd.f32 0.0, %v705
        %v707 = vpop.f32.mrf.mxu0
        %v708 = vadd.f32 0.0, %v707
        %709 = vmatmul.bf16.gmra.mxu0 %v685
        %v710 = vpop.f32.mrf.mxu0
        %v711 = vadd.f32 0.0, %v710
        %v712 = vpop.f32.mrf.mxu0
        %v713 = vadd.f32 0.0, %v712
        %714 = vmatmul.bf16.gmra.mxu0 %v688
        %v715 = vpop.f32.mrf.mxu0
        %v716 = vadd.f32 0.0, %v715
        %v717 = vpop.f32.mrf.mxu0
        %v718 = vadd.f32 0.0, %v717
        %719 = vmatmul.bf16.gmra.mxu0 %v691
        %v720 = vpop.f32.mrf.mxu0
        %v721 = vadd.f32 0.0, %v720
        %v722 = vpop.f32.mrf.mxu0
        %v723 = vadd.f32 0.0, %v722
        %724 = vmatmul.bf16.gmra.mxu0 %v694
        %v725 = vpop.f32.mrf.mxu0
        %v726 = vadd.f32 0.0, %v725
        %v727 = vpop.f32.mrf.mxu0
        %v728 = vadd.f32 0.0, %v727
        %729 = vdwg.mxu0
        %v730 = vadd.f32 %v631, %v706
        %v731 = vadd.f32 %v632, %v708
        %v732 = vadd.f32 %v633, %v711
        %v733 = vadd.f32 %v634, %v713
        %v734 = vadd.f32 %v635, %v716
        %v735 = vadd.f32 %v636, %v718
        %v736 = vadd.f32 %v637, %v721
        %v737 = vadd.f32 %v638, %v723
        %v738 = vadd.f32 %v639, %v726
        %v739 = vadd.f32 %v640, %v728
        %s740 = scalar_lea.vmem [#allocation3], 64
        %v741 = vld [vmem:[%s740] sm:$0xf]
        %v742 = vld [vmem:[%s740 + $0x4] sm:$0xf]
        %v743 = vld [vmem:[%s740 + $0x8] sm:$0xf]
        %v744 = vld [vmem:[%s740 + $0xc] sm:$0xf]
        %vm745 = vsmask.f32 6400
        %v747 = vshrl.u32 %v641, 16
        %v749 = vrot.slane %v747, 1
        %v750 = vshll.u32 %v641, 16
        %v752 = vrot.slane %v750, 2
        %v753 = vor.u32 %v749, %v752
        %v755 = vshrl.u32 %v642, 16
        %v757 = vrot.slane %v755, 1
        %v758 = vshll.u32 %v642, 16
        %v760 = vrot.slane %v758, 2
        %v761 = vor.u32 %v757, %v760
        %v762 = vsel %vm745, %v753, %v761
        %v764 = vshrl.u32 %v643, 16
        %v766 = vrot.slane %v764, 1
        %v767 = vshll.u32 %v643, 16
        %v769 = vrot.slane %v767, 2
        %v770 = vor.u32 %v766, %v769
        %v771 = vsel %vm745, %v761, %v770
        %v773 = vshrl.u32 %v644, 16
        %v775 = vrot.slane %v773, 1
        %v776 = vshll.u32 %v644, 16
        %v778 = vrot.slane %v776, 2
        %v779 = vor.u32 %v775, %v778
        %v780 = vsel %vm745, %v770, %v779
        %v782 = vshrl.u32 %v645, 16
        %v784 = vrot.slane %v782, 1
        %v785 = vshll.u32 %v645, 16
        %v787 = vrot.slane %v785, 2
        %v788 = vor.u32 %v784, %v787
        %v789 = vsel %vm745, %v779, %v788
        %v791 = vshrl.u32 %v646, 16
        %v793 = vrot.slane %v791, 1
        %v794 = vshll.u32 %v646, 16
        %v796 = vrot.slane %v794, 2
        %v797 = vor.u32 %v793, %v796
        %v798 = vsel %vm745, %v788, %v797
        %v803 = vunpack.c.l.b16 %v741
        %v804 = vunpack.c.l.b16 %v742
        %v805 = vunpack.c.l.b16 %v743
        %v806 = vunpack.c.l.b16 %v744
        %v807 = vpack.c.b16 %v804, %v803
        %v808 = vpack.c.b16 %v806, %v805
        %v812 = vsel %vm441, %v762, 0
        %v815 = vsel %vm441, %v771, 0
        %v818 = vsel %vm441, %v780, 0
        %v821 = vsel %vm441, %v789, 0
        %v824 = vsel %vm441, %v798, 0
        %826 = vmatpush.bf16.msra.mxu0 0
        %827 = vmatpush.bf16.msra.mxu0 0
        %828 = vmatpush.bf16.msra.mxu0 0
        %829 = vmatpush.bf16.msra.mxu0 0
        %830 = vmatpush.bf16.msra.mxu0 0
        %831 = vmatpush.bf16.msra.mxu0 0
        %832 = vmatpush.bf16.msra.mxu0 %v808
        %833 = vmatpush.bf16.msra.mxu0 %v807
        %834 = vmatmul.bf16.gmra.mxu0 %v812
        %v835 = vpop.f32.mrf.mxu0
        %v836 = vadd.f32 0.0, %v835
        %v837 = vpop.f32.mrf.mxu0
        %v838 = vadd.f32 0.0, %v837
        %839 = vmatmul.bf16.gmra.mxu0 %v815
        %v840 = vpop.f32.mrf.mxu0
        %v841 = vadd.f32 0.0, %v840
        %v842 = vpop.f32.mrf.mxu0
        %v843 = vadd.f32 0.0, %v842
        %844 = vmatmul.bf16.gmra.mxu0 %v818
        %v845 = vpop.f32.mrf.mxu0
        %v846 = vadd.f32 0.0, %v845
        %v847 = vpop.f32.mrf.mxu0
        %v848 = vadd.f32 0.0, %v847
        %849 = vmatmul.bf16.gmra.mxu0 %v821
        %v850 = vpop.f32.mrf.mxu0
        %v851 = vadd.f32 0.0, %v850
        %v852 = vpop.f32.mrf.mxu0
        %v853 = vadd.f32 0.0, %v852
        %854 = vmatmul.bf16.gmra.mxu0 %v824
        %v855 = vpop.f32.mrf.mxu0
        %v856 = vadd.f32 0.0, %v855
        %v857 = vpop.f32.mrf.mxu0
        %v858 = vadd.f32 0.0, %v857
        %859 = vdwg.mxu0
        %v860 = vadd.f32 %v730, %v836
        %v861 = vadd.f32 %v731, %v838
        %v862 = vadd.f32 %v732, %v841
        %v863 = vadd.f32 %v733, %v843
        %v864 = vadd.f32 %v734, %v846
        %v865 = vadd.f32 %v735, %v848
        %v866 = vadd.f32 %v736, %v851
        %v867 = vadd.f32 %v737, %v853
        %v868 = vadd.f32 %v738, %v856
        %v869 = vadd.f32 %v739, %v858
        %s870 = scalar_lea.vmem [#allocation3], 80
        %v871 = vld [vmem:[%s870] sm:$0xf]
        %v872 = vld [vmem:[%s870 + $0x4] sm:$0xf]
        %v873 = vld [vmem:[%s870 + $0x8] sm:$0xf]
        %v874 = vld [vmem:[%s870 + $0xc] sm:$0xf]
        %vm875 = vcmask 1045504
        %v876 = vrot.slane %v641, 2
        %v877 = vrot.slane %v642, 2
        %v878 = vsel %vm875, %v876, %v877
        %v879 = vrot.slane %v643, 2
        %v880 = vsel %vm875, %v877, %v879
        %v881 = vrot.slane %v644, 2
        %v882 = vsel %vm875, %v879, %v881
        %v883 = vrot.slane %v645, 2
        %v884 = vsel %vm875, %v881, %v883
        %v885 = vrot.slane %v646, 2
        %v886 = vsel %vm875, %v883, %v885
        %v891 = vunpack.c.l.b16 %v871
        %v892 = vunpack.c.l.b16 %v872
        %v893 = vunpack.c.l.b16 %v873
        %v894 = vunpack.c.l.b16 %v874
        %v895 = vpack.c.b16 %v892, %v891
        %v896 = vpack.c.b16 %v894, %v893
        %v900 = vsel %vm441, %v878, 0
        %v903 = vsel %vm441, %v880, 0
        %v906 = vsel %vm441, %v882, 0
        %v909 = vsel %vm441, %v884, 0
        %v912 = vsel %vm441, %v886, 0
        %914 = vmatpush.bf16.msra.mxu0 0
        %915 = vmatpush.bf16.msra.mxu0 0
        %916 = vmatpush.bf16.msra.mxu0 0
        %917 = vmatpush.bf16.msra.mxu0 0
        %918 = vmatpush.bf16.msra.mxu0 0
        %919 = vmatpush.bf16.msra.mxu0 0
        %920 = vmatpush.bf16.msra.mxu0 %v896
        %921 = vmatpush.bf16.msra.mxu0 %v895
        %922 = vmatmul.bf16.gmra.mxu0 %v900
        %v923 = vpop.f32.mrf.mxu0
        %v924 = vadd.f32 0.0, %v923
        %v925 = vpop.f32.mrf.mxu0
        %v926 = vadd.f32 0.0, %v925
        %927 = vmatmul.bf16.gmra.mxu0 %v903
        %v928 = vpop.f32.mrf.mxu0
        %v929 = vadd.f32 0.0, %v928
        %v930 = vpop.f32.mrf.mxu0
        %v931 = vadd.f32 0.0, %v930
        %932 = vmatmul.bf16.gmra.mxu0 %v906
        %v933 = vpop.f32.mrf.mxu0
        %v934 = vadd.f32 0.0, %v933
        %v935 = vpop.f32.mrf.mxu0
        %v936 = vadd.f32 0.0, %v935
        %937 = vmatmul.bf16.gmra.mxu0 %v909
        %v938 = vpop.f32.mrf.mxu0
        %v939 = vadd.f32 0.0, %v938
        %v940 = vpop.f32.mrf.mxu0
        %v941 = vadd.f32 0.0, %v940
        %942 = vmatmul.bf16.gmra.mxu0 %v912
        %v943 = vpop.f32.mrf.mxu0
        %v944 = vadd.f32 0.0, %v943
        %v945 = vpop.f32.mrf.mxu0
        %v946 = vadd.f32 0.0, %v945
        %947 = vdwg.mxu0
        %v948 = vadd.f32 %v860, %v924
        %v949 = vadd.f32 %v861, %v926
        %v950 = vadd.f32 %v862, %v929
        %v951 = vadd.f32 %v863, %v931
        %v952 = vadd.f32 %v864, %v934
        %v953 = vadd.f32 %v865, %v936
        %v954 = vadd.f32 %v866, %v939
        %v955 = vadd.f32 %v867, %v941
        %v956 = vadd.f32 %v868, %v944
        %v957 = vadd.f32 %v869, %v946
        %v958 = vpack.c.bf16 %v367, %v366
        %v959 = vpack.c.bf16 %v368, %v368
        %s960 = scalar_lea.vmem [#allocation3], 96
        %v961 = vld [vmem:[%s960] sm:$0xf]
        %v962 = vld [vmem:[%s960 + $0x4] sm:$0xf]
        %v963 = vld [vmem:[%s960 + $0x8] sm:$0xf]
        %v964 = vld [vmem:[%s960 + $0xc] sm:$0xf]
        %v967 = vrot.slane %v370, 2
        %v968 = vrot.slane %v371, 2
        %v969 = vsel %vm875, %v967, %v968
        %v970 = vrot.slane %v372, 2
        %v971 = vsel %vm875, %v968, %v970
        %v972 = vrot.slane %v373, 2
        %v973 = vsel %vm875, %v970, %v972
        %v974 = vrot.slane %v958, 2
        %v975 = vsel %vm875, %v972, %v974
        %v976 = vrot.slane %v959, 2
        %v977 = vsel %vm875, %v974, %v976
        %v982 = vunpack.c.l.b16 %v961
        %v983 = vunpack.c.l.b16 %v962
        %v984 = vunpack.c.l.b16 %v963
        %v985 = vunpack.c.l.b16 %v964
        %v986 = vpack.c.b16 %v983, %v982
        %v987 = vpack.c.b16 %v985, %v984
        %v991 = vsel %vm441, %v969, 0
        %v994 = vsel %vm441, %v971, 0
        %v997 = vsel %vm441, %v973, 0
        %v1000 = vsel %vm441, %v975, 0
        %v1003 = vsel %vm441, %v977, 0
        %1005 = vmatpush.bf16.msra.mxu0 0
        %1006 = vmatpush.bf16.msra.mxu0 0
        %1007 = vmatpush.bf16.msra.mxu0 0
        %1008 = vmatpush.bf16.msra.mxu0 0
        %1009 = vmatpush.bf16.msra.mxu0 0
        %1010 = vmatpush.bf16.msra.mxu0 0
        %1011 = vmatpush.bf16.msra.mxu0 %v987
        %1012 = vmatpush.bf16.msra.mxu0 %v986
        %1013 = vmatmul.bf16.gmra.mxu0 %v991
        %v1014 = vpop.f32.mrf.mxu0
        %v1015 = vadd.f32 0.0, %v1014
        %v1016 = vpop.f32.mrf.mxu0
        %v1017 = vadd.f32 0.0, %v1016
        %1018 = vmatmul.bf16.gmra.mxu0 %v994
        %v1019 = vpop.f32.mrf.mxu0
        %v1020 = vadd.f32 0.0, %v1019
        %v1021 = vpop.f32.mrf.mxu0
        %v1022 = vadd.f32 0.0, %v1021
        %1023 = vmatmul.bf16.gmra.mxu0 %v997
        %v1024 = vpop.f32.mrf.mxu0
        %v1025 = vadd.f32 0.0, %v1024
        %v1026 = vpop.f32.mrf.mxu0
        %v1027 = vadd.f32 0.0, %v1026
        %1028 = vmatmul.bf16.gmra.mxu0 %v1000
        %v1029 = vpop.f32.mrf.mxu0
        %v1030 = vadd.f32 0.0, %v1029
        %v1031 = vpop.f32.mrf.mxu0
        %v1032 = vadd.f32 0.0, %v1031
        %1033 = vmatmul.bf16.gmra.mxu0 %v1003
        %v1034 = vpop.f32.mrf.mxu0
        %v1035 = vadd.f32 0.0, %v1034
        %v1036 = vpop.f32.mrf.mxu0
        %v1037 = vadd.f32 0.0, %v1036
        %1038 = vdwg.mxu0
        %v1039 = vadd.f32 %v948, %v1015
        %v1040 = vadd.f32 %v949, %v1017
        %v1041 = vadd.f32 %v950, %v1020
        %v1042 = vadd.f32 %v951, %v1022
        %v1043 = vadd.f32 %v952, %v1025
        %v1044 = vadd.f32 %v953, %v1027
        %v1045 = vadd.f32 %v954, %v1030
        %v1046 = vadd.f32 %v955, %v1032
        %v1047 = vadd.f32 %v956, %v1035
        %v1048 = vadd.f32 %v957, %v1037
        %s1049 = scalar_lea.vmem [#allocation3], 112
        %v1050 = vld [vmem:[%s1049] sm:$0xf]
        %v1051 = vld [vmem:[%s1049 + $0x4] sm:$0xf]
        %v1052 = vld [vmem:[%s1049 + $0x8] sm:$0xf]
        %v1053 = vld [vmem:[%s1049 + $0xc] sm:$0xf]
        %vm1054 = vsmask.f32 5376
        %v1055 = vrot.slane %v397, 2
        %v1056 = vrot.slane %v393, 3
        %v1057 = vor.u32 %v1055, %v1056
        %v1058 = vrot.slane %v405, 2
        %v1059 = vrot.slane %v401, 3
        %v1060 = vor.u32 %v1058, %v1059
        %v1061 = vsel %vm1054, %v1057, %v1060
        %v1062 = vrot.slane %v413, 2
        %v1063 = vrot.slane %v409, 3
        %v1064 = vor.u32 %v1062, %v1063
        %v1065 = vsel %vm1054, %v1060, %v1064
        %v1066 = vrot.slane %v421, 2
        %v1067 = vrot.slane %v417, 3
        %v1068 = vor.u32 %v1066, %v1067
        %v1069 = vsel %vm1054, %v1064, %v1068
        %v1071 = vshrl.u32 %v958, 16
        %v1073 = vrot.slane %v1071, 2
        %v1074 = vshll.u32 %v958, 16
        %v1076 = vrot.slane %v1074, 3
        %v1077 = vor.u32 %v1073, %v1076
        %v1078 = vsel %vm1054, %v1068, %v1077
        %v1080 = vshrl.u32 %v959, 16
        %v1082 = vrot.slane %v1080, 2
        %v1083 = vshll.u32 %v959, 16
        %v1085 = vrot.slane %v1083, 3
        %v1086 = vor.u32 %v1082, %v1085
        %v1087 = vsel %vm1054, %v1077, %v1086
        %v1092 = vunpack.c.l.b16 %v1050
        %v1093 = vunpack.c.l.b16 %v1051
        %v1094 = vunpack.c.l.b16 %v1052
        %v1095 = vunpack.c.l.b16 %v1053
        %v1096 = vpack.c.b16 %v1093, %v1092
        %v1097 = vpack.c.b16 %v1095, %v1094
        %v1101 = vsel %vm441, %v1061, 0
        %v1104 = vsel %vm441, %v1065, 0
        %v1107 = vsel %vm441, %v1069, 0
        %v1110 = vsel %vm441, %v1078, 0
        %v1113 = vsel %vm441, %v1087, 0
        %1115 = vmatpush.bf16.msra.mxu0 0
        %1116 = vmatpush.bf16.msra.mxu0 0
        %1117 = vmatpush.bf16.msra.mxu0 0
        %1118 = vmatpush.bf16.msra.mxu0 0
        %1119 = vmatpush.bf16.msra.mxu0 0
        %1120 = vmatpush.bf16.msra.mxu0 0
        %1121 = vmatpush.bf16.msra.mxu0 %v1097
        %1122 = vmatpush.bf16.msra.mxu0 %v1096
        %1123 = vmatmul.bf16.gmra.mxu0 %v1101
        %v1124 = vpop.f32.mrf.mxu0
        %v1125 = vadd.f32 0.0, %v1124
        %v1126 = vpop.f32.mrf.mxu0
        %v1127 = vadd.f32 0.0, %v1126
        %1128 = vmatmul.bf16.gmra.mxu0 %v1104
        %v1129 = vpop.f32.mrf.mxu0
        %v1130 = vadd.f32 0.0, %v1129
        %v1131 = vpop.f32.mrf.mxu0
        %v1132 = vadd.f32 0.0, %v1131
        %1133 = vmatmul.bf16.gmra.mxu0 %v1107
        %v1134 = vpop.f32.mrf.mxu0
        %v1135 = vadd.f32 0.0, %v1134
        %v1136 = vpop.f32.mrf.mxu0
        %v1137 = vadd.f32 0.0, %v1136
        %1138 = vmatmul.bf16.gmra.mxu0 %v1110
        %v1139 = vpop.f32.mrf.mxu0
        %v1140 = vadd.f32 0.0, %v1139
        %v1141 = vpop.f32.mrf.mxu0
        %v1142 = vadd.f32 0.0, %v1141
        %1143 = vmatmul.bf16.gmra.mxu0 %v1113
        %v1144 = vpop.f32.mrf.mxu0
        %v1145 = vadd.f32 0.0, %v1144
        %v1146 = vpop.f32.mrf.mxu0
        %v1147 = vadd.f32 0.0, %v1146
        %1148 = vdwg.mxu0
        %v1149 = vadd.f32 %v1039, %v1125
        %v1150 = vadd.f32 %v1040, %v1127
        %v1151 = vadd.f32 %v1041, %v1130
        %v1152 = vadd.f32 %v1042, %v1132
        %v1153 = vadd.f32 %v1043, %v1135
        %v1154 = vadd.f32 %v1044, %v1137
        %v1155 = vadd.f32 %v1045, %v1140
        %v1156 = vadd.f32 %v1046, %v1142
        %v1157 = vadd.f32 %v1047, %v1145
        %v1158 = vadd.f32 %v1048, %v1147
        %s1159 = scalar_lea.vmem [#allocation3], 128
        %v1160 = vld [vmem:[%s1159] sm:$0xf]
        %v1161 = vld [vmem:[%s1159 + $0x4] sm:$0xf]
        %v1162 = vld [vmem:[%s1159 + $0x8] sm:$0xf]
        %v1163 = vld [vmem:[%s1159 + $0xc] sm:$0xf]
        %vm1164 = vcmask 1044480
        %v1165 = vrot.slane %v370, 3
        %v1166 = vrot.slane %v371, 3
        %v1167 = vsel %vm1164, %v1165, %v1166
        %v1168 = vrot.slane %v372, 3
        %v1169 = vsel %vm1164, %v1166, %v1168
        %v1170 = vrot.slane %v373, 3
        %v1171 = vsel %vm1164, %v1168, %v1170
        %v1172 = vrot.slane %v958, 3
        %v1173 = vsel %vm1164, %v1170, %v1172
        %v1174 = vrot.slane %v959, 3
        %v1175 = vsel %vm1164, %v1172, %v1174
        %v1180 = vunpack.c.l.b16 %v1160
        %v1181 = vunpack.c.l.b16 %v1161
        %v1182 = vunpack.c.l.b16 %v1162
        %v1183 = vunpack.c.l.b16 %v1163
        %v1184 = vpack.c.b16 %v1181, %v1180
        %v1185 = vpack.c.b16 %v1183, %v1182
        %v1189 = vsel %vm441, %v1167, 0
        %v1192 = vsel %vm441, %v1169, 0
        %v1195 = vsel %vm441, %v1171, 0
        %v1198 = vsel %vm441, %v1173, 0
        %v1201 = vsel %vm441, %v1175, 0
        %1203 = vmatpush.bf16.msra.mxu0 0
        %1204 = vmatpush.bf16.msra.mxu0 0
        %1205 = vmatpush.bf16.msra.mxu0 0
        %1206 = vmatpush.bf16.msra.mxu0 0
        %1207 = vmatpush.bf16.msra.mxu0 0
        %1208 = vmatpush.bf16.msra.mxu0 0
        %1209 = vmatpush.bf16.msra.mxu0 %v1185
        %1210 = vmatpush.bf16.msra.mxu0 %v1184
        %1211 = vmatmul.bf16.gmra.mxu0 %v1189
        %v1212 = vpop.f32.mrf.mxu0
        %v1213 = vadd.f32 0.0, %v1212
        %v1214 = vpop.f32.mrf.mxu0
        %v1215 = vadd.f32 0.0, %v1214
        %1216 = vmatmul.bf16.gmra.mxu0 %v1192
        %v1217 = vpop.f32.mrf.mxu0
        %v1218 = vadd.f32 0.0, %v1217
        %v1219 = vpop.f32.mrf.mxu0
        %v1220 = vadd.f32 0.0, %v1219
        %1221 = vmatmul.bf16.gmra.mxu0 %v1195
        %v1222 = vpop.f32.mrf.mxu0
        %v1223 = vadd.f32 0.0, %v1222
        %v1224 = vpop.f32.mrf.mxu0
        %v1225 = vadd.f32 0.0, %v1224
        %1226 = vmatmul.bf16.gmra.mxu0 %v1198
        %v1227 = vpop.f32.mrf.mxu0
        %v1228 = vadd.f32 0.0, %v1227
        %v1229 = vpop.f32.mrf.mxu0
        %v1230 = vadd.f32 0.0, %v1229
        %1231 = vmatmul.bf16.gmra.mxu0 %v1201
        %v1232 = vpop.f32.mrf.mxu0
        %v1233 = vadd.f32 0.0, %v1232
        %v1234 = vpop.f32.mrf.mxu0
        %v1235 = vadd.f32 0.0, %v1234
        %1236 = vdwg.mxu0
        %v1237 = vadd.f32 %v1149, %v1213
        %v1238 = vadd.f32 %v1150, %v1215
        %v1239 = vadd.f32 %v1151, %v1218
        %v1240 = vadd.f32 %v1152, %v1220
        %v1241 = vadd.f32 %v1153, %v1223
        %v1242 = vadd.f32 %v1154, %v1225
        %v1243 = vadd.f32 %v1155, %v1228
        %v1244 = vadd.f32 %v1156, %v1230
        %v1245 = vadd.f32 %v1157, %v1233
        %v1246 = vadd.f32 %v1158, %v1235
        %v1247 = vld [vmem:[#allocation5] sm:$0x1]
        %v1249 = vperm.slane %v1247, 0
        %v1251 = vadd.f32 %v1237, %v1249
        %v1252 = vadd.f32 %v1238, %v1249
        %v1253 = vadd.f32 %v1239, %v1249
        %v1254 = vadd.f32 %v1240, %v1249
        %v1255 = vadd.f32 %v1241, %v1249
        %v1256 = vadd.f32 %v1242, %v1249
        %v1257 = vadd.f32 %v1243, %v1249
        %v1258 = vadd.f32 %v1244, %v1249
        %v1259 = vadd.f32 %v1245, %v1249
        %v1260 = vadd.f32 %v1246, %v1249
        %v1261 = vmax.f32 %v1251, 0.0
        %v1262 = vmax.f32 %v1252, 0.0
        %v1263 = vmax.f32 %v1253, 0.0
        %v1264 = vmax.f32 %v1254, 0.0
        %v1265 = vmax.f32 %v1255, 0.0
        %v1266 = vmax.f32 %v1256, 0.0
        %v1267 = vmax.f32 %v1257, 0.0
        %v1268 = vmax.f32 %v1258, 0.0
        %v1269 = vmax.f32 %v1259, 0.0
        %v1270 = vmax.f32 %v1260, 0.0
        %v1271 = vld [vmem:[#allocation8] sm:$0xff]
        %v1272 = vld [vmem:[#allocation8 + $0x8] sm:$0xff]
        %v1273 = vld [vmem:[#allocation8 + $0x10] sm:$0xff]
        %v1274 = vld [vmem:[#allocation8 + $0x18] sm:$0xff]
        %v1275 = vld [vmem:[#allocation8 + $0x20] sm:$0xff]
        %v1276 = vld [vmem:[#allocation8 + $0x28] sm:$0xff]
        %v1277 = vld [vmem:[#allocation8 + $0x30] sm:$0xff]
        %v1278 = vld [vmem:[#allocation8 + $0x38] sm:$0xff]
        %v1279 = vld [vmem:[#allocation8 + $0x40] sm:$0xff]
        %v1280 = vld [vmem:[#allocation8 + $0x48] sm:$0xff]
        %1282 = vset.pattern.permute.xlu0 0
        %1283 = vperm.xlu0 %1282, %v1271
        %v1284 = vpop.permute.xlu0 %1283
        %1287 = vset.pattern.permute.xlu0 0
        %1288 = vperm.xlu0 %1287, %v1272
        %v1289 = vpop.permute.xlu0 %1288
        %1292 = vset.pattern.permute.xlu0 0
        %1293 = vperm.xlu0 %1292, %v1273
        %v1294 = vpop.permute.xlu0 %1293
        %1297 = vset.pattern.permute.xlu0 0
        %1298 = vperm.xlu0 %1297, %v1274
        %v1299 = vpop.permute.xlu0 %1298
        %1302 = vset.pattern.permute.xlu0 0
        %1303 = vperm.xlu0 %1302, %v1275
        %v1304 = vpop.permute.xlu0 %1303
        %1307 = vset.pattern.permute.xlu0 0
        %1308 = vperm.xlu0 %1307, %v1276
        %v1309 = vpop.permute.xlu0 %1308
        %1312 = vset.pattern.permute.xlu0 0
        %1313 = vperm.xlu0 %1312, %v1277
        %v1314 = vpop.permute.xlu0 %1313
        %1317 = vset.pattern.permute.xlu0 0
        %1318 = vperm.xlu0 %1317, %v1278
        %v1319 = vpop.permute.xlu0 %1318
        %1322 = vset.pattern.permute.xlu0 0
        %1323 = vperm.xlu0 %1322, %v1279
        %v1324 = vpop.permute.xlu0 %1323
        %1327 = vset.pattern.permute.xlu0 0
        %1328 = vperm.xlu0 %1327, %v1280
        %v1329 = vpop.permute.xlu0 %1328
        %v1331 = vmul.f32 %v1261, %v1284
        %v1332 = vmul.f32 %v1262, %v1289
        %v1333 = vmul.f32 %v1263, %v1294
        %v1334 = vmul.f32 %v1264, %v1299
        %v1335 = vmul.f32 %v1265, %v1304
        %v1336 = vmul.f32 %v1266, %v1309
        %v1337 = vmul.f32 %v1267, %v1314
        %v1338 = vmul.f32 %v1268, %v1319
        %v1339 = vmul.f32 %v1269, %v1324
        %v1340 = vmul.f32 %v1270, %v1329
        %vm1341 = vcmask 523264
        %1342 = vst.msk [vmem:[#allocation2] sm:$0xff] %vm1341, 0.0
        %1343 = vst.msk [vmem:[#allocation2 + $0x8] sm:$0xff] %vm1341, 0.0
        %1344 = vst.msk [vmem:[#allocation2 + $0x10] sm:$0xff] %vm1341, 0.0
        %1345 = vst.msk [vmem:[#allocation2 + $0x18] sm:$0xff] %vm1341, 0.0
        %1346 = vst.msk [vmem:[#allocation2 + $0x20] sm:$0xff] %vm1341, 0.0
        %1347 = vst.msk [vmem:[#allocation2 + $0x28] sm:$0xff] %vm1341, 0.0
        %1348 = vst.msk [vmem:[#allocation2 + $0x30] sm:$0xff] %vm1341, 0.0
        %1349 = vst.msk [vmem:[#allocation2 + $0x38] sm:$0xff] %vm1341, 0.0
        %1350 = vst.msk [vmem:[#allocation2 + $0x40] sm:$0xff] %vm1341, 0.0
        %1351 = vst.msk [vmem:[#allocation2 + $0x48] sm:$0xff] %vm1341, 0.0
        %1352 = vst.msk [vmem:[#allocation2 + $0x50] sm:$0xff] %vm1341, 0.0
        %1353 = vst.msk [vmem:[#allocation2 + $0x58] sm:$0xff] %vm1341, 0.0
        %1354 = vst.msk [vmem:[#allocation2 + $0x60] sm:$0xff] %vm1341, 0.0
        %vm1355 = vcmask 521216
        %1356 = vst.msk [vmem:[#allocation2 + $0x68] sm:$0x3f] %vm1355, 0.0
        %1357 = vst.msk [vmem:[#allocation2 + $0xb] sm:$0xff] %vm1341, %v1331
        %1358 = vst.msk [vmem:[#allocation2 + $0x13] sm:$0xff] %vm1341, %v1332
        %1359 = vst.msk [vmem:[#allocation2 + $0x1b] sm:$0xff] %vm1341, %v1333
        %1360 = vst.msk [vmem:[#allocation2 + $0x23] sm:$0xff] %vm1341, %v1334
        %1361 = vst.msk [vmem:[#allocation2 + $0x2b] sm:$0xff] %vm1341, %v1335
        %1362 = vst.msk [vmem:[#allocation2 + $0x33] sm:$0xff] %vm1341, %v1336
        %1363 = vst.msk [vmem:[#allocation2 + $0x3b] sm:$0xff] %vm1341, %v1337
        %1364 = vst.msk [vmem:[#allocation2 + $0x43] sm:$0xff] %vm1341, %v1338
        %1365 = vst.msk [vmem:[#allocation2 + $0x4b] sm:$0xff] %vm1341, %v1339
        %1366 = vst.msk [vmem:[#allocation2 + $0x53] sm:$0xff] %vm1341, %v1340
        %v1367 = vld [vmem:[#allocation2] sm:$0xff]
        %v1368 = vld [vmem:[#allocation2 + $0x8] sm:$0xff]
        %v1369 = vld [vmem:[#allocation2 + $0x10] sm:$0xff]
        %v1370 = vld [vmem:[#allocation2 + $0x18] sm:$0xff]
        %v1371 = vld [vmem:[#allocation2 + $0x20] sm:$0xff]
        %v1372 = vld [vmem:[#allocation2 + $0x28] sm:$0xff]
        %v1373 = vld [vmem:[#allocation2 + $0x30] sm:$0xff]
        %v1374 = vld [vmem:[#allocation2 + $0x38] sm:$0xff]
        %v1375 = vld [vmem:[#allocation2 + $0x40] sm:$0xff]
        %v1376 = vld [vmem:[#allocation2 + $0x48] sm:$0xff]
        %v1377 = vld [vmem:[#allocation2 + $0x50] sm:$0xff]
        %v1378 = vld [vmem:[#allocation2 + $0x58] sm:$0xff]
        %v1379 = vld [vmem:[#allocation2 + $0x60] sm:$0xff]
        %v1380 = vpack.c.bf16 %v1368, %v1367
        %v1381 = vpack.c.bf16 %v1370, %v1369
        %v1382 = vpack.c.bf16 %v1372, %v1371
        %v1383 = vpack.c.bf16 %v1374, %v1373
        %v1384 = vpack.c.bf16 %v1376, %v1375
        %v1385 = vld [vmem:[%s3] sm:$0xf]
        %v1386 = vld [vmem:[%s3 + $0x4] sm:$0xf]
        %v1387 = vld [vmem:[%s3 + $0x8] sm:$0xf]
        %v1388 = vld [vmem:[%s3 + $0xc] sm:$0xf]
        %v1389 = vld [vmem:[%s3 + $0x10] sm:$0xf]
        %v1390 = vld [vmem:[%s3 + $0x14] sm:$0xf]
        %v1391 = vld [vmem:[%s3 + $0x18] sm:$0xf]
        %v1392 = vld [vmem:[%s3 + $0x1c] sm:$0xf]
        %v1393 = vpack.c.bf16 %v1377, %v1377
        %s1394 = scalar_lea.vmem %s3, 32
        %v1395 = vld [vmem:[%s1394] sm:$0xf]
        %v1396 = vld [vmem:[%s1394 + $0x4] sm:$0xf]
        %v1397 = vld [vmem:[%s1394 + $0x8] sm:$0xf]
        %v1398 = vld [vmem:[%s1394 + $0xc] sm:$0xf]
        %v1399 = vld [vmem:[%s1394 + $0x10] sm:$0xf]
        %v1400 = vld [vmem:[%s1394 + $0x14] sm:$0xf]
        %v1401 = vld [vmem:[%s1394 + $0x18] sm:$0xf]
        %v1402 = vld [vmem:[%s1394 + $0x1c] sm:$0xf]
        %v1404 = vshrl.u32 %v1380, 16
        %v1406 = vshll.u32 %v1380, 16
        %v1408 = vrot.slane %v1406, 1
        %v1409 = vor.u32 %v1404, %v1408
        %v1411 = vshll.u32 %v1381, 16
        %v1413 = vrot.slane %v1411, 1
        %v1414 = vsel %vm384, %v1409, %v1413
        %v1415 = vshrl.u32 %v1381, 16
        %v1417 = vor.u32 %v1415, %v1413
        %v1419 = vshll.u32 %v1382, 16
        %v1421 = vrot.slane %v1419, 1
        %v1422 = vsel %vm384, %v1417, %v1421
        %v1423 = vshrl.u32 %v1382, 16
        %v1425 = vor.u32 %v1423, %v1421
        %v1427 = vshll.u32 %v1383, 16
        %v1429 = vrot.slane %v1427, 1
        %v1430 = vsel %vm384, %v1425, %v1429
        %v1431 = vshrl.u32 %v1383, 16
        %v1433 = vor.u32 %v1431, %v1429
        %v1435 = vshll.u32 %v1384, 16
        %v1437 = vrot.slane %v1435, 1
        %v1438 = vsel %vm384, %v1433, %v1437
        %v1439 = vshrl.u32 %v1384, 16
        %v1441 = vor.u32 %v1439, %v1437
        %v1443 = vshll.u32 %v1393, 16
        %v1445 = vrot.slane %v1443, 1
        %v1446 = vsel %vm384, %v1441, %v1445
        %v1455 = vunpack.c.l.b16 %v1395
        %v1456 = vunpack.c.l.b16 %v1396
        %v1457 = vunpack.c.l.b16 %v1397
        %v1458 = vunpack.c.l.b16 %v1398
        %v1459 = vunpack.c.l.b16 %v1399
        %v1460 = vunpack.c.l.b16 %v1400
        %v1461 = vunpack.c.l.b16 %v1401
        %v1462 = vunpack.c.l.b16 %v1402
        %v1463 = vpack.c.b16 %v1456, %v1455
        %v1464 = vpack.c.b16 %v1458, %v1457
        %v1465 = vpack.c.b16 %v1460, %v1459
        %v1466 = vpack.c.b16 %v1462, %v1461
        %v1472 = vsel %vm1341, %v1414, 0
        %v1475 = vsel %vm1341, %v1422, 0
        %v1478 = vsel %vm1341, %v1430, 0
        %v1481 = vsel %vm1341, %v1438, 0
        %v1484 = vsel %vm1341, %v1446, 0
        %1486 = vmatpush.bf16.msra.mxu0 0
        %1487 = vmatpush.bf16.msra.mxu0 0
        %1488 = vmatpush.bf16.msra.mxu0 0
        %1489 = vmatpush.bf16.msra.mxu0 0
        %1490 = vmatpush.bf16.msra.mxu0 %v1466
        %1491 = vmatpush.bf16.msra.mxu0 %v1465
        %1492 = vmatpush.bf16.msra.mxu0 %v1464
        %1493 = vmatpush.bf16.msra.mxu0 %v1463
        %1494 = vmatmul.bf16.gmra.mxu0 %v1472
        %v1495 = vpop.f32.mrf.mxu0
        %v1496 = vadd.f32 0.0, %v1495
        %v1497 = vpop.f32.mrf.mxu0
        %v1498 = vadd.f32 0.0, %v1497
        %1499 = vmatmul.bf16.gmra.mxu0 %v1475
        %v1500 = vpop.f32.mrf.mxu0
        %v1501 = vadd.f32 0.0, %v1500
        %v1502 = vpop.f32.mrf.mxu0
        %v1503 = vadd.f32 0.0, %v1502
        %1504 = vmatmul.bf16.gmra.mxu0 %v1478
        %v1505 = vpop.f32.mrf.mxu0
        %v1506 = vadd.f32 0.0, %v1505
        %v1507 = vpop.f32.mrf.mxu0
        %v1508 = vadd.f32 0.0, %v1507
        %1509 = vmatmul.bf16.gmra.mxu0 %v1481
        %v1510 = vpop.f32.mrf.mxu0
        %v1511 = vadd.f32 0.0, %v1510
        %v1512 = vpop.f32.mrf.mxu0
        %v1513 = vadd.f32 0.0, %v1512
        %1514 = vmatmul.bf16.gmra.mxu0 %v1484
        %v1515 = vpop.f32.mrf.mxu0
        %v1516 = vadd.f32 0.0, %v1515
        %v1517 = vpop.f32.mrf.mxu0
        %v1518 = vadd.f32 0.0, %v1517
        %1519 = vdwg.mxu0
        %v1528 = vunpack.c.l.b16 %v1385
        %v1529 = vunpack.c.l.b16 %v1386
        %v1530 = vunpack.c.l.b16 %v1387
        %v1531 = vunpack.c.l.b16 %v1388
        %v1532 = vunpack.c.l.b16 %v1389
        %v1533 = vunpack.c.l.b16 %v1390
        %v1534 = vunpack.c.l.b16 %v1391
        %v1535 = vunpack.c.l.b16 %v1392
        %v1536 = vpack.c.b16 %v1529, %v1528
        %v1537 = vpack.c.b16 %v1531, %v1530
        %v1538 = vpack.c.b16 %v1533, %v1532
        %v1539 = vpack.c.b16 %v1535, %v1534
        %v1544 = vsel %vm1341, %v1380, 0
        %v1546 = vsel %vm1341, %v1381, 0
        %v1548 = vsel %vm1341, %v1382, 0
        %v1550 = vsel %vm1341, %v1383, 0
        %v1552 = vsel %vm1341, %v1384, 0
        %1554 = vmatpush.bf16.msra.mxu0 0
        %1555 = vmatpush.bf16.msra.mxu0 0
        %1556 = vmatpush.bf16.msra.mxu0 0
        %1557 = vmatpush.bf16.msra.mxu0 0
        %1558 = vmatpush.bf16.msra.mxu0 %v1539
        %1559 = vmatpush.bf16.msra.mxu0 %v1538
        %1560 = vmatpush.bf16.msra.mxu0 %v1537
        %1561 = vmatpush.bf16.msra.mxu0 %v1536
        %1562 = vmatmul.bf16.gmra.mxu0 %v1544
        %v1563 = vpop.f32.mrf.mxu0
        %v1564 = vadd.f32 %v1496, %v1563
        %v1565 = vpop.f32.mrf.mxu0
        %v1566 = vadd.f32 %v1498, %v1565
        %1567 = vmatmul.bf16.gmra.mxu0 %v1546
        %v1568 = vpop.f32.mrf.mxu0
        %v1569 = vadd.f32 %v1501, %v1568
        %v1570 = vpop.f32.mrf.mxu0
        %v1571 = vadd.f32 %v1503, %v1570
        %1572 = vmatmul.bf16.gmra.mxu0 %v1548
        %v1573 = vpop.f32.mrf.mxu0
        %v1574 = vadd.f32 %v1506, %v1573
        %v1575 = vpop.f32.mrf.mxu0
        %v1576 = vadd.f32 %v1508, %v1575
        %1577 = vmatmul.bf16.gmra.mxu0 %v1550
        %v1578 = vpop.f32.mrf.mxu0
        %v1579 = vadd.f32 %v1511, %v1578
        %v1580 = vpop.f32.mrf.mxu0
        %v1581 = vadd.f32 %v1513, %v1580
        %1582 = vmatmul.bf16.gmra.mxu0 %v1552
        %v1583 = vpop.f32.mrf.mxu0
        %v1584 = vadd.f32 %v1516, %v1583
        %v1585 = vpop.f32.mrf.mxu0
        %v1586 = vadd.f32 %v1518, %v1585
        %1587 = vdwg.mxu0
        %s1588 = scalar_lea.vmem %s3, 64
        %v1589 = vld [vmem:[%s1588] sm:$0xf]
        %v1590 = vld [vmem:[%s1588 + $0x4] sm:$0xf]
        %v1591 = vld [vmem:[%s1588 + $0x8] sm:$0xf]
        %v1592 = vld [vmem:[%s1588 + $0xc] sm:$0xf]
        %v1593 = vld [vmem:[%s1588 + $0x10] sm:$0xf]
        %v1594 = vld [vmem:[%s1588 + $0x14] sm:$0xf]
        %v1595 = vld [vmem:[%s1588 + $0x18] sm:$0xf]
        %v1596 = vld [vmem:[%s1588 + $0x1c] sm:$0xf]
        %v1603 = vrot.slane %v1380, 1
        %v1604 = vrot.slane %v1381, 1
        %v1605 = vsel %vm558, %v1603, %v1604
        %v1606 = vrot.slane %v1382, 1
        %v1607 = vsel %vm558, %v1604, %v1606
        %v1608 = vrot.slane %v1383, 1
        %v1609 = vsel %vm558, %v1606, %v1608
        %v1610 = vrot.slane %v1384, 1
        %v1611 = vsel %vm558, %v1608, %v1610
        %v1612 = vrot.slane %v1393, 1
        %v1613 = vsel %vm558, %v1610, %v1612
        %v1622 = vunpack.c.l.b16 %v1589
        %v1623 = vunpack.c.l.b16 %v1590
        %v1624 = vunpack.c.l.b16 %v1591
        %v1625 = vunpack.c.l.b16 %v1592
        %v1626 = vunpack.c.l.b16 %v1593
        %v1627 = vunpack.c.l.b16 %v1594
        %v1628 = vunpack.c.l.b16 %v1595
        %v1629 = vunpack.c.l.b16 %v1596
        %v1630 = vpack.c.b16 %v1623, %v1622
        %v1631 = vpack.c.b16 %v1625, %v1624
        %v1632 = vpack.c.b16 %v1627, %v1626
        %v1633 = vpack.c.b16 %v1629, %v1628
        %v1639 = vsel %vm1341, %v1605, 0
        %v1642 = vsel %vm1341, %v1607, 0
        %v1645 = vsel %vm1341, %v1609, 0
        %v1648 = vsel %vm1341, %v1611, 0
        %v1651 = vsel %vm1341, %v1613, 0
        %1653 = vmatpush.bf16.msra.mxu0 0
        %1654 = vmatpush.bf16.msra.mxu0 0
        %1655 = vmatpush.bf16.msra.mxu0 0
        %1656 = vmatpush.bf16.msra.mxu0 0
        %1657 = vmatpush.bf16.msra.mxu0 %v1633
        %1658 = vmatpush.bf16.msra.mxu0 %v1632
        %1659 = vmatpush.bf16.msra.mxu0 %v1631
        %1660 = vmatpush.bf16.msra.mxu0 %v1630
        %1661 = vmatmul.bf16.gmra.mxu0 %v1639
        %v1662 = vpop.f32.mrf.mxu0
        %v1663 = vadd.f32 0.0, %v1662
        %v1664 = vpop.f32.mrf.mxu0
        %v1665 = vadd.f32 0.0, %v1664
        %1666 = vmatmul.bf16.gmra.mxu0 %v1642
        %v1667 = vpop.f32.mrf.mxu0
        %v1668 = vadd.f32 0.0, %v1667
        %v1669 = vpop.f32.mrf.mxu0
        %v1670 = vadd.f32 0.0, %v1669
        %1671 = vmatmul.bf16.gmra.mxu0 %v1645
        %v1672 = vpop.f32.mrf.mxu0
        %v1673 = vadd.f32 0.0, %v1672
        %v1674 = vpop.f32.mrf.mxu0
        %v1675 = vadd.f32 0.0, %v1674
        %1676 = vmatmul.bf16.gmra.mxu0 %v1648
        %v1677 = vpop.f32.mrf.mxu0
        %v1678 = vadd.f32 0.0, %v1677
        %v1679 = vpop.f32.mrf.mxu0
        %v1680 = vadd.f32 0.0, %v1679
        %1681 = vmatmul.bf16.gmra.mxu0 %v1651
        %v1682 = vpop.f32.mrf.mxu0
        %v1683 = vadd.f32 0.0, %v1682
        %v1684 = vpop.f32.mrf.mxu0
        %v1685 = vadd.f32 0.0, %v1684
        %1686 = vdwg.mxu0
        %v1687 = vadd.f32 %v1564, %v1663
        %v1688 = vadd.f32 %v1566, %v1665
        %v1689 = vadd.f32 %v1569, %v1668
        %v1690 = vadd.f32 %v1571, %v1670
        %v1691 = vadd.f32 %v1574, %v1673
        %v1692 = vadd.f32 %v1576, %v1675
        %v1693 = vadd.f32 %v1579, %v1678
        %v1694 = vadd.f32 %v1581, %v1680
        %v1695 = vadd.f32 %v1584, %v1683
        %v1696 = vadd.f32 %v1586, %v1685
        %v1697 = vpack.c.bf16 %v1369, %v1368
        %v1698 = vpack.c.bf16 %v1371, %v1370
        %v1699 = vpack.c.bf16 %v1373, %v1372
        %v1700 = vpack.c.bf16 %v1375, %v1374
        %v1701 = vpack.c.bf16 %v1377, %v1376
        %v1702 = vpack.c.bf16 %v1378, %v1378
        %s1703 = scalar_lea.vmem %s3, 96
        %v1704 = vld [vmem:[%s1703] sm:$0xf]
        %v1705 = vld [vmem:[%s1703 + $0x4] sm:$0xf]
        %v1706 = vld [vmem:[%s1703 + $0x8] sm:$0xf]
        %v1707 = vld [vmem:[%s1703 + $0xc] sm:$0xf]
        %v1708 = vld [vmem:[%s1703 + $0x10] sm:$0xf]
        %v1709 = vld [vmem:[%s1703 + $0x14] sm:$0xf]
        %v1710 = vld [vmem:[%s1703 + $0x18] sm:$0xf]
        %v1711 = vld [vmem:[%s1703 + $0x1c] sm:$0xf]
        %v1718 = vrot.slane %v1697, 1
        %v1719 = vrot.slane %v1698, 1
        %v1720 = vsel %vm558, %v1718, %v1719
        %v1721 = vrot.slane %v1699, 1
        %v1722 = vsel %vm558, %v1719, %v1721
        %v1723 = vrot.slane %v1700, 1
        %v1724 = vsel %vm558, %v1721, %v1723
        %v1725 = vrot.slane %v1701, 1
        %v1726 = vsel %vm558, %v1723, %v1725
        %v1727 = vrot.slane %v1702, 1
        %v1728 = vsel %vm558, %v1725, %v1727
        %v1737 = vunpack.c.l.b16 %v1704
        %v1738 = vunpack.c.l.b16 %v1705
        %v1739 = vunpack.c.l.b16 %v1706
        %v1740 = vunpack.c.l.b16 %v1707
        %v1741 = vunpack.c.l.b16 %v1708
        %v1742 = vunpack.c.l.b16 %v1709
        %v1743 = vunpack.c.l.b16 %v1710
        %v1744 = vunpack.c.l.b16 %v1711
        %v1745 = vpack.c.b16 %v1738, %v1737
        %v1746 = vpack.c.b16 %v1740, %v1739
        %v1747 = vpack.c.b16 %v1742, %v1741
        %v1748 = vpack.c.b16 %v1744, %v1743
        %v1754 = vsel %vm1341, %v1720, 0
        %v1757 = vsel %vm1341, %v1722, 0
        %v1760 = vsel %vm1341, %v1724, 0
        %v1763 = vsel %vm1341, %v1726, 0
        %v1766 = vsel %vm1341, %v1728, 0
        %1768 = vmatpush.bf16.msra.mxu0 0
        %1769 = vmatpush.bf16.msra.mxu0 0
        %1770 = vmatpush.bf16.msra.mxu0 0
        %1771 = vmatpush.bf16.msra.mxu0 0
        %1772 = vmatpush.bf16.msra.mxu0 %v1748
        %1773 = vmatpush.bf16.msra.mxu0 %v1747
        %1774 = vmatpush.bf16.msra.mxu0 %v1746
        %1775 = vmatpush.bf16.msra.mxu0 %v1745
        %1776 = vmatmul.bf16.gmra.mxu0 %v1754
        %v1777 = vpop.f32.mrf.mxu0
        %v1778 = vadd.f32 0.0, %v1777
        %v1779 = vpop.f32.mrf.mxu0
        %v1780 = vadd.f32 0.0, %v1779
        %1781 = vmatmul.bf16.gmra.mxu0 %v1757
        %v1782 = vpop.f32.mrf.mxu0
        %v1783 = vadd.f32 0.0, %v1782
        %v1784 = vpop.f32.mrf.mxu0
        %v1785 = vadd.f32 0.0, %v1784
        %1786 = vmatmul.bf16.gmra.mxu0 %v1760
        %v1787 = vpop.f32.mrf.mxu0
        %v1788 = vadd.f32 0.0, %v1787
        %v1789 = vpop.f32.mrf.mxu0
        %v1790 = vadd.f32 0.0, %v1789
        %1791 = vmatmul.bf16.gmra.mxu0 %v1763
        %v1792 = vpop.f32.mrf.mxu0
        %v1793 = vadd.f32 0.0, %v1792
        %v1794 = vpop.f32.mrf.mxu0
        %v1795 = vadd.f32 0.0, %v1794
        %1796 = vmatmul.bf16.gmra.mxu0 %v1766
        %v1797 = vpop.f32.mrf.mxu0
        %v1798 = vadd.f32 0.0, %v1797
        %v1799 = vpop.f32.mrf.mxu0
        %v1800 = vadd.f32 0.0, %v1799
        %1801 = vdwg.mxu0
        %v1802 = vadd.f32 %v1687, %v1778
        %v1803 = vadd.f32 %v1688, %v1780
        %v1804 = vadd.f32 %v1689, %v1783
        %v1805 = vadd.f32 %v1690, %v1785
        %v1806 = vadd.f32 %v1691, %v1788
        %v1807 = vadd.f32 %v1692, %v1790
        %v1808 = vadd.f32 %v1693, %v1793
        %v1809 = vadd.f32 %v1694, %v1795
        %v1810 = vadd.f32 %v1695, %v1798
        %v1811 = vadd.f32 %v1696, %v1800
        %s1812 = scalar_lea.vmem %s3, 128
        %v1813 = vld [vmem:[%s1812] sm:$0xf]
        %v1814 = vld [vmem:[%s1812 + $0x4] sm:$0xf]
        %v1815 = vld [vmem:[%s1812 + $0x8] sm:$0xf]
        %v1816 = vld [vmem:[%s1812 + $0xc] sm:$0xf]
        %v1817 = vld [vmem:[%s1812 + $0x10] sm:$0xf]
        %v1818 = vld [vmem:[%s1812 + $0x14] sm:$0xf]
        %v1819 = vld [vmem:[%s1812 + $0x18] sm:$0xf]
        %v1820 = vld [vmem:[%s1812 + $0x1c] sm:$0xf]
        %v1822 = vshrl.u32 %v1697, 16
        %v1824 = vrot.slane %v1822, 1
        %v1825 = vshll.u32 %v1697, 16
        %v1827 = vrot.slane %v1825, 2
        %v1828 = vor.u32 %v1824, %v1827
        %v1830 = vshrl.u32 %v1698, 16
        %v1832 = vrot.slane %v1830, 1
        %v1833 = vshll.u32 %v1698, 16
        %v1835 = vrot.slane %v1833, 2
        %v1836 = vor.u32 %v1832, %v1835
        %v1837 = vsel %vm745, %v1828, %v1836
        %v1839 = vshrl.u32 %v1699, 16
        %v1841 = vrot.slane %v1839, 1
        %v1842 = vshll.u32 %v1699, 16
        %v1844 = vrot.slane %v1842, 2
        %v1845 = vor.u32 %v1841, %v1844
        %v1846 = vsel %vm745, %v1836, %v1845
        %v1848 = vshrl.u32 %v1700, 16
        %v1850 = vrot.slane %v1848, 1
        %v1851 = vshll.u32 %v1700, 16
        %v1853 = vrot.slane %v1851, 2
        %v1854 = vor.u32 %v1850, %v1853
        %v1855 = vsel %vm745, %v1845, %v1854
        %v1857 = vshrl.u32 %v1701, 16
        %v1859 = vrot.slane %v1857, 1
        %v1860 = vshll.u32 %v1701, 16
        %v1862 = vrot.slane %v1860, 2
        %v1863 = vor.u32 %v1859, %v1862
        %v1864 = vsel %vm745, %v1854, %v1863
        %v1866 = vshrl.u32 %v1702, 16
        %v1868 = vrot.slane %v1866, 1
        %v1869 = vshll.u32 %v1702, 16
        %v1871 = vrot.slane %v1869, 2
        %v1872 = vor.u32 %v1868, %v1871
        %v1873 = vsel %vm745, %v1863, %v1872
        %v1882 = vunpack.c.l.b16 %v1813
        %v1883 = vunpack.c.l.b16 %v1814
        %v1884 = vunpack.c.l.b16 %v1815
        %v1885 = vunpack.c.l.b16 %v1816
        %v1886 = vunpack.c.l.b16 %v1817
        %v1887 = vunpack.c.l.b16 %v1818
        %v1888 = vunpack.c.l.b16 %v1819
        %v1889 = vunpack.c.l.b16 %v1820
        %v1890 = vpack.c.b16 %v1883, %v1882
        %v1891 = vpack.c.b16 %v1885, %v1884
        %v1892 = vpack.c.b16 %v1887, %v1886
        %v1893 = vpack.c.b16 %v1889, %v1888
        %v1899 = vsel %vm1341, %v1837, 0
        %v1902 = vsel %vm1341, %v1846, 0
        %v1905 = vsel %vm1341, %v1855, 0
        %v1908 = vsel %vm1341, %v1864, 0
        %v1911 = vsel %vm1341, %v1873, 0
        %1913 = vmatpush.bf16.msra.mxu0 0
        %1914 = vmatpush.bf16.msra.mxu0 0
        %1915 = vmatpush.bf16.msra.mxu0 0
        %1916 = vmatpush.bf16.msra.mxu0 0
        %1917 = vmatpush.bf16.msra.mxu0 %v1893
        %1918 = vmatpush.bf16.msra.mxu0 %v1892
        %1919 = vmatpush.bf16.msra.mxu0 %v1891
        %1920 = vmatpush.bf16.msra.mxu0 %v1890
        %1921 = vmatmul.bf16.gmra.mxu0 %v1899
        %v1922 = vpop.f32.mrf.mxu0
        %v1923 = vadd.f32 0.0, %v1922
        %v1924 = vpop.f32.mrf.mxu0
        %v1925 = vadd.f32 0.0, %v1924
        %1926 = vmatmul.bf16.gmra.mxu0 %v1902
        %v1927 = vpop.f32.mrf.mxu0
        %v1928 = vadd.f32 0.0, %v1927
        %v1929 = vpop.f32.mrf.mxu0
        %v1930 = vadd.f32 0.0, %v1929
        %1931 = vmatmul.bf16.gmra.mxu0 %v1905
        %v1932 = vpop.f32.mrf.mxu0
        %v1933 = vadd.f32 0.0, %v1932
        %v1934 = vpop.f32.mrf.mxu0
        %v1935 = vadd.f32 0.0, %v1934
        %1936 = vmatmul.bf16.gmra.mxu0 %v1908
        %v1937 = vpop.f32.mrf.mxu0
        %v1938 = vadd.f32 0.0, %v1937
        %v1939 = vpop.f32.mrf.mxu0
        %v1940 = vadd.f32 0.0, %v1939
        %1941 = vmatmul.bf16.gmra.mxu0 %v1911
        %v1942 = vpop.f32.mrf.mxu0
        %v1943 = vadd.f32 0.0, %v1942
        %v1944 = vpop.f32.mrf.mxu0
        %v1945 = vadd.f32 0.0, %v1944
        %1946 = vdwg.mxu0
        %v1947 = vadd.f32 %v1802, %v1923
        %v1948 = vadd.f32 %v1803, %v1925
        %v1949 = vadd.f32 %v1804, %v1928
        %v1950 = vadd.f32 %v1805, %v1930
        %v1951 = vadd.f32 %v1806, %v1933
        %v1952 = vadd.f32 %v1807, %v1935
        %v1953 = vadd.f32 %v1808, %v1938
        %v1954 = vadd.f32 %v1809, %v1940
        %v1955 = vadd.f32 %v1810, %v1943
        %v1956 = vadd.f32 %v1811, %v1945
        %s1957 = scalar_lea.vmem %s3, 160
        %v1958 = vld [vmem:[%s1957] sm:$0xf]
        %v1959 = vld [vmem:[%s1957 + $0x4] sm:$0xf]
        %v1960 = vld [vmem:[%s1957 + $0x8] sm:$0xf]
        %v1961 = vld [vmem:[%s1957 + $0xc] sm:$0xf]
        %v1962 = vld [vmem:[%s1957 + $0x10] sm:$0xf]
        %v1963 = vld [vmem:[%s1957 + $0x14] sm:$0xf]
        %v1964 = vld [vmem:[%s1957 + $0x18] sm:$0xf]
        %v1965 = vld [vmem:[%s1957 + $0x1c] sm:$0xf]
        %v1966 = vrot.slane %v1697, 2
        %v1967 = vrot.slane %v1698, 2
        %v1968 = vsel %vm875, %v1966, %v1967
        %v1969 = vrot.slane %v1699, 2
        %v1970 = vsel %vm875, %v1967, %v1969
        %v1971 = vrot.slane %v1700, 2
        %v1972 = vsel %vm875, %v1969, %v1971
        %v1973 = vrot.slane %v1701, 2
        %v1974 = vsel %vm875, %v1971, %v1973
        %v1975 = vrot.slane %v1702, 2
        %v1976 = vsel %vm875, %v1973, %v1975
        %v1985 = vunpack.c.l.b16 %v1958
        %v1986 = vunpack.c.l.b16 %v1959
        %v1987 = vunpack.c.l.b16 %v1960
        %v1988 = vunpack.c.l.b16 %v1961
        %v1989 = vunpack.c.l.b16 %v1962
        %v1990 = vunpack.c.l.b16 %v1963
        %v1991 = vunpack.c.l.b16 %v1964
        %v1992 = vunpack.c.l.b16 %v1965
        %v1993 = vpack.c.b16 %v1986, %v1985
        %v1994 = vpack.c.b16 %v1988, %v1987
        %v1995 = vpack.c.b16 %v1990, %v1989
        %v1996 = vpack.c.b16 %v1992, %v1991
        %v2002 = vsel %vm1341, %v1968, 0
        %v2005 = vsel %vm1341, %v1970, 0
        %v2008 = vsel %vm1341, %v1972, 0
        %v2011 = vsel %vm1341, %v1974, 0
        %v2014 = vsel %vm1341, %v1976, 0
        %2016 = vmatpush.bf16.msra.mxu0 0
        %2017 = vmatpush.bf16.msra.mxu0 0
        %2018 = vmatpush.bf16.msra.mxu0 0
        %2019 = vmatpush.bf16.msra.mxu0 0
        %2020 = vmatpush.bf16.msra.mxu0 %v1996
        %2021 = vmatpush.bf16.msra.mxu0 %v1995
        %2022 = vmatpush.bf16.msra.mxu0 %v1994
        %2023 = vmatpush.bf16.msra.mxu0 %v1993
        %2024 = vmatmul.bf16.gmra.mxu0 %v2002
        %v2025 = vpop.f32.mrf.mxu0
        %v2026 = vadd.f32 0.0, %v2025
        %v2027 = vpop.f32.mrf.mxu0
        %v2028 = vadd.f32 0.0, %v2027
        %2029 = vmatmul.bf16.gmra.mxu0 %v2005
        %v2030 = vpop.f32.mrf.mxu0
        %v2031 = vadd.f32 0.0, %v2030
        %v2032 = vpop.f32.mrf.mxu0
        %v2033 = vadd.f32 0.0, %v2032
        %2034 = vmatmul.bf16.gmra.mxu0 %v2008
        %v2035 = vpop.f32.mrf.mxu0
        %v2036 = vadd.f32 0.0, %v2035
        %v2037 = vpop.f32.mrf.mxu0
        %v2038 = vadd.f32 0.0, %v2037
        %2039 = vmatmul.bf16.gmra.mxu0 %v2011
        %v2040 = vpop.f32.mrf.mxu0
        %v2041 = vadd.f32 0.0, %v2040
        %v2042 = vpop.f32.mrf.mxu0
        %v2043 = vadd.f32 0.0, %v2042
        %2044 = vmatmul.bf16.gmra.mxu0 %v2014
        %v2045 = vpop.f32.mrf.mxu0
        %v2046 = vadd.f32 0.0, %v2045
        %v2047 = vpop.f32.mrf.mxu0
        %v2048 = vadd.f32 0.0, %v2047
        %2049 = vdwg.mxu0
        %v2050 = vadd.f32 %v1947, %v2026
        %v2051 = vadd.f32 %v1948, %v2028
        %v2052 = vadd.f32 %v1949, %v2031
        %v2053 = vadd.f32 %v1950, %v2033
        %v2054 = vadd.f32 %v1951, %v2036
        %v2055 = vadd.f32 %v1952, %v2038
        %v2056 = vadd.f32 %v1953, %v2041
        %v2057 = vadd.f32 %v1954, %v2043
        %v2058 = vadd.f32 %v1955, %v2046
        %v2059 = vadd.f32 %v1956, %v2048
        %v2060 = vpack.c.bf16 %v1378, %v1377
        %v2061 = vpack.c.bf16 %v1379, %v1379
        %s2062 = scalar_lea.vmem %s3, 192
        %v2063 = vld [vmem:[%s2062] sm:$0xf]
        %v2064 = vld [vmem:[%s2062 + $0x4] sm:$0xf]
        %v2065 = vld [vmem:[%s2062 + $0x8] sm:$0xf]
        %v2066 = vld [vmem:[%s2062 + $0xc] sm:$0xf]
        %v2067 = vld [vmem:[%s2062 + $0x10] sm:$0xf]
        %v2068 = vld [vmem:[%s2062 + $0x14] sm:$0xf]
        %v2069 = vld [vmem:[%s2062 + $0x18] sm:$0xf]
        %v2070 = vld [vmem:[%s2062 + $0x1c] sm:$0xf]
        %v2073 = vrot.slane %v1381, 2
        %v2074 = vrot.slane %v1382, 2
        %v2075 = vsel %vm875, %v2073, %v2074
        %v2076 = vrot.slane %v1383, 2
        %v2077 = vsel %vm875, %v2074, %v2076
        %v2078 = vrot.slane %v1384, 2
        %v2079 = vsel %vm875, %v2076, %v2078
        %v2080 = vrot.slane %v2060, 2
        %v2081 = vsel %vm875, %v2078, %v2080
        %v2082 = vrot.slane %v2061, 2
        %v2083 = vsel %vm875, %v2080, %v2082
        %v2092 = vunpack.c.l.b16 %v2063
        %v2093 = vunpack.c.l.b16 %v2064
        %v2094 = vunpack.c.l.b16 %v2065
        %v2095 = vunpack.c.l.b16 %v2066
        %v2096 = vunpack.c.l.b16 %v2067
        %v2097 = vunpack.c.l.b16 %v2068
        %v2098 = vunpack.c.l.b16 %v2069
        %v2099 = vunpack.c.l.b16 %v2070
        %v2100 = vpack.c.b16 %v2093, %v2092
        %v2101 = vpack.c.b16 %v2095, %v2094
        %v2102 = vpack.c.b16 %v2097, %v2096
        %v2103 = vpack.c.b16 %v2099, %v2098
        %v2109 = vsel %vm1341, %v2075, 0
        %v2112 = vsel %vm1341, %v2077, 0
        %v2115 = vsel %vm1341, %v2079, 0
        %v2118 = vsel %vm1341, %v2081, 0
        %v2121 = vsel %vm1341, %v2083, 0
        %2123 = vmatpush.bf16.msra.mxu0 0
        %2124 = vmatpush.bf16.msra.mxu0 0
        %2125 = vmatpush.bf16.msra.mxu0 0
        %2126 = vmatpush.bf16.msra.mxu0 0
        %2127 = vmatpush.bf16.msra.mxu0 %v2103
        %2128 = vmatpush.bf16.msra.mxu0 %v2102
        %2129 = vmatpush.bf16.msra.mxu0 %v2101
        %2130 = vmatpush.bf16.msra.mxu0 %v2100
        %2131 = vmatmul.bf16.gmra.mxu0 %v2109
        %v2132 = vpop.f32.mrf.mxu0
        %v2133 = vadd.f32 0.0, %v2132
        %v2134 = vpop.f32.mrf.mxu0
        %v2135 = vadd.f32 0.0, %v2134
        %2136 = vmatmul.bf16.gmra.mxu0 %v2112
        %v2137 = vpop.f32.mrf.mxu0
        %v2138 = vadd.f32 0.0, %v2137
        %v2139 = vpop.f32.mrf.mxu0
        %v2140 = vadd.f32 0.0, %v2139
        %2141 = vmatmul.bf16.gmra.mxu0 %v2115
        %v2142 = vpop.f32.mrf.mxu0
        %v2143 = vadd.f32 0.0, %v2142
        %v2144 = vpop.f32.mrf.mxu0
        %v2145 = vadd.f32 0.0, %v2144
        %2146 = vmatmul.bf16.gmra.mxu0 %v2118
        %v2147 = vpop.f32.mrf.mxu0
        %v2148 = vadd.f32 0.0, %v2147
        %v2149 = vpop.f32.mrf.mxu0
        %v2150 = vadd.f32 0.0, %v2149
        %2151 = vmatmul.bf16.gmra.mxu0 %v2121
        %v2152 = vpop.f32.mrf.mxu0
        %v2153 = vadd.f32 0.0, %v2152
        %v2154 = vpop.f32.mrf.mxu0
        %v2155 = vadd.f32 0.0, %v2154
        %2156 = vdwg.mxu0
        %v2157 = vadd.f32 %v2050, %v2133
        %v2158 = vadd.f32 %v2051, %v2135
        %v2159 = vadd.f32 %v2052, %v2138
        %v2160 = vadd.f32 %v2053, %v2140
        %v2161 = vadd.f32 %v2054, %v2143
        %v2162 = vadd.f32 %v2055, %v2145
        %v2163 = vadd.f32 %v2056, %v2148
        %v2164 = vadd.f32 %v2057, %v2150
        %v2165 = vadd.f32 %v2058, %v2153
        %v2166 = vadd.f32 %v2059, %v2155
        %s2167 = scalar_lea.vmem %s3, 224
        %v2168 = vld [vmem:[%s2167] sm:$0xf]
        %v2169 = vld [vmem:[%s2167 + $0x4] sm:$0xf]
        %v2170 = vld [vmem:[%s2167 + $0x8] sm:$0xf]
        %v2171 = vld [vmem:[%s2167 + $0xc] sm:$0xf]
        %v2172 = vld [vmem:[%s2167 + $0x10] sm:$0xf]
        %v2173 = vld [vmem:[%s2167 + $0x14] sm:$0xf]
        %v2174 = vld [vmem:[%s2167 + $0x18] sm:$0xf]
        %v2175 = vld [vmem:[%s2167 + $0x1c] sm:$0xf]
        %v2176 = vrot.slane %v1415, 2
        %v2177 = vrot.slane %v1411, 3
        %v2178 = vor.u32 %v2176, %v2177
        %v2179 = vrot.slane %v1423, 2
        %v2180 = vrot.slane %v1419, 3
        %v2181 = vor.u32 %v2179, %v2180
        %v2182 = vsel %vm1054, %v2178, %v2181
        %v2183 = vrot.slane %v1431, 2
        %v2184 = vrot.slane %v1427, 3
        %v2185 = vor.u32 %v2183, %v2184
        %v2186 = vsel %vm1054, %v2181, %v2185
        %v2187 = vrot.slane %v1439, 2
        %v2188 = vrot.slane %v1435, 3
        %v2189 = vor.u32 %v2187, %v2188
        %v2190 = vsel %vm1054, %v2185, %v2189
        %v2192 = vshrl.u32 %v2060, 16
        %v2194 = vrot.slane %v2192, 2
        %v2195 = vshll.u32 %v2060, 16
        %v2197 = vrot.slane %v2195, 3
        %v2198 = vor.u32 %v2194, %v2197
        %v2199 = vsel %vm1054, %v2189, %v2198
        %v2201 = vshrl.u32 %v2061, 16
        %v2203 = vrot.slane %v2201, 2
        %v2204 = vshll.u32 %v2061, 16
        %v2206 = vrot.slane %v2204, 3
        %v2207 = vor.u32 %v2203, %v2206
        %v2208 = vsel %vm1054, %v2198, %v2207
        %v2217 = vunpack.c.l.b16 %v2168
        %v2218 = vunpack.c.l.b16 %v2169
        %v2219 = vunpack.c.l.b16 %v2170
        %v2220 = vunpack.c.l.b16 %v2171
        %v2221 = vunpack.c.l.b16 %v2172
        %v2222 = vunpack.c.l.b16 %v2173
        %v2223 = vunpack.c.l.b16 %v2174
        %v2224 = vunpack.c.l.b16 %v2175
        %v2225 = vpack.c.b16 %v2218, %v2217
        %v2226 = vpack.c.b16 %v2220, %v2219
        %v2227 = vpack.c.b16 %v2222, %v2221
        %v2228 = vpack.c.b16 %v2224, %v2223
        %v2234 = vsel %vm1341, %v2182, 0
        %v2237 = vsel %vm1341, %v2186, 0
        %v2240 = vsel %vm1341, %v2190, 0
        %v2243 = vsel %vm1341, %v2199, 0
        %v2246 = vsel %vm1341, %v2208, 0
        %2248 = vmatpush.bf16.msra.mxu0 0
        %2249 = vmatpush.bf16.msra.mxu0 0
        %2250 = vmatpush.bf16.msra.mxu0 0
        %2251 = vmatpush.bf16.msra.mxu0 0
        %2252 = vmatpush.bf16.msra.mxu0 %v2228
        %2253 = vmatpush.bf16.msra.mxu0 %v2227
        %2254 = vmatpush.bf16.msra.mxu0 %v2226
        %2255 = vmatpush.bf16.msra.mxu0 %v2225
        %2256 = vmatmul.bf16.gmra.mxu0 %v2234
        %v2257 = vpop.f32.mrf.mxu0
        %v2258 = vadd.f32 0.0, %v2257
        %v2259 = vpop.f32.mrf.mxu0
        %v2260 = vadd.f32 0.0, %v2259
        %2261 = vmatmul.bf16.gmra.mxu0 %v2237
        %v2262 = vpop.f32.mrf.mxu0
        %v2263 = vadd.f32 0.0, %v2262
        %v2264 = vpop.f32.mrf.mxu0
        %v2265 = vadd.f32 0.0, %v2264
        %2266 = vmatmul.bf16.gmra.mxu0 %v2240
        %v2267 = vpop.f32.mrf.mxu0
        %v2268 = vadd.f32 0.0, %v2267
        %v2269 = vpop.f32.mrf.mxu0
        %v2270 = vadd.f32 0.0, %v2269
        %2271 = vmatmul.bf16.gmra.mxu0 %v2243
        %v2272 = vpop.f32.mrf.mxu0
        %v2273 = vadd.f32 0.0, %v2272
        %v2274 = vpop.f32.mrf.mxu0
        %v2275 = vadd.f32 0.0, %v2274
        %2276 = vmatmul.bf16.gmra.mxu0 %v2246
        %v2277 = vpop.f32.mrf.mxu0
        %v2278 = vadd.f32 0.0, %v2277
        %v2279 = vpop.f32.mrf.mxu0
        %v2280 = vadd.f32 0.0, %v2279
        %2281 = vdwg.mxu0
        %v2282 = vadd.f32 %v2157, %v2258
        %v2283 = vadd.f32 %v2158, %v2260
        %v2284 = vadd.f32 %v2159, %v2263
        %v2285 = vadd.f32 %v2160, %v2265
        %v2286 = vadd.f32 %v2161, %v2268
        %v2287 = vadd.f32 %v2162, %v2270
        %v2288 = vadd.f32 %v2163, %v2273
        %v2289 = vadd.f32 %v2164, %v2275
        %v2290 = vadd.f32 %v2165, %v2278
        %v2291 = vadd.f32 %v2166, %v2280
        %s2292 = scalar_lea.vmem %s3, 256
        %v2293 = vld [vmem:[%s2292] sm:$0xf]
        %v2294 = vld [vmem:[%s2292 + $0x4] sm:$0xf]
        %v2295 = vld [vmem:[%s2292 + $0x8] sm:$0xf]
        %v2296 = vld [vmem:[%s2292 + $0xc] sm:$0xf]
        %v2297 = vld [vmem:[%s2292 + $0x10] sm:$0xf]
        %v2298 = vld [vmem:[%s2292 + $0x14] sm:$0xf]
        %v2299 = vld [vmem:[%s2292 + $0x18] sm:$0xf]
        %v2300 = vld [vmem:[%s2292 + $0x1c] sm:$0xf]
        %v2301 = vrot.slane %v1381, 3
        %v2302 = vrot.slane %v1382, 3
        %v2303 = vsel %vm1164, %v2301, %v2302
        %v2304 = vrot.slane %v1383, 3
        %v2305 = vsel %vm1164, %v2302, %v2304
        %v2306 = vrot.slane %v1384, 3
        %v2307 = vsel %vm1164, %v2304, %v2306
        %v2308 = vrot.slane %v2060, 3
        %v2309 = vsel %vm1164, %v2306, %v2308
        %v2310 = vrot.slane %v2061, 3
        %v2311 = vsel %vm1164, %v2308, %v2310
        %v2320 = vunpack.c.l.b16 %v2293
        %v2321 = vunpack.c.l.b16 %v2294
        %v2322 = vunpack.c.l.b16 %v2295
        %v2323 = vunpack.c.l.b16 %v2296
        %v2324 = vunpack.c.l.b16 %v2297
        %v2325 = vunpack.c.l.b16 %v2298
        %v2326 = vunpack.c.l.b16 %v2299
        %v2327 = vunpack.c.l.b16 %v2300
        %v2328 = vpack.c.b16 %v2321, %v2320
        %v2329 = vpack.c.b16 %v2323, %v2322
        %v2330 = vpack.c.b16 %v2325, %v2324
        %v2331 = vpack.c.b16 %v2327, %v2326
        %v2337 = vsel %vm1341, %v2303, 0
        %v2340 = vsel %vm1341, %v2305, 0
        %v2343 = vsel %vm1341, %v2307, 0
        %v2346 = vsel %vm1341, %v2309, 0
        %v2349 = vsel %vm1341, %v2311, 0
        %2351 = vmatpush.bf16.msra.mxu0 0
        %2352 = vmatpush.bf16.msra.mxu0 0
        %2353 = vmatpush.bf16.msra.mxu0 0
        %2354 = vmatpush.bf16.msra.mxu0 0
        %2355 = vmatpush.bf16.msra.mxu0 %v2331
        %2356 = vmatpush.bf16.msra.mxu0 %v2330
        %2357 = vmatpush.bf16.msra.mxu0 %v2329
        %2358 = vmatpush.bf16.msra.mxu0 %v2328
        %2359 = vmatmul.bf16.gmra.mxu0 %v2337
        %v2360 = vpop.f32.mrf.mxu0
        %v2361 = vadd.f32 0.0, %v2360
        %v2362 = vpop.f32.mrf.mxu0
        %v2363 = vadd.f32 0.0, %v2362
        %2364 = vmatmul.bf16.gmra.mxu0 %v2340
        %v2365 = vpop.f32.mrf.mxu0
        %v2366 = vadd.f32 0.0, %v2365
        %v2367 = vpop.f32.mrf.mxu0
        %v2368 = vadd.f32 0.0, %v2367
        %2369 = vmatmul.bf16.gmra.mxu0 %v2343
        %v2370 = vpop.f32.mrf.mxu0
        %v2371 = vadd.f32 0.0, %v2370
        %v2372 = vpop.f32.mrf.mxu0
        %v2373 = vadd.f32 0.0, %v2372
        %2374 = vmatmul.bf16.gmra.mxu0 %v2346
        %v2375 = vpop.f32.mrf.mxu0
        %v2376 = vadd.f32 0.0, %v2375
        %v2377 = vpop.f32.mrf.mxu0
        %v2378 = vadd.f32 0.0, %v2377
        %2379 = vmatmul.bf16.gmra.mxu0 %v2349
        %v2380 = vpop.f32.mrf.mxu0
        %v2381 = vadd.f32 0.0, %v2380
        %v2382 = vpop.f32.mrf.mxu0
        %v2383 = vadd.f32 0.0, %v2382
        %2384 = vdwg.mxu0
        %v2385 = vadd.f32 %v2282, %v2361
        %v2386 = vadd.f32 %v2283, %v2363
        %v2387 = vadd.f32 %v2284, %v2366
        %v2388 = vadd.f32 %v2285, %v2368
        %v2389 = vadd.f32 %v2286, %v2371
        %v2390 = vadd.f32 %v2287, %v2373
        %v2391 = vadd.f32 %v2288, %v2376
        %v2392 = vadd.f32 %v2289, %v2378
        %v2393 = vadd.f32 %v2290, %v2381
        %v2394 = vadd.f32 %v2291, %v2383
        %v2395 = vld [vmem:[#allocation7] sm:$0x1]
        %v2397 = vperm.slane %v2395, 0
        %v2399 = vadd.f32 %v2385, %v2397
        %v2400 = vadd.f32 %v2386, %v2397
        %v2401 = vadd.f32 %v2387, %v2397
        %v2402 = vadd.f32 %v2388, %v2397
        %v2403 = vadd.f32 %v2389, %v2397
        %v2404 = vadd.f32 %v2390, %v2397
        %v2405 = vadd.f32 %v2391, %v2397
        %v2406 = vadd.f32 %v2392, %v2397
        %v2407 = vadd.f32 %v2393, %v2397
        %v2408 = vadd.f32 %v2394, %v2397
        %v2409 = vmax.f32 %v2399, 0.0
        %v2410 = vmax.f32 %v2400, 0.0
        %v2411 = vmax.f32 %v2401, 0.0
        %v2412 = vmax.f32 %v2402, 0.0
        %v2413 = vmax.f32 %v2403, 0.0
        %v2414 = vmax.f32 %v2404, 0.0
        %v2415 = vmax.f32 %v2405, 0.0
        %v2416 = vmax.f32 %v2406, 0.0
        %v2417 = vmax.f32 %v2407, 0.0
        %v2418 = vmax.f32 %v2408, 0.0
        %vm2428 = vcmask 1046528
        %v2429 = vrot.slane %v2409, 1
        %v2430 = vrot.slane %v2410, 1
        %v2431 = vsel %vm2428, %v2429, %v2430
        %v2432 = vrot.slane %v2411, 1
        %v2433 = vsel %vm2428, %v2430, %v2432
        %v2434 = vrot.slane %v2412, 1
        %v2435 = vsel %vm2428, %v2432, %v2434
        %v2436 = vrot.slane %v2413, 1
        %v2437 = vsel %vm2428, %v2434, %v2436
        %v2438 = vrot.slane %v2414, 1
        %v2439 = vsel %vm2428, %v2436, %v2438
        %v2440 = vrot.slane %v2415, 1
        %v2441 = vsel %vm2428, %v2438, %v2440
        %v2442 = vrot.slane %v2416, 1
        %v2443 = vsel %vm2428, %v2440, %v2442
        %v2444 = vrot.slane %v2417, 1
        %v2445 = vsel %vm2428, %v2442, %v2444
        %v2455 = vmax.f32 %v2409, %v2431
        %v2456 = vmax.f32 %v2410, %v2433
        %v2457 = vmax.f32 %v2411, %v2435
        %v2458 = vmax.f32 %v2412, %v2437
        %v2459 = vmax.f32 %v2413, %v2439
        %v2460 = vmax.f32 %v2414, %v2441
        %v2461 = vmax.f32 %v2415, %v2443
        %v2462 = vmax.f32 %v2416, %v2445
        %v2463 = vmax.f32 %v2417, %v2444
        %v2465 = vrot.slane %v2418, 1
        %v2466 = vsel %vm2428, %v2444, %v2465
        %v2469 = vmax.f32 %v2417, %v2466
        %v2470 = vmax.f32 %v2418, %v2465
        %vm2480 = vcmask 1045504
        %v2481 = vrot.slane %v2456, 2
        %v2482 = vrot.slane %v2457, 2
        %v2483 = vsel %vm2480, %v2481, %v2482
        %v2484 = vrot.slane %v2458, 2
        %v2485 = vsel %vm2480, %v2482, %v2484
        %v2486 = vrot.slane %v2459, 2
        %v2487 = vsel %vm2480, %v2484, %v2486
        %v2488 = vrot.slane %v2460, 2
        %v2489 = vsel %vm2480, %v2486, %v2488
        %v2490 = vrot.slane %v2461, 2
        %v2491 = vsel %vm2480, %v2488, %v2490
        %v2492 = vrot.slane %v2462, 2
        %v2493 = vsel %vm2480, %v2490, %v2492
        %v2494 = vrot.slane %v2469, 2
        %v2495 = vsel %vm2480, %v2492, %v2494
        %v2496 = vrot.slane %v2470, 2
        %v2497 = vsel %vm2480, %v2494, %v2496
        %v2507 = vmax.f32 %v2455, %v2483
        %v2508 = vmax.f32 %v2456, %v2485
        %v2509 = vmax.f32 %v2457, %v2487
        %v2510 = vmax.f32 %v2458, %v2489
        %v2511 = vmax.f32 %v2459, %v2491
        %v2512 = vmax.f32 %v2460, %v2493
        %v2513 = vmax.f32 %v2461, %v2495
        %v2514 = vmax.f32 %v2462, %v2497
        %v2515 = vmax.f32 %v2463, %v2496
        %v2516 = vld [vmem:[%s6] sm:$0xf]
        %v2517 = vld [vmem:[%s6 + $0x4] sm:$0xf]
        %v2518 = vpack.c.bf16 %v2508, %v2507
        %v2519 = vpack.c.bf16 %v2510, %v2509
        %v2520 = vpack.c.bf16 %v2512, %v2511
        %v2521 = vpack.c.bf16 %v2514, %v2513
        %v2522 = vpack.c.bf16 %v2515, %v2515
        %v2525 = vunpack.c.l.b16 %v2516
        %v2526 = vunpack.c.l.b16 %v2517
        %v2527 = vpack.c.b16 %v2526, %v2525
        %vm2528 = vcmask 564224
        %v2530 = vsel %vm2528, %v2527, 0
        %vm2532 = vcmask 1041408
        %vm2533 = vcmask 1042432
        %v2534 = vsel %vm2532, 4294967295, 65535
        %v2535 = vsel %vm2533, %v2534, 0
        %v2537 = vand.u32 %v2522, %v2535
        %2539 = vmatpush.bf16.msra.mxu0 0
        %2540 = vmatpush.bf16.msra.mxu0 0
        %2541 = vmatpush.bf16.msra.mxu0 0
        %2542 = vmatpush.bf16.msra.mxu0 %v2537
        %2543 = vmatpush.bf16.msra.mxu0 %v2521
        %2544 = vmatpush.bf16.msra.mxu0 %v2520
        %2545 = vmatpush.bf16.msra.mxu0 %v2519
        %2546 = vmatpush.bf16.msra.mxu0 %v2518
        %2547 = vmatmul.bf16.gmra.mxu0 %v2530
        %v2548 = vpop.f32.mrf.mxu0
        %v2549 = vadd.f32 0.0, %v2548
        %v2550 = vpop.f32.mrf.mxu0
        %v2551 = vadd.f32 0.0, %v2550
        %2552 = vdwg.mxu0
        %v2553 = vpack.c.bf16 %v2549, %v2549
        %v2554 = vpack.c.bf16 %v2551, %v2551
        %vm2555 = vcmask 519168
        %2556 = vst.msk [vmem:[%s341] sm:$0xf] %vm2555, %v2553
        %2557 = vst.msk [vmem:[%s341 + $0x4] sm:$0xf] %vm2555, %v2554
        %p2558 = scmp.lt.s32.totalorder %s21, 1
        %s2559 = scalar_select %p2558, %s21, 1
        %s2560 = smul.addr %s2559, 2
        %s2561 = smul.addr %s2560, 4
        %s2562 = scalar_lea.vmem %s7, %s2561
        // Predicated region
        $region65: #{conv_net_forward.5} parent=47 // pred_check
          %p2563 = pneg %p191
        $region66: #{conv_net_forward.5} parent=47 // pred_check_branch
          %2565 = sbr.rel (%p2563) target = $region68
        $region67: #{conv_net_forward.5} parent=47 // pred_region
          _
        $region68: #{conv_net_forward.5} parent=47 // pred_fallthru
          _
      $region48: #{conv_net_forward.5} parent=5 // pred_fallthru
        _
      %p2566 = scmp.le.s32.totalorder 2, %s16
      // Predicated region
      $region69: #{conv_net_forward.5} parent=5 // pred_check
        %p2567 = pneg %p2566
      $region70: #{conv_net_forward.5} parent=5 // pred_check_branch
        %2569 = sbr.rel (%p2567) target = $region72
      $region71: #{conv_net_forward.5} parent=5 // pred_region
        %s2570 = ssub.s32 %s16, 2
        // Predicated region
        $region73: #{conv_net_forward.5} parent=71 // pred_check
          %p2571 = pneg %p197
        $region74: #{conv_net_forward.5} parent=71 // pred_check_branch
          %2573 = sbr.rel (%p2571) target = $region76
        $region75: #{conv_net_forward.5} parent=71 // pred_region
          %p2574 = scmp.lt.s32.totalorder %s22, 1
          %s2575 = scalar_select %p2574, %s22, 1
          %s2576 = smul.addr %s2575, 2
          %s2577 = smul.addr %s2576, 4
          %s2578 = scalar_lea.vmem %s7, %s2577
        $region76: #{conv_net_forward.5} parent=71 // pred_fallthru
          _
      $region72: #{conv_net_forward.5} parent=5 // pred_fallthru
        _
    $region6: #{conv_net_forward.5} parent=1 // loop_footer
      %s20 = sadd.s32 1, %s16
    $region7: #{conv_net_forward.5} parent=1 // loop_footer_branch
      %15 = sbr.rel target = $region3
    $region8: #{conv_net_forward.5} parent=1 // loop_exit
      _
    %2579 = vsyncpa [#allocation4], 1
    %s2580 = scalar_lea.sflag [#allocation4], 1
    %2581 = vsyncpa %s2580, 1
    %2582 = vsyncpa [#allocation6], 1
    %2583 = vsyncpa [#allocation9], 1

// kernel: conv_net_forward.6
$region0: #{conv_net_forward.6}
  #allocation0 [shape = 'u32[]', space=smem, size = 0x4, offset = 0x4, fixed_abs, tag = 'smem constant byte address 0x4 - core index']
  #allocation1 [shape = 'u32[72,128]{1,0:T(1,128)}', space=vmem, size = 0x9000, scoped, tag = 'internal scratch']
  #allocation2 [shape = 'f32[42,128]{1,0:T(8,128)}', space=vmem, size = 0x6000, scoped, tag = 'scratch operand']
  %s0 = inlined_call_operand.vmem [shape: bf16[2,42,64], index: 0, kind: input, shape index: {}]
  %s1 = inlined_call_operand.hbm [shape: bf16[9,64,128], index: 1, kind: input, shape index: {}]
  %s2 = inlined_call_operand.hbm [shape: f32[1,128], index: 2, kind: input, shape index: {}]
  %s3 = inlined_call_operand.vmem [shape: bf16[9,128,128], index: 3, kind: input, shape index: {}]
  %s4 = inlined_call_operand.hbm [shape: f32[1,128], index: 4, kind: input, shape index: {}]
  %s5 = inlined_call_operand.vmem [shape: f32[24,1], index: 5, kind: input, shape index: {}]
  %s6 = inlined_call_operand.hbm [shape: bf16[4,17], index: 6, kind: input, shape index: {}]
  %s7 = inlined_call_operand.vmem [shape: bf16[2,4,128], index: 7, kind: output, shape index: {}]
  %s8 = sld [smem:[#allocation0]]
  $region77: #{conv_net_forward.6} parent=0
    _
  %s10 = ssub.s32 1, %s8
  %s11 = scalar_select 0, %s10, %s8
  $region1: #{conv_net_forward.6} parent=0
    #allocation3 [shape = 'u8[147456]{0}', space=vmem, size = 0x24000, scoped, tag = 'input window, operand 1, single buffered']
    #allocation4 [shape = 's32[2]{0}', space=sflag, size = 0x8, scoped, tag = 'scoped memory for conv_net_forward.6']
    #allocation5 [shape = 'u8[512]{0}', space=vmem, size = 0x400, scoped, tag = 'input window, operand 2, single buffered']
    #allocation6 [shape = 's32[1]{0}', space=sflag, size = 0x4, scoped, tag = 'scoped memory for conv_net_forward.6']
    #allocation7 [shape = 'u8[512]{0}', space=vmem, size = 0x400, scoped, tag = 'input window, operand 4, single buffered']
    #allocation8 [shape = 'u8[1024]{0}', space=vmem, size = 0x400, scoped, tag = 'input window, operand 6, single buffered']
    #allocation9 [shape = 's32[1]{0}', space=sflag, size = 0x4, scoped, tag = 'scoped memory for conv_net_forward.6']
    %12 = vsyncpa [#allocation4], 0
    %13 = vsyncpa [#allocation6], 0
    %14 = vsyncpa [#allocation9], 0
    loop: start=0, step=1, limit=4
    $region2: #{conv_net_forward.6} parent=1 // loop_pre_header
      _
    $region3: #{conv_net_forward.6} parent=1 // loop_header
      %s16 = sphi 0, %s20
      %p17 = scmp.ge.s32.totalorder %s16, 4
      %s26 = sphi 0, %s28
      %s29 = sphi 0, %s26
      %s30 = sphi 0, %s29
      %s46 = sphi 0, %s30
      %s50 = sphi 0, %s50
      %s52 = sphi 0, %s50
      %s53 = sphi 0, %s52
      %s67 = sphi 0, %s53
      %s71 = sphi 0, %s71
      %s73 = sphi 0, %s71
      %s74 = sphi 0, %s73
      %s88 = sphi 0, %s74
      %s92 = sphi 0, %s92
      %s94 = sphi 0, %s92
      %s95 = sphi 0, %s94
      %s109 = sphi 0, %s95
      %s113 = sphi 0, %s113
      %s115 = sphi 0, %s113
      %s116 = sphi 0, %s115
      %s130 = sphi 0, %s116
      %s134 = sphi 0, %s134
      %s136 = sphi 0, %s134
      %s137 = sphi 0, %s136
      %s151 = sphi 0, %s137
      %s155 = sphi 0, %s155
      %s157 = sphi 0, %s155
      %s158 = sphi 0, %s157
      %s172 = sphi 0, %s158
      %s178 = sphi 0, %s180
      %s181 = sphi 0, %s178
      %s182 = sphi 0, %s181
      %s198 = sphi 0, %s182
    $region4: #{conv_net_forward.6} parent=1 // loop_header_branch
      %19 = sbr.rel (%p17) target = $region8
    $region5: #{conv_net_forward.6} parent=1 // loop_body
      %s21 = ssub.s32 %s16, 1
      %s22 = ssub.s32 %s16, 2
      %s23 = sadd.s32 %s16, 1
      %s24 = ssub.s32 %s16, %s23
      %p25 = scmp.eq.s32.totalorder %s24, 0
      %s27 = sadd.s32 %s26, 1
      %s28 = scalar_select %p25, %s26, %s27
      %p31 = pneg %p25
      %p32 = scmp.eq.s32.totalorder %s16, 1
      %p33 = por %p31, %p32
      %p34 = scmp.ne.s32.totalorder %s26, %s29
      %p35 = scmp.eq.s32.totalorder %s16, 0
      %p36 = por %p34, %p35
      %p37 = scmp.ne.s32.totalorder %s26, %s29
      %p38 = scmp.eq.s32.totalorder %s21, 1
      %p39 = por %p37, %p38
      %p40 = scmp.ne.s32.totalorder %s29, %s30
      %p41 = scmp.eq.s32.totalorder %s21, 0
      %p42 = por %p40, %p41
      %p43 = scmp.ne.s32.totalorder %s29, %s30
      %p44 = scmp.eq.s32.totalorder %s22, 1
      %p45 = por %p43, %p44
      %p47 = scmp.ne.s32.totalorder %s30, %s46
      %p48 = scmp.eq.s32.totalorder %s22, 0
      %p49 = por %p47, %p48
      %s51 = sadd.s32 %s50, 1
      %p54 = scmp.eq.s32.totalorder %s16, 1
      %p55 = scmp.ne.s32.totalorder %s50, %s52
      %p56 = scmp.eq.s32.totalorder %s16, 0
      %p57 = por %p55, %p56
      %p58 = scmp.ne.s32.totalorder %s50, %s52
      %p59 = scmp.eq.s32.totalorder %s21, 1
      %p60 = por %p58, %p59
      %p61 = scmp.ne.s32.totalorder %s52, %s53
      %p62 = scmp.eq.s32.totalorder %s21, 0
      %p63 = por %p61, %p62
      %p64 = scmp.ne.s32.totalorder %s52, %s53
      %p65 = scmp.eq.s32.totalorder %s22, 1
      %p66 = por %p64, %p65
      %p68 = scmp.ne.s32.totalorder %s53, %s67
      %p69 = scmp.eq.s32.totalorder %s22, 0
      %p70 = por %p68, %p69
      %s72 = sadd.s32 %s71, 1
      %p75 = scmp.eq.s32.totalorder %s16, 1
      %p76 = scmp.ne.s32.totalorder %s71, %s73
      %p77 = scmp.eq.s32.totalorder %s16, 0
      %p78 = por %p76, %p77
      %p79 = scmp.ne.s32.totalorder %s71, %s73
      %p80 = scmp.eq.s32.totalorder %s21, 1
      %p81 = por %p79, %p80
      %p82 = scmp.ne.s32.totalorder %s73, %s74
      %p83 = scmp.eq.s32.totalorder %s21, 0
      %p84 = por %p82, %p83
      %p85 = scmp.ne.s32.totalorder %s73, %s74
      %p86 = scmp.eq.s32.totalorder %s22, 1
      %p87 = por %p85, %p86
      %p89 = scmp.ne.s32.totalorder %s74, %s88
      %p90 = scmp.eq.s32.totalorder %s22, 0
      %p91 = por %p89, %p90
      %s93 = sadd.s32 %s92, 1
      %p96 = scmp.eq.s32.totalorder %s16, 1
      %p97 = scmp.ne.s32.totalorder %s92, %s94
      %p98 = scmp.eq.s32.totalorder %s16, 0
      %p99 = por %p97, %p98
      %p100 = scmp.ne.s32.totalorder %s92, %s94
      %p101 = scmp.eq.s32.totalorder %s21, 1
      %p102 = por %p100, %p101
      %p103 = scmp.ne.s32.totalorder %s94, %s95
      %p104 = scmp.eq.s32.totalorder %s21, 0
      %p105 = por %p103, %p104
      %p106 = scmp.ne.s32.totalorder %s94, %s95
      %p107 = scmp.eq.s32.totalorder %s22, 1
      %p108 = por %p106, %p107
      %p110 = scmp.ne.s32.totalorder %s95, %s109
      %p111 = scmp.eq.s32.totalorder %s22, 0
      %p112 = por %p110, %p111
      %s114 = sadd.s32 %s113, 1
      %p117 = scmp.eq.s32.totalorder %s16, 1
      %p118 = scmp.ne.s32.totalorder %s113, %s115
      %p119 = scmp.eq.s32.totalorder %s16, 0
      %p120 = por %p118, %p119
      %p121 = scmp.ne.s32.totalorder %s113, %s115
      %p122 = scmp.eq.s32.totalorder %s21, 1
      %p123 = por %p121, %p122
      %p124 = scmp.ne.s32.totalorder %s115, %s116
      %p125 = scmp.eq.s32.totalorder %s21, 0
      %p126 = por %p124, %p125
      %p127 = scmp.ne.s32.totalorder %s115, %s116
      %p128 = scmp.eq.s32.totalorder %s22, 1
      %p129 = por %p127, %p128
      %p131 = scmp.ne.s32.totalorder %s116, %s130
      %p132 = scmp.eq.s32.totalorder %s22, 0
      %p133 = por %p131, %p132
      %s135 = sadd.s32 %s134, 1
      %p138 = scmp.eq.s32.totalorder %s16, 1
      %p139 = scmp.ne.s32.totalorder %s134, %s136
      %p140 = scmp.eq.s32.totalorder %s16, 0
      %p141 = por %p139, %p140
      %p142 = scmp.ne.s32.totalorder %s134, %s136
      %p143 = scmp.eq.s32.totalorder %s21, 1
      %p144 = por %p142, %p143
      %p145 = scmp.ne.s32.totalorder %s136, %s137
      %p146 = scmp.eq.s32.totalorder %s21, 0
      %p147 = por %p145, %p146
      %p148 = scmp.ne.s32.totalorder %s136, %s137
      %p149 = scmp.eq.s32.totalorder %s22, 1
      %p150 = por %p148, %p149
      %p152 = scmp.ne.s32.totalorder %s137, %s151
      %p153 = scmp.eq.s32.totalorder %s22, 0
      %p154 = por %p152, %p153
      %s156 = sadd.s32 %s155, 1
      %p159 = scmp.eq.s32.totalorder %s16, 1
      %p160 = scmp.ne.s32.totalorder %s155, %s157
      %p161 = scmp.eq.s32.totalorder %s16, 0
      %p162 = por %p160, %p161
      %p163 = scmp.ne.s32.totalorder %s155, %s157
      %p164 = scmp.eq.s32.totalorder %s21, 1
      %p165 = por %p163, %p164
      %p166 = scmp.ne.s32.totalorder %s157, %s158
      %p167 = scmp.eq.s32.totalorder %s21, 0
      %p168 = por %p166, %p167
      %p169 = scmp.ne.s32.totalorder %s157, %s158
      %p170 = scmp.eq.s32.totalorder %s22, 1
      %p171 = por %p169, %p170
      %p173 = scmp.ne.s32.totalorder %s158, %s172
      %p174 = scmp.eq.s32.totalorder %s22, 0
      %p175 = por %p173, %p174
      %s176 = ssub.s32 %s16, %s23
      %p177 = scmp.eq.s32.totalorder %s176, 0
      %s179 = sadd.s32 %s178, 1
      %s180 = scalar_select %p177, %s178, %s179
      %p183 = pneg %p177
      %p184 = scmp.eq.s32.totalorder %s16, 1
      %p185 = por %p183, %p184
      %p186 = scmp.ne.s32.totalorder %s178, %s181
      %p187 = scmp.eq.s32.totalorder %s16, 0
      %p188 = por %p186, %p187
      %p189 = scmp.ne.s32.totalorder %s178, %s181
      %p190 = scmp.eq.s32.totalorder %s21, 1
      %p191 = por %p189, %p190
      %p192 = scmp.ne.s32.totalorder %s181, %s182
      %p193 = scmp.eq.s32.totalorder %s21, 0
      %p194 = por %p192, %p193
      %p195 = scmp.ne.s32.totalorder %s181, %s182
      %p196 = scmp.eq.s32.totalorder %s22, 1
      %p197 = por %p195, %p196
      %p199 = scmp.ne.s32.totalorder %s182, %s198
      %p200 = scmp.eq.s32.totalorder %s22, 0
      %p201 = por %p199, %p200
      %p202 = scmp.le.s32.totalorder 1, %s16
      %p203 = scmp.lt.s32.totalorder %s16, 3
      %p204 = pnand %p202, %p203
      %p205 = pneg %p204
      // Predicated region
      $region9: #{conv_net_forward.6} parent=5 // pred_check
        _
      $region10: #{conv_net_forward.6} parent=5 // pred_check_branch
        %207 = sbr.rel (%p204) target = $region12
      $region11: #{conv_net_forward.6} parent=5 // pred_region
        %s208 = ssub.s32 %s16, 1
        // Predicated region
        $region13: #{conv_net_forward.6} parent=11 // pred_check
          %p209 = pneg %p63
        $region14: #{conv_net_forward.6} parent=11 // pred_check_branch
          %211 = sbr.rel (%p209) target = $region16
        $region15: #{conv_net_forward.6} parent=11 // pred_region
          %213 = vsyncadd [#allocation4], 0
          %s214 = sshll.u32 %s1, 4
          %s215 = int_to_ptr.hbm [resolvable:$true] %s214
          %s216 = sshll.u32 [#allocation3], 4
          %s217 = int_to_ptr.vmem [resolvable:$true] %s216
          %222 = dma.hbm_to_vmem [thread:$0]  %s215, 4608, %s217, [#allocation4], 64, 64, 4
        $region16: #{conv_net_forward.6} parent=11 // pred_fallthru
          _
        // Predicated region
        $region17: #{conv_net_forward.6} parent=11 // pred_check
          %p223 = pneg %p84
        $region18: #{conv_net_forward.6} parent=11 // pred_check_branch
          %225 = sbr.rel (%p223) target = $region20
        $region19: #{conv_net_forward.6} parent=11 // pred_region
          %227 = vsyncadd [#allocation6], 0
          %s229 = sshll.u32 %s2, 4
          %s230 = int_to_ptr.hbm [resolvable:$true] %s229
          %s231 = sshll.u32 [#allocation5], 4
          %s232 = int_to_ptr.vmem [resolvable:$true] %s231
          %234 = dma.hbm_to_vmem [thread:$0]  %s230, 16, %s232, [#allocation6]
        $region20: #{conv_net_forward.6} parent=11 // pred_fallthru
          _
        // Predicated region
        $region21: #{conv_net_forward.6} parent=11 // pred_check
          %p235 = pneg %p105
        $region22: #{conv_net_forward.6} parent=11 // pred_check_branch
          %237 = sbr.rel (%p235) target = $region24
        $region23: #{conv_net_forward.6} parent=11 // pred_region
          _
        $region24: #{conv_net_forward.6} parent=11 // pred_fallthru
          _
        // Predicated region
        $region25: #{conv_net_forward.6} parent=11 // pred_check
          %p238 = pneg %p126
        $region26: #{conv_net_forward.6} parent=11 // pred_check_branch
          %240 = sbr.rel (%p238) target = $region28
        $region27: #{conv_net_forward.6} parent=11 // pred_region
          %242 = vsyncadd [#allocation6], 0
          %s244 = sshll.u32 %s4, 4
          %s245 = int_to_ptr.hbm [resolvable:$true] %s244
          %s246 = sshll.u32 [#allocation7], 4
          %s247 = int_to_ptr.vmem [resolvable:$true] %s246
          %249 = dma.hbm_to_vmem [thread:$0]  %s245, 16, %s247, [#allocation6]
        $region28: #{conv_net_forward.6} parent=11 // pred_fallthru
          _
        // Predicated region
        $region29: #{conv_net_forward.6} parent=11 // pred_check
          %p250 = pneg %p147
        $region30: #{conv_net_forward.6} parent=11 // pred_check_branch
          %252 = sbr.rel (%p250) target = $region32
        $region31: #{conv_net_forward.6} parent=11 // pred_region
          _
        $region32: #{conv_net_forward.6} parent=11 // pred_fallthru
          _
        // Predicated region
        $region33: #{conv_net_forward.6} parent=11 // pred_check
          %p253 = pneg %p168
        $region34: #{conv_net_forward.6} parent=11 // pred_check_branch
          %255 = sbr.rel (%p253) target = $region36
        $region35: #{conv_net_forward.6} parent=11 // pred_region
          %257 = vsyncadd [#allocation9], 0
          %s259 = sshll.u32 %s6, 4
          %s260 = int_to_ptr.hbm [resolvable:$true] %s259
          %s261 = sshll.u32 [#allocation8], 4
          %s262 = int_to_ptr.vmem [resolvable:$true] %s261
          %264 = dma.hbm_to_vmem [thread:$0]  %s260, 32, %s262, [#allocation9]
        $region36: #{conv_net_forward.6} parent=11 // pred_fallthru
          _
      $region12: #{conv_net_forward.6} parent=5 // pred_fallthru
        _
      %p265 = scmp.lt.s32.totalorder %s16, 2
      // Predicated region
      $region37: #{conv_net_forward.6} parent=5 // pred_check
        %p266 = pneg %p265
      $region38: #{conv_net_forward.6} parent=5 // pred_check_branch
        %268 = sbr.rel (%p266) target = $region40
      $region39: #{conv_net_forward.6} parent=5 // pred_region
        // Predicated region
        $region41: #{conv_net_forward.6} parent=39 // pred_check
          %p269 = pneg %p36
        $region42: #{conv_net_forward.6} parent=39 // pred_check_branch
          %271 = sbr.rel (%p269) target = $region44
        $region43: #{conv_net_forward.6} parent=39 // pred_region
          %p272 = scmp.lt.s32.totalorder %s16, 1
          %s273 = scalar_select %p272, %s16, 1
          %s274 = smul.addr %s273, 6
          %s275 = smul.addr %s274, 4
          %s276 = scalar_lea.vmem %s0, %s275
        $region44: #{conv_net_forward.6} parent=39 // pred_fallthru
          _
      $region40: #{conv_net_forward.6} parent=5 // pred_fallthru
        _
      %p277 = scmp.le.s32.totalorder 1, %s16
      %p278 = scmp.lt.s32.totalorder %s16, 3
      %p279 = pnand %p277, %p278
      %p280 = pneg %p279
      // Predicated region
      $region45: #{conv_net_forward.6} parent=5 // pred_check
        _
      $region46: #{conv_net_forward.6} parent=5 // pred_check_branch
        %282 = sbr.rel (%p279) target = $region48
      $region47: #{conv_net_forward.6} parent=5 // pred_region
        %s283 = ssub.s32 %s16, 1
        // Predicated region
        $region49: #{conv_net_forward.6} parent=47 // pred_check
          %p284 = pneg %p63
        $region50: #{conv_net_forward.6} parent=47 // pred_check_branch
          %286 = sbr.rel (%p284) target = $region52
        $region51: #{conv_net_forward.6} parent=47 // pred_region
          %288 = dma.done [#allocation4], 4608
        $region52: #{conv_net_forward.6} parent=47 // pred_fallthru
          _
        // Predicated region
        $region53: #{conv_net_forward.6} parent=47 // pred_check
          %p289 = pneg %p84
        $region54: #{conv_net_forward.6} parent=47 // pred_check_branch
          %291 = sbr.rel (%p289) target = $region56
        $region55: #{conv_net_forward.6} parent=47 // pred_region
          %293 = dma.done [#allocation6], 16
        $region56: #{conv_net_forward.6} parent=47 // pred_fallthru
          _
        // Predicated region
        $region57: #{conv_net_forward.6} parent=47 // pred_check
          %p294 = pneg %p126
        $region58: #{conv_net_forward.6} parent=47 // pred_check_branch
          %296 = sbr.rel (%p294) target = $region60
        $region59: #{conv_net_forward.6} parent=47 // pred_region
          %298 = dma.done [#allocation6], 16
        $region60: #{conv_net_forward.6} parent=47 // pred_fallthru
          _
        // Predicated region
        $region61: #{conv_net_forward.6} parent=47 // pred_check
          %p299 = pneg %p168
        $region62: #{conv_net_forward.6} parent=47 // pred_check_branch
          %301 = sbr.rel (%p299) target = $region64
        $region63: #{conv_net_forward.6} parent=47 // pred_region
          %303 = dma.done [#allocation9], 32
        $region64: #{conv_net_forward.6} parent=47 // pred_fallthru
          _
        %p304 = scmp.lt.s32.totalorder %s21, 1
        %s305 = scalar_select %p304, %s21, 1
        %s306 = smul.addr %s305, 6
        %s307 = smul.addr %s306, 4
        %s308 = scalar_lea.vmem %s0, %s307
        %p309 = pneg %p42
        %p310 = pneg %p39
        %p311 = pneg %p63
        %p312 = pneg %p60
        %p313 = pneg %p84
        %p314 = pneg %p81
        %p315 = pneg %p105
        %p316 = pneg %p102
        %p317 = pneg %p126
        %p318 = pneg %p123
        %p319 = pneg %p147
        %p320 = pneg %p144
        %p321 = pneg %p168
        %p322 = pneg %p165
        %p323 = pneg %p194
        %p324 = pneg %p191
        %p325 = scmp.lt.s32.totalorder %s21, 1
        %s326 = scalar_select %p325, %s21, 1
        %s327 = smul.addr %s326, 2
        %s328 = scalar_lea.vmem %s7, %s327
        %p329 = scmp.lt.s32.totalorder %s21, 1
        %s330 = scalar_select %p329, %s21, 1
        %s331 = smul.addr %s330, 6
        %s332 = smul.addr %s331, 4
        %s333 = scalar_lea.vmem %s0, %s332
        %p334 = scmp.lt.s32.totalorder %s21, 1
        %s335 = scalar_select %p334, %s21, 1
        %s336 = smul.addr %s335, 2
        %s337 = scalar_lea.vmem %s7, %s336
        %v339 = vld [vmem:[%s333] sm:$0xf]
        %v340 = vld [vmem:[%s333 + $0x4] sm:$0xf]
        %v341 = vld [vmem:[%s333 + $0x8] sm:$0xf]
        %v342 = vld [vmem:[%s333 + $0xc] sm:$0xf]
        %v343 = vld [vmem:[%s333 + $0x10] sm:$0xf]
        %v344 = vunpack.c.l.bf16 %v339
        %v345 = vunpack.c.l.bf16 %v340
        %v346 = vunpack.c.l.bf16 %v341
        %v347 = vunpack.c.l.bf16 %v342
        %v348 = vunpack.c.l.bf16 %v343
        %v349 = vpack.c.bf16 %v345, %v344
        %v350 = vpack.c.bf16 %v346, %v346
        %v351 = vld [vmem:[#allocation3] sm:$0xf]
        %v352 = vld [vmem:[#allocation3 + $0x4] sm:$0xf]
        %v353 = vld [vmem:[#allocation3 + $0x8] sm:$0xf]
        %v354 = vld [vmem:[#allocation3 + $0xc] sm:$0xf]
        %v355 = vld [vmem:[#allocation3 + $0x10] sm:$0xf]
        %v356 = vld [vmem:[#allocation3 + $0x14] sm:$0xf]
        %v357 = vld [vmem:[#allocation3 + $0x18] sm:$0xf]
        %v358 = vld [vmem:[#allocation3 + $0x1c] sm:$0xf]
        %v359 = vpack.c.bf16 %v347, %v346
        %s360 = scalar_lea.vmem [#allocation3], 32
        %v361 = vld [vmem:[%s360] sm:$0xf]
        %v362 = vld [vmem:[%s360 + $0x4] sm:$0xf]
        %v363 = vld [vmem:[%s360 + $0x8] sm:$0xf]
        %v364 = vld [vmem:[%s360 + $0xc] sm:$0xf]
        %v365 = vld [vmem:[%s360 + $0x10] sm:$0xf]
        %v366 = vld [vmem:[%s360 + $0x14] sm:$0xf]
        %v367 = vld [vmem:[%s360 + $0x18] sm:$0xf]
        %v368 = vld [vmem:[%s360 + $0x1c] sm:$0xf]
        %vm369 = vsmask.f32 7424
        %v371 = vshrl.u32 %v349, 16
        %v373 = vshll.u32 %v349, 16
        %v375 = vrot.slane %v373, 1
        %v376 = vor.u32 %v371, %v375
        %v378 = vshll.u32 %v359, 16
        %v380 = vrot.slane %v378, 1
        %v381 = vsel %vm369, %v376, %v380
        %v382 = vshrl.u32 %v359, 16
        %v384 = vor.u32 %v382, %v380
        %v393 = vunpack.c.l.b16 %v361
        %v394 = vunpack.c.l.b16 %v362
        %v395 = vunpack.c.l.b16 %v363
        %v396 = vunpack.c.l.b16 %v364
        %v397 = vunpack.c.l.b16 %v365
        %v398 = vunpack.c.l.b16 %v366
        %v399 = vunpack.c.l.b16 %v367
        %v400 = vunpack.c.l.b16 %v368
        %v401 = vpack.c.b16 %v394, %v393
        %v402 = vpack.c.b16 %v396, %v395
        %v403 = vpack.c.b16 %v398, %v397
        %v404 = vpack.c.b16 %v400, %v399
        %vm409 = vcmask 523264
        %v411 = vsel %vm409, %v381, 0
        %v414 = vsel %vm409, %v384, 0
        %416 = vmatpush.bf16.msra.mxu0 0
        %417 = vmatpush.bf16.msra.mxu0 0
        %418 = vmatpush.bf16.msra.mxu0 0
        %419 = vmatpush.bf16.msra.mxu0 0
        %420 = vmatpush.bf16.msra.mxu0 %v404
        %421 = vmatpush.bf16.msra.mxu0 %v403
        %422 = vmatpush.bf16.msra.mxu0 %v402
        %423 = vmatpush.bf16.msra.mxu0 %v401
        %424 = vmatmul.bf16.gmra.mxu0 %v411
        %v425 = vpop.f32.mrf.mxu0
        %v426 = vadd.f32 0.0, %v425
        %v427 = vpop.f32.mrf.mxu0
        %v428 = vadd.f32 0.0, %v427
        %429 = vmatmul.bf16.gmra.mxu0 %v414
        %v430 = vpop.f32.mrf.mxu0
        %v431 = vadd.f32 0.0, %v430
        %v432 = vpop.f32.mrf.mxu0
        %433 = vdwg.mxu0
        %v442 = vunpack.c.l.b16 %v351
        %v443 = vunpack.c.l.b16 %v352
        %v444 = vunpack.c.l.b16 %v353
        %v445 = vunpack.c.l.b16 %v354
        %v446 = vunpack.c.l.b16 %v355
        %v447 = vunpack.c.l.b16 %v356
        %v448 = vunpack.c.l.b16 %v357
        %v449 = vunpack.c.l.b16 %v358
        %v450 = vpack.c.b16 %v443, %v442
        %v451 = vpack.c.b16 %v445, %v444
        %v452 = vpack.c.b16 %v447, %v446
        %v453 = vpack.c.b16 %v449, %v448
        %v458 = vsel %vm409, %v349, 0
        %v461 = vsel %vm409, %v350, 0
        %463 = vmatpush.bf16.msra.mxu0 0
        %464 = vmatpush.bf16.msra.mxu0 0
        %465 = vmatpush.bf16.msra.mxu0 0
        %466 = vmatpush.bf16.msra.mxu0 0
        %467 = vmatpush.bf16.msra.mxu0 %v453
        %468 = vmatpush.bf16.msra.mxu0 %v452
        %469 = vmatpush.bf16.msra.mxu0 %v451
        %470 = vmatpush.bf16.msra.mxu0 %v450
        %471 = vmatmul.bf16.gmra.mxu0 %v458
        %v472 = vpop.f32.mrf.mxu0
        %v473 = vadd.f32 %v426, %v472
        %v474 = vpop.f32.mrf.mxu0
        %v475 = vadd.f32 %v428, %v474
        %476 = vmatmul.bf16.gmra.mxu0 %v461
        %v477 = vpop.f32.mrf.mxu0
        %v478 = vadd.f32 %v431, %v477
        %v479 = vpop.f32.mrf.mxu0
        %480 = vdwg.mxu0
        %s481 = scalar_lea.vmem [#allocation3], 64
        %v482 = vld [vmem:[%s481] sm:$0xf]
        %v483 = vld [vmem:[%s481 + $0x4] sm:$0xf]
        %v484 = vld [vmem:[%s481 + $0x8] sm:$0xf]
        %v485 = vld [vmem:[%s481 + $0xc] sm:$0xf]
        %v486 = vld [vmem:[%s481 + $0x10] sm:$0xf]
        %v487 = vld [vmem:[%s481 + $0x14] sm:$0xf]
        %v488 = vld [vmem:[%s481 + $0x18] sm:$0xf]
        %v489 = vld [vmem:[%s481 + $0x1c] sm:$0xf]
        %vm492 = vcmask 1046528
        %v493 = vrot.slane %v349, 1
        %v494 = vrot.slane %v359, 1
        %v495 = vsel %vm492, %v493, %v494
        %v504 = vunpack.c.l.b16 %v482
        %v505 = vunpack.c.l.b16 %v483
        %v506 = vunpack.c.l.b16 %v484
        %v507 = vunpack.c.l.b16 %v485
        %v508 = vunpack.c.l.b16 %v486
        %v509 = vunpack.c.l.b16 %v487
        %v510 = vunpack.c.l.b16 %v488
        %v511 = vunpack.c.l.b16 %v489
        %v512 = vpack.c.b16 %v505, %v504
        %v513 = vpack.c.b16 %v507, %v506
        %v514 = vpack.c.b16 %v509, %v508
        %v515 = vpack.c.b16 %v511, %v510
        %v521 = vsel %vm409, %v495, 0
        %v524 = vsel %vm409, %v494, 0
        %526 = vmatpush.bf16.msra.mxu0 0
        %527 = vmatpush.bf16.msra.mxu0 0
        %528 = vmatpush.bf16.msra.mxu0 0
        %529 = vmatpush.bf16.msra.mxu0 0
        %530 = vmatpush.bf16.msra.mxu0 %v515
        %531 = vmatpush.bf16.msra.mxu0 %v514
        %532 = vmatpush.bf16.msra.mxu0 %v513
        %533 = vmatpush.bf16.msra.mxu0 %v512
        %534 = vmatmul.bf16.gmra.mxu0 %v521
        %v535 = vpop.f32.mrf.mxu0
        %v536 = vadd.f32 0.0, %v535
        %v537 = vpop.f32.mrf.mxu0
        %v538 = vadd.f32 0.0, %v537
        %539 = vmatmul.bf16.gmra.mxu0 %v524
        %v540 = vpop.f32.mrf.mxu0
        %v541 = vadd.f32 0.0, %v540
        %v542 = vpop.f32.mrf.mxu0
        %543 = vdwg.mxu0
        %v544 = vadd.f32 %v473, %v536
        %v545 = vadd.f32 %v475, %v538
        %v546 = vadd.f32 %v478, %v541
        %s547 = scalar_lea.vmem [#allocation3], 96
        %v548 = vld [vmem:[%s547] sm:$0xf]
        %v549 = vld [vmem:[%s547 + $0x4] sm:$0xf]
        %v550 = vld [vmem:[%s547 + $0x8] sm:$0xf]
        %v551 = vld [vmem:[%s547 + $0xc] sm:$0xf]
        %v552 = vld [vmem:[%s547 + $0x10] sm:$0xf]
        %v553 = vld [vmem:[%s547 + $0x14] sm:$0xf]
        %v554 = vld [vmem:[%s547 + $0x18] sm:$0xf]
        %v555 = vld [vmem:[%s547 + $0x1c] sm:$0xf]
        %vm556 = vcmask 1044480
        %v557 = vrot.slane %v349, 3
        %v558 = vrot.slane %v359, 3
        %v559 = vsel %vm556, %v557, %v558
        %v568 = vunpack.c.l.b16 %v548
        %v569 = vunpack.c.l.b16 %v549
        %v570 = vunpack.c.l.b16 %v550
        %v571 = vunpack.c.l.b16 %v551
        %v572 = vunpack.c.l.b16 %v552
        %v573 = vunpack.c.l.b16 %v553
        %v574 = vunpack.c.l.b16 %v554
        %v575 = vunpack.c.l.b16 %v555
        %v576 = vpack.c.b16 %v569, %v568
        %v577 = vpack.c.b16 %v571, %v570
        %v578 = vpack.c.b16 %v573, %v572
        %v579 = vpack.c.b16 %v575, %v574
        %v585 = vsel %vm409, %v559, 0
        %v588 = vsel %vm409, %v558, 0
        %590 = vmatpush.bf16.msra.mxu0 0
        %591 = vmatpush.bf16.msra.mxu0 0
        %592 = vmatpush.bf16.msra.mxu0 0
        %593 = vmatpush.bf16.msra.mxu0 0
        %594 = vmatpush.bf16.msra.mxu0 %v579
        %595 = vmatpush.bf16.msra.mxu0 %v578
        %596 = vmatpush.bf16.msra.mxu0 %v577
        %597 = vmatpush.bf16.msra.mxu0 %v576
        %598 = vmatmul.bf16.gmra.mxu0 %v585
        %v599 = vpop.f32.mrf.mxu0
        %v600 = vadd.f32 0.0, %v599
        %v601 = vpop.f32.mrf.mxu0
        %v602 = vadd.f32 0.0, %v601
        %603 = vmatmul.bf16.gmra.mxu0 %v588
        %v604 = vpop.f32.mrf.mxu0
        %v605 = vadd.f32 0.0, %v604
        %v606 = vpop.f32.mrf.mxu0
        %607 = vdwg.mxu0
        %v608 = vadd.f32 %v544, %v600
        %v609 = vadd.f32 %v545, %v602
        %v610 = vadd.f32 %v546, %v605
        %s611 = scalar_lea.vmem [#allocation3], 128
        %v612 = vld [vmem:[%s611] sm:$0xf]
        %v613 = vld [vmem:[%s611 + $0x4] sm:$0xf]
        %v614 = vld [vmem:[%s611 + $0x8] sm:$0xf]
        %v615 = vld [vmem:[%s611 + $0xc] sm:$0xf]
        %v616 = vld [vmem:[%s611 + $0x10] sm:$0xf]
        %v617 = vld [vmem:[%s611 + $0x14] sm:$0xf]
        %v618 = vld [vmem:[%s611 + $0x18] sm:$0xf]
        %v619 = vld [vmem:[%s611 + $0x1c] sm:$0xf]
        %vm620 = vsmask.f32 4352
        %v621 = vrot.slane %v371, 3
        %v622 = vrot.slane %v373, 4
        %v623 = vor.u32 %v621, %v622
        %v624 = vrot.slane %v382, 3
        %v625 = vrot.slane %v378, 4
        %v626 = vor.u32 %v624, %v625
        %v627 = vsel %vm620, %v623, %v626
        %v636 = vunpack.c.l.b16 %v612
        %v637 = vunpack.c.l.b16 %v613
        %v638 = vunpack.c.l.b16 %v614
        %v639 = vunpack.c.l.b16 %v615
        %v640 = vunpack.c.l.b16 %v616
        %v641 = vunpack.c.l.b16 %v617
        %v642 = vunpack.c.l.b16 %v618
        %v643 = vunpack.c.l.b16 %v619
        %v644 = vpack.c.b16 %v637, %v636
        %v645 = vpack.c.b16 %v639, %v638
        %v646 = vpack.c.b16 %v641, %v640
        %v647 = vpack.c.b16 %v643, %v642
        %v653 = vsel %vm409, %v627, 0
        %v656 = vsel %vm409, %v626, 0
        %658 = vmatpush.bf16.msra.mxu0 0
        %659 = vmatpush.bf16.msra.mxu0 0
        %660 = vmatpush.bf16.msra.mxu0 0
        %661 = vmatpush.bf16.msra.mxu0 0
        %662 = vmatpush.bf16.msra.mxu0 %v647
        %663 = vmatpush.bf16.msra.mxu0 %v646
        %664 = vmatpush.bf16.msra.mxu0 %v645
        %665 = vmatpush.bf16.msra.mxu0 %v644
        %666 = vmatmul.bf16.gmra.mxu0 %v653
        %v667 = vpop.f32.mrf.mxu0
        %v668 = vadd.f32 0.0, %v667
        %v669 = vpop.f32.mrf.mxu0
        %v670 = vadd.f32 0.0, %v669
        %671 = vmatmul.bf16.gmra.mxu0 %v656
        %v672 = vpop.f32.mrf.mxu0
        %v673 = vadd.f32 0.0, %v672
        %v674 = vpop.f32.mrf.mxu0
        %675 = vdwg.mxu0
        %v676 = vadd.f32 %v608, %v668
        %v677 = vadd.f32 %v609, %v670
        %v678 = vadd.f32 %v610, %v673
        %v679 = vpack.c.bf16 %v346, %v345
        %v680 = vpack.c.bf16 %v347, %v347
        %s681 = scalar_lea.vmem [#allocation3], 160
        %v682 = vld [vmem:[%s681] sm:$0xf]
        %v683 = vld [vmem:[%s681 + $0x4] sm:$0xf]
        %v684 = vld [vmem:[%s681 + $0x8] sm:$0xf]
        %v685 = vld [vmem:[%s681 + $0xc] sm:$0xf]
        %v686 = vld [vmem:[%s681 + $0x10] sm:$0xf]
        %v687 = vld [vmem:[%s681 + $0x14] sm:$0xf]
        %v688 = vld [vmem:[%s681 + $0x18] sm:$0xf]
        %v689 = vld [vmem:[%s681 + $0x1c] sm:$0xf]
        %v698 = vunpack.c.l.b16 %v682
        %v699 = vunpack.c.l.b16 %v683
        %v700 = vunpack.c.l.b16 %v684
        %v701 = vunpack.c.l.b16 %v685
        %v702 = vunpack.c.l.b16 %v686
        %v703 = vunpack.c.l.b16 %v687
        %v704 = vunpack.c.l.b16 %v688
        %v705 = vunpack.c.l.b16 %v689
        %v706 = vpack.c.b16 %v699, %v698
        %v707 = vpack.c.b16 %v701, %v700
        %v708 = vpack.c.b16 %v703, %v702
        %v709 = vpack.c.b16 %v705, %v704
        %v715 = vsel %vm409, %v679, 0
        %v718 = vsel %vm409, %v680, 0
        %720 = vmatpush.bf16.msra.mxu0 0
        %721 = vmatpush.bf16.msra.mxu0 0
        %722 = vmatpush.bf16.msra.mxu0 0
        %723 = vmatpush.bf16.msra.mxu0 0
        %724 = vmatpush.bf16.msra.mxu0 %v709
        %725 = vmatpush.bf16.msra.mxu0 %v708
        %726 = vmatpush.bf16.msra.mxu0 %v707
        %727 = vmatpush.bf16.msra.mxu0 %v706
        %728 = vmatmul.bf16.gmra.mxu0 %v715
        %v729 = vpop.f32.mrf.mxu0
        %v730 = vadd.f32 0.0, %v729
        %v731 = vpop.f32.mrf.mxu0
        %v732 = vadd.f32 0.0, %v731
        %733 = vmatmul.bf16.gmra.mxu0 %v718
        %v734 = vpop.f32.mrf.mxu0
        %v735 = vadd.f32 0.0, %v734
        %v736 = vpop.f32.mrf.mxu0
        %737 = vdwg.mxu0
        %v738 = vadd.f32 %v676, %v730
        %v739 = vadd.f32 %v677, %v732
        %v740 = vadd.f32 %v678, %v735
        %v741 = vpack.c.bf16 %v348, %v347
        %s742 = scalar_lea.vmem [#allocation3], 192
        %v743 = vld [vmem:[%s742] sm:$0xf]
        %v744 = vld [vmem:[%s742 + $0x4] sm:$0xf]
        %v745 = vld [vmem:[%s742 + $0x8] sm:$0xf]
        %v746 = vld [vmem:[%s742 + $0xc] sm:$0xf]
        %v747 = vld [vmem:[%s742 + $0x10] sm:$0xf]
        %v748 = vld [vmem:[%s742 + $0x14] sm:$0xf]
        %v749 = vld [vmem:[%s742 + $0x18] sm:$0xf]
        %v750 = vld [vmem:[%s742 + $0x1c] sm:$0xf]
        %vm753 = vcmask 1045504
        %v754 = vrot.slane %v679, 2
        %v755 = vrot.slane %v741, 2
        %v756 = vsel %vm753, %v754, %v755
        %v765 = vunpack.c.l.b16 %v743
        %v766 = vunpack.c.l.b16 %v744
        %v767 = vunpack.c.l.b16 %v745
        %v768 = vunpack.c.l.b16 %v746
        %v769 = vunpack.c.l.b16 %v747
        %v770 = vunpack.c.l.b16 %v748
        %v771 = vunpack.c.l.b16 %v749
        %v772 = vunpack.c.l.b16 %v750
        %v773 = vpack.c.b16 %v766, %v765
        %v774 = vpack.c.b16 %v768, %v767
        %v775 = vpack.c.b16 %v770, %v769
        %v776 = vpack.c.b16 %v772, %v771
        %v782 = vsel %vm409, %v756, 0
        %v785 = vsel %vm409, %v755, 0
        %787 = vmatpush.bf16.msra.mxu0 0
        %788 = vmatpush.bf16.msra.mxu0 0
        %789 = vmatpush.bf16.msra.mxu0 0
        %790 = vmatpush.bf16.msra.mxu0 0
        %791 = vmatpush.bf16.msra.mxu0 %v776
        %792 = vmatpush.bf16.msra.mxu0 %v775
        %793 = vmatpush.bf16.msra.mxu0 %v774
        %794 = vmatpush.bf16.msra.mxu0 %v773
        %795 = vmatmul.bf16.gmra.mxu0 %v782
        %v796 = vpop.f32.mrf.mxu0
        %v797 = vadd.f32 0.0, %v796
        %v798 = vpop.f32.mrf.mxu0
        %v799 = vadd.f32 0.0, %v798
        %800 = vmatmul.bf16.gmra.mxu0 %v785
        %v801 = vpop.f32.mrf.mxu0
        %v802 = vadd.f32 0.0, %v801
        %v803 = vpop.f32.mrf.mxu0
        %804 = vdwg.mxu0
        %v805 = vadd.f32 %v738, %v797
        %v806 = vadd.f32 %v739, %v799
        %v807 = vadd.f32 %v740, %v802
        %s808 = scalar_lea.vmem [#allocation3], 224
        %v809 = vld [vmem:[%s808] sm:$0xf]
        %v810 = vld [vmem:[%s808 + $0x4] sm:$0xf]
        %v811 = vld [vmem:[%s808 + $0x8] sm:$0xf]
        %v812 = vld [vmem:[%s808 + $0xc] sm:$0xf]
        %v813 = vld [vmem:[%s808 + $0x10] sm:$0xf]
        %v814 = vld [vmem:[%s808 + $0x14] sm:$0xf]
        %v815 = vld [vmem:[%s808 + $0x18] sm:$0xf]
        %v816 = vld [vmem:[%s808 + $0x1c] sm:$0xf]
        %vm817 = vsmask.f32 5376
        %v818 = vshrl.u32 %v679, 16
        %v820 = vrot.slane %v818, 2
        %v821 = vshll.u32 %v679, 16
        %v823 = vrot.slane %v821, 3
        %v824 = vor.u32 %v820, %v823
        %v826 = vshrl.u32 %v741, 16
        %v828 = vrot.slane %v826, 2
        %v829 = vshll.u32 %v741, 16
        %v831 = vrot.slane %v829, 3
        %v832 = vor.u32 %v828, %v831
        %v833 = vsel %vm817, %v824, %v832
        %v842 = vunpack.c.l.b16 %v809
        %v843 = vunpack.c.l.b16 %v810
        %v844 = vunpack.c.l.b16 %v811
        %v845 = vunpack.c.l.b16 %v812
        %v846 = vunpack.c.l.b16 %v813
        %v847 = vunpack.c.l.b16 %v814
        %v848 = vunpack.c.l.b16 %v815
        %v849 = vunpack.c.l.b16 %v816
        %v850 = vpack.c.b16 %v843, %v842
        %v851 = vpack.c.b16 %v845, %v844
        %v852 = vpack.c.b16 %v847, %v846
        %v853 = vpack.c.b16 %v849, %v848
        %v859 = vsel %vm409, %v833, 0
        %v862 = vsel %vm409, %v832, 0
        %864 = vmatpush.bf16.msra.mxu0 0
        %865 = vmatpush.bf16.msra.mxu0 0
        %866 = vmatpush.bf16.msra.mxu0 0
        %867 = vmatpush.bf16.msra.mxu0 0
        %868 = vmatpush.bf16.msra.mxu0 %v853
        %869 = vmatpush.bf16.msra.mxu0 %v852
        %870 = vmatpush.bf16.msra.mxu0 %v851
        %871 = vmatpush.bf16.msra.mxu0 %v850
        %872 = vmatmul.bf16.gmra.mxu0 %v859
        %v873 = vpop.f32.mrf.mxu0
        %v874 = vadd.f32 0.0, %v873
        %v875 = vpop.f32.mrf.mxu0
        %v876 = vadd.f32 0.0, %v875
        %877 = vmatmul.bf16.gmra.mxu0 %v862
        %v878 = vpop.f32.mrf.mxu0
        %v879 = vadd.f32 0.0, %v878
        %v880 = vpop.f32.mrf.mxu0
        %881 = vdwg.mxu0
        %v882 = vadd.f32 %v805, %v874
        %v883 = vadd.f32 %v806, %v876
        %v884 = vadd.f32 %v807, %v879
        %s885 = scalar_lea.vmem [#allocation3], 256
        %v886 = vld [vmem:[%s885] sm:$0xf]
        %v887 = vld [vmem:[%s885 + $0x4] sm:$0xf]
        %v888 = vld [vmem:[%s885 + $0x8] sm:$0xf]
        %v889 = vld [vmem:[%s885 + $0xc] sm:$0xf]
        %v890 = vld [vmem:[%s885 + $0x10] sm:$0xf]
        %v891 = vld [vmem:[%s885 + $0x14] sm:$0xf]
        %v892 = vld [vmem:[%s885 + $0x18] sm:$0xf]
        %v893 = vld [vmem:[%s885 + $0x1c] sm:$0xf]
        %v894 = vrot.slane %v679, 3
        %v895 = vrot.slane %v741, 3
        %v896 = vsel %vm556, %v894, %v895
        %v905 = vunpack.c.l.b16 %v886
        %v906 = vunpack.c.l.b16 %v887
        %v907 = vunpack.c.l.b16 %v888
        %v908 = vunpack.c.l.b16 %v889
        %v909 = vunpack.c.l.b16 %v890
        %v910 = vunpack.c.l.b16 %v891
        %v911 = vunpack.c.l.b16 %v892
        %v912 = vunpack.c.l.b16 %v893
        %v913 = vpack.c.b16 %v906, %v905
        %v914 = vpack.c.b16 %v908, %v907
        %v915 = vpack.c.b16 %v910, %v909
        %v916 = vpack.c.b16 %v912, %v911
        %v922 = vsel %vm409, %v896, 0
        %v925 = vsel %vm409, %v895, 0
        %927 = vmatpush.bf16.msra.mxu0 0
        %928 = vmatpush.bf16.msra.mxu0 0
        %929 = vmatpush.bf16.msra.mxu0 0
        %930 = vmatpush.bf16.msra.mxu0 0
        %931 = vmatpush.bf16.msra.mxu0 %v916
        %932 = vmatpush.bf16.msra.mxu0 %v915
        %933 = vmatpush.bf16.msra.mxu0 %v914
        %934 = vmatpush.bf16.msra.mxu0 %v913
        %935 = vmatmul.bf16.gmra.mxu0 %v922
        %v936 = vpop.f32.mrf.mxu0
        %v937 = vadd.f32 0.0, %v936
        %v938 = vpop.f32.mrf.mxu0
        %v939 = vadd.f32 0.0, %v938
        %940 = vmatmul.bf16.gmra.mxu0 %v925
        %v941 = vpop.f32.mrf.mxu0
        %v942 = vadd.f32 0.0, %v941
        %v943 = vpop.f32.mrf.mxu0
        %944 = vdwg.mxu0
        %v945 = vadd.f32 %v882, %v937
        %v946 = vadd.f32 %v883, %v939
        %v947 = vadd.f32 %v884, %v942
        %v948 = vld [vmem:[#allocation5] sm:$0x1]
        %v950 = vperm.slane %v948, 0
        %v952 = vadd.f32 %v945, %v950
        %v953 = vadd.f32 %v946, %v950
        %v954 = vadd.f32 %v947, %v950
        %v955 = vmax.f32 %v952, 0.0
        %v956 = vmax.f32 %v953, 0.0
        %v957 = vmax.f32 %v954, 0.0
        %v958 = vld [vmem:[%s5] sm:$0xff]
        %v959 = vld [vmem:[%s5 + $0x8] sm:$0xff]
        %v960 = vld [vmem:[%s5 + $0x10] sm:$0xff]
        %962 = vset.pattern.permute.xlu0 0
        %963 = vperm.xlu0 %962, %v958
        %v964 = vpop.permute.xlu0 %963
        %967 = vset.pattern.permute.xlu0 0
        %968 = vperm.xlu0 %967, %v959
        %v969 = vpop.permute.xlu0 %968
        %972 = vset.pattern.permute.xlu0 0
        %973 = vperm.xlu0 %972, %v960
        %v974 = vpop.permute.xlu0 %973
        %v976 = vmul.f32 %v955, %v964
        %v977 = vmul.f32 %v956, %v969
        %v978 = vmul.f32 %v957, %v974
        %979 = vst [vmem:[#allocation2] sm:$0xff] 0.0
        %980 = vst [vmem:[#allocation2 + $0x8] sm:$0xff] 0.0
        %981 = vst [vmem:[#allocation2 + $0x10] sm:$0xff] 0.0
        %982 = vst [vmem:[#allocation2 + $0x18] sm:$0xff] 0.0
        %983 = vst [vmem:[#allocation2 + $0x20] sm:$0xff] 0.0
        %984 = vst [vmem:[#allocation2 + $0x28] sm:$0x3] 0.0
        %985 = vst [vmem:[#allocation2 + $0x7] sm:$0xff] %v976
        %986 = vst [vmem:[#allocation2 + $0xf] sm:$0xff] %v977
        %987 = vst [vmem:[#allocation2 + $0x17] sm:$0xff] %v978
        %v988 = vld [vmem:[#allocation2] sm:$0xff]
        %v989 = vld [vmem:[#allocation2 + $0x8] sm:$0xff]
        %v990 = vld [vmem:[#allocation2 + $0x10] sm:$0xff]
        %v991 = vld [vmem:[#allocation2 + $0x18] sm:$0xff]
        %v992 = vld [vmem:[#allocation2 + $0x20] sm:$0xff]
        %v993 = vpack.c.bf16 %v989, %v988
        %v994 = vpack.c.bf16 %v990, %v990
        %v995 = vld [vmem:[%s3] sm:$0xf]
        %v996 = vld [vmem:[%s3 + $0x4] sm:$0xf]
        %v997 = vld [vmem:[%s3 + $0x8] sm:$0xf]
        %v998 = vld [vmem:[%s3 + $0xc] sm:$0xf]
        %v999 = vld [vmem:[%s3 + $0x10] sm:$0xf]
        %v1000 = vld [vmem:[%s3 + $0x14] sm:$0xf]
        %v1001 = vld [vmem:[%s3 + $0x18] sm:$0xf]
        %v1002 = vld [vmem:[%s3 + $0x1c] sm:$0xf]
        %v1003 = vld [vmem:[%s3 + $0x20] sm:$0xf]
        %v1004 = vld [vmem:[%s3 + $0x24] sm:$0xf]
        %v1005 = vld [vmem:[%s3 + $0x28] sm:$0xf]
        %v1006 = vld [vmem:[%s3 + $0x2c] sm:$0xf]
        %v1007 = vld [vmem:[%s3 + $0x30] sm:$0xf]
        %v1008 = vld [vmem:[%s3 + $0x34] sm:$0xf]
        %v1009 = vld [vmem:[%s3 + $0x38] sm:$0xf]
        %v1010 = vld [vmem:[%s3 + $0x3c] sm:$0xf]
        %v1011 = vpack.c.bf16 %v991, %v990
        %s1012 = scalar_lea.vmem %s3, 64
        %v1013 = vld [vmem:[%s1012] sm:$0xf]
        %v1014 = vld [vmem:[%s1012 + $0x4] sm:$0xf]
        %v1015 = vld [vmem:[%s1012 + $0x8] sm:$0xf]
        %v1016 = vld [vmem:[%s1012 + $0xc] sm:$0xf]
        %v1017 = vld [vmem:[%s1012 + $0x10] sm:$0xf]
        %v1018 = vld [vmem:[%s1012 + $0x14] sm:$0xf]
        %v1019 = vld [vmem:[%s1012 + $0x18] sm:$0xf]
        %v1020 = vld [vmem:[%s1012 + $0x1c] sm:$0xf]
        %v1021 = vld [vmem:[%s1012 + $0x20] sm:$0xf]
        %v1022 = vld [vmem:[%s1012 + $0x24] sm:$0xf]
        %v1023 = vld [vmem:[%s1012 + $0x28] sm:$0xf]
        %v1024 = vld [vmem:[%s1012 + $0x2c] sm:$0xf]
        %v1025 = vld [vmem:[%s1012 + $0x30] sm:$0xf]
        %v1026 = vld [vmem:[%s1012 + $0x34] sm:$0xf]
        %v1027 = vld [vmem:[%s1012 + $0x38] sm:$0xf]
        %v1028 = vld [vmem:[%s1012 + $0x3c] sm:$0xf]
        %v1030 = vshrl.u32 %v993, 16
        %v1032 = vshll.u32 %v993, 16
        %v1034 = vrot.slane %v1032, 1
        %v1035 = vor.u32 %v1030, %v1034
        %v1037 = vshll.u32 %v1011, 16
        %v1039 = vrot.slane %v1037, 1
        %v1040 = vsel %vm369, %v1035, %v1039
        %v1041 = vshrl.u32 %v1011, 16
        %v1043 = vor.u32 %v1041, %v1039
        %v1062 = vunpack.c.l.b16 %v1013
        %v1063 = vunpack.c.l.b16 %v1014
        %v1064 = vunpack.c.l.b16 %v1015
        %v1065 = vunpack.c.l.b16 %v1016
        %v1066 = vunpack.c.l.b16 %v1017
        %v1067 = vunpack.c.l.b16 %v1018
        %v1068 = vunpack.c.l.b16 %v1019
        %v1069 = vunpack.c.l.b16 %v1020
        %v1070 = vunpack.c.l.b16 %v1021
        %v1071 = vunpack.c.l.b16 %v1022
        %v1072 = vunpack.c.l.b16 %v1023
        %v1073 = vunpack.c.l.b16 %v1024
        %v1074 = vunpack.c.l.b16 %v1025
        %v1075 = vunpack.c.l.b16 %v1026
        %v1076 = vunpack.c.l.b16 %v1027
        %v1077 = vunpack.c.l.b16 %v1028
        %v1078 = vpack.c.b16 %v1063, %v1062
        %v1079 = vpack.c.b16 %v1065, %v1064
        %v1080 = vpack.c.b16 %v1067, %v1066
        %v1081 = vpack.c.b16 %v1069, %v1068
        %v1082 = vpack.c.b16 %v1071, %v1070
        %v1083 = vpack.c.b16 %v1073, %v1072
        %v1084 = vpack.c.b16 %v1075, %v1074
        %v1085 = vpack.c.b16 %v1077, %v1076
        %1094 = vmatpush.bf16.msra.mxu0 %v1085
        %1095 = vmatpush.bf16.msra.mxu0 %v1084
        %1096 = vmatpush.bf16.msra.mxu0 %v1083
        %1097 = vmatpush.bf16.msra.mxu0 %v1082
        %1098 = vmatpush.bf16.msra.mxu0 %v1081
        %1099 = vmatpush.bf16.msra.mxu0 %v1080
        %1100 = vmatpush.bf16.msra.mxu0 %v1079
        %1101 = vmatpush.bf16.msra.mxu0 %v1078
        %1102 = vmatmul.bf16.gmra.mxu0 %v1040
        %v1103 = vpop.f32.mrf.mxu0
        %v1104 = vadd.f32 0.0, %v1103
        %v1105 = vpop.f32.mrf.mxu0
        %v1106 = vadd.f32 0.0, %v1105
        %1107 = vmatmul.bf16.gmra.mxu0 %v1043
        %v1108 = vpop.f32.mrf.mxu0
        %v1109 = vadd.f32 0.0, %v1108
        %v1110 = vpop.f32.mrf.mxu0
        %1111 = vdwg.mxu0
        %v1128 = vunpack.c.l.b16 %v995
        %v1129 = vunpack.c.l.b16 %v996
        %v1130 = vunpack.c.l.b16 %v997
        %v1131 = vunpack.c.l.b16 %v998
        %v1132 = vunpack.c.l.b16 %v999
        %v1133 = vunpack.c.l.b16 %v1000
        %v1134 = vunpack.c.l.b16 %v1001
        %v1135 = vunpack.c.l.b16 %v1002
        %v1136 = vunpack.c.l.b16 %v1003
        %v1137 = vunpack.c.l.b16 %v1004
        %v1138 = vunpack.c.l.b16 %v1005
        %v1139 = vunpack.c.l.b16 %v1006
        %v1140 = vunpack.c.l.b16 %v1007
        %v1141 = vunpack.c.l.b16 %v1008
        %v1142 = vunpack.c.l.b16 %v1009
        %v1143 = vunpack.c.l.b16 %v1010
        %v1144 = vpack.c.b16 %v1129, %v1128
        %v1145 = vpack.c.b16 %v1131, %v1130
        %v1146 = vpack.c.b16 %v1133, %v1132
        %v1147 = vpack.c.b16 %v1135, %v1134
        %v1148 = vpack.c.b16 %v1137, %v1136
        %v1149 = vpack.c.b16 %v1139, %v1138
        %v1150 = vpack.c.b16 %v1141, %v1140
        %v1151 = vpack.c.b16 %v1143, %v1142
        %1160 = vmatpush.bf16.msra.mxu0 %v1151
        %1161 = vmatpush.bf16.msra.mxu0 %v1150
        %1162 = vmatpush.bf16.msra.mxu0 %v1149
        %1163 = vmatpush.bf16.msra.mxu0 %v1148
        %1164 = vmatpush.bf16.msra.mxu0 %v1147
        %1165 = vmatpush.bf16.msra.mxu0 %v1146
        %1166 = vmatpush.bf16.msra.mxu0 %v1145
        %1167 = vmatpush.bf16.msra.mxu0 %v1144
        %1168 = vmatmul.bf16.gmra.mxu0 %v993
        %v1169 = vpop.f32.mrf.mxu0
        %v1170 = vadd.f32 %v1104, %v1169
        %v1171 = vpop.f32.mrf.mxu0
        %v1172 = vadd.f32 %v1106, %v1171
        %1173 = vmatmul.bf16.gmra.mxu0 %v994
        %v1174 = vpop.f32.mrf.mxu0
        %v1175 = vadd.f32 %v1109, %v1174
        %v1176 = vpop.f32.mrf.mxu0
        %1177 = vdwg.mxu0
        %s1178 = scalar_lea.vmem %s3, 128
        %v1179 = vld [vmem:[%s1178] sm:$0xf]
        %v1180 = vld [vmem:[%s1178 + $0x4] sm:$0xf]
        %v1181 = vld [vmem:[%s1178 + $0x8] sm:$0xf]
        %v1182 = vld [vmem:[%s1178 + $0xc] sm:$0xf]
        %v1183 = vld [vmem:[%s1178 + $0x10] sm:$0xf]
        %v1184 = vld [vmem:[%s1178 + $0x14] sm:$0xf]
        %v1185 = vld [vmem:[%s1178 + $0x18] sm:$0xf]
        %v1186 = vld [vmem:[%s1178 + $0x1c] sm:$0xf]
        %v1187 = vld [vmem:[%s1178 + $0x20] sm:$0xf]
        %v1188 = vld [vmem:[%s1178 + $0x24] sm:$0xf]
        %v1189 = vld [vmem:[%s1178 + $0x28] sm:$0xf]
        %v1190 = vld [vmem:[%s1178 + $0x2c] sm:$0xf]
        %v1191 = vld [vmem:[%s1178 + $0x30] sm:$0xf]
        %v1192 = vld [vmem:[%s1178 + $0x34] sm:$0xf]
        %v1193 = vld [vmem:[%s1178 + $0x38] sm:$0xf]
        %v1194 = vld [vmem:[%s1178 + $0x3c] sm:$0xf]
        %v1197 = vrot.slane %v993, 1
        %v1198 = vrot.slane %v1011, 1
        %v1199 = vsel %vm492, %v1197, %v1198
        %v1218 = vunpack.c.l.b16 %v1179
        %v1219 = vunpack.c.l.b16 %v1180
        %v1220 = vunpack.c.l.b16 %v1181
        %v1221 = vunpack.c.l.b16 %v1182
        %v1222 = vunpack.c.l.b16 %v1183
        %v1223 = vunpack.c.l.b16 %v1184
        %v1224 = vunpack.c.l.b16 %v1185
        %v1225 = vunpack.c.l.b16 %v1186
        %v1226 = vunpack.c.l.b16 %v1187
        %v1227 = vunpack.c.l.b16 %v1188
        %v1228 = vunpack.c.l.b16 %v1189
        %v1229 = vunpack.c.l.b16 %v1190
        %v1230 = vunpack.c.l.b16 %v1191
        %v1231 = vunpack.c.l.b16 %v1192
        %v1232 = vunpack.c.l.b16 %v1193
        %v1233 = vunpack.c.l.b16 %v1194
        %v1234 = vpack.c.b16 %v1219, %v1218
        %v1235 = vpack.c.b16 %v1221, %v1220
        %v1236 = vpack.c.b16 %v1223, %v1222
        %v1237 = vpack.c.b16 %v1225, %v1224
        %v1238 = vpack.c.b16 %v1227, %v1226
        %v1239 = vpack.c.b16 %v1229, %v1228
        %v1240 = vpack.c.b16 %v1231, %v1230
        %v1241 = vpack.c.b16 %v1233, %v1232
        %1250 = vmatpush.bf16.msra.mxu0 %v1241
        %1251 = vmatpush.bf16.msra.mxu0 %v1240
        %1252 = vmatpush.bf16.msra.mxu0 %v1239
        %1253 = vmatpush.bf16.msra.mxu0 %v1238
        %1254 = vmatpush.bf16.msra.mxu0 %v1237
        %1255 = vmatpush.bf16.msra.mxu0 %v1236
        %1256 = vmatpush.bf16.msra.mxu0 %v1235
        %1257 = vmatpush.bf16.msra.mxu0 %v1234
        %1258 = vmatmul.bf16.gmra.mxu0 %v1199
        %v1259 = vpop.f32.mrf.mxu0
        %v1260 = vadd.f32 0.0, %v1259
        %v1261 = vpop.f32.mrf.mxu0
        %v1262 = vadd.f32 0.0, %v1261
        %1263 = vmatmul.bf16.gmra.mxu0 %v1198
        %v1264 = vpop.f32.mrf.mxu0
        %v1265 = vadd.f32 0.0, %v1264
        %v1266 = vpop.f32.mrf.mxu0
        %1267 = vdwg.mxu0
        %v1268 = vadd.f32 %v1170, %v1260
        %v1269 = vadd.f32 %v1172, %v1262
        %v1270 = vadd.f32 %v1175, %v1265
        %s1271 = scalar_lea.vmem %s3, 192
        %v1272 = vld [vmem:[%s1271] sm:$0xf]
        %v1273 = vld [vmem:[%s1271 + $0x4] sm:$0xf]
        %v1274 = vld [vmem:[%s1271 + $0x8] sm:$0xf]
        %v1275 = vld [vmem:[%s1271 + $0xc] sm:$0xf]
        %v1276 = vld [vmem:[%s1271 + $0x10] sm:$0xf]
        %v1277 = vld [vmem:[%s1271 + $0x14] sm:$0xf]
        %v1278 = vld [vmem:[%s1271 + $0x18] sm:$0xf]
        %v1279 = vld [vmem:[%s1271 + $0x1c] sm:$0xf]
        %v1280 = vld [vmem:[%s1271 + $0x20] sm:$0xf]
        %v1281 = vld [vmem:[%s1271 + $0x24] sm:$0xf]
        %v1282 = vld [vmem:[%s1271 + $0x28] sm:$0xf]
        %v1283 = vld [vmem:[%s1271 + $0x2c] sm:$0xf]
        %v1284 = vld [vmem:[%s1271 + $0x30] sm:$0xf]
        %v1285 = vld [vmem:[%s1271 + $0x34] sm:$0xf]
        %v1286 = vld [vmem:[%s1271 + $0x38] sm:$0xf]
        %v1287 = vld [vmem:[%s1271 + $0x3c] sm:$0xf]
        %v1288 = vrot.slane %v993, 3
        %v1289 = vrot.slane %v1011, 3
        %v1290 = vsel %vm556, %v1288, %v1289
        %v1309 = vunpack.c.l.b16 %v1272
        %v1310 = vunpack.c.l.b16 %v1273
        %v1311 = vunpack.c.l.b16 %v1274
        %v1312 = vunpack.c.l.b16 %v1275
        %v1313 = vunpack.c.l.b16 %v1276
        %v1314 = vunpack.c.l.b16 %v1277
        %v1315 = vunpack.c.l.b16 %v1278
        %v1316 = vunpack.c.l.b16 %v1279
        %v1317 = vunpack.c.l.b16 %v1280
        %v1318 = vunpack.c.l.b16 %v1281
        %v1319 = vunpack.c.l.b16 %v1282
        %v1320 = vunpack.c.l.b16 %v1283
        %v1321 = vunpack.c.l.b16 %v1284
        %v1322 = vunpack.c.l.b16 %v1285
        %v1323 = vunpack.c.l.b16 %v1286
        %v1324 = vunpack.c.l.b16 %v1287
        %v1325 = vpack.c.b16 %v1310, %v1309
        %v1326 = vpack.c.b16 %v1312, %v1311
        %v1327 = vpack.c.b16 %v1314, %v1313
        %v1328 = vpack.c.b16 %v1316, %v1315
        %v1329 = vpack.c.b16 %v1318, %v1317
        %v1330 = vpack.c.b16 %v1320, %v1319
        %v1331 = vpack.c.b16 %v1322, %v1321
        %v1332 = vpack.c.b16 %v1324, %v1323
        %1341 = vmatpush.bf16.msra.mxu0 %v1332
        %1342 = vmatpush.bf16.msra.mxu0 %v1331
        %1343 = vmatpush.bf16.msra.mxu0 %v1330
        %1344 = vmatpush.bf16.msra.mxu0 %v1329
        %1345 = vmatpush.bf16.msra.mxu0 %v1328
        %1346 = vmatpush.bf16.msra.mxu0 %v1327
        %1347 = vmatpush.bf16.msra.mxu0 %v1326
        %1348 = vmatpush.bf16.msra.mxu0 %v1325
        %1349 = vmatmul.bf16.gmra.mxu0 %v1290
        %v1350 = vpop.f32.mrf.mxu0
        %v1351 = vadd.f32 0.0, %v1350
        %v1352 = vpop.f32.mrf.mxu0
        %v1353 = vadd.f32 0.0, %v1352
        %1354 = vmatmul.bf16.gmra.mxu0 %v1289
        %v1355 = vpop.f32.mrf.mxu0
        %v1356 = vadd.f32 0.0, %v1355
        %v1357 = vpop.f32.mrf.mxu0
        %1358 = vdwg.mxu0
        %v1359 = vadd.f32 %v1268, %v1351
        %v1360 = vadd.f32 %v1269, %v1353
        %v1361 = vadd.f32 %v1270, %v1356
        %s1362 = scalar_lea.vmem %s3, 256
        %v1363 = vld [vmem:[%s1362] sm:$0xf]
        %v1364 = vld [vmem:[%s1362 + $0x4] sm:$0xf]
        %v1365 = vld [vmem:[%s1362 + $0x8] sm:$0xf]
        %v1366 = vld [vmem:[%s1362 + $0xc] sm:$0xf]
        %v1367 = vld [vmem:[%s1362 + $0x10] sm:$0xf]
        %v1368 = vld [vmem:[%s1362 + $0x14] sm:$0xf]
        %v1369 = vld [vmem:[%s1362 + $0x18] sm:$0xf]
        %v1370 = vld [vmem:[%s1362 + $0x1c] sm:$0xf]
        %v1371 = vld [vmem:[%s1362 + $0x20] sm:$0xf]
        %v1372 = vld [vmem:[%s1362 + $0x24] sm:$0xf]
        %v1373 = vld [vmem:[%s1362 + $0x28] sm:$0xf]
        %v1374 = vld [vmem:[%s1362 + $0x2c] sm:$0xf]
        %v1375 = vld [vmem:[%s1362 + $0x30] sm:$0xf]
        %v1376 = vld [vmem:[%s1362 + $0x34] sm:$0xf]
        %v1377 = vld [vmem:[%s1362 + $0x38] sm:$0xf]
        %v1378 = vld [vmem:[%s1362 + $0x3c] sm:$0xf]
        %v1379 = vrot.slane %v1030, 3
        %v1380 = vrot.slane %v1032, 4
        %v1381 = vor.u32 %v1379, %v1380
        %v1382 = vrot.slane %v1041, 3
        %v1383 = vrot.slane %v1037, 4
        %v1384 = vor.u32 %v1382, %v1383
        %v1385 = vsel %vm620, %v1381, %v1384
        %v1404 = vunpack.c.l.b16 %v1363
        %v1405 = vunpack.c.l.b16 %v1364
        %v1406 = vunpack.c.l.b16 %v1365
        %v1407 = vunpack.c.l.b16 %v1366
        %v1408 = vunpack.c.l.b16 %v1367
        %v1409 = vunpack.c.l.b16 %v1368
        %v1410 = vunpack.c.l.b16 %v1369
        %v1411 = vunpack.c.l.b16 %v1370
        %v1412 = vunpack.c.l.b16 %v1371
        %v1413 = vunpack.c.l.b16 %v1372
        %v1414 = vunpack.c.l.b16 %v1373
        %v1415 = vunpack.c.l.b16 %v1374
        %v1416 = vunpack.c.l.b16 %v1375
        %v1417 = vunpack.c.l.b16 %v1376
        %v1418 = vunpack.c.l.b16 %v1377
        %v1419 = vunpack.c.l.b16 %v1378
        %v1420 = vpack.c.b16 %v1405, %v1404
        %v1421 = vpack.c.b16 %v1407, %v1406
        %v1422 = vpack.c.b16 %v1409, %v1408
        %v1423 = vpack.c.b16 %v1411, %v1410
        %v1424 = vpack.c.b16 %v1413, %v1412
        %v1425 = vpack.c.b16 %v1415, %v1414
        %v1426 = vpack.c.b16 %v1417, %v1416
        %v1427 = vpack.c.b16 %v1419, %v1418
        %1436 = vmatpush.bf16.msra.mxu0 %v1427
        %1437 = vmatpush.bf16.msra.mxu0 %v1426
        %1438 = vmatpush.bf16.msra.mxu0 %v1425
        %1439 = vmatpush.bf16.msra.mxu0 %v1424
        %1440 = vmatpush.bf16.msra.mxu0 %v1423
        %1441 = vmatpush.bf16.msra.mxu0 %v1422
        %1442 = vmatpush.bf16.msra.mxu0 %v1421
        %1443 = vmatpush.bf16.msra.mxu0 %v1420
        %1444 = vmatmul.bf16.gmra.mxu0 %v1385
        %v1445 = vpop.f32.mrf.mxu0
        %v1446 = vadd.f32 0.0, %v1445
        %v1447 = vpop.f32.mrf.mxu0
        %v1448 = vadd.f32 0.0, %v1447
        %1449 = vmatmul.bf16.gmra.mxu0 %v1384
        %v1450 = vpop.f32.mrf.mxu0
        %v1451 = vadd.f32 0.0, %v1450
        %v1452 = vpop.f32.mrf.mxu0
        %1453 = vdwg.mxu0
        %v1454 = vadd.f32 %v1359, %v1446
        %v1455 = vadd.f32 %v1360, %v1448
        %v1456 = vadd.f32 %v1361, %v1451
        %v1457 = vpack.c.bf16 %v990, %v989
        %v1458 = vpack.c.bf16 %v991, %v991
        %s1459 = scalar_lea.vmem %s3, 320
        %v1460 = vld [vmem:[%s1459] sm:$0xf]
        %v1461 = vld [vmem:[%s1459 + $0x4] sm:$0xf]
        %v1462 = vld [vmem:[%s1459 + $0x8] sm:$0xf]
        %v1463 = vld [vmem:[%s1459 + $0xc] sm:$0xf]
        %v1464 = vld [vmem:[%s1459 + $0x10] sm:$0xf]
        %v1465 = vld [vmem:[%s1459 + $0x14] sm:$0xf]
        %v1466 = vld [vmem:[%s1459 + $0x18] sm:$0xf]
        %v1467 = vld [vmem:[%s1459 + $0x1c] sm:$0xf]
        %v1468 = vld [vmem:[%s1459 + $0x20] sm:$0xf]
        %v1469 = vld [vmem:[%s1459 + $0x24] sm:$0xf]
        %v1470 = vld [vmem:[%s1459 + $0x28] sm:$0xf]
        %v1471 = vld [vmem:[%s1459 + $0x2c] sm:$0xf]
        %v1472 = vld [vmem:[%s1459 + $0x30] sm:$0xf]
        %v1473 = vld [vmem:[%s1459 + $0x34] sm:$0xf]
        %v1474 = vld [vmem:[%s1459 + $0x38] sm:$0xf]
        %v1475 = vld [vmem:[%s1459 + $0x3c] sm:$0xf]
        %v1492 = vunpack.c.l.b16 %v1460
        %v1493 = vunpack.c.l.b16 %v1461
        %v1494 = vunpack.c.l.b16 %v1462
        %v1495 = vunpack.c.l.b16 %v1463
        %v1496 = vunpack.c.l.b16 %v1464
        %v1497 = vunpack.c.l.b16 %v1465
        %v1498 = vunpack.c.l.b16 %v1466
        %v1499 = vunpack.c.l.b16 %v1467
        %v1500 = vunpack.c.l.b16 %v1468
        %v1501 = vunpack.c.l.b16 %v1469
        %v1502 = vunpack.c.l.b16 %v1470
        %v1503 = vunpack.c.l.b16 %v1471
        %v1504 = vunpack.c.l.b16 %v1472
        %v1505 = vunpack.c.l.b16 %v1473
        %v1506 = vunpack.c.l.b16 %v1474
        %v1507 = vunpack.c.l.b16 %v1475
        %v1508 = vpack.c.b16 %v1493, %v1492
        %v1509 = vpack.c.b16 %v1495, %v1494
        %v1510 = vpack.c.b16 %v1497, %v1496
        %v1511 = vpack.c.b16 %v1499, %v1498
        %v1512 = vpack.c.b16 %v1501, %v1500
        %v1513 = vpack.c.b16 %v1503, %v1502
        %v1514 = vpack.c.b16 %v1505, %v1504
        %v1515 = vpack.c.b16 %v1507, %v1506
        %1524 = vmatpush.bf16.msra.mxu0 %v1515
        %1525 = vmatpush.bf16.msra.mxu0 %v1514
        %1526 = vmatpush.bf16.msra.mxu0 %v1513
        %1527 = vmatpush.bf16.msra.mxu0 %v1512
        %1528 = vmatpush.bf16.msra.mxu0 %v1511
        %1529 = vmatpush.bf16.msra.mxu0 %v1510
        %1530 = vmatpush.bf16.msra.mxu0 %v1509
        %1531 = vmatpush.bf16.msra.mxu0 %v1508
        %1532 = vmatmul.bf16.gmra.mxu0 %v1457
        %v1533 = vpop.f32.mrf.mxu0
        %v1534 = vadd.f32 0.0, %v1533
        %v1535 = vpop.f32.mrf.mxu0
        %v1536 = vadd.f32 0.0, %v1535
        %1537 = vmatmul.bf16.gmra.mxu0 %v1458
        %v1538 = vpop.f32.mrf.mxu0
        %v1539 = vadd.f32 0.0, %v1538
        %v1540 = vpop.f32.mrf.mxu0
        %1541 = vdwg.mxu0
        %v1542 = vadd.f32 %v1454, %v1534
        %v1543 = vadd.f32 %v1455, %v1536
        %v1544 = vadd.f32 %v1456, %v1539
        %v1545 = vpack.c.bf16 %v992, %v991
        %s1546 = scalar_lea.vmem %s3, 384
        %v1547 = vld [vmem:[%s1546] sm:$0xf]
        %v1548 = vld [vmem:[%s1546 + $0x4] sm:$0xf]
        %v1549 = vld [vmem:[%s1546 + $0x8] sm:$0xf]
        %v1550 = vld [vmem:[%s1546 + $0xc] sm:$0xf]
        %v1551 = vld [vmem:[%s1546 + $0x10] sm:$0xf]
        %v1552 = vld [vmem:[%s1546 + $0x14] sm:$0xf]
        %v1553 = vld [vmem:[%s1546 + $0x18] sm:$0xf]
        %v1554 = vld [vmem:[%s1546 + $0x1c] sm:$0xf]
        %v1555 = vld [vmem:[%s1546 + $0x20] sm:$0xf]
        %v1556 = vld [vmem:[%s1546 + $0x24] sm:$0xf]
        %v1557 = vld [vmem:[%s1546 + $0x28] sm:$0xf]
        %v1558 = vld [vmem:[%s1546 + $0x2c] sm:$0xf]
        %v1559 = vld [vmem:[%s1546 + $0x30] sm:$0xf]
        %v1560 = vld [vmem:[%s1546 + $0x34] sm:$0xf]
        %v1561 = vld [vmem:[%s1546 + $0x38] sm:$0xf]
        %v1562 = vld [vmem:[%s1546 + $0x3c] sm:$0xf]
        %v1565 = vrot.slane %v1457, 2
        %v1566 = vrot.slane %v1545, 2
        %v1567 = vsel %vm753, %v1565, %v1566
        %v1586 = vunpack.c.l.b16 %v1547
        %v1587 = vunpack.c.l.b16 %v1548
        %v1588 = vunpack.c.l.b16 %v1549
        %v1589 = vunpack.c.l.b16 %v1550
        %v1590 = vunpack.c.l.b16 %v1551
        %v1591 = vunpack.c.l.b16 %v1552
        %v1592 = vunpack.c.l.b16 %v1553
        %v1593 = vunpack.c.l.b16 %v1554
        %v1594 = vunpack.c.l.b16 %v1555
        %v1595 = vunpack.c.l.b16 %v1556
        %v1596 = vunpack.c.l.b16 %v1557
        %v1597 = vunpack.c.l.b16 %v1558
        %v1598 = vunpack.c.l.b16 %v1559
        %v1599 = vunpack.c.l.b16 %v1560
        %v1600 = vunpack.c.l.b16 %v1561
        %v1601 = vunpack.c.l.b16 %v1562
        %v1602 = vpack.c.b16 %v1587, %v1586
        %v1603 = vpack.c.b16 %v1589, %v1588
        %v1604 = vpack.c.b16 %v1591, %v1590
        %v1605 = vpack.c.b16 %v1593, %v1592
        %v1606 = vpack.c.b16 %v1595, %v1594
        %v1607 = vpack.c.b16 %v1597, %v1596
        %v1608 = vpack.c.b16 %v1599, %v1598
        %v1609 = vpack.c.b16 %v1601, %v1600
        %1618 = vmatpush.bf16.msra.mxu0 %v1609
        %1619 = vmatpush.bf16.msra.mxu0 %v1608
        %1620 = vmatpush.bf16.msra.mxu0 %v1607
        %1621 = vmatpush.bf16.msra.mxu0 %v1606
        %1622 = vmatpush.bf16.msra.mxu0 %v1605
        %1623 = vmatpush.bf16.msra.mxu0 %v1604
        %1624 = vmatpush.bf16.msra.mxu0 %v1603
        %1625 = vmatpush.bf16.msra.mxu0 %v1602
        %1626 = vmatmul.bf16.gmra.mxu0 %v1567
        %v1627 = vpop.f32.mrf.mxu0
        %v1628 = vadd.f32 0.0, %v1627
        %v1629 = vpop.f32.mrf.mxu0
        %v1630 = vadd.f32 0.0, %v1629
        %1631 = vmatmul.bf16.gmra.mxu0 %v1566
        %v1632 = vpop.f32.mrf.mxu0
        %v1633 = vadd.f32 0.0, %v1632
        %v1634 = vpop.f32.mrf.mxu0
        %1635 = vdwg.mxu0
        %v1636 = vadd.f32 %v1542, %v1628
        %v1637 = vadd.f32 %v1543, %v1630
        %v1638 = vadd.f32 %v1544, %v1633
        %s1639 = scalar_lea.vmem %s3, 448
        %v1640 = vld [vmem:[%s1639] sm:$0xf]
        %v1641 = vld [vmem:[%s1639 + $0x4] sm:$0xf]
        %v1642 = vld [vmem:[%s1639 + $0x8] sm:$0xf]
        %v1643 = vld [vmem:[%s1639 + $0xc] sm:$0xf]
        %v1644 = vld [vmem:[%s1639 + $0x10] sm:$0xf]
        %v1645 = vld [vmem:[%s1639 + $0x14] sm:$0xf]
        %v1646 = vld [vmem:[%s1639 + $0x18] sm:$0xf]
        %v1647 = vld [vmem:[%s1639 + $0x1c] sm:$0xf]
        %v1648 = vld [vmem:[%s1639 + $0x20] sm:$0xf]
        %v1649 = vld [vmem:[%s1639 + $0x24] sm:$0xf]
        %v1650 = vld [vmem:[%s1639 + $0x28] sm:$0xf]
        %v1651 = vld [vmem:[%s1639 + $0x2c] sm:$0xf]
        %v1652 = vld [vmem:[%s1639 + $0x30] sm:$0xf]
        %v1653 = vld [vmem:[%s1639 + $0x34] sm:$0xf]
        %v1654 = vld [vmem:[%s1639 + $0x38] sm:$0xf]
        %v1655 = vld [vmem:[%s1639 + $0x3c] sm:$0xf]
        %v1657 = vshrl.u32 %v1457, 16
        %v1659 = vrot.slane %v1657, 2
        %v1660 = vshll.u32 %v1457, 16
        %v1662 = vrot.slane %v1660, 3
        %v1663 = vor.u32 %v1659, %v1662
        %v1665 = vshrl.u32 %v1545, 16
        %v1667 = vrot.slane %v1665, 2
        %v1668 = vshll.u32 %v1545, 16
        %v1670 = vrot.slane %v1668, 3
        %v1671 = vor.u32 %v1667, %v1670
        %v1672 = vsel %vm817, %v1663, %v1671
        %v1691 = vunpack.c.l.b16 %v1640
        %v1692 = vunpack.c.l.b16 %v1641
        %v1693 = vunpack.c.l.b16 %v1642
        %v1694 = vunpack.c.l.b16 %v1643
        %v1695 = vunpack.c.l.b16 %v1644
        %v1696 = vunpack.c.l.b16 %v1645
        %v1697 = vunpack.c.l.b16 %v1646
        %v1698 = vunpack.c.l.b16 %v1647
        %v1699 = vunpack.c.l.b16 %v1648
        %v1700 = vunpack.c.l.b16 %v1649
        %v1701 = vunpack.c.l.b16 %v1650
        %v1702 = vunpack.c.l.b16 %v1651
        %v1703 = vunpack.c.l.b16 %v1652
        %v1704 = vunpack.c.l.b16 %v1653
        %v1705 = vunpack.c.l.b16 %v1654
        %v1706 = vunpack.c.l.b16 %v1655
        %v1707 = vpack.c.b16 %v1692, %v1691
        %v1708 = vpack.c.b16 %v1694, %v1693
        %v1709 = vpack.c.b16 %v1696, %v1695
        %v1710 = vpack.c.b16 %v1698, %v1697
        %v1711 = vpack.c.b16 %v1700, %v1699
        %v1712 = vpack.c.b16 %v1702, %v1701
        %v1713 = vpack.c.b16 %v1704, %v1703
        %v1714 = vpack.c.b16 %v1706, %v1705
        %1723 = vmatpush.bf16.msra.mxu0 %v1714
        %1724 = vmatpush.bf16.msra.mxu0 %v1713
        %1725 = vmatpush.bf16.msra.mxu0 %v1712
        %1726 = vmatpush.bf16.msra.mxu0 %v1711
        %1727 = vmatpush.bf16.msra.mxu0 %v1710
        %1728 = vmatpush.bf16.msra.mxu0 %v1709
        %1729 = vmatpush.bf16.msra.mxu0 %v1708
        %1730 = vmatpush.bf16.msra.mxu0 %v1707
        %1731 = vmatmul.bf16.gmra.mxu0 %v1672
        %v1732 = vpop.f32.mrf.mxu0
        %v1733 = vadd.f32 0.0, %v1732
        %v1734 = vpop.f32.mrf.mxu0
        %v1735 = vadd.f32 0.0, %v1734
        %1736 = vmatmul.bf16.gmra.mxu0 %v1671
        %v1737 = vpop.f32.mrf.mxu0
        %v1738 = vadd.f32 0.0, %v1737
        %v1739 = vpop.f32.mrf.mxu0
        %1740 = vdwg.mxu0
        %v1741 = vadd.f32 %v1636, %v1733
        %v1742 = vadd.f32 %v1637, %v1735
        %v1743 = vadd.f32 %v1638, %v1738
        %s1744 = scalar_lea.vmem %s3, 512
        %v1745 = vld [vmem:[%s1744] sm:$0xf]
        %v1746 = vld [vmem:[%s1744 + $0x4] sm:$0xf]
        %v1747 = vld [vmem:[%s1744 + $0x8] sm:$0xf]
        %v1748 = vld [vmem:[%s1744 + $0xc] sm:$0xf]
        %v1749 = vld [vmem:[%s1744 + $0x10] sm:$0xf]
        %v1750 = vld [vmem:[%s1744 + $0x14] sm:$0xf]
        %v1751 = vld [vmem:[%s1744 + $0x18] sm:$0xf]
        %v1752 = vld [vmem:[%s1744 + $0x1c] sm:$0xf]
        %v1753 = vld [vmem:[%s1744 + $0x20] sm:$0xf]
        %v1754 = vld [vmem:[%s1744 + $0x24] sm:$0xf]
        %v1755 = vld [vmem:[%s1744 + $0x28] sm:$0xf]
        %v1756 = vld [vmem:[%s1744 + $0x2c] sm:$0xf]
        %v1757 = vld [vmem:[%s1744 + $0x30] sm:$0xf]
        %v1758 = vld [vmem:[%s1744 + $0x34] sm:$0xf]
        %v1759 = vld [vmem:[%s1744 + $0x38] sm:$0xf]
        %v1760 = vld [vmem:[%s1744 + $0x3c] sm:$0xf]
        %v1761 = vrot.slane %v1457, 3
        %v1762 = vrot.slane %v1545, 3
        %v1763 = vsel %vm556, %v1761, %v1762
        %v1782 = vunpack.c.l.b16 %v1745
        %v1783 = vunpack.c.l.b16 %v1746
        %v1784 = vunpack.c.l.b16 %v1747
        %v1785 = vunpack.c.l.b16 %v1748
        %v1786 = vunpack.c.l.b16 %v1749
        %v1787 = vunpack.c.l.b16 %v1750
        %v1788 = vunpack.c.l.b16 %v1751
        %v1789 = vunpack.c.l.b16 %v1752
        %v1790 = vunpack.c.l.b16 %v1753
        %v1791 = vunpack.c.l.b16 %v1754
        %v1792 = vunpack.c.l.b16 %v1755
        %v1793 = vunpack.c.l.b16 %v1756
        %v1794 = vunpack.c.l.b16 %v1757
        %v1795 = vunpack.c.l.b16 %v1758
        %v1796 = vunpack.c.l.b16 %v1759
        %v1797 = vunpack.c.l.b16 %v1760
        %v1798 = vpack.c.b16 %v1783, %v1782
        %v1799 = vpack.c.b16 %v1785, %v1784
        %v1800 = vpack.c.b16 %v1787, %v1786
        %v1801 = vpack.c.b16 %v1789, %v1788
        %v1802 = vpack.c.b16 %v1791, %v1790
        %v1803 = vpack.c.b16 %v1793, %v1792
        %v1804 = vpack.c.b16 %v1795, %v1794
        %v1805 = vpack.c.b16 %v1797, %v1796
        %1814 = vmatpush.bf16.msra.mxu0 %v1805
        %1815 = vmatpush.bf16.msra.mxu0 %v1804
        %1816 = vmatpush.bf16.msra.mxu0 %v1803
        %1817 = vmatpush.bf16.msra.mxu0 %v1802
        %1818 = vmatpush.bf16.msra.mxu0 %v1801
        %1819 = vmatpush.bf16.msra.mxu0 %v1800
        %1820 = vmatpush.bf16.msra.mxu0 %v1799
        %1821 = vmatpush.bf16.msra.mxu0 %v1798
        %1822 = vmatmul.bf16.gmra.mxu0 %v1763
        %v1823 = vpop.f32.mrf.mxu0
        %v1824 = vadd.f32 0.0, %v1823
        %v1825 = vpop.f32.mrf.mxu0
        %v1826 = vadd.f32 0.0, %v1825
        %1827 = vmatmul.bf16.gmra.mxu0 %v1762
        %v1828 = vpop.f32.mrf.mxu0
        %v1829 = vadd.f32 0.0, %v1828
        %v1830 = vpop.f32.mrf.mxu0
        %1831 = vdwg.mxu0
        %v1832 = vadd.f32 %v1741, %v1824
        %v1833 = vadd.f32 %v1742, %v1826
        %v1834 = vadd.f32 %v1743, %v1829
        %v1835 = vld [vmem:[#allocation7] sm:$0x1]
        %v1837 = vperm.slane %v1835, 0
        %v1839 = vadd.f32 %v1832, %v1837
        %v1840 = vadd.f32 %v1833, %v1837
        %v1841 = vadd.f32 %v1834, %v1837
        %v1842 = vmax.f32 %v1839, 0.0
        %v1843 = vmax.f32 %v1840, 0.0
        %v1844 = vmax.f32 %v1841, 0.0
        %vm1848 = vcmask 1046528
        %v1849 = vrot.slane %v1842, 1
        %v1850 = vrot.slane %v1843, 1
        %v1851 = vsel %vm1848, %v1849, %v1850
        %v1852 = vrot.slane %v1844, 1
        %v1853 = vsel %vm1848, %v1850, %v1852
        %v1857 = vmax.f32 %v1842, %v1851
        %v1858 = vmax.f32 %v1843, %v1853
        %v1859 = vmax.f32 %v1844, %v1852
        %vm1863 = vcmask 1041408
        %v1864 = vrot.slane %v1857, 6
        %v1865 = vrot.slane %v1858, 6
        %v1866 = vsel %vm1863, %v1864, %v1865
        %v1867 = vrot.slane %v1859, 6
        %v1868 = vsel %vm1863, %v1865, %v1867
        %v1872 = vmax.f32 %v1857, %v1866
        %v1873 = vmax.f32 %v1858, %v1868
        %v1874 = vmax.f32 %v1859, %v1867
        %v1875 = vld [vmem:[#allocation8] sm:$0x3]
        %v1876 = vpack.c.bf16 %v1873, %v1872
        %v1877 = vpack.c.bf16 %v1874, %v1874
        %vm1878 = vcmask 138240
        %v1880 = vsel %vm1878, %v1875, 0
        %vm1882 = vcmask 1040384
        %v1883 = vsel 0, 4294967295, 65535
        %v1884 = vsel %vm1882, %v1883, 0
        %v1886 = vand.u32 %v1877, %v1884
        %1888 = vmatpush.bf16.msra.mxu0 0
        %1889 = vmatpush.bf16.msra.mxu0 0
        %1890 = vmatpush.bf16.msra.mxu0 0
        %1891 = vmatpush.bf16.msra.mxu0 0
        %1892 = vmatpush.bf16.msra.mxu0 0
        %1893 = vmatpush.bf16.msra.mxu0 0
        %1894 = vmatpush.bf16.msra.mxu0 %v1886
        %1895 = vmatpush.bf16.msra.mxu0 %v1876
        %1896 = vmatmul.bf16.gmra.mxu0 %v1880
        %v1897 = vpop.f32.mrf.mxu0
        %v1898 = vadd.f32 0.0, %v1897
        %v1899 = vpop.f32.mrf.mxu0
        %1900 = vdwg.mxu0
        %v1901 = vpack.c.bf16 %v1898, %v1898
        %1902 = vst [vmem:[%s337] sm:$0x3] %v1901
        %p1903 = scmp.lt.s32.totalorder %s21, 1
        %s1904 = scalar_select %p1903, %s21, 1
        %s1905 = smul.addr %s1904, 2
        %s1906 = scalar_lea.vmem %s7, %s1905
        // Predicated region
        $region65: #{conv_net_forward.6} parent=47 // pred_check
          %p1907 = pneg %p191
        $region66: #{conv_net_forward.6} parent=47 // pred_check_branch
          %1909 = sbr.rel (%p1907) target = $region68
        $region67: #{conv_net_forward.6} parent=47 // pred_region
          _
        $region68: #{conv_net_forward.6} parent=47 // pred_fallthru
          _
      $region48: #{conv_net_forward.6} parent=5 // pred_fallthru
        _
      %p1910 = scmp.le.s32.totalorder 2, %s16
      // Predicated region
      $region69: #{conv_net_forward.6} parent=5 // pred_check
        %p1911 = pneg %p1910
      $region70: #{conv_net_forward.6} parent=5 // pred_check_branch
        %1913 = sbr.rel (%p1911) target = $region72
      $region71: #{conv_net_forward.6} parent=5 // pred_region
        %s1914 = ssub.s32 %s16, 2
        // Predicated region
        $region73: #{conv_net_forward.6} parent=71 // pred_check
          %p1915 = pneg %p197
        $region74: #{conv_net_forward.6} parent=71 // pred_check_branch
          %1917 = sbr.rel (%p1915) target = $region76
        $region75: #{conv_net_forward.6} parent=71 // pred_region
          %p1918 = scmp.lt.s32.totalorder %s22, 1
          %s1919 = scalar_select %p1918, %s22, 1
          %s1920 = smul.addr %s1919, 2
          %s1921 = scalar_lea.vmem %s7, %s1920
        $region76: #{conv_net_forward.6} parent=71 // pred_fallthru
          _
      $region72: #{conv_net_forward.6} parent=5 // pred_fallthru
        _
    $region6: #{conv_net_forward.6} parent=1 // loop_footer
      %s20 = sadd.s32 1, %s16
    $region7: #{conv_net_forward.6} parent=1 // loop_footer_branch
      %15 = sbr.rel target = $region3
    $region8: #{conv_net_forward.6} parent=1 // loop_exit
      _
    %1922 = vsyncpa [#allocation4], 1
    %s1923 = scalar_lea.sflag [#allocation4], 1
    %1924 = vsyncpa %s1923, 1
    %1925 = vsyncpa [#allocation6], 1
    %1926 = vsyncpa [#allocation9], 1

// kernel: conv_net_forward.4
$region0: #{conv_net_forward.4}
  #allocation0 [shape = 'u32[]', space=smem, size = 0x4, offset = 0x4, fixed_abs, tag = 'smem constant byte address 0x4 - core index']
  #allocation1 [shape = 'u32[72,128]{1,0:T(1,128)}', space=vmem, size = 0x9000, scoped, tag = 'internal scratch']
  #allocation2 [shape = 'f32[342,32]{1,0:T(8,128)}', space=vmem, size = 0x2b000, scoped, tag = 'scratch operand']
  %s0 = inlined_call_operand.vmem [shape: bf16[2,342,4], index: 0, kind: input, shape index: {}]
  %s1 = inlined_call_operand.hbm [shape: bf16[9,4,32], index: 1, kind: input, shape index: {}]
  %s2 = inlined_call_operand.vmem [shape: f32[1,32], index: 2, kind: input, shape index: {}]
  %s3 = inlined_call_operand.vmem [shape: bf16[9,32,32], index: 3, kind: input, shape index: {}]
  %s4 = inlined_call_operand.hbm [shape: f32[1,32], index: 4, kind: input, shape index: {}]
  %s5 = inlined_call_operand.hbm [shape: f32[288,1], index: 5, kind: input, shape index: {}]
  %s6 = inlined_call_operand.hbm [shape: bf16[64,269], index: 6, kind: input, shape index: {}]
  %s7 = inlined_call_operand.vmem [shape: bf16[2,64,32], index: 7, kind: output, shape index: {}]
  %s8 = sld [smem:[#allocation0]]
  $region77: #{conv_net_forward.4} parent=0
    _
  %s10 = ssub.s32 1, %s8
  %s11 = scalar_select 0, %s10, %s8
  $region1: #{conv_net_forward.4} parent=0
    #allocation3 [shape = 'u8[9216]{0}', space=vmem, size = 0x2400, scoped, tag = 'input window, operand 1, single buffered']
    #allocation4 [shape = 's32[2]{0}', space=sflag, size = 0x8, scoped, tag = 'scoped memory for conv_net_forward.4']
    #allocation5 [shape = 'u8[512]{0}', space=vmem, size = 0x400, scoped, tag = 'input window, operand 4, single buffered']
    #allocation6 [shape = 's32[1]{0}', space=sflag, size = 0x4, scoped, tag = 'scoped memory for conv_net_forward.4']
    #allocation7 [shape = 'u8[147456]{0}', space=vmem, size = 0x24000, scoped, tag = 'input window, operand 5, single buffered']
    #allocation8 [shape = 'u8[49152]{0}', space=vmem, size = 0xc000, scoped, tag = 'input window, operand 6, single buffered']
    #allocation9 [shape = 's32[1]{0}', space=sflag, size = 0x4, scoped, tag = 'scoped memory for conv_net_forward.4']
    %12 = vsyncpa [#allocation4], 0
    %13 = vsyncpa [#allocation6], 0
    %14 = vsyncpa [#allocation9], 0
    loop: start=0, step=1, limit=4
    $region2: #{conv_net_forward.4} parent=1 // loop_pre_header
      _
    $region3: #{conv_net_forward.4} parent=1 // loop_header
      %s16 = sphi 0, %s20
      %p17 = scmp.ge.s32.totalorder %s16, 4
      %s26 = sphi 0, %s28
      %s29 = sphi 0, %s26
      %s30 = sphi 0, %s29
      %s46 = sphi 0, %s30
      %s50 = sphi 0, %s50
      %s52 = sphi 0, %s50
      %s53 = sphi 0, %s52
      %s67 = sphi 0, %s53
      %s71 = sphi 0, %s71
      %s73 = sphi 0, %s71
      %s74 = sphi 0, %s73
      %s88 = sphi 0, %s74
      %s92 = sphi 0, %s92
      %s94 = sphi 0, %s92
      %s95 = sphi 0, %s94
      %s109 = sphi 0, %s95
      %s113 = sphi 0, %s113
      %s115 = sphi 0, %s113
      %s116 = sphi 0, %s115
      %s130 = sphi 0, %s116
      %s134 = sphi 0, %s134
      %s136 = sphi 0, %s134
      %s137 = sphi 0, %s136
      %s151 = sphi 0, %s137
      %s155 = sphi 0, %s155
      %s157 = sphi 0, %s155
      %s158 = sphi 0, %s157
      %s172 = sphi 0, %s158
      %s178 = sphi 0, %s180
      %s181 = sphi 0, %s178
      %s182 = sphi 0, %s181
      %s198 = sphi 0, %s182
    $region4: #{conv_net_forward.4} parent=1 // loop_header_branch
      %19 = sbr.rel (%p17) target = $region8
    $region5: #{conv_net_forward.4} parent=1 // loop_body
      %s21 = ssub.s32 %s16, 1
      %s22 = ssub.s32 %s16, 2
      %s23 = sadd.s32 %s16, 1
      %s24 = ssub.s32 %s16, %s23
      %p25 = scmp.eq.s32.totalorder %s24, 0
      %s27 = sadd.s32 %s26, 1
      %s28 = scalar_select %p25, %s26, %s27
      %p31 = pneg %p25
      %p32 = scmp.eq.s32.totalorder %s16, 1
      %p33 = por %p31, %p32
      %p34 = scmp.ne.s32.totalorder %s26, %s29
      %p35 = scmp.eq.s32.totalorder %s16, 0
      %p36 = por %p34, %p35
      %p37 = scmp.ne.s32.totalorder %s26, %s29
      %p38 = scmp.eq.s32.totalorder %s21, 1
      %p39 = por %p37, %p38
      %p40 = scmp.ne.s32.totalorder %s29, %s30
      %p41 = scmp.eq.s32.totalorder %s21, 0
      %p42 = por %p40, %p41
      %p43 = scmp.ne.s32.totalorder %s29, %s30
      %p44 = scmp.eq.s32.totalorder %s22, 1
      %p45 = por %p43, %p44
      %p47 = scmp.ne.s32.totalorder %s30, %s46
      %p48 = scmp.eq.s32.totalorder %s22, 0
      %p49 = por %p47, %p48
      %s51 = sadd.s32 %s50, 1
      %p54 = scmp.eq.s32.totalorder %s16, 1
      %p55 = scmp.ne.s32.totalorder %s50, %s52
      %p56 = scmp.eq.s32.totalorder %s16, 0
      %p57 = por %p55, %p56
      %p58 = scmp.ne.s32.totalorder %s50, %s52
      %p59 = scmp.eq.s32.totalorder %s21, 1
      %p60 = por %p58, %p59
      %p61 = scmp.ne.s32.totalorder %s52, %s53
      %p62 = scmp.eq.s32.totalorder %s21, 0
      %p63 = por %p61, %p62
      %p64 = scmp.ne.s32.totalorder %s52, %s53
      %p65 = scmp.eq.s32.totalorder %s22, 1
      %p66 = por %p64, %p65
      %p68 = scmp.ne.s32.totalorder %s53, %s67
      %p69 = scmp.eq.s32.totalorder %s22, 0
      %p70 = por %p68, %p69
      %s72 = sadd.s32 %s71, 1
      %p75 = scmp.eq.s32.totalorder %s16, 1
      %p76 = scmp.ne.s32.totalorder %s71, %s73
      %p77 = scmp.eq.s32.totalorder %s16, 0
      %p78 = por %p76, %p77
      %p79 = scmp.ne.s32.totalorder %s71, %s73
      %p80 = scmp.eq.s32.totalorder %s21, 1
      %p81 = por %p79, %p80
      %p82 = scmp.ne.s32.totalorder %s73, %s74
      %p83 = scmp.eq.s32.totalorder %s21, 0
      %p84 = por %p82, %p83
      %p85 = scmp.ne.s32.totalorder %s73, %s74
      %p86 = scmp.eq.s32.totalorder %s22, 1
      %p87 = por %p85, %p86
      %p89 = scmp.ne.s32.totalorder %s74, %s88
      %p90 = scmp.eq.s32.totalorder %s22, 0
      %p91 = por %p89, %p90
      %s93 = sadd.s32 %s92, 1
      %p96 = scmp.eq.s32.totalorder %s16, 1
      %p97 = scmp.ne.s32.totalorder %s92, %s94
      %p98 = scmp.eq.s32.totalorder %s16, 0
      %p99 = por %p97, %p98
      %p100 = scmp.ne.s32.totalorder %s92, %s94
      %p101 = scmp.eq.s32.totalorder %s21, 1
      %p102 = por %p100, %p101
      %p103 = scmp.ne.s32.totalorder %s94, %s95
      %p104 = scmp.eq.s32.totalorder %s21, 0
      %p105 = por %p103, %p104
      %p106 = scmp.ne.s32.totalorder %s94, %s95
      %p107 = scmp.eq.s32.totalorder %s22, 1
      %p108 = por %p106, %p107
      %p110 = scmp.ne.s32.totalorder %s95, %s109
      %p111 = scmp.eq.s32.totalorder %s22, 0
      %p112 = por %p110, %p111
      %s114 = sadd.s32 %s113, 1
      %p117 = scmp.eq.s32.totalorder %s16, 1
      %p118 = scmp.ne.s32.totalorder %s113, %s115
      %p119 = scmp.eq.s32.totalorder %s16, 0
      %p120 = por %p118, %p119
      %p121 = scmp.ne.s32.totalorder %s113, %s115
      %p122 = scmp.eq.s32.totalorder %s21, 1
      %p123 = por %p121, %p122
      %p124 = scmp.ne.s32.totalorder %s115, %s116
      %p125 = scmp.eq.s32.totalorder %s21, 0
      %p126 = por %p124, %p125
      %p127 = scmp.ne.s32.totalorder %s115, %s116
      %p128 = scmp.eq.s32.totalorder %s22, 1
      %p129 = por %p127, %p128
      %p131 = scmp.ne.s32.totalorder %s116, %s130
      %p132 = scmp.eq.s32.totalorder %s22, 0
      %p133 = por %p131, %p132
      %s135 = sadd.s32 %s134, 1
      %p138 = scmp.eq.s32.totalorder %s16, 1
      %p139 = scmp.ne.s32.totalorder %s134, %s136
      %p140 = scmp.eq.s32.totalorder %s16, 0
      %p141 = por %p139, %p140
      %p142 = scmp.ne.s32.totalorder %s134, %s136
      %p143 = scmp.eq.s32.totalorder %s21, 1
      %p144 = por %p142, %p143
      %p145 = scmp.ne.s32.totalorder %s136, %s137
      %p146 = scmp.eq.s32.totalorder %s21, 0
      %p147 = por %p145, %p146
      %p148 = scmp.ne.s32.totalorder %s136, %s137
      %p149 = scmp.eq.s32.totalorder %s22, 1
      %p150 = por %p148, %p149
      %p152 = scmp.ne.s32.totalorder %s137, %s151
      %p153 = scmp.eq.s32.totalorder %s22, 0
      %p154 = por %p152, %p153
      %s156 = sadd.s32 %s155, 1
      %p159 = scmp.eq.s32.totalorder %s16, 1
      %p160 = scmp.ne.s32.totalorder %s155, %s157
      %p161 = scmp.eq.s32.totalorder %s16, 0
      %p162 = por %p160, %p161
      %p163 = scmp.ne.s32.totalorder %s155, %s157
      %p164 = scmp.eq.s32.totalorder %s21, 1
      %p165 = por %p163, %p164
      %p166 = scmp.ne.s32.totalorder %s157, %s158
      %p167 = scmp.eq.s32.totalorder %s21, 0
      %p168 = por %p166, %p167
      %p169 = scmp.ne.s32.totalorder %s157, %s158
      %p170 = scmp.eq.s32.totalorder %s22, 1
      %p171 = por %p169, %p170
      %p173 = scmp.ne.s32.totalorder %s158, %s172
      %p174 = scmp.eq.s32.totalorder %s22, 0
      %p175 = por %p173, %p174
      %s176 = ssub.s32 %s16, %s23
      %p177 = scmp.eq.s32.totalorder %s176, 0
      %s179 = sadd.s32 %s178, 1
      %s180 = scalar_select %p177, %s178, %s179
      %p183 = pneg %p177
      %p184 = scmp.eq.s32.totalorder %s16, 1
      %p185 = por %p183, %p184
      %p186 = scmp.ne.s32.totalorder %s178, %s181
      %p187 = scmp.eq.s32.totalorder %s16, 0
      %p188 = por %p186, %p187
      %p189 = scmp.ne.s32.totalorder %s178, %s181
      %p190 = scmp.eq.s32.totalorder %s21, 1
      %p191 = por %p189, %p190
      %p192 = scmp.ne.s32.totalorder %s181, %s182
      %p193 = scmp.eq.s32.totalorder %s21, 0
      %p194 = por %p192, %p193
      %p195 = scmp.ne.s32.totalorder %s181, %s182
      %p196 = scmp.eq.s32.totalorder %s22, 1
      %p197 = por %p195, %p196
      %p199 = scmp.ne.s32.totalorder %s182, %s198
      %p200 = scmp.eq.s32.totalorder %s22, 0
      %p201 = por %p199, %p200
      %p202 = scmp.le.s32.totalorder 1, %s16
      %p203 = scmp.lt.s32.totalorder %s16, 3
      %p204 = pnand %p202, %p203
      %p205 = pneg %p204
      // Predicated region
      $region9: #{conv_net_forward.4} parent=5 // pred_check
        _
      $region10: #{conv_net_forward.4} parent=5 // pred_check_branch
        %207 = sbr.rel (%p204) target = $region12
      $region11: #{conv_net_forward.4} parent=5 // pred_region
        %s208 = ssub.s32 %s16, 1
        // Predicated region
        $region13: #{conv_net_forward.4} parent=11 // pred_check
          %p209 = pneg %p63
        $region14: #{conv_net_forward.4} parent=11 // pred_check_branch
          %211 = sbr.rel (%p209) target = $region16
        $region15: #{conv_net_forward.4} parent=11 // pred_region
          %213 = vsyncadd [#allocation4], 0
          %s214 = sshll.u32 %s1, 4
          %s215 = int_to_ptr.hbm [resolvable:$true] %s214
          %s216 = sshll.u32 [#allocation3], 4
          %s217 = int_to_ptr.vmem [resolvable:$true] %s216
          %222 = dma.hbm_to_vmem [thread:$0]  %s215, 288, %s217, [#allocation4], 32, 32, 2
        $region16: #{conv_net_forward.4} parent=11 // pred_fallthru
          _
        // Predicated region
        $region17: #{conv_net_forward.4} parent=11 // pred_check
          %p223 = pneg %p84
        $region18: #{conv_net_forward.4} parent=11 // pred_check_branch
          %225 = sbr.rel (%p223) target = $region20
        $region19: #{conv_net_forward.4} parent=11 // pred_region
          _
        $region20: #{conv_net_forward.4} parent=11 // pred_fallthru
          _
        // Predicated region
        $region21: #{conv_net_forward.4} parent=11 // pred_check
          %p226 = pneg %p105
        $region22: #{conv_net_forward.4} parent=11 // pred_check_branch
          %228 = sbr.rel (%p226) target = $region24
        $region23: #{conv_net_forward.4} parent=11 // pred_region
          _
        $region24: #{conv_net_forward.4} parent=11 // pred_fallthru
          _
        // Predicated region
        $region25: #{conv_net_forward.4} parent=11 // pred_check
          %p229 = pneg %p126
        $region26: #{conv_net_forward.4} parent=11 // pred_check_branch
          %231 = sbr.rel (%p229) target = $region28
        $region27: #{conv_net_forward.4} parent=11 // pred_region
          %233 = vsyncadd [#allocation6], 0
          %s235 = sshll.u32 %s4, 4
          %s236 = int_to_ptr.hbm [resolvable:$true] %s235
          %s237 = sshll.u32 [#allocation5], 4
          %s238 = int_to_ptr.vmem [resolvable:$true] %s237
          %240 = dma.hbm_to_vmem [thread:$0]  %s236, 16, %s238, [#allocation6]
        $region28: #{conv_net_forward.4} parent=11 // pred_fallthru
          _
        // Predicated region
        $region29: #{conv_net_forward.4} parent=11 // pred_check
          %p241 = pneg %p147
        $region30: #{conv_net_forward.4} parent=11 // pred_check_branch
          %243 = sbr.rel (%p241) target = $region32
        $region31: #{conv_net_forward.4} parent=11 // pred_region
          %245 = vsyncadd [#allocation6], 0
          %s246 = sshll.u32 %s5, 4
          %s247 = int_to_ptr.hbm [resolvable:$true] %s246
          %s248 = sshll.u32 [#allocation7], 4
          %s249 = int_to_ptr.vmem [resolvable:$true] %s248
          %254 = dma.hbm_to_vmem [thread:$0]  %s247, 4608, %s249, [#allocation6], 128, 128, 8
        $region32: #{conv_net_forward.4} parent=11 // pred_fallthru
          _
        // Predicated region
        $region33: #{conv_net_forward.4} parent=11 // pred_check
          %p255 = pneg %p168
        $region34: #{conv_net_forward.4} parent=11 // pred_check_branch
          %257 = sbr.rel (%p255) target = $region36
        $region35: #{conv_net_forward.4} parent=11 // pred_region
          %259 = vsyncadd [#allocation9], 0
          %s260 = sshll.u32 %s6, 4
          %s261 = int_to_ptr.hbm [resolvable:$true] %s260
          %s262 = sshll.u32 [#allocation8], 4
          %s263 = int_to_ptr.vmem [resolvable:$true] %s262
          %268 = dma.hbm_to_vmem [thread:$0]  %s261, 1536, %s263, [#allocation9], 192, 192, 12
        $region36: #{conv_net_forward.4} parent=11 // pred_fallthru
          _
      $region12: #{conv_net_forward.4} parent=5 // pred_fallthru
        _
      %p269 = scmp.lt.s32.totalorder %s16, 2
      // Predicated region
      $region37: #{conv_net_forward.4} parent=5 // pred_check
        %p270 = pneg %p269
      $region38: #{conv_net_forward.4} parent=5 // pred_check_branch
        %272 = sbr.rel (%p270) target = $region40
      $region39: #{conv_net_forward.4} parent=5 // pred_region
        // Predicated region
        $region41: #{conv_net_forward.4} parent=39 // pred_check
          %p273 = pneg %p36
        $region42: #{conv_net_forward.4} parent=39 // pred_check_branch
          %275 = sbr.rel (%p273) target = $region44
        $region43: #{conv_net_forward.4} parent=39 // pred_region
          %p276 = scmp.lt.s32.totalorder %s16, 1
          %s277 = scalar_select %p276, %s16, 1
          %s278 = smul.addr %s277, 43
          %s279 = smul.addr %s278, 4
          %s280 = scalar_lea.vmem %s0, %s279
        $region44: #{conv_net_forward.4} parent=39 // pred_fallthru
          _
      $region40: #{conv_net_forward.4} parent=5 // pred_fallthru
        _
      %p281 = scmp.le.s32.totalorder 1, %s16
      %p282 = scmp.lt.s32.totalorder %s16, 3
      %p283 = pnand %p281, %p282
      %p284 = pneg %p283
      // Predicated region
      $region45: #{conv_net_forward.4} parent=5 // pred_check
        _
      $region46: #{conv_net_forward.4} parent=5 // pred_check_branch
        %286 = sbr.rel (%p283) target = $region48
      $region47: #{conv_net_forward.4} parent=5 // pred_region
        %s287 = ssub.s32 %s16, 1
        // Predicated region
        $region49: #{conv_net_forward.4} parent=47 // pred_check
          %p288 = pneg %p63
        $region50: #{conv_net_forward.4} parent=47 // pred_check_branch
          %290 = sbr.rel (%p288) target = $region52
        $region51: #{conv_net_forward.4} parent=47 // pred_region
          %292 = dma.done [#allocation4], 288
        $region52: #{conv_net_forward.4} parent=47 // pred_fallthru
          _
        // Predicated region
        $region53: #{conv_net_forward.4} parent=47 // pred_check
          %p293 = pneg %p126
        $region54: #{conv_net_forward.4} parent=47 // pred_check_branch
          %295 = sbr.rel (%p293) target = $region56
        $region55: #{conv_net_forward.4} parent=47 // pred_region
          %297 = dma.done [#allocation6], 16
        $region56: #{conv_net_forward.4} parent=47 // pred_fallthru
          _
        // Predicated region
        $region57: #{conv_net_forward.4} parent=47 // pred_check
          %p298 = pneg %p147
        $region58: #{conv_net_forward.4} parent=47 // pred_check_branch
          %300 = sbr.rel (%p298) target = $region60
        $region59: #{conv_net_forward.4} parent=47 // pred_region
          %302 = dma.done [#allocation6], 4608
        $region60: #{conv_net_forward.4} parent=47 // pred_fallthru
          _
        // Predicated region
        $region61: #{conv_net_forward.4} parent=47 // pred_check
          %p303 = pneg %p168
        $region62: #{conv_net_forward.4} parent=47 // pred_check_branch
          %305 = sbr.rel (%p303) target = $region64
        $region63: #{conv_net_forward.4} parent=47 // pred_region
          %307 = dma.done [#allocation9], 1536
        $region64: #{conv_net_forward.4} parent=47 // pred_fallthru
          _
        %p308 = scmp.lt.s32.totalorder %s21, 1
        %s309 = scalar_select %p308, %s21, 1
        %s310 = smul.addr %s309, 43
        %s311 = smul.addr %s310, 4
        %s312 = scalar_lea.vmem %s0, %s311
        %p313 = pneg %p42
        %p314 = pneg %p39
        %p315 = pneg %p63
        %p316 = pneg %p60
        %p317 = pneg %p84
        %p318 = pneg %p81
        %p319 = pneg %p105
        %p320 = pneg %p102
        %p321 = pneg %p126
        %p322 = pneg %p123
        %p323 = pneg %p147
        %p324 = pneg %p144
        %p325 = pneg %p168
        %p326 = pneg %p165
        %p327 = pneg %p194
        %p328 = pneg %p191
        %p329 = scmp.lt.s32.totalorder %s21, 1
        %s330 = scalar_select %p329, %s21, 1
        %s331 = smul.addr %s330, 8
        %s332 = smul.addr %s331, 4
        %s333 = scalar_lea.vmem %s7, %s332
        %p334 = scmp.lt.s32.totalorder %s21, 1
        %s335 = scalar_select %p334, %s21, 1
        %s336 = smul.addr %s335, 43
        %s337 = smul.addr %s336, 4
        %s338 = scalar_lea.vmem %s0, %s337
        %p339 = scmp.lt.s32.totalorder %s21, 1
        %s340 = scalar_select %p339, %s21, 1
        %s341 = smul.addr %s340, 8
        %s342 = smul.addr %s341, 4
        %s343 = scalar_lea.vmem %s7, %s342
        %v345 = vld [vmem:[%s338] sm:$0xf]
        %v346 = vld [vmem:[%s338 + $0x4] sm:$0xf]
        %v347 = vld [vmem:[%s338 + $0x8] sm:$0xf]
        %v348 = vld [vmem:[%s338 + $0xc] sm:$0xf]
        %v349 = vld [vmem:[%s338 + $0x10] sm:$0xf]
        %v350 = vld [vmem:[%s338 + $0x14] sm:$0xf]
        %v351 = vld [vmem:[%s338 + $0x18] sm:$0xf]
        %v352 = vld [vmem:[%s338 + $0x1c] sm:$0xf]
        %v353 = vld [vmem:[%s338 + $0x20] sm:$0xf]
        %v354 = vld [vmem:[%s338 + $0x24] sm:$0xf]
        %v355 = vld [vmem:[%s338 + $0x28] sm:$0xf]
        %v356 = vld [vmem:[%s338 + $0x2c] sm:$0xf]
        %v357 = vld [vmem:[%s338 + $0x30] sm:$0xf]
        %v358 = vld [vmem:[%s338 + $0x34] sm:$0xf]
        %v359 = vld [vmem:[%s338 + $0x38] sm:$0xf]
        %v360 = vld [vmem:[%s338 + $0x3c] sm:$0xf]
        %v361 = vld [vmem:[%s338 + $0x40] sm:$0xf]
        %v362 = vld [vmem:[%s338 + $0x44] sm:$0xf]
        %v363 = vld [vmem:[%s338 + $0x48] sm:$0xf]
        %v364 = vld [vmem:[%s338 + $0x4c] sm:$0xf]
        %v365 = vld [vmem:[%s338 + $0x50] sm:$0xf]
        %v366 = vld [vmem:[%s338 + $0x54] sm:$0xf]
        %v367 = vld [vmem:[%s338 + $0x58] sm:$0xf]
        %v368 = vld [vmem:[%s338 + $0x5c] sm:$0xf]
        %v369 = vld [vmem:[%s338 + $0x60] sm:$0xf]
        %v370 = vld [vmem:[%s338 + $0x64] sm:$0xf]
        %v371 = vld [vmem:[%s338 + $0x68] sm:$0xf]
        %v372 = vld [vmem:[%s338 + $0x6c] sm:$0xf]
        %v373 = vld [vmem:[%s338 + $0x70] sm:$0xf]
        %v374 = vld [vmem:[%s338 + $0x74] sm:$0xf]
        %v375 = vld [vmem:[%s338 + $0x78] sm:$0xf]
        %v376 = vld [vmem:[%s338 + $0x7c] sm:$0xf]
        %v377 = vld [vmem:[%s338 + $0x80] sm:$0xf]
        %v378 = vld [vmem:[%s338 + $0x84] sm:$0xf]
        %v379 = vld [vmem:[%s338 + $0x88] sm:$0xf]
        %v380 = vld [vmem:[%s338 + $0x8c] sm:$0xf]
        %v381 = vld [vmem:[%s338 + $0x90] sm:$0xf]
        %v382 = vld [vmem:[%s338 + $0x94] sm:$0xf]
        %v383 = vld [vmem:[%s338 + $0x98] sm:$0xf]
        %v384 = vld [vmem:[%s338 + $0x9c] sm:$0xf]
        %v385 = vld [vmem:[%s338 + $0xa0] sm:$0xf]
        %v386 = vunpack.c.l.bf16 %v345
        %v387 = vunpack.c.l.bf16 %v346
        %v388 = vunpack.c.l.bf16 %v347
        %v389 = vunpack.c.l.bf16 %v348
        %v390 = vunpack.c.l.bf16 %v349
        %v391 = vunpack.c.l.bf16 %v350
        %v392 = vunpack.c.l.bf16 %v351
        %v393 = vunpack.c.l.bf16 %v352
        %v394 = vunpack.c.l.bf16 %v353
        %v395 = vunpack.c.l.bf16 %v354
        %v396 = vunpack.c.l.bf16 %v355
        %v397 = vunpack.c.l.bf16 %v356
        %v398 = vunpack.c.l.bf16 %v357
        %v399 = vunpack.c.l.bf16 %v358
        %v400 = vunpack.c.l.bf16 %v359
        %v401 = vunpack.c.l.bf16 %v360
        %v402 = vunpack.c.l.bf16 %v361
        %v403 = vunpack.c.l.bf16 %v362
        %v404 = vunpack.c.l.bf16 %v363
        %v405 = vunpack.c.l.bf16 %v364
        %v406 = vunpack.c.l.bf16 %v365
        %v407 = vunpack.c.l.bf16 %v366
        %v408 = vunpack.c.l.bf16 %v367
        %v409 = vunpack.c.l.bf16 %v368
        %v410 = vunpack.c.l.bf16 %v369
        %v411 = vunpack.c.l.bf16 %v370
        %v412 = vunpack.c.l.bf16 %v371
        %v413 = vunpack.c.l.bf16 %v372
        %v414 = vunpack.c.l.bf16 %v373
        %v415 = vunpack.c.l.bf16 %v374
        %v416 = vunpack.c.l.bf16 %v375
        %v417 = vunpack.c.l.bf16 %v376
        %v418 = vunpack.c.l.bf16 %v377
        %v419 = vunpack.c.l.bf16 %v378
        %v420 = vunpack.c.l.bf16 %v379
        %v421 = vunpack.c.l.bf16 %v380
        %v422 = vunpack.c.l.bf16 %v381
        %v423 = vunpack.c.l.bf16 %v382
        %v424 = vunpack.c.l.bf16 %v383
        %v425 = vunpack.c.l.bf16 %v384
        %v426 = vunpack.c.l.bf16 %v385
        %v427 = vpack.c.bf16 %v387, %v386
        %v428 = vpack.c.bf16 %v389, %v388
        %v429 = vpack.c.bf16 %v391, %v390
        %v430 = vpack.c.bf16 %v393, %v392
        %v431 = vpack.c.bf16 %v395, %v394
        %v432 = vpack.c.bf16 %v397, %v396
        %v433 = vpack.c.bf16 %v399, %v398
        %v434 = vpack.c.bf16 %v401, %v400
        %v435 = vpack.c.bf16 %v403, %v402
        %v436 = vpack.c.bf16 %v405, %v404
        %v437 = vpack.c.bf16 %v407, %v406
        %v438 = vpack.c.bf16 %v409, %v408
        %v439 = vpack.c.bf16 %v411, %v410
        %v440 = vpack.c.bf16 %v413, %v412
        %v441 = vpack.c.bf16 %v415, %v414
        %v442 = vpack.c.bf16 %v417, %v416
        %v443 = vpack.c.bf16 %v419, %v418
        %v444 = vpack.c.bf16 %v421, %v420
        %v445 = vld [vmem:[#allocation3] sm:$0x3]
        %v446 = vpack.c.bf16 %v422, %v422
        %s447 = scalar_lea.vmem [#allocation3], 2
        %v448 = vld [vmem:[%s447] sm:$0x3]
        %vm449 = vsmask.f32 7424
        %v451 = vshrl.u32 %v427, 16
        %v453 = vshll.u32 %v427, 16
        %v455 = vrot.slane %v453, 1
        %v456 = vor.u32 %v451, %v455
        %v458 = vshll.u32 %v428, 16
        %v460 = vrot.slane %v458, 1
        %v461 = vsel %vm449, %v456, %v460
        %v462 = vshrl.u32 %v428, 16
        %v464 = vor.u32 %v462, %v460
        %v466 = vshll.u32 %v429, 16
        %v468 = vrot.slane %v466, 1
        %v469 = vsel %vm449, %v464, %v468
        %v470 = vshrl.u32 %v429, 16
        %v472 = vor.u32 %v470, %v468
        %v474 = vshll.u32 %v430, 16
        %v476 = vrot.slane %v474, 1
        %v477 = vsel %vm449, %v472, %v476
        %v478 = vshrl.u32 %v430, 16
        %v480 = vor.u32 %v478, %v476
        %v482 = vshll.u32 %v431, 16
        %v484 = vrot.slane %v482, 1
        %v485 = vsel %vm449, %v480, %v484
        %v486 = vshrl.u32 %v431, 16
        %v488 = vor.u32 %v486, %v484
        %v490 = vshll.u32 %v432, 16
        %v492 = vrot.slane %v490, 1
        %v493 = vsel %vm449, %v488, %v492
        %v494 = vshrl.u32 %v432, 16
        %v496 = vor.u32 %v494, %v492
        %v498 = vshll.u32 %v433, 16
        %v500 = vrot.slane %v498, 1
        %v501 = vsel %vm449, %v496, %v500
        %v502 = vshrl.u32 %v433, 16
        %v504 = vor.u32 %v502, %v500
        %v506 = vshll.u32 %v434, 16
        %v508 = vrot.slane %v506, 1
        %v509 = vsel %vm449, %v504, %v508
        %v510 = vshrl.u32 %v434, 16
        %v512 = vor.u32 %v510, %v508
        %v514 = vshll.u32 %v435, 16
        %v516 = vrot.slane %v514, 1
        %v517 = vsel %vm449, %v512, %v516
        %v518 = vshrl.u32 %v435, 16
        %v520 = vor.u32 %v518, %v516
        %v522 = vshll.u32 %v436, 16
        %v524 = vrot.slane %v522, 1
        %v525 = vsel %vm449, %v520, %v524
        %v526 = vshrl.u32 %v436, 16
        %v528 = vor.u32 %v526, %v524
        %v530 = vshll.u32 %v437, 16
        %v532 = vrot.slane %v530, 1
        %v533 = vsel %vm449, %v528, %v532
        %v534 = vshrl.u32 %v437, 16
        %v536 = vor.u32 %v534, %v532
        %v538 = vshll.u32 %v438, 16
        %v540 = vrot.slane %v538, 1
        %v541 = vsel %vm449, %v536, %v540
        %v542 = vshrl.u32 %v438, 16
        %v544 = vor.u32 %v542, %v540
        %v546 = vshll.u32 %v439, 16
        %v548 = vrot.slane %v546, 1
        %v549 = vsel %vm449, %v544, %v548
        %v550 = vshrl.u32 %v439, 16
        %v552 = vor.u32 %v550, %v548
        %v554 = vshll.u32 %v440, 16
        %v556 = vrot.slane %v554, 1
        %v557 = vsel %vm449, %v552, %v556
        %v558 = vshrl.u32 %v440, 16
        %v560 = vor.u32 %v558, %v556
        %v562 = vshll.u32 %v441, 16
        %v564 = vrot.slane %v562, 1
        %v565 = vsel %vm449, %v560, %v564
        %v566 = vshrl.u32 %v441, 16
        %v568 = vor.u32 %v566, %v564
        %v570 = vshll.u32 %v442, 16
        %v572 = vrot.slane %v570, 1
        %v573 = vsel %vm449, %v568, %v572
        %v574 = vshrl.u32 %v442, 16
        %v576 = vor.u32 %v574, %v572
        %v578 = vshll.u32 %v443, 16
        %v580 = vrot.slane %v578, 1
        %v581 = vsel %vm449, %v576, %v580
        %v582 = vshrl.u32 %v443, 16
        %v584 = vor.u32 %v582, %v580
        %v586 = vshll.u32 %v444, 16
        %v588 = vrot.slane %v586, 1
        %v589 = vsel %vm449, %v584, %v588
        %v590 = vshrl.u32 %v444, 16
        %v592 = vor.u32 %v590, %v588
        %v594 = vshll.u32 %v446, 16
        %v596 = vrot.slane %v594, 1
        %v597 = vsel %vm449, %v592, %v596
        %vm598 = vcmask 31744
        %v600 = vsel %vm598, %v461, 0
        %v603 = vsel %vm598, %v469, 0
        %v606 = vsel %vm598, %v477, 0
        %v609 = vsel %vm598, %v485, 0
        %v612 = vsel %vm598, %v493, 0
        %v615 = vsel %vm598, %v501, 0
        %v618 = vsel %vm598, %v509, 0
        %v621 = vsel %vm598, %v517, 0
        %v624 = vsel %vm598, %v525, 0
        %v627 = vsel %vm598, %v533, 0
        %v630 = vsel %vm598, %v541, 0
        %v633 = vsel %vm598, %v549, 0
        %v636 = vsel %vm598, %v557, 0
        %v639 = vsel %vm598, %v565, 0
        %v642 = vsel %vm598, %v573, 0
        %v645 = vsel %vm598, %v581, 0
        %v648 = vsel %vm598, %v589, 0
        %v651 = vsel %vm598, %v597, 0
        %vm653 = vcmask 1041408
        %v655 = vsel %vm653, %v448, 0
        %657 = vmatpush.bf16.msra.mxu0 0
        %658 = vmatpush.bf16.msra.mxu0 0
        %659 = vmatpush.bf16.msra.mxu0 0
        %660 = vmatpush.bf16.msra.mxu0 0
        %661 = vmatpush.bf16.msra.mxu0 0
        %662 = vmatpush.bf16.msra.mxu0 0
        %663 = vmatpush.bf16.msra.mxu0 0
        %664 = vmatpush.bf16.msra.mxu0 %v655
        %665 = vmatmul.bf16.gmra.mxu0 %v600
        %v666 = vpop.f32.mrf.mxu0
        %v667 = vadd.f32 0.0, %v666
        %v668 = vpop.f32.mrf.mxu0
        %v669 = vadd.f32 0.0, %v668
        %670 = vmatmul.bf16.gmra.mxu0 %v603
        %v671 = vpop.f32.mrf.mxu0
        %v672 = vadd.f32 0.0, %v671
        %v673 = vpop.f32.mrf.mxu0
        %v674 = vadd.f32 0.0, %v673
        %675 = vmatmul.bf16.gmra.mxu0 %v606
        %v676 = vpop.f32.mrf.mxu0
        %v677 = vadd.f32 0.0, %v676
        %v678 = vpop.f32.mrf.mxu0
        %v679 = vadd.f32 0.0, %v678
        %680 = vmatmul.bf16.gmra.mxu0 %v609
        %v681 = vpop.f32.mrf.mxu0
        %v682 = vadd.f32 0.0, %v681
        %v683 = vpop.f32.mrf.mxu0
        %v684 = vadd.f32 0.0, %v683
        %685 = vmatmul.bf16.gmra.mxu0 %v612
        %v686 = vpop.f32.mrf.mxu0
        %v687 = vadd.f32 0.0, %v686
        %v688 = vpop.f32.mrf.mxu0
        %v689 = vadd.f32 0.0, %v688
        %690 = vmatmul.bf16.gmra.mxu0 %v615
        %v691 = vpop.f32.mrf.mxu0
        %v692 = vadd.f32 0.0, %v691
        %v693 = vpop.f32.mrf.mxu0
        %v694 = vadd.f32 0.0, %v693
        %695 = vmatmul.bf16.gmra.mxu0 %v618
        %v696 = vpop.f32.mrf.mxu0
        %v697 = vadd.f32 0.0, %v696
        %v698 = vpop.f32.mrf.mxu0
        %v699 = vadd.f32 0.0, %v698
        %700 = vmatmul.bf16.gmra.mxu0 %v621
        %v701 = vpop.f32.mrf.mxu0
        %v702 = vadd.f32 0.0, %v701
        %v703 = vpop.f32.mrf.mxu0
        %v704 = vadd.f32 0.0, %v703
        %705 = vmatmul.bf16.gmra.mxu0 %v624
        %v706 = vpop.f32.mrf.mxu0
        %v707 = vadd.f32 0.0, %v706
        %v708 = vpop.f32.mrf.mxu0
        %v709 = vadd.f32 0.0, %v708
        %710 = vmatmul.bf16.gmra.mxu0 %v627
        %v711 = vpop.f32.mrf.mxu0
        %v712 = vadd.f32 0.0, %v711
        %v713 = vpop.f32.mrf.mxu0
        %v714 = vadd.f32 0.0, %v713
        %715 = vmatmul.bf16.gmra.mxu0 %v630
        %v716 = vpop.f32.mrf.mxu0
        %v717 = vadd.f32 0.0, %v716
        %v718 = vpop.f32.mrf.mxu0
        %v719 = vadd.f32 0.0, %v718
        %720 = vmatmul.bf16.gmra.mxu0 %v633
        %v721 = vpop.f32.mrf.mxu0
        %v722 = vadd.f32 0.0, %v721
        %v723 = vpop.f32.mrf.mxu0
        %v724 = vadd.f32 0.0, %v723
        %725 = vmatmul.bf16.gmra.mxu0 %v636
        %v726 = vpop.f32.mrf.mxu0
        %v727 = vadd.f32 0.0, %v726
        %v728 = vpop.f32.mrf.mxu0
        %v729 = vadd.f32 0.0, %v728
        %730 = vmatmul.bf16.gmra.mxu0 %v639
        %v731 = vpop.f32.mrf.mxu0
        %v732 = vadd.f32 0.0, %v731
        %v733 = vpop.f32.mrf.mxu0
        %v734 = vadd.f32 0.0, %v733
        %735 = vmatmul.bf16.gmra.mxu0 %v642
        %v736 = vpop.f32.mrf.mxu0
        %v737 = vadd.f32 0.0, %v736
        %v738 = vpop.f32.mrf.mxu0
        %v739 = vadd.f32 0.0, %v738
        %740 = vmatmul.bf16.gmra.mxu0 %v645
        %v741 = vpop.f32.mrf.mxu0
        %v742 = vadd.f32 0.0, %v741
        %v743 = vpop.f32.mrf.mxu0
        %v744 = vadd.f32 0.0, %v743
        %745 = vmatmul.bf16.gmra.mxu0 %v648
        %v746 = vpop.f32.mrf.mxu0
        %v747 = vadd.f32 0.0, %v746
        %v748 = vpop.f32.mrf.mxu0
        %v749 = vadd.f32 0.0, %v748
        %750 = vmatmul.bf16.gmra.mxu0 %v651
        %v751 = vpop.f32.mrf.mxu0
        %v752 = vadd.f32 0.0, %v751
        %v753 = vpop.f32.mrf.mxu0
        %v754 = vadd.f32 0.0, %v753
        %755 = vdwg.mxu0
        %v756 = vsel %vm598, %v427, 0
        %v758 = vsel %vm598, %v428, 0
        %v760 = vsel %vm598, %v429, 0
        %v762 = vsel %vm598, %v430, 0
        %v764 = vsel %vm598, %v431, 0
        %v766 = vsel %vm598, %v432, 0
        %v768 = vsel %vm598, %v433, 0
        %v770 = vsel %vm598, %v434, 0
        %v772 = vsel %vm598, %v435, 0
        %v774 = vsel %vm598, %v436, 0
        %v776 = vsel %vm598, %v437, 0
        %v778 = vsel %vm598, %v438, 0
        %v780 = vsel %vm598, %v439, 0
        %v782 = vsel %vm598, %v440, 0
        %v784 = vsel %vm598, %v441, 0
        %v786 = vsel %vm598, %v442, 0
        %v788 = vsel %vm598, %v443, 0
        %v790 = vsel %vm598, %v444, 0
        %v793 = vsel %vm653, %v445, 0
        %795 = vmatpush.bf16.msra.mxu0 0
        %796 = vmatpush.bf16.msra.mxu0 0
        %797 = vmatpush.bf16.msra.mxu0 0
        %798 = vmatpush.bf16.msra.mxu0 0
        %799 = vmatpush.bf16.msra.mxu0 0
        %800 = vmatpush.bf16.msra.mxu0 0
        %801 = vmatpush.bf16.msra.mxu0 0
        %802 = vmatpush.bf16.msra.mxu0 %v793
        %803 = vmatmul.bf16.gmra.mxu0 %v756
        %v804 = vpop.f32.mrf.mxu0
        %v805 = vadd.f32 %v667, %v804
        %v806 = vpop.f32.mrf.mxu0
        %v807 = vadd.f32 %v669, %v806
        %808 = vmatmul.bf16.gmra.mxu0 %v758
        %v809 = vpop.f32.mrf.mxu0
        %v810 = vadd.f32 %v672, %v809
        %v811 = vpop.f32.mrf.mxu0
        %v812 = vadd.f32 %v674, %v811
        %813 = vmatmul.bf16.gmra.mxu0 %v760
        %v814 = vpop.f32.mrf.mxu0
        %v815 = vadd.f32 %v677, %v814
        %v816 = vpop.f32.mrf.mxu0
        %v817 = vadd.f32 %v679, %v816
        %818 = vmatmul.bf16.gmra.mxu0 %v762
        %v819 = vpop.f32.mrf.mxu0
        %v820 = vadd.f32 %v682, %v819
        %v821 = vpop.f32.mrf.mxu0
        %v822 = vadd.f32 %v684, %v821
        %823 = vmatmul.bf16.gmra.mxu0 %v764
        %v824 = vpop.f32.mrf.mxu0
        %v825 = vadd.f32 %v687, %v824
        %v826 = vpop.f32.mrf.mxu0
        %v827 = vadd.f32 %v689, %v826
        %828 = vmatmul.bf16.gmra.mxu0 %v766
        %v829 = vpop.f32.mrf.mxu0
        %v830 = vadd.f32 %v692, %v829
        %v831 = vpop.f32.mrf.mxu0
        %v832 = vadd.f32 %v694, %v831
        %833 = vmatmul.bf16.gmra.mxu0 %v768
        %v834 = vpop.f32.mrf.mxu0
        %v835 = vadd.f32 %v697, %v834
        %v836 = vpop.f32.mrf.mxu0
        %v837 = vadd.f32 %v699, %v836
        %838 = vmatmul.bf16.gmra.mxu0 %v770
        %v839 = vpop.f32.mrf.mxu0
        %v840 = vadd.f32 %v702, %v839
        %v841 = vpop.f32.mrf.mxu0
        %v842 = vadd.f32 %v704, %v841
        %843 = vmatmul.bf16.gmra.mxu0 %v772
        %v844 = vpop.f32.mrf.mxu0
        %v845 = vadd.f32 %v707, %v844
        %v846 = vpop.f32.mrf.mxu0
        %v847 = vadd.f32 %v709, %v846
        %848 = vmatmul.bf16.gmra.mxu0 %v774
        %v849 = vpop.f32.mrf.mxu0
        %v850 = vadd.f32 %v712, %v849
        %v851 = vpop.f32.mrf.mxu0
        %v852 = vadd.f32 %v714, %v851
        %853 = vmatmul.bf16.gmra.mxu0 %v776
        %v854 = vpop.f32.mrf.mxu0
        %v855 = vadd.f32 %v717, %v854
        %v856 = vpop.f32.mrf.mxu0
        %v857 = vadd.f32 %v719, %v856
        %858 = vmatmul.bf16.gmra.mxu0 %v778
        %v859 = vpop.f32.mrf.mxu0
        %v860 = vadd.f32 %v722, %v859
        %v861 = vpop.f32.mrf.mxu0
        %v862 = vadd.f32 %v724, %v861
        %863 = vmatmul.bf16.gmra.mxu0 %v780
        %v864 = vpop.f32.mrf.mxu0
        %v865 = vadd.f32 %v727, %v864
        %v866 = vpop.f32.mrf.mxu0
        %v867 = vadd.f32 %v729, %v866
        %868 = vmatmul.bf16.gmra.mxu0 %v782
        %v869 = vpop.f32.mrf.mxu0
        %v870 = vadd.f32 %v732, %v869
        %v871 = vpop.f32.mrf.mxu0
        %v872 = vadd.f32 %v734, %v871
        %873 = vmatmul.bf16.gmra.mxu0 %v784
        %v874 = vpop.f32.mrf.mxu0
        %v875 = vadd.f32 %v737, %v874
        %v876 = vpop.f32.mrf.mxu0
        %v877 = vadd.f32 %v739, %v876
        %878 = vmatmul.bf16.gmra.mxu0 %v786
        %v879 = vpop.f32.mrf.mxu0
        %v880 = vadd.f32 %v742, %v879
        %v881 = vpop.f32.mrf.mxu0
        %v882 = vadd.f32 %v744, %v881
        %883 = vmatmul.bf16.gmra.mxu0 %v788
        %v884 = vpop.f32.mrf.mxu0
        %v885 = vadd.f32 %v747, %v884
        %v886 = vpop.f32.mrf.mxu0
        %v887 = vadd.f32 %v749, %v886
        %888 = vmatmul.bf16.gmra.mxu0 %v790
        %v889 = vpop.f32.mrf.mxu0
        %v890 = vadd.f32 %v752, %v889
        %v891 = vpop.f32.mrf.mxu0
        %v892 = vadd.f32 %v754, %v891
        %893 = vdwg.mxu0
        %s894 = scalar_lea.vmem [#allocation3], 4
        %v895 = vld [vmem:[%s894] sm:$0x3]
        %vm915 = vcmask 1046528
        %v916 = vrot.slane %v427, 1
        %v917 = vrot.slane %v428, 1
        %v918 = vsel %vm915, %v916, %v917
        %v919 = vrot.slane %v429, 1
        %v920 = vsel %vm915, %v917, %v919
        %v921 = vrot.slane %v430, 1
        %v922 = vsel %vm915, %v919, %v921
        %v923 = vrot.slane %v431, 1
        %v924 = vsel %vm915, %v921, %v923
        %v925 = vrot.slane %v432, 1
        %v926 = vsel %vm915, %v923, %v925
        %v927 = vrot.slane %v433, 1
        %v928 = vsel %vm915, %v925, %v927
        %v929 = vrot.slane %v434, 1
        %v930 = vsel %vm915, %v927, %v929
        %v931 = vrot.slane %v435, 1
        %v932 = vsel %vm915, %v929, %v931
        %v933 = vrot.slane %v436, 1
        %v934 = vsel %vm915, %v931, %v933
        %v935 = vrot.slane %v437, 1
        %v936 = vsel %vm915, %v933, %v935
        %v937 = vrot.slane %v438, 1
        %v938 = vsel %vm915, %v935, %v937
        %v939 = vrot.slane %v439, 1
        %v940 = vsel %vm915, %v937, %v939
        %v941 = vrot.slane %v440, 1
        %v942 = vsel %vm915, %v939, %v941
        %v943 = vrot.slane %v441, 1
        %v944 = vsel %vm915, %v941, %v943
        %v945 = vrot.slane %v442, 1
        %v946 = vsel %vm915, %v943, %v945
        %v947 = vrot.slane %v443, 1
        %v948 = vsel %vm915, %v945, %v947
        %v949 = vrot.slane %v444, 1
        %v950 = vsel %vm915, %v947, %v949
        %v951 = vrot.slane %v446, 1
        %v952 = vsel %vm915, %v949, %v951
        %v954 = vsel %vm598, %v918, 0
        %v957 = vsel %vm598, %v920, 0
        %v960 = vsel %vm598, %v922, 0
        %v963 = vsel %vm598, %v924, 0
        %v966 = vsel %vm598, %v926, 0
        %v969 = vsel %vm598, %v928, 0
        %v972 = vsel %vm598, %v930, 0
        %v975 = vsel %vm598, %v932, 0
        %v978 = vsel %vm598, %v934, 0
        %v981 = vsel %vm598, %v936, 0
        %v984 = vsel %vm598, %v938, 0
        %v987 = vsel %vm598, %v940, 0
        %v990 = vsel %vm598, %v942, 0
        %v993 = vsel %vm598, %v944, 0
        %v996 = vsel %vm598, %v946, 0
        %v999 = vsel %vm598, %v948, 0
        %v1002 = vsel %vm598, %v950, 0
        %v1005 = vsel %vm598, %v952, 0
        %v1008 = vsel %vm653, %v895, 0
        %1010 = vmatpush.bf16.msra.mxu0 0
        %1011 = vmatpush.bf16.msra.mxu0 0
        %1012 = vmatpush.bf16.msra.mxu0 0
        %1013 = vmatpush.bf16.msra.mxu0 0
        %1014 = vmatpush.bf16.msra.mxu0 0
        %1015 = vmatpush.bf16.msra.mxu0 0
        %1016 = vmatpush.bf16.msra.mxu0 0
        %1017 = vmatpush.bf16.msra.mxu0 %v1008
        %1018 = vmatmul.bf16.gmra.mxu0 %v954
        %v1019 = vpop.f32.mrf.mxu0
        %v1020 = vadd.f32 0.0, %v1019
        %v1021 = vpop.f32.mrf.mxu0
        %v1022 = vadd.f32 0.0, %v1021
        %1023 = vmatmul.bf16.gmra.mxu0 %v957
        %v1024 = vpop.f32.mrf.mxu0
        %v1025 = vadd.f32 0.0, %v1024
        %v1026 = vpop.f32.mrf.mxu0
        %v1027 = vadd.f32 0.0, %v1026
        %1028 = vmatmul.bf16.gmra.mxu0 %v960
        %v1029 = vpop.f32.mrf.mxu0
        %v1030 = vadd.f32 0.0, %v1029
        %v1031 = vpop.f32.mrf.mxu0
        %v1032 = vadd.f32 0.0, %v1031
        %1033 = vmatmul.bf16.gmra.mxu0 %v963
        %v1034 = vpop.f32.mrf.mxu0
        %v1035 = vadd.f32 0.0, %v1034
        %v1036 = vpop.f32.mrf.mxu0
        %v1037 = vadd.f32 0.0, %v1036
        %1038 = vmatmul.bf16.gmra.mxu0 %v966
        %v1039 = vpop.f32.mrf.mxu0
        %v1040 = vadd.f32 0.0, %v1039
        %v1041 = vpop.f32.mrf.mxu0
        %v1042 = vadd.f32 0.0, %v1041
        %1043 = vmatmul.bf16.gmra.mxu0 %v969
        %v1044 = vpop.f32.mrf.mxu0
        %v1045 = vadd.f32 0.0, %v1044
        %v1046 = vpop.f32.mrf.mxu0
        %v1047 = vadd.f32 0.0, %v1046
        %1048 = vmatmul.bf16.gmra.mxu0 %v972
        %v1049 = vpop.f32.mrf.mxu0
        %v1050 = vadd.f32 0.0, %v1049
        %v1051 = vpop.f32.mrf.mxu0
        %v1052 = vadd.f32 0.0, %v1051
        %1053 = vmatmul.bf16.gmra.mxu0 %v975
        %v1054 = vpop.f32.mrf.mxu0
        %v1055 = vadd.f32 0.0, %v1054
        %v1056 = vpop.f32.mrf.mxu0
        %v1057 = vadd.f32 0.0, %v1056
        %1058 = vmatmul.bf16.gmra.mxu0 %v978
        %v1059 = vpop.f32.mrf.mxu0
        %v1060 = vadd.f32 0.0, %v1059
        %v1061 = vpop.f32.mrf.mxu0
        %v1062 = vadd.f32 0.0, %v1061
        %1063 = vmatmul.bf16.gmra.mxu0 %v981
        %v1064 = vpop.f32.mrf.mxu0
        %v1065 = vadd.f32 0.0, %v1064
        %v1066 = vpop.f32.mrf.mxu0
        %v1067 = vadd.f32 0.0, %v1066
        %1068 = vmatmul.bf16.gmra.mxu0 %v984
        %v1069 = vpop.f32.mrf.mxu0
        %v1070 = vadd.f32 0.0, %v1069
        %v1071 = vpop.f32.mrf.mxu0
        %v1072 = vadd.f32 0.0, %v1071
        %1073 = vmatmul.bf16.gmra.mxu0 %v987
        %v1074 = vpop.f32.mrf.mxu0
        %v1075 = vadd.f32 0.0, %v1074
        %v1076 = vpop.f32.mrf.mxu0
        %v1077 = vadd.f32 0.0, %v1076
        %1078 = vmatmul.bf16.gmra.mxu0 %v990
        %v1079 = vpop.f32.mrf.mxu0
        %v1080 = vadd.f32 0.0, %v1079
        %v1081 = vpop.f32.mrf.mxu0
        %v1082 = vadd.f32 0.0, %v1081
        %1083 = vmatmul.bf16.gmra.mxu0 %v993
        %v1084 = vpop.f32.mrf.mxu0
        %v1085 = vadd.f32 0.0, %v1084
        %v1086 = vpop.f32.mrf.mxu0
        %v1087 = vadd.f32 0.0, %v1086
        %1088 = vmatmul.bf16.gmra.mxu0 %v996
        %v1089 = vpop.f32.mrf.mxu0
        %v1090 = vadd.f32 0.0, %v1089
        %v1091 = vpop.f32.mrf.mxu0
        %v1092 = vadd.f32 0.0, %v1091
        %1093 = vmatmul.bf16.gmra.mxu0 %v999
        %v1094 = vpop.f32.mrf.mxu0
        %v1095 = vadd.f32 0.0, %v1094
        %v1096 = vpop.f32.mrf.mxu0
        %v1097 = vadd.f32 0.0, %v1096
        %1098 = vmatmul.bf16.gmra.mxu0 %v1002
        %v1099 = vpop.f32.mrf.mxu0
        %v1100 = vadd.f32 0.0, %v1099
        %v1101 = vpop.f32.mrf.mxu0
        %v1102 = vadd.f32 0.0, %v1101
        %1103 = vmatmul.bf16.gmra.mxu0 %v1005
        %v1104 = vpop.f32.mrf.mxu0
        %v1105 = vadd.f32 0.0, %v1104
        %v1106 = vpop.f32.mrf.mxu0
        %v1107 = vadd.f32 0.0, %v1106
        %1108 = vdwg.mxu0
        %v1109 = vadd.f32 %v805, %v1020
        %v1110 = vadd.f32 %v807, %v1022
        %v1111 = vadd.f32 %v810, %v1025
        %v1112 = vadd.f32 %v812, %v1027
        %v1113 = vadd.f32 %v815, %v1030
        %v1114 = vadd.f32 %v817, %v1032
        %v1115 = vadd.f32 %v820, %v1035
        %v1116 = vadd.f32 %v822, %v1037
        %v1117 = vadd.f32 %v825, %v1040
        %v1118 = vadd.f32 %v827, %v1042
        %v1119 = vadd.f32 %v830, %v1045
        %v1120 = vadd.f32 %v832, %v1047
        %v1121 = vadd.f32 %v835, %v1050
        %v1122 = vadd.f32 %v837, %v1052
        %v1123 = vadd.f32 %v840, %v1055
        %v1124 = vadd.f32 %v842, %v1057
        %v1125 = vadd.f32 %v845, %v1060
        %v1126 = vadd.f32 %v847, %v1062
        %v1127 = vadd.f32 %v850, %v1065
        %v1128 = vadd.f32 %v852, %v1067
        %v1129 = vadd.f32 %v855, %v1070
        %v1130 = vadd.f32 %v857, %v1072
        %v1131 = vadd.f32 %v860, %v1075
        %v1132 = vadd.f32 %v862, %v1077
        %v1133 = vadd.f32 %v865, %v1080
        %v1134 = vadd.f32 %v867, %v1082
        %v1135 = vadd.f32 %v870, %v1085
        %v1136 = vadd.f32 %v872, %v1087
        %v1137 = vadd.f32 %v875, %v1090
        %v1138 = vadd.f32 %v877, %v1092
        %v1139 = vadd.f32 %v880, %v1095
        %v1140 = vadd.f32 %v882, %v1097
        %v1141 = vadd.f32 %v885, %v1100
        %v1142 = vadd.f32 %v887, %v1102
        %v1143 = vadd.f32 %v890, %v1105
        %v1144 = vadd.f32 %v892, %v1107
        %v1145 = vpack.c.bf16 %v423, %v422
        %v1146 = vpack.c.bf16 %v424, %v424
        %s1147 = scalar_lea.vmem [#allocation3], 6
        %v1148 = vld [vmem:[%s1147] sm:$0x3]
        %v1151 = vrot.slane %v1145, 1
        %v1152 = vsel %vm915, %v949, %v1151
        %v1153 = vrot.slane %v1146, 1
        %v1154 = vsel %vm915, %v1151, %v1153
        %v1156 = vsel %vm598, %v1152, 0
        %v1159 = vsel %vm598, %v1154, 0
        %v1162 = vsel %vm653, %v1148, 0
        %1164 = vmatpush.bf16.msra.mxu0 0
        %1165 = vmatpush.bf16.msra.mxu0 0
        %1166 = vmatpush.bf16.msra.mxu0 0
        %1167 = vmatpush.bf16.msra.mxu0 0
        %1168 = vmatpush.bf16.msra.mxu0 0
        %1169 = vmatpush.bf16.msra.mxu0 0
        %1170 = vmatpush.bf16.msra.mxu0 0
        %1171 = vmatpush.bf16.msra.mxu0 %v1162
        %1172 = vmatmul.bf16.gmra.mxu0 %v957
        %v1173 = vpop.f32.mrf.mxu0
        %v1174 = vadd.f32 0.0, %v1173
        %v1175 = vpop.f32.mrf.mxu0
        %v1176 = vadd.f32 0.0, %v1175
        %1177 = vmatmul.bf16.gmra.mxu0 %v960
        %v1178 = vpop.f32.mrf.mxu0
        %v1179 = vadd.f32 0.0, %v1178
        %v1180 = vpop.f32.mrf.mxu0
        %v1181 = vadd.f32 0.0, %v1180
        %1182 = vmatmul.bf16.gmra.mxu0 %v963
        %v1183 = vpop.f32.mrf.mxu0
        %v1184 = vadd.f32 0.0, %v1183
        %v1185 = vpop.f32.mrf.mxu0
        %v1186 = vadd.f32 0.0, %v1185
        %1187 = vmatmul.bf16.gmra.mxu0 %v966
        %v1188 = vpop.f32.mrf.mxu0
        %v1189 = vadd.f32 0.0, %v1188
        %v1190 = vpop.f32.mrf.mxu0
        %v1191 = vadd.f32 0.0, %v1190
        %1192 = vmatmul.bf16.gmra.mxu0 %v969
        %v1193 = vpop.f32.mrf.mxu0
        %v1194 = vadd.f32 0.0, %v1193
        %v1195 = vpop.f32.mrf.mxu0
        %v1196 = vadd.f32 0.0, %v1195
        %1197 = vmatmul.bf16.gmra.mxu0 %v972
        %v1198 = vpop.f32.mrf.mxu0
        %v1199 = vadd.f32 0.0, %v1198
        %v1200 = vpop.f32.mrf.mxu0
        %v1201 = vadd.f32 0.0, %v1200
        %1202 = vmatmul.bf16.gmra.mxu0 %v975
        %v1203 = vpop.f32.mrf.mxu0
        %v1204 = vadd.f32 0.0, %v1203
        %v1205 = vpop.f32.mrf.mxu0
        %v1206 = vadd.f32 0.0, %v1205
        %1207 = vmatmul.bf16.gmra.mxu0 %v978
        %v1208 = vpop.f32.mrf.mxu0
        %v1209 = vadd.f32 0.0, %v1208
        %v1210 = vpop.f32.mrf.mxu0
        %v1211 = vadd.f32 0.0, %v1210
        %1212 = vmatmul.bf16.gmra.mxu0 %v981
        %v1213 = vpop.f32.mrf.mxu0
        %v1214 = vadd.f32 0.0, %v1213
        %v1215 = vpop.f32.mrf.mxu0
        %v1216 = vadd.f32 0.0, %v1215
        %1217 = vmatmul.bf16.gmra.mxu0 %v984
        %v1218 = vpop.f32.mrf.mxu0
        %v1219 = vadd.f32 0.0, %v1218
        %v1220 = vpop.f32.mrf.mxu0
        %v1221 = vadd.f32 0.0, %v1220
        %1222 = vmatmul.bf16.gmra.mxu0 %v987
        %v1223 = vpop.f32.mrf.mxu0
        %v1224 = vadd.f32 0.0, %v1223
        %v1225 = vpop.f32.mrf.mxu0
        %v1226 = vadd.f32 0.0, %v1225
        %1227 = vmatmul.bf16.gmra.mxu0 %v990
        %v1228 = vpop.f32.mrf.mxu0
        %v1229 = vadd.f32 0.0, %v1228
        %v1230 = vpop.f32.mrf.mxu0
        %v1231 = vadd.f32 0.0, %v1230
        %1232 = vmatmul.bf16.gmra.mxu0 %v993
        %v1233 = vpop.f32.mrf.mxu0
        %v1234 = vadd.f32 0.0, %v1233
        %v1235 = vpop.f32.mrf.mxu0
        %v1236 = vadd.f32 0.0, %v1235
        %1237 = vmatmul.bf16.gmra.mxu0 %v996
        %v1238 = vpop.f32.mrf.mxu0
        %v1239 = vadd.f32 0.0, %v1238
        %v1240 = vpop.f32.mrf.mxu0
        %v1241 = vadd.f32 0.0, %v1240
        %1242 = vmatmul.bf16.gmra.mxu0 %v999
        %v1243 = vpop.f32.mrf.mxu0
        %v1244 = vadd.f32 0.0, %v1243
        %v1245 = vpop.f32.mrf.mxu0
        %v1246 = vadd.f32 0.0, %v1245
        %1247 = vmatmul.bf16.gmra.mxu0 %v1002
        %v1248 = vpop.f32.mrf.mxu0
        %v1249 = vadd.f32 0.0, %v1248
        %v1250 = vpop.f32.mrf.mxu0
        %v1251 = vadd.f32 0.0, %v1250
        %1252 = vmatmul.bf16.gmra.mxu0 %v1156
        %v1253 = vpop.f32.mrf.mxu0
        %v1254 = vadd.f32 0.0, %v1253
        %v1255 = vpop.f32.mrf.mxu0
        %v1256 = vadd.f32 0.0, %v1255
        %1257 = vmatmul.bf16.gmra.mxu0 %v1159
        %v1258 = vpop.f32.mrf.mxu0
        %v1259 = vadd.f32 0.0, %v1258
        %v1260 = vpop.f32.mrf.mxu0
        %v1261 = vadd.f32 0.0, %v1260
        %1262 = vdwg.mxu0
        %v1263 = vadd.f32 %v1109, %v1174
        %v1264 = vadd.f32 %v1110, %v1176
        %v1265 = vadd.f32 %v1111, %v1179
        %v1266 = vadd.f32 %v1112, %v1181
        %v1267 = vadd.f32 %v1113, %v1184
        %v1268 = vadd.f32 %v1114, %v1186
        %v1269 = vadd.f32 %v1115, %v1189
        %v1270 = vadd.f32 %v1116, %v1191
        %v1271 = vadd.f32 %v1117, %v1194
        %v1272 = vadd.f32 %v1118, %v1196
        %v1273 = vadd.f32 %v1119, %v1199
        %v1274 = vadd.f32 %v1120, %v1201
        %v1275 = vadd.f32 %v1121, %v1204
        %v1276 = vadd.f32 %v1122, %v1206
        %v1277 = vadd.f32 %v1123, %v1209
        %v1278 = vadd.f32 %v1124, %v1211
        %v1279 = vadd.f32 %v1125, %v1214
        %v1280 = vadd.f32 %v1126, %v1216
        %v1281 = vadd.f32 %v1127, %v1219
        %v1282 = vadd.f32 %v1128, %v1221
        %v1283 = vadd.f32 %v1129, %v1224
        %v1284 = vadd.f32 %v1130, %v1226
        %v1285 = vadd.f32 %v1131, %v1229
        %v1286 = vadd.f32 %v1132, %v1231
        %v1287 = vadd.f32 %v1133, %v1234
        %v1288 = vadd.f32 %v1134, %v1236
        %v1289 = vadd.f32 %v1135, %v1239
        %v1290 = vadd.f32 %v1136, %v1241
        %v1291 = vadd.f32 %v1137, %v1244
        %v1292 = vadd.f32 %v1138, %v1246
        %v1293 = vadd.f32 %v1139, %v1249
        %v1294 = vadd.f32 %v1140, %v1251
        %v1295 = vadd.f32 %v1141, %v1254
        %v1296 = vadd.f32 %v1142, %v1256
        %v1297 = vadd.f32 %v1143, %v1259
        %v1298 = vadd.f32 %v1144, %v1261
        %s1299 = scalar_lea.vmem [#allocation3], 8
        %v1300 = vld [vmem:[%s1299] sm:$0x3]
        %vm1301 = vsmask.f32 6400
        %v1302 = vrot.slane %v462, 1
        %v1303 = vrot.slane %v458, 2
        %v1304 = vor.u32 %v1302, %v1303
        %v1305 = vrot.slane %v470, 1
        %v1306 = vrot.slane %v466, 2
        %v1307 = vor.u32 %v1305, %v1306
        %v1308 = vsel %vm1301, %v1304, %v1307
        %v1309 = vrot.slane %v478, 1
        %v1310 = vrot.slane %v474, 2
        %v1311 = vor.u32 %v1309, %v1310
        %v1312 = vsel %vm1301, %v1307, %v1311
        %v1313 = vrot.slane %v486, 1
        %v1314 = vrot.slane %v482, 2
        %v1315 = vor.u32 %v1313, %v1314
        %v1316 = vsel %vm1301, %v1311, %v1315
        %v1317 = vrot.slane %v494, 1
        %v1318 = vrot.slane %v490, 2
        %v1319 = vor.u32 %v1317, %v1318
        %v1320 = vsel %vm1301, %v1315, %v1319
        %v1321 = vrot.slane %v502, 1
        %v1322 = vrot.slane %v498, 2
        %v1323 = vor.u32 %v1321, %v1322
        %v1324 = vsel %vm1301, %v1319, %v1323
        %v1325 = vrot.slane %v510, 1
        %v1326 = vrot.slane %v506, 2
        %v1327 = vor.u32 %v1325, %v1326
        %v1328 = vsel %vm1301, %v1323, %v1327
        %v1329 = vrot.slane %v518, 1
        %v1330 = vrot.slane %v514, 2
        %v1331 = vor.u32 %v1329, %v1330
        %v1332 = vsel %vm1301, %v1327, %v1331
        %v1333 = vrot.slane %v526, 1
        %v1334 = vrot.slane %v522, 2
        %v1335 = vor.u32 %v1333, %v1334
        %v1336 = vsel %vm1301, %v1331, %v1335
        %v1337 = vrot.slane %v534, 1
        %v1338 = vrot.slane %v530, 2
        %v1339 = vor.u32 %v1337, %v1338
        %v1340 = vsel %vm1301, %v1335, %v1339
        %v1341 = vrot.slane %v542, 1
        %v1342 = vrot.slane %v538, 2
        %v1343 = vor.u32 %v1341, %v1342
        %v1344 = vsel %vm1301, %v1339, %v1343
        %v1345 = vrot.slane %v550, 1
        %v1346 = vrot.slane %v546, 2
        %v1347 = vor.u32 %v1345, %v1346
        %v1348 = vsel %vm1301, %v1343, %v1347
        %v1349 = vrot.slane %v558, 1
        %v1350 = vrot.slane %v554, 2
        %v1351 = vor.u32 %v1349, %v1350
        %v1352 = vsel %vm1301, %v1347, %v1351
        %v1353 = vrot.slane %v566, 1
        %v1354 = vrot.slane %v562, 2
        %v1355 = vor.u32 %v1353, %v1354
        %v1356 = vsel %vm1301, %v1351, %v1355
        %v1357 = vrot.slane %v574, 1
        %v1358 = vrot.slane %v570, 2
        %v1359 = vor.u32 %v1357, %v1358
        %v1360 = vsel %vm1301, %v1355, %v1359
        %v1361 = vrot.slane %v582, 1
        %v1362 = vrot.slane %v578, 2
        %v1363 = vor.u32 %v1361, %v1362
        %v1364 = vsel %vm1301, %v1359, %v1363
        %v1365 = vrot.slane %v590, 1
        %v1366 = vrot.slane %v586, 2
        %v1367 = vor.u32 %v1365, %v1366
        %v1368 = vsel %vm1301, %v1363, %v1367
        %v1370 = vshrl.u32 %v1145, 16
        %v1372 = vrot.slane %v1370, 1
        %v1373 = vshll.u32 %v1145, 16
        %v1375 = vrot.slane %v1373, 2
        %v1376 = vor.u32 %v1372, %v1375
        %v1377 = vsel %vm1301, %v1367, %v1376
        %v1379 = vshrl.u32 %v1146, 16
        %v1381 = vrot.slane %v1379, 1
        %v1382 = vshll.u32 %v1146, 16
        %v1384 = vrot.slane %v1382, 2
        %v1385 = vor.u32 %v1381, %v1384
        %v1386 = vsel %vm1301, %v1376, %v1385
        %v1388 = vsel %vm598, %v1308, 0
        %v1391 = vsel %vm598, %v1312, 0
        %v1394 = vsel %vm598, %v1316, 0
        %v1397 = vsel %vm598, %v1320, 0
        %v1400 = vsel %vm598, %v1324, 0
        %v1403 = vsel %vm598, %v1328, 0
        %v1406 = vsel %vm598, %v1332, 0
        %v1409 = vsel %vm598, %v1336, 0
        %v1412 = vsel %vm598, %v1340, 0
        %v1415 = vsel %vm598, %v1344, 0
        %v1418 = vsel %vm598, %v1348, 0
        %v1421 = vsel %vm598, %v1352, 0
        %v1424 = vsel %vm598, %v1356, 0
        %v1427 = vsel %vm598, %v1360, 0
        %v1430 = vsel %vm598, %v1364, 0
        %v1433 = vsel %vm598, %v1368, 0
        %v1436 = vsel %vm598, %v1377, 0
        %v1439 = vsel %vm598, %v1386, 0
        %v1442 = vsel %vm653, %v1300, 0
        %1444 = vmatpush.bf16.msra.mxu0 0
        %1445 = vmatpush.bf16.msra.mxu0 0
        %1446 = vmatpush.bf16.msra.mxu0 0
        %1447 = vmatpush.bf16.msra.mxu0 0
        %1448 = vmatpush.bf16.msra.mxu0 0
        %1449 = vmatpush.bf16.msra.mxu0 0
        %1450 = vmatpush.bf16.msra.mxu0 0
        %1451 = vmatpush.bf16.msra.mxu0 %v1442
        %1452 = vmatmul.bf16.gmra.mxu0 %v1388
        %v1453 = vpop.f32.mrf.mxu0
        %v1454 = vadd.f32 0.0, %v1453
        %v1455 = vpop.f32.mrf.mxu0
        %v1456 = vadd.f32 0.0, %v1455
        %1457 = vmatmul.bf16.gmra.mxu0 %v1391
        %v1458 = vpop.f32.mrf.mxu0
        %v1459 = vadd.f32 0.0, %v1458
        %v1460 = vpop.f32.mrf.mxu0
        %v1461 = vadd.f32 0.0, %v1460
        %1462 = vmatmul.bf16.gmra.mxu0 %v1394
        %v1463 = vpop.f32.mrf.mxu0
        %v1464 = vadd.f32 0.0, %v1463
        %v1465 = vpop.f32.mrf.mxu0
        %v1466 = vadd.f32 0.0, %v1465
        %1467 = vmatmul.bf16.gmra.mxu0 %v1397
        %v1468 = vpop.f32.mrf.mxu0
        %v1469 = vadd.f32 0.0, %v1468
        %v1470 = vpop.f32.mrf.mxu0
        %v1471 = vadd.f32 0.0, %v1470
        %1472 = vmatmul.bf16.gmra.mxu0 %v1400
        %v1473 = vpop.f32.mrf.mxu0
        %v1474 = vadd.f32 0.0, %v1473
        %v1475 = vpop.f32.mrf.mxu0
        %v1476 = vadd.f32 0.0, %v1475
        %1477 = vmatmul.bf16.gmra.mxu0 %v1403
        %v1478 = vpop.f32.mrf.mxu0
        %v1479 = vadd.f32 0.0, %v1478
        %v1480 = vpop.f32.mrf.mxu0
        %v1481 = vadd.f32 0.0, %v1480
        %1482 = vmatmul.bf16.gmra.mxu0 %v1406
        %v1483 = vpop.f32.mrf.mxu0
        %v1484 = vadd.f32 0.0, %v1483
        %v1485 = vpop.f32.mrf.mxu0
        %v1486 = vadd.f32 0.0, %v1485
        %1487 = vmatmul.bf16.gmra.mxu0 %v1409
        %v1488 = vpop.f32.mrf.mxu0
        %v1489 = vadd.f32 0.0, %v1488
        %v1490 = vpop.f32.mrf.mxu0
        %v1491 = vadd.f32 0.0, %v1490
        %1492 = vmatmul.bf16.gmra.mxu0 %v1412
        %v1493 = vpop.f32.mrf.mxu0
        %v1494 = vadd.f32 0.0, %v1493
        %v1495 = vpop.f32.mrf.mxu0
        %v1496 = vadd.f32 0.0, %v1495
        %1497 = vmatmul.bf16.gmra.mxu0 %v1415
        %v1498 = vpop.f32.mrf.mxu0
        %v1499 = vadd.f32 0.0, %v1498
        %v1500 = vpop.f32.mrf.mxu0
        %v1501 = vadd.f32 0.0, %v1500
        %1502 = vmatmul.bf16.gmra.mxu0 %v1418
        %v1503 = vpop.f32.mrf.mxu0
        %v1504 = vadd.f32 0.0, %v1503
        %v1505 = vpop.f32.mrf.mxu0
        %v1506 = vadd.f32 0.0, %v1505
        %1507 = vmatmul.bf16.gmra.mxu0 %v1421
        %v1508 = vpop.f32.mrf.mxu0
        %v1509 = vadd.f32 0.0, %v1508
        %v1510 = vpop.f32.mrf.mxu0
        %v1511 = vadd.f32 0.0, %v1510
        %1512 = vmatmul.bf16.gmra.mxu0 %v1424
        %v1513 = vpop.f32.mrf.mxu0
        %v1514 = vadd.f32 0.0, %v1513
        %v1515 = vpop.f32.mrf.mxu0
        %v1516 = vadd.f32 0.0, %v1515
        %1517 = vmatmul.bf16.gmra.mxu0 %v1427
        %v1518 = vpop.f32.mrf.mxu0
        %v1519 = vadd.f32 0.0, %v1518
        %v1520 = vpop.f32.mrf.mxu0
        %v1521 = vadd.f32 0.0, %v1520
        %1522 = vmatmul.bf16.gmra.mxu0 %v1430
        %v1523 = vpop.f32.mrf.mxu0
        %v1524 = vadd.f32 0.0, %v1523
        %v1525 = vpop.f32.mrf.mxu0
        %v1526 = vadd.f32 0.0, %v1525
        %1527 = vmatmul.bf16.gmra.mxu0 %v1433
        %v1528 = vpop.f32.mrf.mxu0
        %v1529 = vadd.f32 0.0, %v1528
        %v1530 = vpop.f32.mrf.mxu0
        %v1531 = vadd.f32 0.0, %v1530
        %1532 = vmatmul.bf16.gmra.mxu0 %v1436
        %v1533 = vpop.f32.mrf.mxu0
        %v1534 = vadd.f32 0.0, %v1533
        %v1535 = vpop.f32.mrf.mxu0
        %v1536 = vadd.f32 0.0, %v1535
        %1537 = vmatmul.bf16.gmra.mxu0 %v1439
        %v1538 = vpop.f32.mrf.mxu0
        %v1539 = vadd.f32 0.0, %v1538
        %v1540 = vpop.f32.mrf.mxu0
        %v1541 = vadd.f32 0.0, %v1540
        %1542 = vdwg.mxu0
        %v1543 = vadd.f32 %v1263, %v1454
        %v1544 = vadd.f32 %v1264, %v1456
        %v1545 = vadd.f32 %v1265, %v1459
        %v1546 = vadd.f32 %v1266, %v1461
        %v1547 = vadd.f32 %v1267, %v1464
        %v1548 = vadd.f32 %v1268, %v1466
        %v1549 = vadd.f32 %v1269, %v1469
        %v1550 = vadd.f32 %v1270, %v1471
        %v1551 = vadd.f32 %v1271, %v1474
        %v1552 = vadd.f32 %v1272, %v1476
        %v1553 = vadd.f32 %v1273, %v1479
        %v1554 = vadd.f32 %v1274, %v1481
        %v1555 = vadd.f32 %v1275, %v1484
        %v1556 = vadd.f32 %v1276, %v1486
        %v1557 = vadd.f32 %v1277, %v1489
        %v1558 = vadd.f32 %v1278, %v1491
        %v1559 = vadd.f32 %v1279, %v1494
        %v1560 = vadd.f32 %v1280, %v1496
        %v1561 = vadd.f32 %v1281, %v1499
        %v1562 = vadd.f32 %v1282, %v1501
        %v1563 = vadd.f32 %v1283, %v1504
        %v1564 = vadd.f32 %v1284, %v1506
        %v1565 = vadd.f32 %v1285, %v1509
        %v1566 = vadd.f32 %v1286, %v1511
        %v1567 = vadd.f32 %v1287, %v1514
        %v1568 = vadd.f32 %v1288, %v1516
        %v1569 = vadd.f32 %v1289, %v1519
        %v1570 = vadd.f32 %v1290, %v1521
        %v1571 = vadd.f32 %v1291, %v1524
        %v1572 = vadd.f32 %v1292, %v1526
        %v1573 = vadd.f32 %v1293, %v1529
        %v1574 = vadd.f32 %v1294, %v1531
        %v1575 = vadd.f32 %v1295, %v1534
        %v1576 = vadd.f32 %v1296, %v1536
        %v1577 = vadd.f32 %v1297, %v1539
        %v1578 = vadd.f32 %v1298, %v1541
        %s1579 = scalar_lea.vmem [#allocation3], 10
        %v1580 = vld [vmem:[%s1579] sm:$0x3]
        %vm1581 = vcmask 1045504
        %v1582 = vrot.slane %v428, 2
        %v1583 = vrot.slane %v429, 2
        %v1584 = vsel %vm1581, %v1582, %v1583
        %v1585 = vrot.slane %v430, 2
        %v1586 = vsel %vm1581, %v1583, %v1585
        %v1587 = vrot.slane %v431, 2
        %v1588 = vsel %vm1581, %v1585, %v1587
        %v1589 = vrot.slane %v432, 2
        %v1590 = vsel %vm1581, %v1587, %v1589
        %v1591 = vrot.slane %v433, 2
        %v1592 = vsel %vm1581, %v1589, %v1591
        %v1593 = vrot.slane %v434, 2
        %v1594 = vsel %vm1581, %v1591, %v1593
        %v1595 = vrot.slane %v435, 2
        %v1596 = vsel %vm1581, %v1593, %v1595
        %v1597 = vrot.slane %v436, 2
        %v1598 = vsel %vm1581, %v1595, %v1597
        %v1599 = vrot.slane %v437, 2
        %v1600 = vsel %vm1581, %v1597, %v1599
        %v1601 = vrot.slane %v438, 2
        %v1602 = vsel %vm1581, %v1599, %v1601
        %v1603 = vrot.slane %v439, 2
        %v1604 = vsel %vm1581, %v1601, %v1603
        %v1605 = vrot.slane %v440, 2
        %v1606 = vsel %vm1581, %v1603, %v1605
        %v1607 = vrot.slane %v441, 2
        %v1608 = vsel %vm1581, %v1605, %v1607
        %v1609 = vrot.slane %v442, 2
        %v1610 = vsel %vm1581, %v1607, %v1609
        %v1611 = vrot.slane %v443, 2
        %v1612 = vsel %vm1581, %v1609, %v1611
        %v1613 = vrot.slane %v444, 2
        %v1614 = vsel %vm1581, %v1611, %v1613
        %v1615 = vrot.slane %v1145, 2
        %v1616 = vsel %vm1581, %v1613, %v1615
        %v1617 = vrot.slane %v1146, 2
        %v1618 = vsel %vm1581, %v1615, %v1617
        %v1620 = vsel %vm598, %v1584, 0
        %v1623 = vsel %vm598, %v1586, 0
        %v1626 = vsel %vm598, %v1588, 0
        %v1629 = vsel %vm598, %v1590, 0
        %v1632 = vsel %vm598, %v1592, 0
        %v1635 = vsel %vm598, %v1594, 0
        %v1638 = vsel %vm598, %v1596, 0
        %v1641 = vsel %vm598, %v1598, 0
        %v1644 = vsel %vm598, %v1600, 0
        %v1647 = vsel %vm598, %v1602, 0
        %v1650 = vsel %vm598, %v1604, 0
        %v1653 = vsel %vm598, %v1606, 0
        %v1656 = vsel %vm598, %v1608, 0
        %v1659 = vsel %vm598, %v1610, 0
        %v1662 = vsel %vm598, %v1612, 0
        %v1665 = vsel %vm598, %v1614, 0
        %v1668 = vsel %vm598, %v1616, 0
        %v1671 = vsel %vm598, %v1618, 0
        %v1674 = vsel %vm653, %v1580, 0
        %1676 = vmatpush.bf16.msra.mxu0 0
        %1677 = vmatpush.bf16.msra.mxu0 0
        %1678 = vmatpush.bf16.msra.mxu0 0
        %1679 = vmatpush.bf16.msra.mxu0 0
        %1680 = vmatpush.bf16.msra.mxu0 0
        %1681 = vmatpush.bf16.msra.mxu0 0
        %1682 = vmatpush.bf16.msra.mxu0 0
        %1683 = vmatpush.bf16.msra.mxu0 %v1674
        %1684 = vmatmul.bf16.gmra.mxu0 %v1620
        %v1685 = vpop.f32.mrf.mxu0
        %v1686 = vadd.f32 0.0, %v1685
        %v1687 = vpop.f32.mrf.mxu0
        %v1688 = vadd.f32 0.0, %v1687
        %1689 = vmatmul.bf16.gmra.mxu0 %v1623
        %v1690 = vpop.f32.mrf.mxu0
        %v1691 = vadd.f32 0.0, %v1690
        %v1692 = vpop.f32.mrf.mxu0
        %v1693 = vadd.f32 0.0, %v1692
        %1694 = vmatmul.bf16.gmra.mxu0 %v1626
        %v1695 = vpop.f32.mrf.mxu0
        %v1696 = vadd.f32 0.0, %v1695
        %v1697 = vpop.f32.mrf.mxu0
        %v1698 = vadd.f32 0.0, %v1697
        %1699 = vmatmul.bf16.gmra.mxu0 %v1629
        %v1700 = vpop.f32.mrf.mxu0
        %v1701 = vadd.f32 0.0, %v1700
        %v1702 = vpop.f32.mrf.mxu0
        %v1703 = vadd.f32 0.0, %v1702
        %1704 = vmatmul.bf16.gmra.mxu0 %v1632
        %v1705 = vpop.f32.mrf.mxu0
        %v1706 = vadd.f32 0.0, %v1705
        %v1707 = vpop.f32.mrf.mxu0
        %v1708 = vadd.f32 0.0, %v1707
        %1709 = vmatmul.bf16.gmra.mxu0 %v1635
        %v1710 = vpop.f32.mrf.mxu0
        %v1711 = vadd.f32 0.0, %v1710
        %v1712 = vpop.f32.mrf.mxu0
        %v1713 = vadd.f32 0.0, %v1712
        %1714 = vmatmul.bf16.gmra.mxu0 %v1638
        %v1715 = vpop.f32.mrf.mxu0
        %v1716 = vadd.f32 0.0, %v1715
        %v1717 = vpop.f32.mrf.mxu0
        %v1718 = vadd.f32 0.0, %v1717
        %1719 = vmatmul.bf16.gmra.mxu0 %v1641
        %v1720 = vpop.f32.mrf.mxu0
        %v1721 = vadd.f32 0.0, %v1720
        %v1722 = vpop.f32.mrf.mxu0
        %v1723 = vadd.f32 0.0, %v1722
        %1724 = vmatmul.bf16.gmra.mxu0 %v1644
        %v1725 = vpop.f32.mrf.mxu0
        %v1726 = vadd.f32 0.0, %v1725
        %v1727 = vpop.f32.mrf.mxu0
        %v1728 = vadd.f32 0.0, %v1727
        %1729 = vmatmul.bf16.gmra.mxu0 %v1647
        %v1730 = vpop.f32.mrf.mxu0
        %v1731 = vadd.f32 0.0, %v1730
        %v1732 = vpop.f32.mrf.mxu0
        %v1733 = vadd.f32 0.0, %v1732
        %1734 = vmatmul.bf16.gmra.mxu0 %v1650
        %v1735 = vpop.f32.mrf.mxu0
        %v1736 = vadd.f32 0.0, %v1735
        %v1737 = vpop.f32.mrf.mxu0
        %v1738 = vadd.f32 0.0, %v1737
        %1739 = vmatmul.bf16.gmra.mxu0 %v1653
        %v1740 = vpop.f32.mrf.mxu0
        %v1741 = vadd.f32 0.0, %v1740
        %v1742 = vpop.f32.mrf.mxu0
        %v1743 = vadd.f32 0.0, %v1742
        %1744 = vmatmul.bf16.gmra.mxu0 %v1656
        %v1745 = vpop.f32.mrf.mxu0
        %v1746 = vadd.f32 0.0, %v1745
        %v1747 = vpop.f32.mrf.mxu0
        %v1748 = vadd.f32 0.0, %v1747
        %1749 = vmatmul.bf16.gmra.mxu0 %v1659
        %v1750 = vpop.f32.mrf.mxu0
        %v1751 = vadd.f32 0.0, %v1750
        %v1752 = vpop.f32.mrf.mxu0
        %v1753 = vadd.f32 0.0, %v1752
        %1754 = vmatmul.bf16.gmra.mxu0 %v1662
        %v1755 = vpop.f32.mrf.mxu0
        %v1756 = vadd.f32 0.0, %v1755
        %v1757 = vpop.f32.mrf.mxu0
        %v1758 = vadd.f32 0.0, %v1757
        %1759 = vmatmul.bf16.gmra.mxu0 %v1665
        %v1760 = vpop.f32.mrf.mxu0
        %v1761 = vadd.f32 0.0, %v1760
        %v1762 = vpop.f32.mrf.mxu0
        %v1763 = vadd.f32 0.0, %v1762
        %1764 = vmatmul.bf16.gmra.mxu0 %v1668
        %v1765 = vpop.f32.mrf.mxu0
        %v1766 = vadd.f32 0.0, %v1765
        %v1767 = vpop.f32.mrf.mxu0
        %v1768 = vadd.f32 0.0, %v1767
        %1769 = vmatmul.bf16.gmra.mxu0 %v1671
        %v1770 = vpop.f32.mrf.mxu0
        %v1771 = vadd.f32 0.0, %v1770
        %v1772 = vpop.f32.mrf.mxu0
        %v1773 = vadd.f32 0.0, %v1772
        %1774 = vdwg.mxu0
        %v1775 = vadd.f32 %v1543, %v1686
        %v1776 = vadd.f32 %v1544, %v1688
        %v1777 = vadd.f32 %v1545, %v1691
        %v1778 = vadd.f32 %v1546, %v1693
        %v1779 = vadd.f32 %v1547, %v1696
        %v1780 = vadd.f32 %v1548, %v1698
        %v1781 = vadd.f32 %v1549, %v1701
        %v1782 = vadd.f32 %v1550, %v1703
        %v1783 = vadd.f32 %v1551, %v1706
        %v1784 = vadd.f32 %v1552, %v1708
        %v1785 = vadd.f32 %v1553, %v1711
        %v1786 = vadd.f32 %v1554, %v1713
        %v1787 = vadd.f32 %v1555, %v1716
        %v1788 = vadd.f32 %v1556, %v1718
        %v1789 = vadd.f32 %v1557, %v1721
        %v1790 = vadd.f32 %v1558, %v1723
        %v1791 = vadd.f32 %v1559, %v1726
        %v1792 = vadd.f32 %v1560, %v1728
        %v1793 = vadd.f32 %v1561, %v1731
        %v1794 = vadd.f32 %v1562, %v1733
        %v1795 = vadd.f32 %v1563, %v1736
        %v1796 = vadd.f32 %v1564, %v1738
        %v1797 = vadd.f32 %v1565, %v1741
        %v1798 = vadd.f32 %v1566, %v1743
        %v1799 = vadd.f32 %v1567, %v1746
        %v1800 = vadd.f32 %v1568, %v1748
        %v1801 = vadd.f32 %v1569, %v1751
        %v1802 = vadd.f32 %v1570, %v1753
        %v1803 = vadd.f32 %v1571, %v1756
        %v1804 = vadd.f32 %v1572, %v1758
        %v1805 = vadd.f32 %v1573, %v1761
        %v1806 = vadd.f32 %v1574, %v1763
        %v1807 = vadd.f32 %v1575, %v1766
        %v1808 = vadd.f32 %v1576, %v1768
        %v1809 = vadd.f32 %v1577, %v1771
        %v1810 = vadd.f32 %v1578, %v1773
        %v1811 = vpack.c.bf16 %v425, %v424
        %v1812 = vpack.c.bf16 %v426, %v426
        %s1813 = scalar_lea.vmem [#allocation3], 12
        %v1814 = vld [vmem:[%s1813] sm:$0x3]
        %v1817 = vrot.slane %v1811, 2
        %v1818 = vsel %vm1581, %v1615, %v1817
        %v1819 = vrot.slane %v1812, 2
        %v1820 = vsel %vm1581, %v1817, %v1819
        %v1822 = vsel %vm598, %v1818, 0
        %v1825 = vsel %vm598, %v1820, 0
        %v1828 = vsel %vm653, %v1814, 0
        %1830 = vmatpush.bf16.msra.mxu0 0
        %1831 = vmatpush.bf16.msra.mxu0 0
        %1832 = vmatpush.bf16.msra.mxu0 0
        %1833 = vmatpush.bf16.msra.mxu0 0
        %1834 = vmatpush.bf16.msra.mxu0 0
        %1835 = vmatpush.bf16.msra.mxu0 0
        %1836 = vmatpush.bf16.msra.mxu0 0
        %1837 = vmatpush.bf16.msra.mxu0 %v1828
        %1838 = vmatmul.bf16.gmra.mxu0 %v1623
        %v1839 = vpop.f32.mrf.mxu0
        %v1840 = vadd.f32 0.0, %v1839
        %v1841 = vpop.f32.mrf.mxu0
        %v1842 = vadd.f32 0.0, %v1841
        %1843 = vmatmul.bf16.gmra.mxu0 %v1626
        %v1844 = vpop.f32.mrf.mxu0
        %v1845 = vadd.f32 0.0, %v1844
        %v1846 = vpop.f32.mrf.mxu0
        %v1847 = vadd.f32 0.0, %v1846
        %1848 = vmatmul.bf16.gmra.mxu0 %v1629
        %v1849 = vpop.f32.mrf.mxu0
        %v1850 = vadd.f32 0.0, %v1849
        %v1851 = vpop.f32.mrf.mxu0
        %v1852 = vadd.f32 0.0, %v1851
        %1853 = vmatmul.bf16.gmra.mxu0 %v1632
        %v1854 = vpop.f32.mrf.mxu0
        %v1855 = vadd.f32 0.0, %v1854
        %v1856 = vpop.f32.mrf.mxu0
        %v1857 = vadd.f32 0.0, %v1856
        %1858 = vmatmul.bf16.gmra.mxu0 %v1635
        %v1859 = vpop.f32.mrf.mxu0
        %v1860 = vadd.f32 0.0, %v1859
        %v1861 = vpop.f32.mrf.mxu0
        %v1862 = vadd.f32 0.0, %v1861
        %1863 = vmatmul.bf16.gmra.mxu0 %v1638
        %v1864 = vpop.f32.mrf.mxu0
        %v1865 = vadd.f32 0.0, %v1864
        %v1866 = vpop.f32.mrf.mxu0
        %v1867 = vadd.f32 0.0, %v1866
        %1868 = vmatmul.bf16.gmra.mxu0 %v1641
        %v1869 = vpop.f32.mrf.mxu0
        %v1870 = vadd.f32 0.0, %v1869
        %v1871 = vpop.f32.mrf.mxu0
        %v1872 = vadd.f32 0.0, %v1871
        %1873 = vmatmul.bf16.gmra.mxu0 %v1644
        %v1874 = vpop.f32.mrf.mxu0
        %v1875 = vadd.f32 0.0, %v1874
        %v1876 = vpop.f32.mrf.mxu0
        %v1877 = vadd.f32 0.0, %v1876
        %1878 = vmatmul.bf16.gmra.mxu0 %v1647
        %v1879 = vpop.f32.mrf.mxu0
        %v1880 = vadd.f32 0.0, %v1879
        %v1881 = vpop.f32.mrf.mxu0
        %v1882 = vadd.f32 0.0, %v1881
        %1883 = vmatmul.bf16.gmra.mxu0 %v1650
        %v1884 = vpop.f32.mrf.mxu0
        %v1885 = vadd.f32 0.0, %v1884
        %v1886 = vpop.f32.mrf.mxu0
        %v1887 = vadd.f32 0.0, %v1886
        %1888 = vmatmul.bf16.gmra.mxu0 %v1653
        %v1889 = vpop.f32.mrf.mxu0
        %v1890 = vadd.f32 0.0, %v1889
        %v1891 = vpop.f32.mrf.mxu0
        %v1892 = vadd.f32 0.0, %v1891
        %1893 = vmatmul.bf16.gmra.mxu0 %v1656
        %v1894 = vpop.f32.mrf.mxu0
        %v1895 = vadd.f32 0.0, %v1894
        %v1896 = vpop.f32.mrf.mxu0
        %v1897 = vadd.f32 0.0, %v1896
        %1898 = vmatmul.bf16.gmra.mxu0 %v1659
        %v1899 = vpop.f32.mrf.mxu0
        %v1900 = vadd.f32 0.0, %v1899
        %v1901 = vpop.f32.mrf.mxu0
        %v1902 = vadd.f32 0.0, %v1901
        %1903 = vmatmul.bf16.gmra.mxu0 %v1662
        %v1904 = vpop.f32.mrf.mxu0
        %v1905 = vadd.f32 0.0, %v1904
        %v1906 = vpop.f32.mrf.mxu0
        %v1907 = vadd.f32 0.0, %v1906
        %1908 = vmatmul.bf16.gmra.mxu0 %v1665
        %v1909 = vpop.f32.mrf.mxu0
        %v1910 = vadd.f32 0.0, %v1909
        %v1911 = vpop.f32.mrf.mxu0
        %v1912 = vadd.f32 0.0, %v1911
        %1913 = vmatmul.bf16.gmra.mxu0 %v1668
        %v1914 = vpop.f32.mrf.mxu0
        %v1915 = vadd.f32 0.0, %v1914
        %v1916 = vpop.f32.mrf.mxu0
        %v1917 = vadd.f32 0.0, %v1916
        %1918 = vmatmul.bf16.gmra.mxu0 %v1822
        %v1919 = vpop.f32.mrf.mxu0
        %v1920 = vadd.f32 0.0, %v1919
        %v1921 = vpop.f32.mrf.mxu0
        %v1922 = vadd.f32 0.0, %v1921
        %1923 = vmatmul.bf16.gmra.mxu0 %v1825
        %v1924 = vpop.f32.mrf.mxu0
        %v1925 = vadd.f32 0.0, %v1924
        %v1926 = vpop.f32.mrf.mxu0
        %v1927 = vadd.f32 0.0, %v1926
        %1928 = vdwg.mxu0
        %v1929 = vadd.f32 %v1775, %v1840
        %v1930 = vadd.f32 %v1776, %v1842
        %v1931 = vadd.f32 %v1777, %v1845
        %v1932 = vadd.f32 %v1778, %v1847
        %v1933 = vadd.f32 %v1779, %v1850
        %v1934 = vadd.f32 %v1780, %v1852
        %v1935 = vadd.f32 %v1781, %v1855
        %v1936 = vadd.f32 %v1782, %v1857
        %v1937 = vadd.f32 %v1783, %v1860
        %v1938 = vadd.f32 %v1784, %v1862
        %v1939 = vadd.f32 %v1785, %v1865
        %v1940 = vadd.f32 %v1786, %v1867
        %v1941 = vadd.f32 %v1787, %v1870
        %v1942 = vadd.f32 %v1788, %v1872
        %v1943 = vadd.f32 %v1789, %v1875
        %v1944 = vadd.f32 %v1790, %v1877
        %v1945 = vadd.f32 %v1791, %v1880
        %v1946 = vadd.f32 %v1792, %v1882
        %v1947 = vadd.f32 %v1793, %v1885
        %v1948 = vadd.f32 %v1794, %v1887
        %v1949 = vadd.f32 %v1795, %v1890
        %v1950 = vadd.f32 %v1796, %v1892
        %v1951 = vadd.f32 %v1797, %v1895
        %v1952 = vadd.f32 %v1798, %v1897
        %v1953 = vadd.f32 %v1799, %v1900
        %v1954 = vadd.f32 %v1800, %v1902
        %v1955 = vadd.f32 %v1801, %v1905
        %v1956 = vadd.f32 %v1802, %v1907
        %v1957 = vadd.f32 %v1803, %v1910
        %v1958 = vadd.f32 %v1804, %v1912
        %v1959 = vadd.f32 %v1805, %v1915
        %v1960 = vadd.f32 %v1806, %v1917
        %v1961 = vadd.f32 %v1807, %v1920
        %v1962 = vadd.f32 %v1808, %v1922
        %v1963 = vadd.f32 %v1809, %v1925
        %v1964 = vadd.f32 %v1810, %v1927
        %s1965 = scalar_lea.vmem [#allocation3], 14
        %v1966 = vld [vmem:[%s1965] sm:$0x3]
        %vm1967 = vsmask.f32 5376
        %v1968 = vrot.slane %v470, 2
        %v1969 = vrot.slane %v466, 3
        %v1970 = vor.u32 %v1968, %v1969
        %v1971 = vrot.slane %v478, 2
        %v1972 = vrot.slane %v474, 3
        %v1973 = vor.u32 %v1971, %v1972
        %v1974 = vsel %vm1967, %v1970, %v1973
        %v1975 = vrot.slane %v486, 2
        %v1976 = vrot.slane %v482, 3
        %v1977 = vor.u32 %v1975, %v1976
        %v1978 = vsel %vm1967, %v1973, %v1977
        %v1979 = vrot.slane %v494, 2
        %v1980 = vrot.slane %v490, 3
        %v1981 = vor.u32 %v1979, %v1980
        %v1982 = vsel %vm1967, %v1977, %v1981
        %v1983 = vrot.slane %v502, 2
        %v1984 = vrot.slane %v498, 3
        %v1985 = vor.u32 %v1983, %v1984
        %v1986 = vsel %vm1967, %v1981, %v1985
        %v1987 = vrot.slane %v510, 2
        %v1988 = vrot.slane %v506, 3
        %v1989 = vor.u32 %v1987, %v1988
        %v1990 = vsel %vm1967, %v1985, %v1989
        %v1991 = vrot.slane %v518, 2
        %v1992 = vrot.slane %v514, 3
        %v1993 = vor.u32 %v1991, %v1992
        %v1994 = vsel %vm1967, %v1989, %v1993
        %v1995 = vrot.slane %v526, 2
        %v1996 = vrot.slane %v522, 3
        %v1997 = vor.u32 %v1995, %v1996
        %v1998 = vsel %vm1967, %v1993, %v1997
        %v1999 = vrot.slane %v534, 2
        %v2000 = vrot.slane %v530, 3
        %v2001 = vor.u32 %v1999, %v2000
        %v2002 = vsel %vm1967, %v1997, %v2001
        %v2003 = vrot.slane %v542, 2
        %v2004 = vrot.slane %v538, 3
        %v2005 = vor.u32 %v2003, %v2004
        %v2006 = vsel %vm1967, %v2001, %v2005
        %v2007 = vrot.slane %v550, 2
        %v2008 = vrot.slane %v546, 3
        %v2009 = vor.u32 %v2007, %v2008
        %v2010 = vsel %vm1967, %v2005, %v2009
        %v2011 = vrot.slane %v558, 2
        %v2012 = vrot.slane %v554, 3
        %v2013 = vor.u32 %v2011, %v2012
        %v2014 = vsel %vm1967, %v2009, %v2013
        %v2015 = vrot.slane %v566, 2
        %v2016 = vrot.slane %v562, 3
        %v2017 = vor.u32 %v2015, %v2016
        %v2018 = vsel %vm1967, %v2013, %v2017
        %v2019 = vrot.slane %v574, 2
        %v2020 = vrot.slane %v570, 3
        %v2021 = vor.u32 %v2019, %v2020
        %v2022 = vsel %vm1967, %v2017, %v2021
        %v2023 = vrot.slane %v582, 2
        %v2024 = vrot.slane %v578, 3
        %v2025 = vor.u32 %v2023, %v2024
        %v2026 = vsel %vm1967, %v2021, %v2025
        %v2027 = vrot.slane %v590, 2
        %v2028 = vrot.slane %v586, 3
        %v2029 = vor.u32 %v2027, %v2028
        %v2030 = vsel %vm1967, %v2025, %v2029
        %v2031 = vrot.slane %v1370, 2
        %v2032 = vrot.slane %v1373, 3
        %v2033 = vor.u32 %v2031, %v2032
        %v2034 = vsel %vm1967, %v2029, %v2033
        %v2036 = vshrl.u32 %v1811, 16
        %v2038 = vrot.slane %v2036, 2
        %v2039 = vshll.u32 %v1811, 16
        %v2041 = vrot.slane %v2039, 3
        %v2042 = vor.u32 %v2038, %v2041
        %v2043 = vsel %vm1967, %v2033, %v2042
        %v2045 = vshrl.u32 %v1812, 16
        %v2047 = vrot.slane %v2045, 2
        %v2048 = vshll.u32 %v1812, 16
        %v2050 = vrot.slane %v2048, 3
        %v2051 = vor.u32 %v2047, %v2050
        %v2052 = vsel %vm1967, %v2042, %v2051
        %v2054 = vsel %vm598, %v1974, 0
        %v2057 = vsel %vm598, %v1978, 0
        %v2060 = vsel %vm598, %v1982, 0
        %v2063 = vsel %vm598, %v1986, 0
        %v2066 = vsel %vm598, %v1990, 0
        %v2069 = vsel %vm598, %v1994, 0
        %v2072 = vsel %vm598, %v1998, 0
        %v2075 = vsel %vm598, %v2002, 0
        %v2078 = vsel %vm598, %v2006, 0
        %v2081 = vsel %vm598, %v2010, 0
        %v2084 = vsel %vm598, %v2014, 0
        %v2087 = vsel %vm598, %v2018, 0
        %v2090 = vsel %vm598, %v2022, 0
        %v2093 = vsel %vm598, %v2026, 0
        %v2096 = vsel %vm598, %v2030, 0
        %v2099 = vsel %vm598, %v2034, 0
        %v2102 = vsel %vm598, %v2043, 0
        %v2105 = vsel %vm598, %v2052, 0
        %v2108 = vsel %vm653, %v1966, 0
        %2110 = vmatpush.bf16.msra.mxu0 0
        %2111 = vmatpush.bf16.msra.mxu0 0
        %2112 = vmatpush.bf16.msra.mxu0 0
        %2113 = vmatpush.bf16.msra.mxu0 0
        %2114 = vmatpush.bf16.msra.mxu0 0
        %2115 = vmatpush.bf16.msra.mxu0 0
        %2116 = vmatpush.bf16.msra.mxu0 0
        %2117 = vmatpush.bf16.msra.mxu0 %v2108
        %2118 = vmatmul.bf16.gmra.mxu0 %v2054
        %v2119 = vpop.f32.mrf.mxu0
        %v2120 = vadd.f32 0.0, %v2119
        %v2121 = vpop.f32.mrf.mxu0
        %v2122 = vadd.f32 0.0, %v2121
        %2123 = vmatmul.bf16.gmra.mxu0 %v2057
        %v2124 = vpop.f32.mrf.mxu0
        %v2125 = vadd.f32 0.0, %v2124
        %v2126 = vpop.f32.mrf.mxu0
        %v2127 = vadd.f32 0.0, %v2126
        %2128 = vmatmul.bf16.gmra.mxu0 %v2060
        %v2129 = vpop.f32.mrf.mxu0
        %v2130 = vadd.f32 0.0, %v2129
        %v2131 = vpop.f32.mrf.mxu0
        %v2132 = vadd.f32 0.0, %v2131
        %2133 = vmatmul.bf16.gmra.mxu0 %v2063
        %v2134 = vpop.f32.mrf.mxu0
        %v2135 = vadd.f32 0.0, %v2134
        %v2136 = vpop.f32.mrf.mxu0
        %v2137 = vadd.f32 0.0, %v2136
        %2138 = vmatmul.bf16.gmra.mxu0 %v2066
        %v2139 = vpop.f32.mrf.mxu0
        %v2140 = vadd.f32 0.0, %v2139
        %v2141 = vpop.f32.mrf.mxu0
        %v2142 = vadd.f32 0.0, %v2141
        %2143 = vmatmul.bf16.gmra.mxu0 %v2069
        %v2144 = vpop.f32.mrf.mxu0
        %v2145 = vadd.f32 0.0, %v2144
        %v2146 = vpop.f32.mrf.mxu0
        %v2147 = vadd.f32 0.0, %v2146
        %2148 = vmatmul.bf16.gmra.mxu0 %v2072
        %v2149 = vpop.f32.mrf.mxu0
        %v2150 = vadd.f32 0.0, %v2149
        %v2151 = vpop.f32.mrf.mxu0
        %v2152 = vadd.f32 0.0, %v2151
        %2153 = vmatmul.bf16.gmra.mxu0 %v2075
        %v2154 = vpop.f32.mrf.mxu0
        %v2155 = vadd.f32 0.0, %v2154
        %v2156 = vpop.f32.mrf.mxu0
        %v2157 = vadd.f32 0.0, %v2156
        %2158 = vmatmul.bf16.gmra.mxu0 %v2078
        %v2159 = vpop.f32.mrf.mxu0
        %v2160 = vadd.f32 0.0, %v2159
        %v2161 = vpop.f32.mrf.mxu0
        %v2162 = vadd.f32 0.0, %v2161
        %2163 = vmatmul.bf16.gmra.mxu0 %v2081
        %v2164 = vpop.f32.mrf.mxu0
        %v2165 = vadd.f32 0.0, %v2164
        %v2166 = vpop.f32.mrf.mxu0
        %v2167 = vadd.f32 0.0, %v2166
        %2168 = vmatmul.bf16.gmra.mxu0 %v2084
        %v2169 = vpop.f32.mrf.mxu0
        %v2170 = vadd.f32 0.0, %v2169
        %v2171 = vpop.f32.mrf.mxu0
        %v2172 = vadd.f32 0.0, %v2171
        %2173 = vmatmul.bf16.gmra.mxu0 %v2087
        %v2174 = vpop.f32.mrf.mxu0
        %v2175 = vadd.f32 0.0, %v2174
        %v2176 = vpop.f32.mrf.mxu0
        %v2177 = vadd.f32 0.0, %v2176
        %2178 = vmatmul.bf16.gmra.mxu0 %v2090
        %v2179 = vpop.f32.mrf.mxu0
        %v2180 = vadd.f32 0.0, %v2179
        %v2181 = vpop.f32.mrf.mxu0
        %v2182 = vadd.f32 0.0, %v2181
        %2183 = vmatmul.bf16.gmra.mxu0 %v2093
        %v2184 = vpop.f32.mrf.mxu0
        %v2185 = vadd.f32 0.0, %v2184
        %v2186 = vpop.f32.mrf.mxu0
        %v2187 = vadd.f32 0.0, %v2186
        %2188 = vmatmul.bf16.gmra.mxu0 %v2096
        %v2189 = vpop.f32.mrf.mxu0
        %v2190 = vadd.f32 0.0, %v2189
        %v2191 = vpop.f32.mrf.mxu0
        %v2192 = vadd.f32 0.0, %v2191
        %2193 = vmatmul.bf16.gmra.mxu0 %v2099
        %v2194 = vpop.f32.mrf.mxu0
        %v2195 = vadd.f32 0.0, %v2194
        %v2196 = vpop.f32.mrf.mxu0
        %v2197 = vadd.f32 0.0, %v2196
        %2198 = vmatmul.bf16.gmra.mxu0 %v2102
        %v2199 = vpop.f32.mrf.mxu0
        %v2200 = vadd.f32 0.0, %v2199
        %v2201 = vpop.f32.mrf.mxu0
        %v2202 = vadd.f32 0.0, %v2201
        %2203 = vmatmul.bf16.gmra.mxu0 %v2105
        %v2204 = vpop.f32.mrf.mxu0
        %v2205 = vadd.f32 0.0, %v2204
        %v2206 = vpop.f32.mrf.mxu0
        %v2207 = vadd.f32 0.0, %v2206
        %2208 = vdwg.mxu0
        %v2209 = vadd.f32 %v1929, %v2120
        %v2210 = vadd.f32 %v1930, %v2122
        %v2211 = vadd.f32 %v1931, %v2125
        %v2212 = vadd.f32 %v1932, %v2127
        %v2213 = vadd.f32 %v1933, %v2130
        %v2214 = vadd.f32 %v1934, %v2132
        %v2215 = vadd.f32 %v1935, %v2135
        %v2216 = vadd.f32 %v1936, %v2137
        %v2217 = vadd.f32 %v1937, %v2140
        %v2218 = vadd.f32 %v1938, %v2142
        %v2219 = vadd.f32 %v1939, %v2145
        %v2220 = vadd.f32 %v1940, %v2147
        %v2221 = vadd.f32 %v1941, %v2150
        %v2222 = vadd.f32 %v1942, %v2152
        %v2223 = vadd.f32 %v1943, %v2155
        %v2224 = vadd.f32 %v1944, %v2157
        %v2225 = vadd.f32 %v1945, %v2160
        %v2226 = vadd.f32 %v1946, %v2162
        %v2227 = vadd.f32 %v1947, %v2165
        %v2228 = vadd.f32 %v1948, %v2167
        %v2229 = vadd.f32 %v1949, %v2170
        %v2230 = vadd.f32 %v1950, %v2172
        %v2231 = vadd.f32 %v1951, %v2175
        %v2232 = vadd.f32 %v1952, %v2177
        %v2233 = vadd.f32 %v1953, %v2180
        %v2234 = vadd.f32 %v1954, %v2182
        %v2235 = vadd.f32 %v1955, %v2185
        %v2236 = vadd.f32 %v1956, %v2187
        %v2237 = vadd.f32 %v1957, %v2190
        %v2238 = vadd.f32 %v1958, %v2192
        %v2239 = vadd.f32 %v1959, %v2195
        %v2240 = vadd.f32 %v1960, %v2197
        %v2241 = vadd.f32 %v1961, %v2200
        %v2242 = vadd.f32 %v1962, %v2202
        %v2243 = vadd.f32 %v1963, %v2205
        %v2244 = vadd.f32 %v1964, %v2207
        %s2245 = scalar_lea.vmem [#allocation3], 16
        %v2246 = vld [vmem:[%s2245] sm:$0x3]
        %vm2247 = vcmask 1044480
        %v2248 = vrot.slane %v429, 3
        %v2249 = vrot.slane %v430, 3
        %v2250 = vsel %vm2247, %v2248, %v2249
        %v2251 = vrot.slane %v431, 3
        %v2252 = vsel %vm2247, %v2249, %v2251
        %v2253 = vrot.slane %v432, 3
        %v2254 = vsel %vm2247, %v2251, %v2253
        %v2255 = vrot.slane %v433, 3
        %v2256 = vsel %vm2247, %v2253, %v2255
        %v2257 = vrot.slane %v434, 3
        %v2258 = vsel %vm2247, %v2255, %v2257
        %v2259 = vrot.slane %v435, 3
        %v2260 = vsel %vm2247, %v2257, %v2259
        %v2261 = vrot.slane %v436, 3
        %v2262 = vsel %vm2247, %v2259, %v2261
        %v2263 = vrot.slane %v437, 3
        %v2264 = vsel %vm2247, %v2261, %v2263
        %v2265 = vrot.slane %v438, 3
        %v2266 = vsel %vm2247, %v2263, %v2265
        %v2267 = vrot.slane %v439, 3
        %v2268 = vsel %vm2247, %v2265, %v2267
        %v2269 = vrot.slane %v440, 3
        %v2270 = vsel %vm2247, %v2267, %v2269
        %v2271 = vrot.slane %v441, 3
        %v2272 = vsel %vm2247, %v2269, %v2271
        %v2273 = vrot.slane %v442, 3
        %v2274 = vsel %vm2247, %v2271, %v2273
        %v2275 = vrot.slane %v443, 3
        %v2276 = vsel %vm2247, %v2273, %v2275
        %v2277 = vrot.slane %v444, 3
        %v2278 = vsel %vm2247, %v2275, %v2277
        %v2279 = vrot.slane %v1145, 3
        %v2280 = vsel %vm2247, %v2277, %v2279
        %v2281 = vrot.slane %v1811, 3
        %v2282 = vsel %vm2247, %v2279, %v2281
        %v2283 = vrot.slane %v1812, 3
        %v2284 = vsel %vm2247, %v2281, %v2283
        %v2286 = vsel %vm598, %v2250, 0
        %v2289 = vsel %vm598, %v2252, 0
        %v2292 = vsel %vm598, %v2254, 0
        %v2295 = vsel %vm598, %v2256, 0
        %v2298 = vsel %vm598, %v2258, 0
        %v2301 = vsel %vm598, %v2260, 0
        %v2304 = vsel %vm598, %v2262, 0
        %v2307 = vsel %vm598, %v2264, 0
        %v2310 = vsel %vm598, %v2266, 0
        %v2313 = vsel %vm598, %v2268, 0
        %v2316 = vsel %vm598, %v2270, 0
        %v2319 = vsel %vm598, %v2272, 0
        %v2322 = vsel %vm598, %v2274, 0
        %v2325 = vsel %vm598, %v2276, 0
        %v2328 = vsel %vm598, %v2278, 0
        %v2331 = vsel %vm598, %v2280, 0
        %v2334 = vsel %vm598, %v2282, 0
        %v2337 = vsel %vm598, %v2284, 0
        %v2340 = vsel %vm653, %v2246, 0
        %2342 = vmatpush.bf16.msra.mxu0 0
        %2343 = vmatpush.bf16.msra.mxu0 0
        %2344 = vmatpush.bf16.msra.mxu0 0
        %2345 = vmatpush.bf16.msra.mxu0 0
        %2346 = vmatpush.bf16.msra.mxu0 0
        %2347 = vmatpush.bf16.msra.mxu0 0
        %2348 = vmatpush.bf16.msra.mxu0 0
        %2349 = vmatpush.bf16.msra.mxu0 %v2340
        %2350 = vmatmul.bf16.gmra.mxu0 %v2286
        %v2351 = vpop.f32.mrf.mxu0
        %v2352 = vadd.f32 0.0, %v2351
        %v2353 = vpop.f32.mrf.mxu0
        %v2354 = vadd.f32 0.0, %v2353
        %2355 = vmatmul.bf16.gmra.mxu0 %v2289
        %v2356 = vpop.f32.mrf.mxu0
        %v2357 = vadd.f32 0.0, %v2356
        %v2358 = vpop.f32.mrf.mxu0
        %v2359 = vadd.f32 0.0, %v2358
        %2360 = vmatmul.bf16.gmra.mxu0 %v2292
        %v2361 = vpop.f32.mrf.mxu0
        %v2362 = vadd.f32 0.0, %v2361
        %v2363 = vpop.f32.mrf.mxu0
        %v2364 = vadd.f32 0.0, %v2363
        %2365 = vmatmul.bf16.gmra.mxu0 %v2295
        %v2366 = vpop.f32.mrf.mxu0
        %v2367 = vadd.f32 0.0, %v2366
        %v2368 = vpop.f32.mrf.mxu0
        %v2369 = vadd.f32 0.0, %v2368
        %2370 = vmatmul.bf16.gmra.mxu0 %v2298
        %v2371 = vpop.f32.mrf.mxu0
        %v2372 = vadd.f32 0.0, %v2371
        %v2373 = vpop.f32.mrf.mxu0
        %v2374 = vadd.f32 0.0, %v2373
        %2375 = vmatmul.bf16.gmra.mxu0 %v2301
        %v2376 = vpop.f32.mrf.mxu0
        %v2377 = vadd.f32 0.0, %v2376
        %v2378 = vpop.f32.mrf.mxu0
        %v2379 = vadd.f32 0.0, %v2378
        %2380 = vmatmul.bf16.gmra.mxu0 %v2304
        %v2381 = vpop.f32.mrf.mxu0
        %v2382 = vadd.f32 0.0, %v2381
        %v2383 = vpop.f32.mrf.mxu0
        %v2384 = vadd.f32 0.0, %v2383
        %2385 = vmatmul.bf16.gmra.mxu0 %v2307
        %v2386 = vpop.f32.mrf.mxu0
        %v2387 = vadd.f32 0.0, %v2386
        %v2388 = vpop.f32.mrf.mxu0
        %v2389 = vadd.f32 0.0, %v2388
        %2390 = vmatmul.bf16.gmra.mxu0 %v2310
        %v2391 = vpop.f32.mrf.mxu0
        %v2392 = vadd.f32 0.0, %v2391
        %v2393 = vpop.f32.mrf.mxu0
        %v2394 = vadd.f32 0.0, %v2393
        %2395 = vmatmul.bf16.gmra.mxu0 %v2313
        %v2396 = vpop.f32.mrf.mxu0
        %v2397 = vadd.f32 0.0, %v2396
        %v2398 = vpop.f32.mrf.mxu0
        %v2399 = vadd.f32 0.0, %v2398
        %2400 = vmatmul.bf16.gmra.mxu0 %v2316
        %v2401 = vpop.f32.mrf.mxu0
        %v2402 = vadd.f32 0.0, %v2401
        %v2403 = vpop.f32.mrf.mxu0
        %v2404 = vadd.f32 0.0, %v2403
        %2405 = vmatmul.bf16.gmra.mxu0 %v2319
        %v2406 = vpop.f32.mrf.mxu0
        %v2407 = vadd.f32 0.0, %v2406
        %v2408 = vpop.f32.mrf.mxu0
        %v2409 = vadd.f32 0.0, %v2408
        %2410 = vmatmul.bf16.gmra.mxu0 %v2322
        %v2411 = vpop.f32.mrf.mxu0
        %v2412 = vadd.f32 0.0, %v2411
        %v2413 = vpop.f32.mrf.mxu0
        %v2414 = vadd.f32 0.0, %v2413
        %2415 = vmatmul.bf16.gmra.mxu0 %v2325
        %v2416 = vpop.f32.mrf.mxu0
        %v2417 = vadd.f32 0.0, %v2416
        %v2418 = vpop.f32.mrf.mxu0
        %v2419 = vadd.f32 0.0, %v2418
        %2420 = vmatmul.bf16.gmra.mxu0 %v2328
        %v2421 = vpop.f32.mrf.mxu0
        %v2422 = vadd.f32 0.0, %v2421
        %v2423 = vpop.f32.mrf.mxu0
        %v2424 = vadd.f32 0.0, %v2423
        %2425 = vmatmul.bf16.gmra.mxu0 %v2331
        %v2426 = vpop.f32.mrf.mxu0
        %v2427 = vadd.f32 0.0, %v2426
        %v2428 = vpop.f32.mrf.mxu0
        %v2429 = vadd.f32 0.0, %v2428
        %2430 = vmatmul.bf16.gmra.mxu0 %v2334
        %v2431 = vpop.f32.mrf.mxu0
        %v2432 = vadd.f32 0.0, %v2431
        %v2433 = vpop.f32.mrf.mxu0
        %v2434 = vadd.f32 0.0, %v2433
        %2435 = vmatmul.bf16.gmra.mxu0 %v2337
        %v2436 = vpop.f32.mrf.mxu0
        %v2437 = vadd.f32 0.0, %v2436
        %v2438 = vpop.f32.mrf.mxu0
        %v2439 = vadd.f32 0.0, %v2438
        %2440 = vdwg.mxu0
        %v2441 = vadd.f32 %v2209, %v2352
        %v2442 = vadd.f32 %v2210, %v2354
        %v2443 = vadd.f32 %v2211, %v2357
        %v2444 = vadd.f32 %v2212, %v2359
        %v2445 = vadd.f32 %v2213, %v2362
        %v2446 = vadd.f32 %v2214, %v2364
        %v2447 = vadd.f32 %v2215, %v2367
        %v2448 = vadd.f32 %v2216, %v2369
        %v2449 = vadd.f32 %v2217, %v2372
        %v2450 = vadd.f32 %v2218, %v2374
        %v2451 = vadd.f32 %v2219, %v2377
        %v2452 = vadd.f32 %v2220, %v2379
        %v2453 = vadd.f32 %v2221, %v2382
        %v2454 = vadd.f32 %v2222, %v2384
        %v2455 = vadd.f32 %v2223, %v2387
        %v2456 = vadd.f32 %v2224, %v2389
        %v2457 = vadd.f32 %v2225, %v2392
        %v2458 = vadd.f32 %v2226, %v2394
        %v2459 = vadd.f32 %v2227, %v2397
        %v2460 = vadd.f32 %v2228, %v2399
        %v2461 = vadd.f32 %v2229, %v2402
        %v2462 = vadd.f32 %v2230, %v2404
        %v2463 = vadd.f32 %v2231, %v2407
        %v2464 = vadd.f32 %v2232, %v2409
        %v2465 = vadd.f32 %v2233, %v2412
        %v2466 = vadd.f32 %v2234, %v2414
        %v2467 = vadd.f32 %v2235, %v2417
        %v2468 = vadd.f32 %v2236, %v2419
        %v2469 = vadd.f32 %v2237, %v2422
        %v2470 = vadd.f32 %v2238, %v2424
        %v2471 = vadd.f32 %v2239, %v2427
        %v2472 = vadd.f32 %v2240, %v2429
        %v2473 = vadd.f32 %v2241, %v2432
        %v2474 = vadd.f32 %v2242, %v2434
        %v2475 = vadd.f32 %v2243, %v2437
        %v2476 = vadd.f32 %v2244, %v2439
        %v2477 = vld [vmem:[%s2] sm:$0x1]
        %v2479 = vperm.slane %v2477, 0
        %v2481 = vadd.f32 %v2441, %v2479
        %v2482 = vadd.f32 %v2442, %v2479
        %v2483 = vadd.f32 %v2443, %v2479
        %v2484 = vadd.f32 %v2444, %v2479
        %v2485 = vadd.f32 %v2445, %v2479
        %v2486 = vadd.f32 %v2446, %v2479
        %v2487 = vadd.f32 %v2447, %v2479
        %v2488 = vadd.f32 %v2448, %v2479
        %v2489 = vadd.f32 %v2449, %v2479
        %v2490 = vadd.f32 %v2450, %v2479
        %v2491 = vadd.f32 %v2451, %v2479
        %v2492 = vadd.f32 %v2452, %v2479
        %v2493 = vadd.f32 %v2453, %v2479
        %v2494 = vadd.f32 %v2454, %v2479
        %v2495 = vadd.f32 %v2455, %v2479
        %v2496 = vadd.f32 %v2456, %v2479
        %v2497 = vadd.f32 %v2457, %v2479
        %v2498 = vadd.f32 %v2458, %v2479
        %v2499 = vadd.f32 %v2459, %v2479
        %v2500 = vadd.f32 %v2460, %v2479
        %v2501 = vadd.f32 %v2461, %v2479
        %v2502 = vadd.f32 %v2462, %v2479
        %v2503 = vadd.f32 %v2463, %v2479
        %v2504 = vadd.f32 %v2464, %v2479
        %v2505 = vadd.f32 %v2465, %v2479
        %v2506 = vadd.f32 %v2466, %v2479
        %v2507 = vadd.f32 %v2467, %v2479
        %v2508 = vadd.f32 %v2468, %v2479
        %v2509 = vadd.f32 %v2469, %v2479
        %v2510 = vadd.f32 %v2470, %v2479
        %v2511 = vadd.f32 %v2471, %v2479
        %v2512 = vadd.f32 %v2472, %v2479
        %v2513 = vadd.f32 %v2473, %v2479
        %v2514 = vadd.f32 %v2474, %v2479
        %v2515 = vadd.f32 %v2475, %v2479
        %v2516 = vadd.f32 %v2476, %v2479
        %v2517 = vmax.f32 %v2481, 0.0
        %v2518 = vmax.f32 %v2482, 0.0
        %v2519 = vmax.f32 %v2483, 0.0
        %v2520 = vmax.f32 %v2484, 0.0
        %v2521 = vmax.f32 %v2485, 0.0
        %v2522 = vmax.f32 %v2486, 0.0
        %v2523 = vmax.f32 %v2487, 0.0
        %v2524 = vmax.f32 %v2488, 0.0
        %v2525 = vmax.f32 %v2489, 0.0
        %v2526 = vmax.f32 %v2490, 0.0
        %v2527 = vmax.f32 %v2491, 0.0
        %v2528 = vmax.f32 %v2492, 0.0
        %v2529 = vmax.f32 %v2493, 0.0
        %v2530 = vmax.f32 %v2494, 0.0
        %v2531 = vmax.f32 %v2495, 0.0
        %v2532 = vmax.f32 %v2496, 0.0
        %v2533 = vmax.f32 %v2497, 0.0
        %v2534 = vmax.f32 %v2498, 0.0
        %v2535 = vmax.f32 %v2499, 0.0
        %v2536 = vmax.f32 %v2500, 0.0
        %v2537 = vmax.f32 %v2501, 0.0
        %v2538 = vmax.f32 %v2502, 0.0
        %v2539 = vmax.f32 %v2503, 0.0
        %v2540 = vmax.f32 %v2504, 0.0
        %v2541 = vmax.f32 %v2505, 0.0
        %v2542 = vmax.f32 %v2506, 0.0
        %v2543 = vmax.f32 %v2507, 0.0
        %v2544 = vmax.f32 %v2508, 0.0
        %v2545 = vmax.f32 %v2509, 0.0
        %v2546 = vmax.f32 %v2510, 0.0
        %v2547 = vmax.f32 %v2511, 0.0
        %v2548 = vmax.f32 %v2512, 0.0
        %v2549 = vmax.f32 %v2513, 0.0
        %v2550 = vmax.f32 %v2514, 0.0
        %v2551 = vmax.f32 %v2515, 0.0
        %v2552 = vmax.f32 %v2516, 0.0
        %v2553 = vld [vmem:[#allocation7] sm:$0xff]
        %v2554 = vld [vmem:[#allocation7 + $0x8] sm:$0xff]
        %v2555 = vld [vmem:[#allocation7 + $0x10] sm:$0xff]
        %v2556 = vld [vmem:[#allocation7 + $0x18] sm:$0xff]
        %v2557 = vld [vmem:[#allocation7 + $0x20] sm:$0xff]
        %v2558 = vld [vmem:[#allocation7 + $0x28] sm:$0xff]
        %v2559 = vld [vmem:[#allocation7 + $0x30] sm:$0xff]
        %v2560 = vld [vmem:[#allocation7 + $0x38] sm:$0xff]
        %v2561 = vld [vmem:[#allocation7 + $0x40] sm:$0xff]
        %v2562 = vld [vmem:[#allocation7 + $0x48] sm:$0xff]
        %v2563 = vld [vmem:[#allocation7 + $0x50] sm:$0xff]
        %v2564 = vld [vmem:[#allocation7 + $0x58] sm:$0xff]
        %v2565 = vld [vmem:[#allocation7 + $0x60] sm:$0xff]
        %v2566 = vld [vmem:[#allocation7 + $0x68] sm:$0xff]
        %v2567 = vld [vmem:[#allocation7 + $0x70] sm:$0xff]
        %v2568 = vld [vmem:[#allocation7 + $0x78] sm:$0xff]
        %v2569 = vld [vmem:[#allocation7 + $0x80] sm:$0xff]
        %v2570 = vld [vmem:[#allocation7 + $0x88] sm:$0xff]
        %v2571 = vld [vmem:[#allocation7 + $0x90] sm:$0xff]
        %v2572 = vld [vmem:[#allocation7 + $0x98] sm:$0xff]
        %v2573 = vld [vmem:[#allocation7 + $0xa0] sm:$0xff]
        %v2574 = vld [vmem:[#allocation7 + $0xa8] sm:$0xff]
        %v2575 = vld [vmem:[#allocation7 + $0xb0] sm:$0xff]
        %v2576 = vld [vmem:[#allocation7 + $0xb8] sm:$0xff]
        %v2577 = vld [vmem:[#allocation7 + $0xc0] sm:$0xff]
        %v2578 = vld [vmem:[#allocation7 + $0xc8] sm:$0xff]
        %v2579 = vld [vmem:[#allocation7 + $0xd0] sm:$0xff]
        %v2580 = vld [vmem:[#allocation7 + $0xd8] sm:$0xff]
        %v2581 = vld [vmem:[#allocation7 + $0xe0] sm:$0xff]
        %v2582 = vld [vmem:[#allocation7 + $0xe8] sm:$0xff]
        %v2583 = vld [vmem:[#allocation7 + $0xf0] sm:$0xff]
        %v2584 = vld [vmem:[#allocation7 + $0xf8] sm:$0xff]
        %v2585 = vld [vmem:[#allocation7 + $0x100] sm:$0xff]
        %v2586 = vld [vmem:[#allocation7 + $0x108] sm:$0xff]
        %v2587 = vld [vmem:[#allocation7 + $0x110] sm:$0xff]
        %v2588 = vld [vmem:[#allocation7 + $0x118] sm:$0xff]
        %2590 = vset.pattern.permute.xlu0 0
        %2591 = vperm.xlu0 %2590, %v2553
        %v2592 = vpop.permute.xlu0 %2591
        %2595 = vset.pattern.permute.xlu0 0
        %2596 = vperm.xlu0 %2595, %v2554
        %v2597 = vpop.permute.xlu0 %2596
        %2600 = vset.pattern.permute.xlu0 0
        %2601 = vperm.xlu0 %2600, %v2555
        %v2602 = vpop.permute.xlu0 %2601
        %2605 = vset.pattern.permute.xlu0 0
        %2606 = vperm.xlu0 %2605, %v2556
        %v2607 = vpop.permute.xlu0 %2606
        %2610 = vset.pattern.permute.xlu0 0
        %2611 = vperm.xlu0 %2610, %v2557
        %v2612 = vpop.permute.xlu0 %2611
        %2615 = vset.pattern.permute.xlu0 0
        %2616 = vperm.xlu0 %2615, %v2558
        %v2617 = vpop.permute.xlu0 %2616
        %2620 = vset.pattern.permute.xlu0 0
        %2621 = vperm.xlu0 %2620, %v2559
        %v2622 = vpop.permute.xlu0 %2621
        %2625 = vset.pattern.permute.xlu0 0
        %2626 = vperm.xlu0 %2625, %v2560
        %v2627 = vpop.permute.xlu0 %2626
        %2630 = vset.pattern.permute.xlu0 0
        %2631 = vperm.xlu0 %2630, %v2561
        %v2632 = vpop.permute.xlu0 %2631
        %2635 = vset.pattern.permute.xlu0 0
        %2636 = vperm.xlu0 %2635, %v2562
        %v2637 = vpop.permute.xlu0 %2636
        %2640 = vset.pattern.permute.xlu0 0
        %2641 = vperm.xlu0 %2640, %v2563
        %v2642 = vpop.permute.xlu0 %2641
        %2645 = vset.pattern.permute.xlu0 0
        %2646 = vperm.xlu0 %2645, %v2564
        %v2647 = vpop.permute.xlu0 %2646
        %2650 = vset.pattern.permute.xlu0 0
        %2651 = vperm.xlu0 %2650, %v2565
        %v2652 = vpop.permute.xlu0 %2651
        %2655 = vset.pattern.permute.xlu0 0
        %2656 = vperm.xlu0 %2655, %v2566
        %v2657 = vpop.permute.xlu0 %2656
        %2660 = vset.pattern.permute.xlu0 0
        %2661 = vperm.xlu0 %2660, %v2567
        %v2662 = vpop.permute.xlu0 %2661
        %2665 = vset.pattern.permute.xlu0 0
        %2666 = vperm.xlu0 %2665, %v2568
        %v2667 = vpop.permute.xlu0 %2666
        %2670 = vset.pattern.permute.xlu0 0
        %2671 = vperm.xlu0 %2670, %v2569
        %v2672 = vpop.permute.xlu0 %2671
        %2675 = vset.pattern.permute.xlu0 0
        %2676 = vperm.xlu0 %2675, %v2570
        %v2677 = vpop.permute.xlu0 %2676
        %2680 = vset.pattern.permute.xlu0 0
        %2681 = vperm.xlu0 %2680, %v2571
        %v2682 = vpop.permute.xlu0 %2681
        %2685 = vset.pattern.permute.xlu0 0
        %2686 = vperm.xlu0 %2685, %v2572
        %v2687 = vpop.permute.xlu0 %2686
        %2690 = vset.pattern.permute.xlu0 0
        %2691 = vperm.xlu0 %2690, %v2573
        %v2692 = vpop.permute.xlu0 %2691
        %2695 = vset.pattern.permute.xlu0 0
        %2696 = vperm.xlu0 %2695, %v2574
        %v2697 = vpop.permute.xlu0 %2696
        %2700 = vset.pattern.permute.xlu0 0
        %2701 = vperm.xlu0 %2700, %v2575
        %v2702 = vpop.permute.xlu0 %2701
        %2705 = vset.pattern.permute.xlu0 0
        %2706 = vperm.xlu0 %2705, %v2576
        %v2707 = vpop.permute.xlu0 %2706
        %2710 = vset.pattern.permute.xlu0 0
        %2711 = vperm.xlu0 %2710, %v2577
        %v2712 = vpop.permute.xlu0 %2711
        %2715 = vset.pattern.permute.xlu0 0
        %2716 = vperm.xlu0 %2715, %v2578
        %v2717 = vpop.permute.xlu0 %2716
        %2720 = vset.pattern.permute.xlu0 0
        %2721 = vperm.xlu0 %2720, %v2579
        %v2722 = vpop.permute.xlu0 %2721
        %2725 = vset.pattern.permute.xlu0 0
        %2726 = vperm.xlu0 %2725, %v2580
        %v2727 = vpop.permute.xlu0 %2726
        %2730 = vset.pattern.permute.xlu0 0
        %2731 = vperm.xlu0 %2730, %v2581
        %v2732 = vpop.permute.xlu0 %2731
        %2735 = vset.pattern.permute.xlu0 0
        %2736 = vperm.xlu0 %2735, %v2582
        %v2737 = vpop.permute.xlu0 %2736
        %2740 = vset.pattern.permute.xlu0 0
        %2741 = vperm.xlu0 %2740, %v2583
        %v2742 = vpop.permute.xlu0 %2741
        %2745 = vset.pattern.permute.xlu0 0
        %2746 = vperm.xlu0 %2745, %v2584
        %v2747 = vpop.permute.xlu0 %2746
        %2750 = vset.pattern.permute.xlu0 0
        %2751 = vperm.xlu0 %2750, %v2585
        %v2752 = vpop.permute.xlu0 %2751
        %2755 = vset.pattern.permute.xlu0 0
        %2756 = vperm.xlu0 %2755, %v2586
        %v2757 = vpop.permute.xlu0 %2756
        %2760 = vset.pattern.permute.xlu0 0
        %2761 = vperm.xlu0 %2760, %v2587
        %v2762 = vpop.permute.xlu0 %2761
        %2765 = vset.pattern.permute.xlu0 0
        %2766 = vperm.xlu0 %2765, %v2588
        %v2767 = vpop.permute.xlu0 %2766
        %v2769 = vmul.f32 %v2517, %v2592
        %v2770 = vmul.f32 %v2518, %v2597
        %v2771 = vmul.f32 %v2519, %v2602
        %v2772 = vmul.f32 %v2520, %v2607
        %v2773 = vmul.f32 %v2521, %v2612
        %v2774 = vmul.f32 %v2522, %v2617
        %v2775 = vmul.f32 %v2523, %v2622
        %v2776 = vmul.f32 %v2524, %v2627
        %v2777 = vmul.f32 %v2525, %v2632
        %v2778 = vmul.f32 %v2526, %v2637
        %v2779 = vmul.f32 %v2527, %v2642
        %v2780 = vmul.f32 %v2528, %v2647
        %v2781 = vmul.f32 %v2529, %v2652
        %v2782 = vmul.f32 %v2530, %v2657
        %v2783 = vmul.f32 %v2531, %v2662
        %v2784 = vmul.f32 %v2532, %v2667
        %v2785 = vmul.f32 %v2533, %v2672
        %v2786 = vmul.f32 %v2534, %v2677
        %v2787 = vmul.f32 %v2535, %v2682
        %v2788 = vmul.f32 %v2536, %v2687
        %v2789 = vmul.f32 %v2537, %v2692
        %v2790 = vmul.f32 %v2538, %v2697
        %v2791 = vmul.f32 %v2539, %v2702
        %v2792 = vmul.f32 %v2540, %v2707
        %v2793 = vmul.f32 %v2541, %v2712
        %v2794 = vmul.f32 %v2542, %v2717
        %v2795 = vmul.f32 %v2543, %v2722
        %v2796 = vmul.f32 %v2544, %v2727
        %v2797 = vmul.f32 %v2545, %v2732
        %v2798 = vmul.f32 %v2546, %v2737
        %v2799 = vmul.f32 %v2547, %v2742
        %v2800 = vmul.f32 %v2548, %v2747
        %v2801 = vmul.f32 %v2549, %v2752
        %v2802 = vmul.f32 %v2550, %v2757
        %v2803 = vmul.f32 %v2551, %v2762
        %v2804 = vmul.f32 %v2552, %v2767
        %vm2805 = vcmask 261120
        %2806 = vst.msk [vmem:[#allocation2] sm:$0xff] %vm2805, 0.0
        %2807 = vst.msk [vmem:[#allocation2 + $0x8] sm:$0xff] %vm2805, 0.0
        %2808 = vst.msk [vmem:[#allocation2 + $0x10] sm:$0xff] %vm2805, 0.0
        %2809 = vst.msk [vmem:[#allocation2 + $0x18] sm:$0xff] %vm2805, 0.0
        %2810 = vst.msk [vmem:[#allocation2 + $0x20] sm:$0xff] %vm2805, 0.0
        %2811 = vst.msk [vmem:[#allocation2 + $0x28] sm:$0xff] %vm2805, 0.0
        %2812 = vst.msk [vmem:[#allocation2 + $0x30] sm:$0xff] %vm2805, 0.0
        %2813 = vst.msk [vmem:[#allocation2 + $0x38] sm:$0xff] %vm2805, 0.0
        %2814 = vst.msk [vmem:[#allocation2 + $0x40] sm:$0xff] %vm2805, 0.0
        %2815 = vst.msk [vmem:[#allocation2 + $0x48] sm:$0xff] %vm2805, 0.0
        %2816 = vst.msk [vmem:[#allocation2 + $0x50] sm:$0xff] %vm2805, 0.0
        %2817 = vst.msk [vmem:[#allocation2 + $0x58] sm:$0xff] %vm2805, 0.0
        %2818 = vst.msk [vmem:[#allocation2 + $0x60] sm:$0xff] %vm2805, 0.0
        %2819 = vst.msk [vmem:[#allocation2 + $0x68] sm:$0xff] %vm2805, 0.0
        %2820 = vst.msk [vmem:[#allocation2 + $0x70] sm:$0xff] %vm2805, 0.0
        %2821 = vst.msk [vmem:[#allocation2 + $0x78] sm:$0xff] %vm2805, 0.0
        %2822 = vst.msk [vmem:[#allocation2 + $0x80] sm:$0xff] %vm2805, 0.0
        %2823 = vst.msk [vmem:[#allocation2 + $0x88] sm:$0xff] %vm2805, 0.0
        %2824 = vst.msk [vmem:[#allocation2 + $0x90] sm:$0xff] %vm2805, 0.0
        %2825 = vst.msk [vmem:[#allocation2 + $0x98] sm:$0xff] %vm2805, 0.0
        %2826 = vst.msk [vmem:[#allocation2 + $0xa0] sm:$0xff] %vm2805, 0.0
        %2827 = vst.msk [vmem:[#allocation2 + $0xa8] sm:$0xff] %vm2805, 0.0
        %2828 = vst.msk [vmem:[#allocation2 + $0xb0] sm:$0xff] %vm2805, 0.0
        %2829 = vst.msk [vmem:[#allocation2 + $0xb8] sm:$0xff] %vm2805, 0.0
        %2830 = vst.msk [vmem:[#allocation2 + $0xc0] sm:$0xff] %vm2805, 0.0
        %2831 = vst.msk [vmem:[#allocation2 + $0xc8] sm:$0xff] %vm2805, 0.0
        %2832 = vst.msk [vmem:[#allocation2 + $0xd0] sm:$0xff] %vm2805, 0.0
        %2833 = vst.msk [vmem:[#allocation2 + $0xd8] sm:$0xff] %vm2805, 0.0
        %2834 = vst.msk [vmem:[#allocation2 + $0xe0] sm:$0xff] %vm2805, 0.0
        %2835 = vst.msk [vmem:[#allocation2 + $0xe8] sm:$0xff] %vm2805, 0.0
        %2836 = vst.msk [vmem:[#allocation2 + $0xf0] sm:$0xff] %vm2805, 0.0
        %2837 = vst.msk [vmem:[#allocation2 + $0xf8] sm:$0xff] %vm2805, 0.0
        %2838 = vst.msk [vmem:[#allocation2 + $0x100] sm:$0xff] %vm2805, 0.0
        %2839 = vst.msk [vmem:[#allocation2 + $0x108] sm:$0xff] %vm2805, 0.0
        %2840 = vst.msk [vmem:[#allocation2 + $0x110] sm:$0xff] %vm2805, 0.0
        %2841 = vst.msk [vmem:[#allocation2 + $0x118] sm:$0xff] %vm2805, 0.0
        %2842 = vst.msk [vmem:[#allocation2 + $0x120] sm:$0xff] %vm2805, 0.0
        %2843 = vst.msk [vmem:[#allocation2 + $0x128] sm:$0xff] %vm2805, 0.0
        %2844 = vst.msk [vmem:[#allocation2 + $0x130] sm:$0xff] %vm2805, 0.0
        %2845 = vst.msk [vmem:[#allocation2 + $0x138] sm:$0xff] %vm2805, 0.0
        %2846 = vst.msk [vmem:[#allocation2 + $0x140] sm:$0xff] %vm2805, 0.0
        %2847 = vst.msk [vmem:[#allocation2 + $0x148] sm:$0xff] %vm2805, 0.0
        %vm2848 = vcmask 259072
        %2849 = vst.msk [vmem:[#allocation2 + $0x150] sm:$0x3f] %vm2848, 0.0
        %2850 = vst.msk [vmem:[#allocation2 + $0x13] sm:$0xff] %vm2805, %v2769
        %2851 = vst.msk [vmem:[#allocation2 + $0x1b] sm:$0xff] %vm2805, %v2770
        %2852 = vst.msk [vmem:[#allocation2 + $0x23] sm:$0xff] %vm2805, %v2771
        %2853 = vst.msk [vmem:[#allocation2 + $0x2b] sm:$0xff] %vm2805, %v2772
        %2854 = vst.msk [vmem:[#allocation2 + $0x33] sm:$0xff] %vm2805, %v2773
        %2855 = vst.msk [vmem:[#allocation2 + $0x3b] sm:$0xff] %vm2805, %v2774
        %2856 = vst.msk [vmem:[#allocation2 + $0x43] sm:$0xff] %vm2805, %v2775
        %2857 = vst.msk [vmem:[#allocation2 + $0x4b] sm:$0xff] %vm2805, %v2776
        %2858 = vst.msk [vmem:[#allocation2 + $0x53] sm:$0xff] %vm2805, %v2777
        %2859 = vst.msk [vmem:[#allocation2 + $0x5b] sm:$0xff] %vm2805, %v2778
        %2860 = vst.msk [vmem:[#allocation2 + $0x63] sm:$0xff] %vm2805, %v2779
        %2861 = vst.msk [vmem:[#allocation2 + $0x6b] sm:$0xff] %vm2805, %v2780
        %2862 = vst.msk [vmem:[#allocation2 + $0x73] sm:$0xff] %vm2805, %v2781
        %2863 = vst.msk [vmem:[#allocation2 + $0x7b] sm:$0xff] %vm2805, %v2782
        %2864 = vst.msk [vmem:[#allocation2 + $0x83] sm:$0xff] %vm2805, %v2783
        %2865 = vst.msk [vmem:[#allocation2 + $0x8b] sm:$0xff] %vm2805, %v2784
        %2866 = vst.msk [vmem:[#allocation2 + $0x93] sm:$0xff] %vm2805, %v2785
        %2867 = vst.msk [vmem:[#allocation2 + $0x9b] sm:$0xff] %vm2805, %v2786
        %2868 = vst.msk [vmem:[#allocation2 + $0xa3] sm:$0xff] %vm2805, %v2787
        %2869 = vst.msk [vmem:[#allocation2 + $0xab] sm:$0xff] %vm2805, %v2788
        %2870 = vst.msk [vmem:[#allocation2 + $0xb3] sm:$0xff] %vm2805, %v2789
        %2871 = vst.msk [vmem:[#allocation2 + $0xbb] sm:$0xff] %vm2805, %v2790
        %2872 = vst.msk [vmem:[#allocation2 + $0xc3] sm:$0xff] %vm2805, %v2791
        %2873 = vst.msk [vmem:[#allocation2 + $0xcb] sm:$0xff] %vm2805, %v2792
        %2874 = vst.msk [vmem:[#allocation2 + $0xd3] sm:$0xff] %vm2805, %v2793
        %2875 = vst.msk [vmem:[#allocation2 + $0xdb] sm:$0xff] %vm2805, %v2794
        %2876 = vst.msk [vmem:[#allocation2 + $0xe3] sm:$0xff] %vm2805, %v2795
        %2877 = vst.msk [vmem:[#allocation2 + $0xeb] sm:$0xff] %vm2805, %v2796
        %2878 = vst.msk [vmem:[#allocation2 + $0xf3] sm:$0xff] %vm2805, %v2797
        %2879 = vst.msk [vmem:[#allocation2 + $0xfb] sm:$0xff] %vm2805, %v2798
        %2880 = vst.msk [vmem:[#allocation2 + $0x103] sm:$0xff] %vm2805, %v2799
        %2881 = vst.msk [vmem:[#allocation2 + $0x10b] sm:$0xff] %vm2805, %v2800
        %2882 = vst.msk [vmem:[#allocation2 + $0x113] sm:$0xff] %vm2805, %v2801
        %2883 = vst.msk [vmem:[#allocation2 + $0x11b] sm:$0xff] %vm2805, %v2802
        %2884 = vst.msk [vmem:[#allocation2 + $0x123] sm:$0xff] %vm2805, %v2803
        %2885 = vst.msk [vmem:[#allocation2 + $0x12b] sm:$0xff] %vm2805, %v2804
        %v2886 = vld [vmem:[#allocation2] sm:$0xff]
        %v2887 = vld [vmem:[#allocation2 + $0x8] sm:$0xff]
        %v2888 = vld [vmem:[#allocation2 + $0x10] sm:$0xff]
        %v2889 = vld [vmem:[#allocation2 + $0x18] sm:$0xff]
        %v2890 = vld [vmem:[#allocation2 + $0x20] sm:$0xff]
        %v2891 = vld [vmem:[#allocation2 + $0x28] sm:$0xff]
        %v2892 = vld [vmem:[#allocation2 + $0x30] sm:$0xff]
        %v2893 = vld [vmem:[#allocation2 + $0x38] sm:$0xff]
        %v2894 = vld [vmem:[#allocation2 + $0x40] sm:$0xff]
        %v2895 = vld [vmem:[#allocation2 + $0x48] sm:$0xff]
        %v2896 = vld [vmem:[#allocation2 + $0x50] sm:$0xff]
        %v2897 = vld [vmem:[#allocation2 + $0x58] sm:$0xff]
        %v2898 = vld [vmem:[#allocation2 + $0x60] sm:$0xff]
        %v2899 = vld [vmem:[#allocation2 + $0x68] sm:$0xff]
        %v2900 = vld [vmem:[#allocation2 + $0x70] sm:$0xff]
        %v2901 = vld [vmem:[#allocation2 + $0x78] sm:$0xff]
        %v2902 = vld [vmem:[#allocation2 + $0x80] sm:$0xff]
        %v2903 = vld [vmem:[#allocation2 + $0x88] sm:$0xff]
        %v2904 = vld [vmem:[#allocation2 + $0x90] sm:$0xff]
        %v2905 = vld [vmem:[#allocation2 + $0x98] sm:$0xff]
        %v2906 = vld [vmem:[#allocation2 + $0xa0] sm:$0xff]
        %v2907 = vld [vmem:[#allocation2 + $0xa8] sm:$0xff]
        %v2908 = vld [vmem:[#allocation2 + $0xb0] sm:$0xff]
        %v2909 = vld [vmem:[#allocation2 + $0xb8] sm:$0xff]
        %v2910 = vld [vmem:[#allocation2 + $0xc0] sm:$0xff]
        %v2911 = vld [vmem:[#allocation2 + $0xc8] sm:$0xff]
        %v2912 = vld [vmem:[#allocation2 + $0xd0] sm:$0xff]
        %v2913 = vld [vmem:[#allocation2 + $0xd8] sm:$0xff]
        %v2914 = vld [vmem:[#allocation2 + $0xe0] sm:$0xff]
        %v2915 = vld [vmem:[#allocation2 + $0xe8] sm:$0xff]
        %v2916 = vld [vmem:[#allocation2 + $0xf0] sm:$0xff]
        %v2917 = vld [vmem:[#allocation2 + $0xf8] sm:$0xff]
        %v2918 = vld [vmem:[#allocation2 + $0x100] sm:$0xff]
        %v2919 = vld [vmem:[#allocation2 + $0x108] sm:$0xff]
        %v2920 = vld [vmem:[#allocation2 + $0x110] sm:$0xff]
        %v2921 = vld [vmem:[#allocation2 + $0x118] sm:$0xff]
        %v2922 = vld [vmem:[#allocation2 + $0x120] sm:$0xff]
        %v2923 = vld [vmem:[#allocation2 + $0x128] sm:$0xff]
        %v2924 = vld [vmem:[#allocation2 + $0x130] sm:$0xff]
        %v2925 = vld [vmem:[#allocation2 + $0x138] sm:$0xff]
        %v2926 = vld [vmem:[#allocation2 + $0x140] sm:$0xff]
        %v2927 = vpack.c.bf16 %v2887, %v2886
        %v2928 = vpack.c.bf16 %v2889, %v2888
        %v2929 = vpack.c.bf16 %v2891, %v2890
        %v2930 = vpack.c.bf16 %v2893, %v2892
        %v2931 = vpack.c.bf16 %v2895, %v2894
        %v2932 = vpack.c.bf16 %v2897, %v2896
        %v2933 = vpack.c.bf16 %v2899, %v2898
        %v2934 = vpack.c.bf16 %v2901, %v2900
        %v2935 = vpack.c.bf16 %v2903, %v2902
        %v2936 = vpack.c.bf16 %v2905, %v2904
        %v2937 = vpack.c.bf16 %v2907, %v2906
        %v2938 = vpack.c.bf16 %v2909, %v2908
        %v2939 = vpack.c.bf16 %v2911, %v2910
        %v2940 = vpack.c.bf16 %v2913, %v2912
        %v2941 = vpack.c.bf16 %v2915, %v2914
        %v2942 = vpack.c.bf16 %v2917, %v2916
        %v2943 = vpack.c.bf16 %v2919, %v2918
        %v2944 = vpack.c.bf16 %v2921, %v2920
        %v2945 = vld [vmem:[%s3] sm:$0xf]
        %v2946 = vld [vmem:[%s3 + $0x4] sm:$0xf]
        %v2947 = vld [vmem:[%s3 + $0x8] sm:$0xf]
        %v2948 = vld [vmem:[%s3 + $0xc] sm:$0xf]
        %v2949 = vpack.c.bf16 %v2922, %v2922
        %s2950 = scalar_lea.vmem %s3, 16
        %v2951 = vld [vmem:[%s2950] sm:$0xf]
        %v2952 = vld [vmem:[%s2950 + $0x4] sm:$0xf]
        %v2953 = vld [vmem:[%s2950 + $0x8] sm:$0xf]
        %v2954 = vld [vmem:[%s2950 + $0xc] sm:$0xf]
        %v2956 = vshrl.u32 %v2927, 16
        %v2958 = vshll.u32 %v2927, 16
        %v2960 = vrot.slane %v2958, 1
        %v2961 = vor.u32 %v2956, %v2960
        %v2963 = vshll.u32 %v2928, 16
        %v2965 = vrot.slane %v2963, 1
        %v2966 = vsel %vm449, %v2961, %v2965
        %v2967 = vshrl.u32 %v2928, 16
        %v2969 = vor.u32 %v2967, %v2965
        %v2971 = vshll.u32 %v2929, 16
        %v2973 = vrot.slane %v2971, 1
        %v2974 = vsel %vm449, %v2969, %v2973
        %v2975 = vshrl.u32 %v2929, 16
        %v2977 = vor.u32 %v2975, %v2973
        %v2979 = vshll.u32 %v2930, 16
        %v2981 = vrot.slane %v2979, 1
        %v2982 = vsel %vm449, %v2977, %v2981
        %v2983 = vshrl.u32 %v2930, 16
        %v2985 = vor.u32 %v2983, %v2981
        %v2987 = vshll.u32 %v2931, 16
        %v2989 = vrot.slane %v2987, 1
        %v2990 = vsel %vm449, %v2985, %v2989
        %v2991 = vshrl.u32 %v2931, 16
        %v2993 = vor.u32 %v2991, %v2989
        %v2995 = vshll.u32 %v2932, 16
        %v2997 = vrot.slane %v2995, 1
        %v2998 = vsel %vm449, %v2993, %v2997
        %v2999 = vshrl.u32 %v2932, 16
        %v3001 = vor.u32 %v2999, %v2997
        %v3003 = vshll.u32 %v2933, 16
        %v3005 = vrot.slane %v3003, 1
        %v3006 = vsel %vm449, %v3001, %v3005
        %v3007 = vshrl.u32 %v2933, 16
        %v3009 = vor.u32 %v3007, %v3005
        %v3011 = vshll.u32 %v2934, 16
        %v3013 = vrot.slane %v3011, 1
        %v3014 = vsel %vm449, %v3009, %v3013
        %v3015 = vshrl.u32 %v2934, 16
        %v3017 = vor.u32 %v3015, %v3013
        %v3019 = vshll.u32 %v2935, 16
        %v3021 = vrot.slane %v3019, 1
        %v3022 = vsel %vm449, %v3017, %v3021
        %v3023 = vshrl.u32 %v2935, 16
        %v3025 = vor.u32 %v3023, %v3021
        %v3027 = vshll.u32 %v2936, 16
        %v3029 = vrot.slane %v3027, 1
        %v3030 = vsel %vm449, %v3025, %v3029
        %v3031 = vshrl.u32 %v2936, 16
        %v3033 = vor.u32 %v3031, %v3029
        %v3035 = vshll.u32 %v2937, 16
        %v3037 = vrot.slane %v3035, 1
        %v3038 = vsel %vm449, %v3033, %v3037
        %v3039 = vshrl.u32 %v2937, 16
        %v3041 = vor.u32 %v3039, %v3037
        %v3043 = vshll.u32 %v2938, 16
        %v3045 = vrot.slane %v3043, 1
        %v3046 = vsel %vm449, %v3041, %v3045
        %v3047 = vshrl.u32 %v2938, 16
        %v3049 = vor.u32 %v3047, %v3045
        %v3051 = vshll.u32 %v2939, 16
        %v3053 = vrot.slane %v3051, 1
        %v3054 = vsel %vm449, %v3049, %v3053
        %v3055 = vshrl.u32 %v2939, 16
        %v3057 = vor.u32 %v3055, %v3053
        %v3059 = vshll.u32 %v2940, 16
        %v3061 = vrot.slane %v3059, 1
        %v3062 = vsel %vm449, %v3057, %v3061
        %v3063 = vshrl.u32 %v2940, 16
        %v3065 = vor.u32 %v3063, %v3061
        %v3067 = vshll.u32 %v2941, 16
        %v3069 = vrot.slane %v3067, 1
        %v3070 = vsel %vm449, %v3065, %v3069
        %v3071 = vshrl.u32 %v2941, 16
        %v3073 = vor.u32 %v3071, %v3069
        %v3075 = vshll.u32 %v2942, 16
        %v3077 = vrot.slane %v3075, 1
        %v3078 = vsel %vm449, %v3073, %v3077
        %v3079 = vshrl.u32 %v2942, 16
        %v3081 = vor.u32 %v3079, %v3077
        %v3083 = vshll.u32 %v2943, 16
        %v3085 = vrot.slane %v3083, 1
        %v3086 = vsel %vm449, %v3081, %v3085
        %v3087 = vshrl.u32 %v2943, 16
        %v3089 = vor.u32 %v3087, %v3085
        %v3091 = vshll.u32 %v2944, 16
        %v3093 = vrot.slane %v3091, 1
        %v3094 = vsel %vm449, %v3089, %v3093
        %v3095 = vshrl.u32 %v2944, 16
        %v3097 = vor.u32 %v3095, %v3093
        %v3099 = vshll.u32 %v2949, 16
        %v3101 = vrot.slane %v3099, 1
        %v3102 = vsel %vm449, %v3097, %v3101
        %v3107 = vunpack.c.l.b16 %v2951
        %v3108 = vunpack.c.l.b16 %v2952
        %v3109 = vunpack.c.l.b16 %v2953
        %v3110 = vunpack.c.l.b16 %v2954
        %v3111 = vpack.c.b16 %v3108, %v3107
        %v3112 = vpack.c.b16 %v3110, %v3109
        %v3116 = vsel %vm2805, %v2966, 0
        %v3119 = vsel %vm2805, %v2974, 0
        %v3122 = vsel %vm2805, %v2982, 0
        %v3125 = vsel %vm2805, %v2990, 0
        %v3128 = vsel %vm2805, %v2998, 0
        %v3131 = vsel %vm2805, %v3006, 0
        %v3134 = vsel %vm2805, %v3014, 0
        %v3137 = vsel %vm2805, %v3022, 0
        %v3140 = vsel %vm2805, %v3030, 0
        %v3143 = vsel %vm2805, %v3038, 0
        %v3146 = vsel %vm2805, %v3046, 0
        %v3149 = vsel %vm2805, %v3054, 0
        %v3152 = vsel %vm2805, %v3062, 0
        %v3155 = vsel %vm2805, %v3070, 0
        %v3158 = vsel %vm2805, %v3078, 0
        %v3161 = vsel %vm2805, %v3086, 0
        %v3164 = vsel %vm2805, %v3094, 0
        %v3167 = vsel %vm2805, %v3102, 0
        %3169 = vmatpush.bf16.msra.mxu0 0
        %3170 = vmatpush.bf16.msra.mxu0 0
        %3171 = vmatpush.bf16.msra.mxu0 0
        %3172 = vmatpush.bf16.msra.mxu0 0
        %3173 = vmatpush.bf16.msra.mxu0 0
        %3174 = vmatpush.bf16.msra.mxu0 0
        %3175 = vmatpush.bf16.msra.mxu0 %v3112
        %3176 = vmatpush.bf16.msra.mxu0 %v3111
        %3177 = vmatmul.bf16.gmra.mxu0 %v3116
        %v3178 = vpop.f32.mrf.mxu0
        %v3179 = vadd.f32 0.0, %v3178
        %v3180 = vpop.f32.mrf.mxu0
        %v3181 = vadd.f32 0.0, %v3180
        %3182 = vmatmul.bf16.gmra.mxu0 %v3119
        %v3183 = vpop.f32.mrf.mxu0
        %v3184 = vadd.f32 0.0, %v3183
        %v3185 = vpop.f32.mrf.mxu0
        %v3186 = vadd.f32 0.0, %v3185
        %3187 = vmatmul.bf16.gmra.mxu0 %v3122
        %v3188 = vpop.f32.mrf.mxu0
        %v3189 = vadd.f32 0.0, %v3188
        %v3190 = vpop.f32.mrf.mxu0
        %v3191 = vadd.f32 0.0, %v3190
        %3192 = vmatmul.bf16.gmra.mxu0 %v3125
        %v3193 = vpop.f32.mrf.mxu0
        %v3194 = vadd.f32 0.0, %v3193
        %v3195 = vpop.f32.mrf.mxu0
        %v3196 = vadd.f32 0.0, %v3195
        %3197 = vmatmul.bf16.gmra.mxu0 %v3128
        %v3198 = vpop.f32.mrf.mxu0
        %v3199 = vadd.f32 0.0, %v3198
        %v3200 = vpop.f32.mrf.mxu0
        %v3201 = vadd.f32 0.0, %v3200
        %3202 = vmatmul.bf16.gmra.mxu0 %v3131
        %v3203 = vpop.f32.mrf.mxu0
        %v3204 = vadd.f32 0.0, %v3203
        %v3205 = vpop.f32.mrf.mxu0
        %v3206 = vadd.f32 0.0, %v3205
        %3207 = vmatmul.bf16.gmra.mxu0 %v3134
        %v3208 = vpop.f32.mrf.mxu0
        %v3209 = vadd.f32 0.0, %v3208
        %v3210 = vpop.f32.mrf.mxu0
        %v3211 = vadd.f32 0.0, %v3210
        %3212 = vmatmul.bf16.gmra.mxu0 %v3137
        %v3213 = vpop.f32.mrf.mxu0
        %v3214 = vadd.f32 0.0, %v3213
        %v3215 = vpop.f32.mrf.mxu0
        %v3216 = vadd.f32 0.0, %v3215
        %3217 = vmatmul.bf16.gmra.mxu0 %v3140
        %v3218 = vpop.f32.mrf.mxu0
        %v3219 = vadd.f32 0.0, %v3218
        %v3220 = vpop.f32.mrf.mxu0
        %v3221 = vadd.f32 0.0, %v3220
        %3222 = vmatmul.bf16.gmra.mxu0 %v3143
        %v3223 = vpop.f32.mrf.mxu0
        %v3224 = vadd.f32 0.0, %v3223
        %v3225 = vpop.f32.mrf.mxu0
        %v3226 = vadd.f32 0.0, %v3225
        %3227 = vmatmul.bf16.gmra.mxu0 %v3146
        %v3228 = vpop.f32.mrf.mxu0
        %v3229 = vadd.f32 0.0, %v3228
        %v3230 = vpop.f32.mrf.mxu0
        %v3231 = vadd.f32 0.0, %v3230
        %3232 = vmatmul.bf16.gmra.mxu0 %v3149
        %v3233 = vpop.f32.mrf.mxu0
        %v3234 = vadd.f32 0.0, %v3233
        %v3235 = vpop.f32.mrf.mxu0
        %v3236 = vadd.f32 0.0, %v3235
        %3237 = vmatmul.bf16.gmra.mxu0 %v3152
        %v3238 = vpop.f32.mrf.mxu0
        %v3239 = vadd.f32 0.0, %v3238
        %v3240 = vpop.f32.mrf.mxu0
        %v3241 = vadd.f32 0.0, %v3240
        %3242 = vmatmul.bf16.gmra.mxu0 %v3155
        %v3243 = vpop.f32.mrf.mxu0
        %v3244 = vadd.f32 0.0, %v3243
        %v3245 = vpop.f32.mrf.mxu0
        %v3246 = vadd.f32 0.0, %v3245
        %3247 = vmatmul.bf16.gmra.mxu0 %v3158
        %v3248 = vpop.f32.mrf.mxu0
        %v3249 = vadd.f32 0.0, %v3248
        %v3250 = vpop.f32.mrf.mxu0
        %v3251 = vadd.f32 0.0, %v3250
        %3252 = vmatmul.bf16.gmra.mxu0 %v3161
        %v3253 = vpop.f32.mrf.mxu0
        %v3254 = vadd.f32 0.0, %v3253
        %v3255 = vpop.f32.mrf.mxu0
        %v3256 = vadd.f32 0.0, %v3255
        %3257 = vmatmul.bf16.gmra.mxu0 %v3164
        %v3258 = vpop.f32.mrf.mxu0
        %v3259 = vadd.f32 0.0, %v3258
        %v3260 = vpop.f32.mrf.mxu0
        %v3261 = vadd.f32 0.0, %v3260
        %3262 = vmatmul.bf16.gmra.mxu0 %v3167
        %v3263 = vpop.f32.mrf.mxu0
        %v3264 = vadd.f32 0.0, %v3263
        %v3265 = vpop.f32.mrf.mxu0
        %v3266 = vadd.f32 0.0, %v3265
        %3267 = vdwg.mxu0
        %v3272 = vunpack.c.l.b16 %v2945
        %v3273 = vunpack.c.l.b16 %v2946
        %v3274 = vunpack.c.l.b16 %v2947
        %v3275 = vunpack.c.l.b16 %v2948
        %v3276 = vpack.c.b16 %v3273, %v3272
        %v3277 = vpack.c.b16 %v3275, %v3274
        %v3280 = vsel %vm2805, %v2927, 0
        %v3282 = vsel %vm2805, %v2928, 0
        %v3284 = vsel %vm2805, %v2929, 0
        %v3286 = vsel %vm2805, %v2930, 0
        %v3288 = vsel %vm2805, %v2931, 0
        %v3290 = vsel %vm2805, %v2932, 0
        %v3292 = vsel %vm2805, %v2933, 0
        %v3294 = vsel %vm2805, %v2934, 0
        %v3296 = vsel %vm2805, %v2935, 0
        %v3298 = vsel %vm2805, %v2936, 0
        %v3300 = vsel %vm2805, %v2937, 0
        %v3302 = vsel %vm2805, %v2938, 0
        %v3304 = vsel %vm2805, %v2939, 0
        %v3306 = vsel %vm2805, %v2940, 0
        %v3308 = vsel %vm2805, %v2941, 0
        %v3310 = vsel %vm2805, %v2942, 0
        %v3312 = vsel %vm2805, %v2943, 0
        %v3314 = vsel %vm2805, %v2944, 0
        %3316 = vmatpush.bf16.msra.mxu0 0
        %3317 = vmatpush.bf16.msra.mxu0 0
        %3318 = vmatpush.bf16.msra.mxu0 0
        %3319 = vmatpush.bf16.msra.mxu0 0
        %3320 = vmatpush.bf16.msra.mxu0 0
        %3321 = vmatpush.bf16.msra.mxu0 0
        %3322 = vmatpush.bf16.msra.mxu0 %v3277
        %3323 = vmatpush.bf16.msra.mxu0 %v3276
        %3324 = vmatmul.bf16.gmra.mxu0 %v3280
        %v3325 = vpop.f32.mrf.mxu0
        %v3326 = vadd.f32 %v3179, %v3325
        %v3327 = vpop.f32.mrf.mxu0
        %v3328 = vadd.f32 %v3181, %v3327
        %3329 = vmatmul.bf16.gmra.mxu0 %v3282
        %v3330 = vpop.f32.mrf.mxu0
        %v3331 = vadd.f32 %v3184, %v3330
        %v3332 = vpop.f32.mrf.mxu0
        %v3333 = vadd.f32 %v3186, %v3332
        %3334 = vmatmul.bf16.gmra.mxu0 %v3284
        %v3335 = vpop.f32.mrf.mxu0
        %v3336 = vadd.f32 %v3189, %v3335
        %v3337 = vpop.f32.mrf.mxu0
        %v3338 = vadd.f32 %v3191, %v3337
        %3339 = vmatmul.bf16.gmra.mxu0 %v3286
        %v3340 = vpop.f32.mrf.mxu0
        %v3341 = vadd.f32 %v3194, %v3340
        %v3342 = vpop.f32.mrf.mxu0
        %v3343 = vadd.f32 %v3196, %v3342
        %3344 = vmatmul.bf16.gmra.mxu0 %v3288
        %v3345 = vpop.f32.mrf.mxu0
        %v3346 = vadd.f32 %v3199, %v3345
        %v3347 = vpop.f32.mrf.mxu0
        %v3348 = vadd.f32 %v3201, %v3347
        %3349 = vmatmul.bf16.gmra.mxu0 %v3290
        %v3350 = vpop.f32.mrf.mxu0
        %v3351 = vadd.f32 %v3204, %v3350
        %v3352 = vpop.f32.mrf.mxu0
        %v3353 = vadd.f32 %v3206, %v3352
        %3354 = vmatmul.bf16.gmra.mxu0 %v3292
        %v3355 = vpop.f32.mrf.mxu0
        %v3356 = vadd.f32 %v3209, %v3355
        %v3357 = vpop.f32.mrf.mxu0
        %v3358 = vadd.f32 %v3211, %v3357
        %3359 = vmatmul.bf16.gmra.mxu0 %v3294
        %v3360 = vpop.f32.mrf.mxu0
        %v3361 = vadd.f32 %v3214, %v3360
        %v3362 = vpop.f32.mrf.mxu0
        %v3363 = vadd.f32 %v3216, %v3362
        %3364 = vmatmul.bf16.gmra.mxu0 %v3296
        %v3365 = vpop.f32.mrf.mxu0
        %v3366 = vadd.f32 %v3219, %v3365
        %v3367 = vpop.f32.mrf.mxu0
        %v3368 = vadd.f32 %v3221, %v3367
        %3369 = vmatmul.bf16.gmra.mxu0 %v3298
        %v3370 = vpop.f32.mrf.mxu0
        %v3371 = vadd.f32 %v3224, %v3370
        %v3372 = vpop.f32.mrf.mxu0
        %v3373 = vadd.f32 %v3226, %v3372
        %3374 = vmatmul.bf16.gmra.mxu0 %v3300
        %v3375 = vpop.f32.mrf.mxu0
        %v3376 = vadd.f32 %v3229, %v3375
        %v3377 = vpop.f32.mrf.mxu0
        %v3378 = vadd.f32 %v3231, %v3377
        %3379 = vmatmul.bf16.gmra.mxu0 %v3302
        %v3380 = vpop.f32.mrf.mxu0
        %v3381 = vadd.f32 %v3234, %v3380
        %v3382 = vpop.f32.mrf.mxu0
        %v3383 = vadd.f32 %v3236, %v3382
        %3384 = vmatmul.bf16.gmra.mxu0 %v3304
        %v3385 = vpop.f32.mrf.mxu0
        %v3386 = vadd.f32 %v3239, %v3385
        %v3387 = vpop.f32.mrf.mxu0
        %v3388 = vadd.f32 %v3241, %v3387
        %3389 = vmatmul.bf16.gmra.mxu0 %v3306
        %v3390 = vpop.f32.mrf.mxu0
        %v3391 = vadd.f32 %v3244, %v3390
        %v3392 = vpop.f32.mrf.mxu0
        %v3393 = vadd.f32 %v3246, %v3392
        %3394 = vmatmul.bf16.gmra.mxu0 %v3308
        %v3395 = vpop.f32.mrf.mxu0
        %v3396 = vadd.f32 %v3249, %v3395
        %v3397 = vpop.f32.mrf.mxu0
        %v3398 = vadd.f32 %v3251, %v3397
        %3399 = vmatmul.bf16.gmra.mxu0 %v3310
        %v3400 = vpop.f32.mrf.mxu0
        %v3401 = vadd.f32 %v3254, %v3400
        %v3402 = vpop.f32.mrf.mxu0
        %v3403 = vadd.f32 %v3256, %v3402
        %3404 = vmatmul.bf16.gmra.mxu0 %v3312
        %v3405 = vpop.f32.mrf.mxu0
        %v3406 = vadd.f32 %v3259, %v3405
        %v3407 = vpop.f32.mrf.mxu0
        %v3408 = vadd.f32 %v3261, %v3407
        %3409 = vmatmul.bf16.gmra.mxu0 %v3314
        %v3410 = vpop.f32.mrf.mxu0
        %v3411 = vadd.f32 %v3264, %v3410
        %v3412 = vpop.f32.mrf.mxu0
        %v3413 = vadd.f32 %v3266, %v3412
        %3414 = vdwg.mxu0
        %s3415 = scalar_lea.vmem %s3, 32
        %v3416 = vld [vmem:[%s3415] sm:$0xf]
        %v3417 = vld [vmem:[%s3415 + $0x4] sm:$0xf]
        %v3418 = vld [vmem:[%s3415 + $0x8] sm:$0xf]
        %v3419 = vld [vmem:[%s3415 + $0xc] sm:$0xf]
        %v3439 = vrot.slane %v2927, 1
        %v3440 = vrot.slane %v2928, 1
        %v3441 = vsel %vm915, %v3439, %v3440
        %v3442 = vrot.slane %v2929, 1
        %v3443 = vsel %vm915, %v3440, %v3442
        %v3444 = vrot.slane %v2930, 1
        %v3445 = vsel %vm915, %v3442, %v3444
        %v3446 = vrot.slane %v2931, 1
        %v3447 = vsel %vm915, %v3444, %v3446
        %v3448 = vrot.slane %v2932, 1
        %v3449 = vsel %vm915, %v3446, %v3448
        %v3450 = vrot.slane %v2933, 1
        %v3451 = vsel %vm915, %v3448, %v3450
        %v3452 = vrot.slane %v2934, 1
        %v3453 = vsel %vm915, %v3450, %v3452
        %v3454 = vrot.slane %v2935, 1
        %v3455 = vsel %vm915, %v3452, %v3454
        %v3456 = vrot.slane %v2936, 1
        %v3457 = vsel %vm915, %v3454, %v3456
        %v3458 = vrot.slane %v2937, 1
        %v3459 = vsel %vm915, %v3456, %v3458
        %v3460 = vrot.slane %v2938, 1
        %v3461 = vsel %vm915, %v3458, %v3460
        %v3462 = vrot.slane %v2939, 1
        %v3463 = vsel %vm915, %v3460, %v3462
        %v3464 = vrot.slane %v2940, 1
        %v3465 = vsel %vm915, %v3462, %v3464
        %v3466 = vrot.slane %v2941, 1
        %v3467 = vsel %vm915, %v3464, %v3466
        %v3468 = vrot.slane %v2942, 1
        %v3469 = vsel %vm915, %v3466, %v3468
        %v3470 = vrot.slane %v2943, 1
        %v3471 = vsel %vm915, %v3468, %v3470
        %v3472 = vrot.slane %v2944, 1
        %v3473 = vsel %vm915, %v3470, %v3472
        %v3474 = vrot.slane %v2949, 1
        %v3475 = vsel %vm915, %v3472, %v3474
        %v3480 = vunpack.c.l.b16 %v3416
        %v3481 = vunpack.c.l.b16 %v3417
        %v3482 = vunpack.c.l.b16 %v3418
        %v3483 = vunpack.c.l.b16 %v3419
        %v3484 = vpack.c.b16 %v3481, %v3480
        %v3485 = vpack.c.b16 %v3483, %v3482
        %v3489 = vsel %vm2805, %v3441, 0
        %v3492 = vsel %vm2805, %v3443, 0
        %v3495 = vsel %vm2805, %v3445, 0
        %v3498 = vsel %vm2805, %v3447, 0
        %v3501 = vsel %vm2805, %v3449, 0
        %v3504 = vsel %vm2805, %v3451, 0
        %v3507 = vsel %vm2805, %v3453, 0
        %v3510 = vsel %vm2805, %v3455, 0
        %v3513 = vsel %vm2805, %v3457, 0
        %v3516 = vsel %vm2805, %v3459, 0
        %v3519 = vsel %vm2805, %v3461, 0
        %v3522 = vsel %vm2805, %v3463, 0
        %v3525 = vsel %vm2805, %v3465, 0
        %v3528 = vsel %vm2805, %v3467, 0
        %v3531 = vsel %vm2805, %v3469, 0
        %v3534 = vsel %vm2805, %v3471, 0
        %v3537 = vsel %vm2805, %v3473, 0
        %v3540 = vsel %vm2805, %v3475, 0
        %3542 = vmatpush.bf16.msra.mxu0 0
        %3543 = vmatpush.bf16.msra.mxu0 0
        %3544 = vmatpush.bf16.msra.mxu0 0
        %3545 = vmatpush.bf16.msra.mxu0 0
        %3546 = vmatpush.bf16.msra.mxu0 0
        %3547 = vmatpush.bf16.msra.mxu0 0
        %3548 = vmatpush.bf16.msra.mxu0 %v3485
        %3549 = vmatpush.bf16.msra.mxu0 %v3484
        %3550 = vmatmul.bf16.gmra.mxu0 %v3489
        %v3551 = vpop.f32.mrf.mxu0
        %v3552 = vadd.f32 0.0, %v3551
        %v3553 = vpop.f32.mrf.mxu0
        %v3554 = vadd.f32 0.0, %v3553
        %3555 = vmatmul.bf16.gmra.mxu0 %v3492
        %v3556 = vpop.f32.mrf.mxu0
        %v3557 = vadd.f32 0.0, %v3556
        %v3558 = vpop.f32.mrf.mxu0
        %v3559 = vadd.f32 0.0, %v3558
        %3560 = vmatmul.bf16.gmra.mxu0 %v3495
        %v3561 = vpop.f32.mrf.mxu0
        %v3562 = vadd.f32 0.0, %v3561
        %v3563 = vpop.f32.mrf.mxu0
        %v3564 = vadd.f32 0.0, %v3563
        %3565 = vmatmul.bf16.gmra.mxu0 %v3498
        %v3566 = vpop.f32.mrf.mxu0
        %v3567 = vadd.f32 0.0, %v3566
        %v3568 = vpop.f32.mrf.mxu0
        %v3569 = vadd.f32 0.0, %v3568
        %3570 = vmatmul.bf16.gmra.mxu0 %v3501
        %v3571 = vpop.f32.mrf.mxu0
        %v3572 = vadd.f32 0.0, %v3571
        %v3573 = vpop.f32.mrf.mxu0
        %v3574 = vadd.f32 0.0, %v3573
        %3575 = vmatmul.bf16.gmra.mxu0 %v3504
        %v3576 = vpop.f32.mrf.mxu0
        %v3577 = vadd.f32 0.0, %v3576
        %v3578 = vpop.f32.mrf.mxu0
        %v3579 = vadd.f32 0.0, %v3578
        %3580 = vmatmul.bf16.gmra.mxu0 %v3507
        %v3581 = vpop.f32.mrf.mxu0
        %v3582 = vadd.f32 0.0, %v3581
        %v3583 = vpop.f32.mrf.mxu0
        %v3584 = vadd.f32 0.0, %v3583
        %3585 = vmatmul.bf16.gmra.mxu0 %v3510
        %v3586 = vpop.f32.mrf.mxu0
        %v3587 = vadd.f32 0.0, %v3586
        %v3588 = vpop.f32.mrf.mxu0
        %v3589 = vadd.f32 0.0, %v3588
        %3590 = vmatmul.bf16.gmra.mxu0 %v3513
        %v3591 = vpop.f32.mrf.mxu0
        %v3592 = vadd.f32 0.0, %v3591
        %v3593 = vpop.f32.mrf.mxu0
        %v3594 = vadd.f32 0.0, %v3593
        %3595 = vmatmul.bf16.gmra.mxu0 %v3516
        %v3596 = vpop.f32.mrf.mxu0
        %v3597 = vadd.f32 0.0, %v3596
        %v3598 = vpop.f32.mrf.mxu0
        %v3599 = vadd.f32 0.0, %v3598
        %3600 = vmatmul.bf16.gmra.mxu0 %v3519
        %v3601 = vpop.f32.mrf.mxu0
        %v3602 = vadd.f32 0.0, %v3601
        %v3603 = vpop.f32.mrf.mxu0
        %v3604 = vadd.f32 0.0, %v3603
        %3605 = vmatmul.bf16.gmra.mxu0 %v3522
        %v3606 = vpop.f32.mrf.mxu0
        %v3607 = vadd.f32 0.0, %v3606
        %v3608 = vpop.f32.mrf.mxu0
        %v3609 = vadd.f32 0.0, %v3608
        %3610 = vmatmul.bf16.gmra.mxu0 %v3525
        %v3611 = vpop.f32.mrf.mxu0
        %v3612 = vadd.f32 0.0, %v3611
        %v3613 = vpop.f32.mrf.mxu0
        %v3614 = vadd.f32 0.0, %v3613
        %3615 = vmatmul.bf16.gmra.mxu0 %v3528
        %v3616 = vpop.f32.mrf.mxu0
        %v3617 = vadd.f32 0.0, %v3616
        %v3618 = vpop.f32.mrf.mxu0
        %v3619 = vadd.f32 0.0, %v3618
        %3620 = vmatmul.bf16.gmra.mxu0 %v3531
        %v3621 = vpop.f32.mrf.mxu0
        %v3622 = vadd.f32 0.0, %v3621
        %v3623 = vpop.f32.mrf.mxu0
        %v3624 = vadd.f32 0.0, %v3623
        %3625 = vmatmul.bf16.gmra.mxu0 %v3534
        %v3626 = vpop.f32.mrf.mxu0
        %v3627 = vadd.f32 0.0, %v3626
        %v3628 = vpop.f32.mrf.mxu0
        %v3629 = vadd.f32 0.0, %v3628
        %3630 = vmatmul.bf16.gmra.mxu0 %v3537
        %v3631 = vpop.f32.mrf.mxu0
        %v3632 = vadd.f32 0.0, %v3631
        %v3633 = vpop.f32.mrf.mxu0
        %v3634 = vadd.f32 0.0, %v3633
        %3635 = vmatmul.bf16.gmra.mxu0 %v3540
        %v3636 = vpop.f32.mrf.mxu0
        %v3637 = vadd.f32 0.0, %v3636
        %v3638 = vpop.f32.mrf.mxu0
        %v3639 = vadd.f32 0.0, %v3638
        %3640 = vdwg.mxu0
        %v3641 = vadd.f32 %v3326, %v3552
        %v3642 = vadd.f32 %v3328, %v3554
        %v3643 = vadd.f32 %v3331, %v3557
        %v3644 = vadd.f32 %v3333, %v3559
        %v3645 = vadd.f32 %v3336, %v3562
        %v3646 = vadd.f32 %v3338, %v3564
        %v3647 = vadd.f32 %v3341, %v3567
        %v3648 = vadd.f32 %v3343, %v3569
        %v3649 = vadd.f32 %v3346, %v3572
        %v3650 = vadd.f32 %v3348, %v3574
        %v3651 = vadd.f32 %v3351, %v3577
        %v3652 = vadd.f32 %v3353, %v3579
        %v3653 = vadd.f32 %v3356, %v3582
        %v3654 = vadd.f32 %v3358, %v3584
        %v3655 = vadd.f32 %v3361, %v3587
        %v3656 = vadd.f32 %v3363, %v3589
        %v3657 = vadd.f32 %v3366, %v3592
        %v3658 = vadd.f32 %v3368, %v3594
        %v3659 = vadd.f32 %v3371, %v3597
        %v3660 = vadd.f32 %v3373, %v3599
        %v3661 = vadd.f32 %v3376, %v3602
        %v3662 = vadd.f32 %v3378, %v3604
        %v3663 = vadd.f32 %v3381, %v3607
        %v3664 = vadd.f32 %v3383, %v3609
        %v3665 = vadd.f32 %v3386, %v3612
        %v3666 = vadd.f32 %v3388, %v3614
        %v3667 = vadd.f32 %v3391, %v3617
        %v3668 = vadd.f32 %v3393, %v3619
        %v3669 = vadd.f32 %v3396, %v3622
        %v3670 = vadd.f32 %v3398, %v3624
        %v3671 = vadd.f32 %v3401, %v3627
        %v3672 = vadd.f32 %v3403, %v3629
        %v3673 = vadd.f32 %v3406, %v3632
        %v3674 = vadd.f32 %v3408, %v3634
        %v3675 = vadd.f32 %v3411, %v3637
        %v3676 = vadd.f32 %v3413, %v3639
        %v3677 = vpack.c.bf16 %v2923, %v2922
        %v3678 = vpack.c.bf16 %v2924, %v2924
        %s3679 = scalar_lea.vmem %s3, 48
        %v3680 = vld [vmem:[%s3679] sm:$0xf]
        %v3681 = vld [vmem:[%s3679 + $0x4] sm:$0xf]
        %v3682 = vld [vmem:[%s3679 + $0x8] sm:$0xf]
        %v3683 = vld [vmem:[%s3679 + $0xc] sm:$0xf]
        %v3686 = vrot.slane %v3677, 1
        %v3687 = vsel %vm915, %v3472, %v3686
        %v3688 = vrot.slane %v3678, 1
        %v3689 = vsel %vm915, %v3686, %v3688
        %v3694 = vunpack.c.l.b16 %v3680
        %v3695 = vunpack.c.l.b16 %v3681
        %v3696 = vunpack.c.l.b16 %v3682
        %v3697 = vunpack.c.l.b16 %v3683
        %v3698 = vpack.c.b16 %v3695, %v3694
        %v3699 = vpack.c.b16 %v3697, %v3696
        %v3703 = vsel %vm2805, %v3687, 0
        %v3706 = vsel %vm2805, %v3689, 0
        %3708 = vmatpush.bf16.msra.mxu0 0
        %3709 = vmatpush.bf16.msra.mxu0 0
        %3710 = vmatpush.bf16.msra.mxu0 0
        %3711 = vmatpush.bf16.msra.mxu0 0
        %3712 = vmatpush.bf16.msra.mxu0 0
        %3713 = vmatpush.bf16.msra.mxu0 0
        %3714 = vmatpush.bf16.msra.mxu0 %v3699
        %3715 = vmatpush.bf16.msra.mxu0 %v3698
        %3716 = vmatmul.bf16.gmra.mxu0 %v3492
        %v3717 = vpop.f32.mrf.mxu0
        %v3718 = vadd.f32 0.0, %v3717
        %v3719 = vpop.f32.mrf.mxu0
        %v3720 = vadd.f32 0.0, %v3719
        %3721 = vmatmul.bf16.gmra.mxu0 %v3495
        %v3722 = vpop.f32.mrf.mxu0
        %v3723 = vadd.f32 0.0, %v3722
        %v3724 = vpop.f32.mrf.mxu0
        %v3725 = vadd.f32 0.0, %v3724
        %3726 = vmatmul.bf16.gmra.mxu0 %v3498
        %v3727 = vpop.f32.mrf.mxu0
        %v3728 = vadd.f32 0.0, %v3727
        %v3729 = vpop.f32.mrf.mxu0
        %v3730 = vadd.f32 0.0, %v3729
        %3731 = vmatmul.bf16.gmra.mxu0 %v3501
        %v3732 = vpop.f32.mrf.mxu0
        %v3733 = vadd.f32 0.0, %v3732
        %v3734 = vpop.f32.mrf.mxu0
        %v3735 = vadd.f32 0.0, %v3734
        %3736 = vmatmul.bf16.gmra.mxu0 %v3504
        %v3737 = vpop.f32.mrf.mxu0
        %v3738 = vadd.f32 0.0, %v3737
        %v3739 = vpop.f32.mrf.mxu0
        %v3740 = vadd.f32 0.0, %v3739
        %3741 = vmatmul.bf16.gmra.mxu0 %v3507
        %v3742 = vpop.f32.mrf.mxu0
        %v3743 = vadd.f32 0.0, %v3742
        %v3744 = vpop.f32.mrf.mxu0
        %v3745 = vadd.f32 0.0, %v3744
        %3746 = vmatmul.bf16.gmra.mxu0 %v3510
        %v3747 = vpop.f32.mrf.mxu0
        %v3748 = vadd.f32 0.0, %v3747
        %v3749 = vpop.f32.mrf.mxu0
        %v3750 = vadd.f32 0.0, %v3749
        %3751 = vmatmul.bf16.gmra.mxu0 %v3513
        %v3752 = vpop.f32.mrf.mxu0
        %v3753 = vadd.f32 0.0, %v3752
        %v3754 = vpop.f32.mrf.mxu0
        %v3755 = vadd.f32 0.0, %v3754
        %3756 = vmatmul.bf16.gmra.mxu0 %v3516
        %v3757 = vpop.f32.mrf.mxu0
        %v3758 = vadd.f32 0.0, %v3757
        %v3759 = vpop.f32.mrf.mxu0
        %v3760 = vadd.f32 0.0, %v3759
        %3761 = vmatmul.bf16.gmra.mxu0 %v3519
        %v3762 = vpop.f32.mrf.mxu0
        %v3763 = vadd.f32 0.0, %v3762
        %v3764 = vpop.f32.mrf.mxu0
        %v3765 = vadd.f32 0.0, %v3764
        %3766 = vmatmul.bf16.gmra.mxu0 %v3522
        %v3767 = vpop.f32.mrf.mxu0
        %v3768 = vadd.f32 0.0, %v3767
        %v3769 = vpop.f32.mrf.mxu0
        %v3770 = vadd.f32 0.0, %v3769
        %3771 = vmatmul.bf16.gmra.mxu0 %v3525
        %v3772 = vpop.f32.mrf.mxu0
        %v3773 = vadd.f32 0.0, %v3772
        %v3774 = vpop.f32.mrf.mxu0
        %v3775 = vadd.f32 0.0, %v3774
        %3776 = vmatmul.bf16.gmra.mxu0 %v3528
        %v3777 = vpop.f32.mrf.mxu0
        %v3778 = vadd.f32 0.0, %v3777
        %v3779 = vpop.f32.mrf.mxu0
        %v3780 = vadd.f32 0.0, %v3779
        %3781 = vmatmul.bf16.gmra.mxu0 %v3531
        %v3782 = vpop.f32.mrf.mxu0
        %v3783 = vadd.f32 0.0, %v3782
        %v3784 = vpop.f32.mrf.mxu0
        %v3785 = vadd.f32 0.0, %v3784
        %3786 = vmatmul.bf16.gmra.mxu0 %v3534
        %v3787 = vpop.f32.mrf.mxu0
        %v3788 = vadd.f32 0.0, %v3787
        %v3789 = vpop.f32.mrf.mxu0
        %v3790 = vadd.f32 0.0, %v3789
        %3791 = vmatmul.bf16.gmra.mxu0 %v3537
        %v3792 = vpop.f32.mrf.mxu0
        %v3793 = vadd.f32 0.0, %v3792
        %v3794 = vpop.f32.mrf.mxu0
        %v3795 = vadd.f32 0.0, %v3794
        %3796 = vmatmul.bf16.gmra.mxu0 %v3703
        %v3797 = vpop.f32.mrf.mxu0
        %v3798 = vadd.f32 0.0, %v3797
        %v3799 = vpop.f32.mrf.mxu0
        %v3800 = vadd.f32 0.0, %v3799
        %3801 = vmatmul.bf16.gmra.mxu0 %v3706
        %v3802 = vpop.f32.mrf.mxu0
        %v3803 = vadd.f32 0.0, %v3802
        %v3804 = vpop.f32.mrf.mxu0
        %v3805 = vadd.f32 0.0, %v3804
        %3806 = vdwg.mxu0
        %v3807 = vadd.f32 %v3641, %v3718
        %v3808 = vadd.f32 %v3642, %v3720
        %v3809 = vadd.f32 %v3643, %v3723
        %v3810 = vadd.f32 %v3644, %v3725
        %v3811 = vadd.f32 %v3645, %v3728
        %v3812 = vadd.f32 %v3646, %v3730
        %v3813 = vadd.f32 %v3647, %v3733
        %v3814 = vadd.f32 %v3648, %v3735
        %v3815 = vadd.f32 %v3649, %v3738
        %v3816 = vadd.f32 %v3650, %v3740
        %v3817 = vadd.f32 %v3651, %v3743
        %v3818 = vadd.f32 %v3652, %v3745
        %v3819 = vadd.f32 %v3653, %v3748
        %v3820 = vadd.f32 %v3654, %v3750
        %v3821 = vadd.f32 %v3655, %v3753
        %v3822 = vadd.f32 %v3656, %v3755
        %v3823 = vadd.f32 %v3657, %v3758
        %v3824 = vadd.f32 %v3658, %v3760
        %v3825 = vadd.f32 %v3659, %v3763
        %v3826 = vadd.f32 %v3660, %v3765
        %v3827 = vadd.f32 %v3661, %v3768
        %v3828 = vadd.f32 %v3662, %v3770
        %v3829 = vadd.f32 %v3663, %v3773
        %v3830 = vadd.f32 %v3664, %v3775
        %v3831 = vadd.f32 %v3665, %v3778
        %v3832 = vadd.f32 %v3666, %v3780
        %v3833 = vadd.f32 %v3667, %v3783
        %v3834 = vadd.f32 %v3668, %v3785
        %v3835 = vadd.f32 %v3669, %v3788
        %v3836 = vadd.f32 %v3670, %v3790
        %v3837 = vadd.f32 %v3671, %v3793
        %v3838 = vadd.f32 %v3672, %v3795
        %v3839 = vadd.f32 %v3673, %v3798
        %v3840 = vadd.f32 %v3674, %v3800
        %v3841 = vadd.f32 %v3675, %v3803
        %v3842 = vadd.f32 %v3676, %v3805
        %s3843 = scalar_lea.vmem %s3, 64
        %v3844 = vld [vmem:[%s3843] sm:$0xf]
        %v3845 = vld [vmem:[%s3843 + $0x4] sm:$0xf]
        %v3846 = vld [vmem:[%s3843 + $0x8] sm:$0xf]
        %v3847 = vld [vmem:[%s3843 + $0xc] sm:$0xf]
        %v3848 = vrot.slane %v2967, 1
        %v3849 = vrot.slane %v2963, 2
        %v3850 = vor.u32 %v3848, %v3849
        %v3851 = vrot.slane %v2975, 1
        %v3852 = vrot.slane %v2971, 2
        %v3853 = vor.u32 %v3851, %v3852
        %v3854 = vsel %vm1301, %v3850, %v3853
        %v3855 = vrot.slane %v2983, 1
        %v3856 = vrot.slane %v2979, 2
        %v3857 = vor.u32 %v3855, %v3856
        %v3858 = vsel %vm1301, %v3853, %v3857
        %v3859 = vrot.slane %v2991, 1
        %v3860 = vrot.slane %v2987, 2
        %v3861 = vor.u32 %v3859, %v3860
        %v3862 = vsel %vm1301, %v3857, %v3861
        %v3863 = vrot.slane %v2999, 1
        %v3864 = vrot.slane %v2995, 2
        %v3865 = vor.u32 %v3863, %v3864
        %v3866 = vsel %vm1301, %v3861, %v3865
        %v3867 = vrot.slane %v3007, 1
        %v3868 = vrot.slane %v3003, 2
        %v3869 = vor.u32 %v3867, %v3868
        %v3870 = vsel %vm1301, %v3865, %v3869
        %v3871 = vrot.slane %v3015, 1
        %v3872 = vrot.slane %v3011, 2
        %v3873 = vor.u32 %v3871, %v3872
        %v3874 = vsel %vm1301, %v3869, %v3873
        %v3875 = vrot.slane %v3023, 1
        %v3876 = vrot.slane %v3019, 2
        %v3877 = vor.u32 %v3875, %v3876
        %v3878 = vsel %vm1301, %v3873, %v3877
        %v3879 = vrot.slane %v3031, 1
        %v3880 = vrot.slane %v3027, 2
        %v3881 = vor.u32 %v3879, %v3880
        %v3882 = vsel %vm1301, %v3877, %v3881
        %v3883 = vrot.slane %v3039, 1
        %v3884 = vrot.slane %v3035, 2
        %v3885 = vor.u32 %v3883, %v3884
        %v3886 = vsel %vm1301, %v3881, %v3885
        %v3887 = vrot.slane %v3047, 1
        %v3888 = vrot.slane %v3043, 2
        %v3889 = vor.u32 %v3887, %v3888
        %v3890 = vsel %vm1301, %v3885, %v3889
        %v3891 = vrot.slane %v3055, 1
        %v3892 = vrot.slane %v3051, 2
        %v3893 = vor.u32 %v3891, %v3892
        %v3894 = vsel %vm1301, %v3889, %v3893
        %v3895 = vrot.slane %v3063, 1
        %v3896 = vrot.slane %v3059, 2
        %v3897 = vor.u32 %v3895, %v3896
        %v3898 = vsel %vm1301, %v3893, %v3897
        %v3899 = vrot.slane %v3071, 1
        %v3900 = vrot.slane %v3067, 2
        %v3901 = vor.u32 %v3899, %v3900
        %v3902 = vsel %vm1301, %v3897, %v3901
        %v3903 = vrot.slane %v3079, 1
        %v3904 = vrot.slane %v3075, 2
        %v3905 = vor.u32 %v3903, %v3904
        %v3906 = vsel %vm1301, %v3901, %v3905
        %v3907 = vrot.slane %v3087, 1
        %v3908 = vrot.slane %v3083, 2
        %v3909 = vor.u32 %v3907, %v3908
        %v3910 = vsel %vm1301, %v3905, %v3909
        %v3911 = vrot.slane %v3095, 1
        %v3912 = vrot.slane %v3091, 2
        %v3913 = vor.u32 %v3911, %v3912
        %v3914 = vsel %vm1301, %v3909, %v3913
        %v3916 = vshrl.u32 %v3677, 16
        %v3918 = vrot.slane %v3916, 1
        %v3919 = vshll.u32 %v3677, 16
        %v3921 = vrot.slane %v3919, 2
        %v3922 = vor.u32 %v3918, %v3921
        %v3923 = vsel %vm1301, %v3913, %v3922
        %v3925 = vshrl.u32 %v3678, 16
        %v3927 = vrot.slane %v3925, 1
        %v3928 = vshll.u32 %v3678, 16
        %v3930 = vrot.slane %v3928, 2
        %v3931 = vor.u32 %v3927, %v3930
        %v3932 = vsel %vm1301, %v3922, %v3931
        %v3937 = vunpack.c.l.b16 %v3844
        %v3938 = vunpack.c.l.b16 %v3845
        %v3939 = vunpack.c.l.b16 %v3846
        %v3940 = vunpack.c.l.b16 %v3847
        %v3941 = vpack.c.b16 %v3938, %v3937
        %v3942 = vpack.c.b16 %v3940, %v3939
        %v3946 = vsel %vm2805, %v3854, 0
        %v3949 = vsel %vm2805, %v3858, 0
        %v3952 = vsel %vm2805, %v3862, 0
        %v3955 = vsel %vm2805, %v3866, 0
        %v3958 = vsel %vm2805, %v3870, 0
        %v3961 = vsel %vm2805, %v3874, 0
        %v3964 = vsel %vm2805, %v3878, 0
        %v3967 = vsel %vm2805, %v3882, 0
        %v3970 = vsel %vm2805, %v3886, 0
        %v3973 = vsel %vm2805, %v3890, 0
        %v3976 = vsel %vm2805, %v3894, 0
        %v3979 = vsel %vm2805, %v3898, 0
        %v3982 = vsel %vm2805, %v3902, 0
        %v3985 = vsel %vm2805, %v3906, 0
        %v3988 = vsel %vm2805, %v3910, 0
        %v3991 = vsel %vm2805, %v3914, 0
        %v3994 = vsel %vm2805, %v3923, 0
        %v3997 = vsel %vm2805, %v3932, 0
        %3999 = vmatpush.bf16.msra.mxu0 0
        %4000 = vmatpush.bf16.msra.mxu0 0
        %4001 = vmatpush.bf16.msra.mxu0 0
        %4002 = vmatpush.bf16.msra.mxu0 0
        %4003 = vmatpush.bf16.msra.mxu0 0
        %4004 = vmatpush.bf16.msra.mxu0 0
        %4005 = vmatpush.bf16.msra.mxu0 %v3942
        %4006 = vmatpush.bf16.msra.mxu0 %v3941
        %4007 = vmatmul.bf16.gmra.mxu0 %v3946
        %v4008 = vpop.f32.mrf.mxu0
        %v4009 = vadd.f32 0.0, %v4008
        %v4010 = vpop.f32.mrf.mxu0
        %v4011 = vadd.f32 0.0, %v4010
        %4012 = vmatmul.bf16.gmra.mxu0 %v3949
        %v4013 = vpop.f32.mrf.mxu0
        %v4014 = vadd.f32 0.0, %v4013
        %v4015 = vpop.f32.mrf.mxu0
        %v4016 = vadd.f32 0.0, %v4015
        %4017 = vmatmul.bf16.gmra.mxu0 %v3952
        %v4018 = vpop.f32.mrf.mxu0
        %v4019 = vadd.f32 0.0, %v4018
        %v4020 = vpop.f32.mrf.mxu0
        %v4021 = vadd.f32 0.0, %v4020
        %4022 = vmatmul.bf16.gmra.mxu0 %v3955
        %v4023 = vpop.f32.mrf.mxu0
        %v4024 = vadd.f32 0.0, %v4023
        %v4025 = vpop.f32.mrf.mxu0
        %v4026 = vadd.f32 0.0, %v4025
        %4027 = vmatmul.bf16.gmra.mxu0 %v3958
        %v4028 = vpop.f32.mrf.mxu0
        %v4029 = vadd.f32 0.0, %v4028
        %v4030 = vpop.f32.mrf.mxu0
        %v4031 = vadd.f32 0.0, %v4030
        %4032 = vmatmul.bf16.gmra.mxu0 %v3961
        %v4033 = vpop.f32.mrf.mxu0
        %v4034 = vadd.f32 0.0, %v4033
        %v4035 = vpop.f32.mrf.mxu0
        %v4036 = vadd.f32 0.0, %v4035
        %4037 = vmatmul.bf16.gmra.mxu0 %v3964
        %v4038 = vpop.f32.mrf.mxu0
        %v4039 = vadd.f32 0.0, %v4038
        %v4040 = vpop.f32.mrf.mxu0
        %v4041 = vadd.f32 0.0, %v4040
        %4042 = vmatmul.bf16.gmra.mxu0 %v3967
        %v4043 = vpop.f32.mrf.mxu0
        %v4044 = vadd.f32 0.0, %v4043
        %v4045 = vpop.f32.mrf.mxu0
        %v4046 = vadd.f32 0.0, %v4045
        %4047 = vmatmul.bf16.gmra.mxu0 %v3970
        %v4048 = vpop.f32.mrf.mxu0
        %v4049 = vadd.f32 0.0, %v4048
        %v4050 = vpop.f32.mrf.mxu0
        %v4051 = vadd.f32 0.0, %v4050
        %4052 = vmatmul.bf16.gmra.mxu0 %v3973
        %v4053 = vpop.f32.mrf.mxu0
        %v4054 = vadd.f32 0.0, %v4053
        %v4055 = vpop.f32.mrf.mxu0
        %v4056 = vadd.f32 0.0, %v4055
        %4057 = vmatmul.bf16.gmra.mxu0 %v3976
        %v4058 = vpop.f32.mrf.mxu0
        %v4059 = vadd.f32 0.0, %v4058
        %v4060 = vpop.f32.mrf.mxu0
        %v4061 = vadd.f32 0.0, %v4060
        %4062 = vmatmul.bf16.gmra.mxu0 %v3979
        %v4063 = vpop.f32.mrf.mxu0
        %v4064 = vadd.f32 0.0, %v4063
        %v4065 = vpop.f32.mrf.mxu0
        %v4066 = vadd.f32 0.0, %v4065
        %4067 = vmatmul.bf16.gmra.mxu0 %v3982
        %v4068 = vpop.f32.mrf.mxu0
        %v4069 = vadd.f32 0.0, %v4068
        %v4070 = vpop.f32.mrf.mxu0
        %v4071 = vadd.f32 0.0, %v4070
        %4072 = vmatmul.bf16.gmra.mxu0 %v3985
        %v4073 = vpop.f32.mrf.mxu0
        %v4074 = vadd.f32 0.0, %v4073
        %v4075 = vpop.f32.mrf.mxu0
        %v4076 = vadd.f32 0.0, %v4075
        %4077 = vmatmul.bf16.gmra.mxu0 %v3988
        %v4078 = vpop.f32.mrf.mxu0
        %v4079 = vadd.f32 0.0, %v4078
        %v4080 = vpop.f32.mrf.mxu0
        %v4081 = vadd.f32 0.0, %v4080
        %4082 = vmatmul.bf16.gmra.mxu0 %v3991
        %v4083 = vpop.f32.mrf.mxu0
        %v4084 = vadd.f32 0.0, %v4083
        %v4085 = vpop.f32.mrf.mxu0
        %v4086 = vadd.f32 0.0, %v4085
        %4087 = vmatmul.bf16.gmra.mxu0 %v3994
        %v4088 = vpop.f32.mrf.mxu0
        %v4089 = vadd.f32 0.0, %v4088
        %v4090 = vpop.f32.mrf.mxu0
        %v4091 = vadd.f32 0.0, %v4090
        %4092 = vmatmul.bf16.gmra.mxu0 %v3997
        %v4093 = vpop.f32.mrf.mxu0
        %v4094 = vadd.f32 0.0, %v4093
        %v4095 = vpop.f32.mrf.mxu0
        %v4096 = vadd.f32 0.0, %v4095
        %4097 = vdwg.mxu0
        %v4098 = vadd.f32 %v3807, %v4009
        %v4099 = vadd.f32 %v3808, %v4011
        %v4100 = vadd.f32 %v3809, %v4014
        %v4101 = vadd.f32 %v3810, %v4016
        %v4102 = vadd.f32 %v3811, %v4019
        %v4103 = vadd.f32 %v3812, %v4021
        %v4104 = vadd.f32 %v3813, %v4024
        %v4105 = vadd.f32 %v3814, %v4026
        %v4106 = vadd.f32 %v3815, %v4029
        %v4107 = vadd.f32 %v3816, %v4031
        %v4108 = vadd.f32 %v3817, %v4034
        %v4109 = vadd.f32 %v3818, %v4036
        %v4110 = vadd.f32 %v3819, %v4039
        %v4111 = vadd.f32 %v3820, %v4041
        %v4112 = vadd.f32 %v3821, %v4044
        %v4113 = vadd.f32 %v3822, %v4046
        %v4114 = vadd.f32 %v3823, %v4049
        %v4115 = vadd.f32 %v3824, %v4051
        %v4116 = vadd.f32 %v3825, %v4054
        %v4117 = vadd.f32 %v3826, %v4056
        %v4118 = vadd.f32 %v3827, %v4059
        %v4119 = vadd.f32 %v3828, %v4061
        %v4120 = vadd.f32 %v3829, %v4064
        %v4121 = vadd.f32 %v3830, %v4066
        %v4122 = vadd.f32 %v3831, %v4069
        %v4123 = vadd.f32 %v3832, %v4071
        %v4124 = vadd.f32 %v3833, %v4074
        %v4125 = vadd.f32 %v3834, %v4076
        %v4126 = vadd.f32 %v3835, %v4079
        %v4127 = vadd.f32 %v3836, %v4081
        %v4128 = vadd.f32 %v3837, %v4084
        %v4129 = vadd.f32 %v3838, %v4086
        %v4130 = vadd.f32 %v3839, %v4089
        %v4131 = vadd.f32 %v3840, %v4091
        %v4132 = vadd.f32 %v3841, %v4094
        %v4133 = vadd.f32 %v3842, %v4096
        %s4134 = scalar_lea.vmem %s3, 80
        %v4135 = vld [vmem:[%s4134] sm:$0xf]
        %v4136 = vld [vmem:[%s4134 + $0x4] sm:$0xf]
        %v4137 = vld [vmem:[%s4134 + $0x8] sm:$0xf]
        %v4138 = vld [vmem:[%s4134 + $0xc] sm:$0xf]
        %v4139 = vrot.slane %v2928, 2
        %v4140 = vrot.slane %v2929, 2
        %v4141 = vsel %vm1581, %v4139, %v4140
        %v4142 = vrot.slane %v2930, 2
        %v4143 = vsel %vm1581, %v4140, %v4142
        %v4144 = vrot.slane %v2931, 2
        %v4145 = vsel %vm1581, %v4142, %v4144
        %v4146 = vrot.slane %v2932, 2
        %v4147 = vsel %vm1581, %v4144, %v4146
        %v4148 = vrot.slane %v2933, 2
        %v4149 = vsel %vm1581, %v4146, %v4148
        %v4150 = vrot.slane %v2934, 2
        %v4151 = vsel %vm1581, %v4148, %v4150
        %v4152 = vrot.slane %v2935, 2
        %v4153 = vsel %vm1581, %v4150, %v4152
        %v4154 = vrot.slane %v2936, 2
        %v4155 = vsel %vm1581, %v4152, %v4154
        %v4156 = vrot.slane %v2937, 2
        %v4157 = vsel %vm1581, %v4154, %v4156
        %v4158 = vrot.slane %v2938, 2
        %v4159 = vsel %vm1581, %v4156, %v4158
        %v4160 = vrot.slane %v2939, 2
        %v4161 = vsel %vm1581, %v4158, %v4160
        %v4162 = vrot.slane %v2940, 2
        %v4163 = vsel %vm1581, %v4160, %v4162
        %v4164 = vrot.slane %v2941, 2
        %v4165 = vsel %vm1581, %v4162, %v4164
        %v4166 = vrot.slane %v2942, 2
        %v4167 = vsel %vm1581, %v4164, %v4166
        %v4168 = vrot.slane %v2943, 2
        %v4169 = vsel %vm1581, %v4166, %v4168
        %v4170 = vrot.slane %v2944, 2
        %v4171 = vsel %vm1581, %v4168, %v4170
        %v4172 = vrot.slane %v3677, 2
        %v4173 = vsel %vm1581, %v4170, %v4172
        %v4174 = vrot.slane %v3678, 2
        %v4175 = vsel %vm1581, %v4172, %v4174
        %v4180 = vunpack.c.l.b16 %v4135
        %v4181 = vunpack.c.l.b16 %v4136
        %v4182 = vunpack.c.l.b16 %v4137
        %v4183 = vunpack.c.l.b16 %v4138
        %v4184 = vpack.c.b16 %v4181, %v4180
        %v4185 = vpack.c.b16 %v4183, %v4182
        %v4189 = vsel %vm2805, %v4141, 0
        %v4192 = vsel %vm2805, %v4143, 0
        %v4195 = vsel %vm2805, %v4145, 0
        %v4198 = vsel %vm2805, %v4147, 0
        %v4201 = vsel %vm2805, %v4149, 0
        %v4204 = vsel %vm2805, %v4151, 0
        %v4207 = vsel %vm2805, %v4153, 0
        %v4210 = vsel %vm2805, %v4155, 0
        %v4213 = vsel %vm2805, %v4157, 0
        %v4216 = vsel %vm2805, %v4159, 0
        %v4219 = vsel %vm2805, %v4161, 0
        %v4222 = vsel %vm2805, %v4163, 0
        %v4225 = vsel %vm2805, %v4165, 0
        %v4228 = vsel %vm2805, %v4167, 0
        %v4231 = vsel %vm2805, %v4169, 0
        %v4234 = vsel %vm2805, %v4171, 0
        %v4237 = vsel %vm2805, %v4173, 0
        %v4240 = vsel %vm2805, %v4175, 0
        %4242 = vmatpush.bf16.msra.mxu0 0
        %4243 = vmatpush.bf16.msra.mxu0 0
        %4244 = vmatpush.bf16.msra.mxu0 0
        %4245 = vmatpush.bf16.msra.mxu0 0
        %4246 = vmatpush.bf16.msra.mxu0 0
        %4247 = vmatpush.bf16.msra.mxu0 0
        %4248 = vmatpush.bf16.msra.mxu0 %v4185
        %4249 = vmatpush.bf16.msra.mxu0 %v4184
        %4250 = vmatmul.bf16.gmra.mxu0 %v4189
        %v4251 = vpop.f32.mrf.mxu0
        %v4252 = vadd.f32 0.0, %v4251
        %v4253 = vpop.f32.mrf.mxu0
        %v4254 = vadd.f32 0.0, %v4253
        %4255 = vmatmul.bf16.gmra.mxu0 %v4192
        %v4256 = vpop.f32.mrf.mxu0
        %v4257 = vadd.f32 0.0, %v4256
        %v4258 = vpop.f32.mrf.mxu0
        %v4259 = vadd.f32 0.0, %v4258
        %4260 = vmatmul.bf16.gmra.mxu0 %v4195
        %v4261 = vpop.f32.mrf.mxu0
        %v4262 = vadd.f32 0.0, %v4261
        %v4263 = vpop.f32.mrf.mxu0
        %v4264 = vadd.f32 0.0, %v4263
        %4265 = vmatmul.bf16.gmra.mxu0 %v4198
        %v4266 = vpop.f32.mrf.mxu0
        %v4267 = vadd.f32 0.0, %v4266
        %v4268 = vpop.f32.mrf.mxu0
        %v4269 = vadd.f32 0.0, %v4268
        %4270 = vmatmul.bf16.gmra.mxu0 %v4201
        %v4271 = vpop.f32.mrf.mxu0
        %v4272 = vadd.f32 0.0, %v4271
        %v4273 = vpop.f32.mrf.mxu0
        %v4274 = vadd.f32 0.0, %v4273
        %4275 = vmatmul.bf16.gmra.mxu0 %v4204
        %v4276 = vpop.f32.mrf.mxu0
        %v4277 = vadd.f32 0.0, %v4276
        %v4278 = vpop.f32.mrf.mxu0
        %v4279 = vadd.f32 0.0, %v4278
        %4280 = vmatmul.bf16.gmra.mxu0 %v4207
        %v4281 = vpop.f32.mrf.mxu0
        %v4282 = vadd.f32 0.0, %v4281
        %v4283 = vpop.f32.mrf.mxu0
        %v4284 = vadd.f32 0.0, %v4283
        %4285 = vmatmul.bf16.gmra.mxu0 %v4210
        %v4286 = vpop.f32.mrf.mxu0
        %v4287 = vadd.f32 0.0, %v4286
        %v4288 = vpop.f32.mrf.mxu0
        %v4289 = vadd.f32 0.0, %v4288
        %4290 = vmatmul.bf16.gmra.mxu0 %v4213
        %v4291 = vpop.f32.mrf.mxu0
        %v4292 = vadd.f32 0.0, %v4291
        %v4293 = vpop.f32.mrf.mxu0
        %v4294 = vadd.f32 0.0, %v4293
        %4295 = vmatmul.bf16.gmra.mxu0 %v4216
        %v4296 = vpop.f32.mrf.mxu0
        %v4297 = vadd.f32 0.0, %v4296
        %v4298 = vpop.f32.mrf.mxu0
        %v4299 = vadd.f32 0.0, %v4298
        %4300 = vmatmul.bf16.gmra.mxu0 %v4219
        %v4301 = vpop.f32.mrf.mxu0
        %v4302 = vadd.f32 0.0, %v4301
        %v4303 = vpop.f32.mrf.mxu0
        %v4304 = vadd.f32 0.0, %v4303
        %4305 = vmatmul.bf16.gmra.mxu0 %v4222
        %v4306 = vpop.f32.mrf.mxu0
        %v4307 = vadd.f32 0.0, %v4306
        %v4308 = vpop.f32.mrf.mxu0
        %v4309 = vadd.f32 0.0, %v4308
        %4310 = vmatmul.bf16.gmra.mxu0 %v4225
        %v4311 = vpop.f32.mrf.mxu0
        %v4312 = vadd.f32 0.0, %v4311
        %v4313 = vpop.f32.mrf.mxu0
        %v4314 = vadd.f32 0.0, %v4313
        %4315 = vmatmul.bf16.gmra.mxu0 %v4228
        %v4316 = vpop.f32.mrf.mxu0
        %v4317 = vadd.f32 0.0, %v4316
        %v4318 = vpop.f32.mrf.mxu0
        %v4319 = vadd.f32 0.0, %v4318
        %4320 = vmatmul.bf16.gmra.mxu0 %v4231
        %v4321 = vpop.f32.mrf.mxu0
        %v4322 = vadd.f32 0.0, %v4321
        %v4323 = vpop.f32.mrf.mxu0
        %v4324 = vadd.f32 0.0, %v4323
        %4325 = vmatmul.bf16.gmra.mxu0 %v4234
        %v4326 = vpop.f32.mrf.mxu0
        %v4327 = vadd.f32 0.0, %v4326
        %v4328 = vpop.f32.mrf.mxu0
        %v4329 = vadd.f32 0.0, %v4328
        %4330 = vmatmul.bf16.gmra.mxu0 %v4237
        %v4331 = vpop.f32.mrf.mxu0
        %v4332 = vadd.f32 0.0, %v4331
        %v4333 = vpop.f32.mrf.mxu0
        %v4334 = vadd.f32 0.0, %v4333
        %4335 = vmatmul.bf16.gmra.mxu0 %v4240
        %v4336 = vpop.f32.mrf.mxu0
        %v4337 = vadd.f32 0.0, %v4336
        %v4338 = vpop.f32.mrf.mxu0
        %v4339 = vadd.f32 0.0, %v4338
        %4340 = vdwg.mxu0
        %v4341 = vadd.f32 %v4098, %v4252
        %v4342 = vadd.f32 %v4099, %v4254
        %v4343 = vadd.f32 %v4100, %v4257
        %v4344 = vadd.f32 %v4101, %v4259
        %v4345 = vadd.f32 %v4102, %v4262
        %v4346 = vadd.f32 %v4103, %v4264
        %v4347 = vadd.f32 %v4104, %v4267
        %v4348 = vadd.f32 %v4105, %v4269
        %v4349 = vadd.f32 %v4106, %v4272
        %v4350 = vadd.f32 %v4107, %v4274
        %v4351 = vadd.f32 %v4108, %v4277
        %v4352 = vadd.f32 %v4109, %v4279
        %v4353 = vadd.f32 %v4110, %v4282
        %v4354 = vadd.f32 %v4111, %v4284
        %v4355 = vadd.f32 %v4112, %v4287
        %v4356 = vadd.f32 %v4113, %v4289
        %v4357 = vadd.f32 %v4114, %v4292
        %v4358 = vadd.f32 %v4115, %v4294
        %v4359 = vadd.f32 %v4116, %v4297
        %v4360 = vadd.f32 %v4117, %v4299
        %v4361 = vadd.f32 %v4118, %v4302
        %v4362 = vadd.f32 %v4119, %v4304
        %v4363 = vadd.f32 %v4120, %v4307
        %v4364 = vadd.f32 %v4121, %v4309
        %v4365 = vadd.f32 %v4122, %v4312
        %v4366 = vadd.f32 %v4123, %v4314
        %v4367 = vadd.f32 %v4124, %v4317
        %v4368 = vadd.f32 %v4125, %v4319
        %v4369 = vadd.f32 %v4126, %v4322
        %v4370 = vadd.f32 %v4127, %v4324
        %v4371 = vadd.f32 %v4128, %v4327
        %v4372 = vadd.f32 %v4129, %v4329
        %v4373 = vadd.f32 %v4130, %v4332
        %v4374 = vadd.f32 %v4131, %v4334
        %v4375 = vadd.f32 %v4132, %v4337
        %v4376 = vadd.f32 %v4133, %v4339
        %v4377 = vpack.c.bf16 %v2925, %v2924
        %v4378 = vpack.c.bf16 %v2926, %v2926
        %s4379 = scalar_lea.vmem %s3, 96
        %v4380 = vld [vmem:[%s4379] sm:$0xf]
        %v4381 = vld [vmem:[%s4379 + $0x4] sm:$0xf]
        %v4382 = vld [vmem:[%s4379 + $0x8] sm:$0xf]
        %v4383 = vld [vmem:[%s4379 + $0xc] sm:$0xf]
        %v4386 = vrot.slane %v4377, 2
        %v4387 = vsel %vm1581, %v4172, %v4386
        %v4388 = vrot.slane %v4378, 2
        %v4389 = vsel %vm1581, %v4386, %v4388
        %v4394 = vunpack.c.l.b16 %v4380
        %v4395 = vunpack.c.l.b16 %v4381
        %v4396 = vunpack.c.l.b16 %v4382
        %v4397 = vunpack.c.l.b16 %v4383
        %v4398 = vpack.c.b16 %v4395, %v4394
        %v4399 = vpack.c.b16 %v4397, %v4396
        %v4403 = vsel %vm2805, %v4387, 0
        %v4406 = vsel %vm2805, %v4389, 0
        %4408 = vmatpush.bf16.msra.mxu0 0
        %4409 = vmatpush.bf16.msra.mxu0 0
        %4410 = vmatpush.bf16.msra.mxu0 0
        %4411 = vmatpush.bf16.msra.mxu0 0
        %4412 = vmatpush.bf16.msra.mxu0 0
        %4413 = vmatpush.bf16.msra.mxu0 0
        %4414 = vmatpush.bf16.msra.mxu0 %v4399
        %4415 = vmatpush.bf16.msra.mxu0 %v4398
        %4416 = vmatmul.bf16.gmra.mxu0 %v4192
        %v4417 = vpop.f32.mrf.mxu0
        %v4418 = vadd.f32 0.0, %v4417
        %v4419 = vpop.f32.mrf.mxu0
        %v4420 = vadd.f32 0.0, %v4419
        %4421 = vmatmul.bf16.gmra.mxu0 %v4195
        %v4422 = vpop.f32.mrf.mxu0
        %v4423 = vadd.f32 0.0, %v4422
        %v4424 = vpop.f32.mrf.mxu0
        %v4425 = vadd.f32 0.0, %v4424
        %4426 = vmatmul.bf16.gmra.mxu0 %v4198
        %v4427 = vpop.f32.mrf.mxu0
        %v4428 = vadd.f32 0.0, %v4427
        %v4429 = vpop.f32.mrf.mxu0
        %v4430 = vadd.f32 0.0, %v4429
        %4431 = vmatmul.bf16.gmra.mxu0 %v4201
        %v4432 = vpop.f32.mrf.mxu0
        %v4433 = vadd.f32 0.0, %v4432
        %v4434 = vpop.f32.mrf.mxu0
        %v4435 = vadd.f32 0.0, %v4434
        %4436 = vmatmul.bf16.gmra.mxu0 %v4204
        %v4437 = vpop.f32.mrf.mxu0
        %v4438 = vadd.f32 0.0, %v4437
        %v4439 = vpop.f32.mrf.mxu0
        %v4440 = vadd.f32 0.0, %v4439
        %4441 = vmatmul.bf16.gmra.mxu0 %v4207
        %v4442 = vpop.f32.mrf.mxu0
        %v4443 = vadd.f32 0.0, %v4442
        %v4444 = vpop.f32.mrf.mxu0
        %v4445 = vadd.f32 0.0, %v4444
        %4446 = vmatmul.bf16.gmra.mxu0 %v4210
        %v4447 = vpop.f32.mrf.mxu0
        %v4448 = vadd.f32 0.0, %v4447
        %v4449 = vpop.f32.mrf.mxu0
        %v4450 = vadd.f32 0.0, %v4449
        %4451 = vmatmul.bf16.gmra.mxu0 %v4213
        %v4452 = vpop.f32.mrf.mxu0
        %v4453 = vadd.f32 0.0, %v4452
        %v4454 = vpop.f32.mrf.mxu0
        %v4455 = vadd.f32 0.0, %v4454
        %4456 = vmatmul.bf16.gmra.mxu0 %v4216
        %v4457 = vpop.f32.mrf.mxu0
        %v4458 = vadd.f32 0.0, %v4457
        %v4459 = vpop.f32.mrf.mxu0
        %v4460 = vadd.f32 0.0, %v4459
        %4461 = vmatmul.bf16.gmra.mxu0 %v4219
        %v4462 = vpop.f32.mrf.mxu0
        %v4463 = vadd.f32 0.0, %v4462
        %v4464 = vpop.f32.mrf.mxu0
        %v4465 = vadd.f32 0.0, %v4464
        %4466 = vmatmul.bf16.gmra.mxu0 %v4222
        %v4467 = vpop.f32.mrf.mxu0
        %v4468 = vadd.f32 0.0, %v4467
        %v4469 = vpop.f32.mrf.mxu0
        %v4470 = vadd.f32 0.0, %v4469
        %4471 = vmatmul.bf16.gmra.mxu0 %v4225
        %v4472 = vpop.f32.mrf.mxu0
        %v4473 = vadd.f32 0.0, %v4472
        %v4474 = vpop.f32.mrf.mxu0
        %v4475 = vadd.f32 0.0, %v4474
        %4476 = vmatmul.bf16.gmra.mxu0 %v4228
        %v4477 = vpop.f32.mrf.mxu0
        %v4478 = vadd.f32 0.0, %v4477
        %v4479 = vpop.f32.mrf.mxu0
        %v4480 = vadd.f32 0.0, %v4479
        %4481 = vmatmul.bf16.gmra.mxu0 %v4231
        %v4482 = vpop.f32.mrf.mxu0
        %v4483 = vadd.f32 0.0, %v4482
        %v4484 = vpop.f32.mrf.mxu0
        %v4485 = vadd.f32 0.0, %v4484
        %4486 = vmatmul.bf16.gmra.mxu0 %v4234
        %v4487 = vpop.f32.mrf.mxu0
        %v4488 = vadd.f32 0.0, %v4487
        %v4489 = vpop.f32.mrf.mxu0
        %v4490 = vadd.f32 0.0, %v4489
        %4491 = vmatmul.bf16.gmra.mxu0 %v4237
        %v4492 = vpop.f32.mrf.mxu0
        %v4493 = vadd.f32 0.0, %v4492
        %v4494 = vpop.f32.mrf.mxu0
        %v4495 = vadd.f32 0.0, %v4494
        %4496 = vmatmul.bf16.gmra.mxu0 %v4403
        %v4497 = vpop.f32.mrf.mxu0
        %v4498 = vadd.f32 0.0, %v4497
        %v4499 = vpop.f32.mrf.mxu0
        %v4500 = vadd.f32 0.0, %v4499
        %4501 = vmatmul.bf16.gmra.mxu0 %v4406
        %v4502 = vpop.f32.mrf.mxu0
        %v4503 = vadd.f32 0.0, %v4502
        %v4504 = vpop.f32.mrf.mxu0
        %v4505 = vadd.f32 0.0, %v4504
        %4506 = vdwg.mxu0
        %v4507 = vadd.f32 %v4341, %v4418
        %v4508 = vadd.f32 %v4342, %v4420
        %v4509 = vadd.f32 %v4343, %v4423
        %v4510 = vadd.f32 %v4344, %v4425
        %v4511 = vadd.f32 %v4345, %v4428
        %v4512 = vadd.f32 %v4346, %v4430
        %v4513 = vadd.f32 %v4347, %v4433
        %v4514 = vadd.f32 %v4348, %v4435
        %v4515 = vadd.f32 %v4349, %v4438
        %v4516 = vadd.f32 %v4350, %v4440
        %v4517 = vadd.f32 %v4351, %v4443
        %v4518 = vadd.f32 %v4352, %v4445
        %v4519 = vadd.f32 %v4353, %v4448
        %v4520 = vadd.f32 %v4354, %v4450
        %v4521 = vadd.f32 %v4355, %v4453
        %v4522 = vadd.f32 %v4356, %v4455
        %v4523 = vadd.f32 %v4357, %v4458
        %v4524 = vadd.f32 %v4358, %v4460
        %v4525 = vadd.f32 %v4359, %v4463
        %v4526 = vadd.f32 %v4360, %v4465
        %v4527 = vadd.f32 %v4361, %v4468
        %v4528 = vadd.f32 %v4362, %v4470
        %v4529 = vadd.f32 %v4363, %v4473
        %v4530 = vadd.f32 %v4364, %v4475
        %v4531 = vadd.f32 %v4365, %v4478
        %v4532 = vadd.f32 %v4366, %v4480
        %v4533 = vadd.f32 %v4367, %v4483
        %v4534 = vadd.f32 %v4368, %v4485
        %v4535 = vadd.f32 %v4369, %v4488
        %v4536 = vadd.f32 %v4370, %v4490
        %v4537 = vadd.f32 %v4371, %v4493
        %v4538 = vadd.f32 %v4372, %v4495
        %v4539 = vadd.f32 %v4373, %v4498
        %v4540 = vadd.f32 %v4374, %v4500
        %v4541 = vadd.f32 %v4375, %v4503
        %v4542 = vadd.f32 %v4376, %v4505
        %s4543 = scalar_lea.vmem %s3, 112
        %v4544 = vld [vmem:[%s4543] sm:$0xf]
        %v4545 = vld [vmem:[%s4543 + $0x4] sm:$0xf]
        %v4546 = vld [vmem:[%s4543 + $0x8] sm:$0xf]
        %v4547 = vld [vmem:[%s4543 + $0xc] sm:$0xf]
        %v4548 = vrot.slane %v2975, 2
        %v4549 = vrot.slane %v2971, 3
        %v4550 = vor.u32 %v4548, %v4549
        %v4551 = vrot.slane %v2983, 2
        %v4552 = vrot.slane %v2979, 3
        %v4553 = vor.u32 %v4551, %v4552
        %v4554 = vsel %vm1967, %v4550, %v4553
        %v4555 = vrot.slane %v2991, 2
        %v4556 = vrot.slane %v2987, 3
        %v4557 = vor.u32 %v4555, %v4556
        %v4558 = vsel %vm1967, %v4553, %v4557
        %v4559 = vrot.slane %v2999, 2
        %v4560 = vrot.slane %v2995, 3
        %v4561 = vor.u32 %v4559, %v4560
        %v4562 = vsel %vm1967, %v4557, %v4561
        %v4563 = vrot.slane %v3007, 2
        %v4564 = vrot.slane %v3003, 3
        %v4565 = vor.u32 %v4563, %v4564
        %v4566 = vsel %vm1967, %v4561, %v4565
        %v4567 = vrot.slane %v3015, 2
        %v4568 = vrot.slane %v3011, 3
        %v4569 = vor.u32 %v4567, %v4568
        %v4570 = vsel %vm1967, %v4565, %v4569
        %v4571 = vrot.slane %v3023, 2
        %v4572 = vrot.slane %v3019, 3
        %v4573 = vor.u32 %v4571, %v4572
        %v4574 = vsel %vm1967, %v4569, %v4573
        %v4575 = vrot.slane %v3031, 2
        %v4576 = vrot.slane %v3027, 3
        %v4577 = vor.u32 %v4575, %v4576
        %v4578 = vsel %vm1967, %v4573, %v4577
        %v4579 = vrot.slane %v3039, 2
        %v4580 = vrot.slane %v3035, 3
        %v4581 = vor.u32 %v4579, %v4580
        %v4582 = vsel %vm1967, %v4577, %v4581
        %v4583 = vrot.slane %v3047, 2
        %v4584 = vrot.slane %v3043, 3
        %v4585 = vor.u32 %v4583, %v4584
        %v4586 = vsel %vm1967, %v4581, %v4585
        %v4587 = vrot.slane %v3055, 2
        %v4588 = vrot.slane %v3051, 3
        %v4589 = vor.u32 %v4587, %v4588
        %v4590 = vsel %vm1967, %v4585, %v4589
        %v4591 = vrot.slane %v3063, 2
        %v4592 = vrot.slane %v3059, 3
        %v4593 = vor.u32 %v4591, %v4592
        %v4594 = vsel %vm1967, %v4589, %v4593
        %v4595 = vrot.slane %v3071, 2
        %v4596 = vrot.slane %v3067, 3
        %v4597 = vor.u32 %v4595, %v4596
        %v4598 = vsel %vm1967, %v4593, %v4597
        %v4599 = vrot.slane %v3079, 2
        %v4600 = vrot.slane %v3075, 3
        %v4601 = vor.u32 %v4599, %v4600
        %v4602 = vsel %vm1967, %v4597, %v4601
        %v4603 = vrot.slane %v3087, 2
        %v4604 = vrot.slane %v3083, 3
        %v4605 = vor.u32 %v4603, %v4604
        %v4606 = vsel %vm1967, %v4601, %v4605
        %v4607 = vrot.slane %v3095, 2
        %v4608 = vrot.slane %v3091, 3
        %v4609 = vor.u32 %v4607, %v4608
        %v4610 = vsel %vm1967, %v4605, %v4609
        %v4611 = vrot.slane %v3916, 2
        %v4612 = vrot.slane %v3919, 3
        %v4613 = vor.u32 %v4611, %v4612
        %v4614 = vsel %vm1967, %v4609, %v4613
        %v4616 = vshrl.u32 %v4377, 16
        %v4618 = vrot.slane %v4616, 2
        %v4619 = vshll.u32 %v4377, 16
        %v4621 = vrot.slane %v4619, 3
        %v4622 = vor.u32 %v4618, %v4621
        %v4623 = vsel %vm1967, %v4613, %v4622
        %v4625 = vshrl.u32 %v4378, 16
        %v4627 = vrot.slane %v4625, 2
        %v4628 = vshll.u32 %v4378, 16
        %v4630 = vrot.slane %v4628, 3
        %v4631 = vor.u32 %v4627, %v4630
        %v4632 = vsel %vm1967, %v4622, %v4631
        %v4637 = vunpack.c.l.b16 %v4544
        %v4638 = vunpack.c.l.b16 %v4545
        %v4639 = vunpack.c.l.b16 %v4546
        %v4640 = vunpack.c.l.b16 %v4547
        %v4641 = vpack.c.b16 %v4638, %v4637
        %v4642 = vpack.c.b16 %v4640, %v4639
        %v4646 = vsel %vm2805, %v4554, 0
        %v4649 = vsel %vm2805, %v4558, 0
        %v4652 = vsel %vm2805, %v4562, 0
        %v4655 = vsel %vm2805, %v4566, 0
        %v4658 = vsel %vm2805, %v4570, 0
        %v4661 = vsel %vm2805, %v4574, 0
        %v4664 = vsel %vm2805, %v4578, 0
        %v4667 = vsel %vm2805, %v4582, 0
        %v4670 = vsel %vm2805, %v4586, 0
        %v4673 = vsel %vm2805, %v4590, 0
        %v4676 = vsel %vm2805, %v4594, 0
        %v4679 = vsel %vm2805, %v4598, 0
        %v4682 = vsel %vm2805, %v4602, 0
        %v4685 = vsel %vm2805, %v4606, 0
        %v4688 = vsel %vm2805, %v4610, 0
        %v4691 = vsel %vm2805, %v4614, 0
        %v4694 = vsel %vm2805, %v4623, 0
        %v4697 = vsel %vm2805, %v4632, 0
        %4699 = vmatpush.bf16.msra.mxu0 0
        %4700 = vmatpush.bf16.msra.mxu0 0
        %4701 = vmatpush.bf16.msra.mxu0 0
        %4702 = vmatpush.bf16.msra.mxu0 0
        %4703 = vmatpush.bf16.msra.mxu0 0
        %4704 = vmatpush.bf16.msra.mxu0 0
        %4705 = vmatpush.bf16.msra.mxu0 %v4642
        %4706 = vmatpush.bf16.msra.mxu0 %v4641
        %4707 = vmatmul.bf16.gmra.mxu0 %v4646
        %v4708 = vpop.f32.mrf.mxu0
        %v4709 = vadd.f32 0.0, %v4708
        %v4710 = vpop.f32.mrf.mxu0
        %v4711 = vadd.f32 0.0, %v4710
        %4712 = vmatmul.bf16.gmra.mxu0 %v4649
        %v4713 = vpop.f32.mrf.mxu0
        %v4714 = vadd.f32 0.0, %v4713
        %v4715 = vpop.f32.mrf.mxu0
        %v4716 = vadd.f32 0.0, %v4715
        %4717 = vmatmul.bf16.gmra.mxu0 %v4652
        %v4718 = vpop.f32.mrf.mxu0
        %v4719 = vadd.f32 0.0, %v4718
        %v4720 = vpop.f32.mrf.mxu0
        %v4721 = vadd.f32 0.0, %v4720
        %4722 = vmatmul.bf16.gmra.mxu0 %v4655
        %v4723 = vpop.f32.mrf.mxu0
        %v4724 = vadd.f32 0.0, %v4723
        %v4725 = vpop.f32.mrf.mxu0
        %v4726 = vadd.f32 0.0, %v4725
        %4727 = vmatmul.bf16.gmra.mxu0 %v4658
        %v4728 = vpop.f32.mrf.mxu0
        %v4729 = vadd.f32 0.0, %v4728
        %v4730 = vpop.f32.mrf.mxu0
        %v4731 = vadd.f32 0.0, %v4730
        %4732 = vmatmul.bf16.gmra.mxu0 %v4661
        %v4733 = vpop.f32.mrf.mxu0
        %v4734 = vadd.f32 0.0, %v4733
        %v4735 = vpop.f32.mrf.mxu0
        %v4736 = vadd.f32 0.0, %v4735
        %4737 = vmatmul.bf16.gmra.mxu0 %v4664
        %v4738 = vpop.f32.mrf.mxu0
        %v4739 = vadd.f32 0.0, %v4738
        %v4740 = vpop.f32.mrf.mxu0
        %v4741 = vadd.f32 0.0, %v4740
        %4742 = vmatmul.bf16.gmra.mxu0 %v4667
        %v4743 = vpop.f32.mrf.mxu0
        %v4744 = vadd.f32 0.0, %v4743
        %v4745 = vpop.f32.mrf.mxu0
        %v4746 = vadd.f32 0.0, %v4745
        %4747 = vmatmul.bf16.gmra.mxu0 %v4670
        %v4748 = vpop.f32.mrf.mxu0
        %v4749 = vadd.f32 0.0, %v4748
        %v4750 = vpop.f32.mrf.mxu0
        %v4751 = vadd.f32 0.0, %v4750
        %4752 = vmatmul.bf16.gmra.mxu0 %v4673
        %v4753 = vpop.f32.mrf.mxu0
        %v4754 = vadd.f32 0.0, %v4753
        %v4755 = vpop.f32.mrf.mxu0
        %v4756 = vadd.f32 0.0, %v4755
        %4757 = vmatmul.bf16.gmra.mxu0 %v4676
        %v4758 = vpop.f32.mrf.mxu0
        %v4759 = vadd.f32 0.0, %v4758
        %v4760 = vpop.f32.mrf.mxu0
        %v4761 = vadd.f32 0.0, %v4760
        %4762 = vmatmul.bf16.gmra.mxu0 %v4679
        %v4763 = vpop.f32.mrf.mxu0
        %v4764 = vadd.f32 0.0, %v4763
        %v4765 = vpop.f32.mrf.mxu0
        %v4766 = vadd.f32 0.0, %v4765
        %4767 = vmatmul.bf16.gmra.mxu0 %v4682
        %v4768 = vpop.f32.mrf.mxu0
        %v4769 = vadd.f32 0.0, %v4768
        %v4770 = vpop.f32.mrf.mxu0
        %v4771 = vadd.f32 0.0, %v4770
        %4772 = vmatmul.bf16.gmra.mxu0 %v4685
        %v4773 = vpop.f32.mrf.mxu0
        %v4774 = vadd.f32 0.0, %v4773
        %v4775 = vpop.f32.mrf.mxu0
        %v4776 = vadd.f32 0.0, %v4775
        %4777 = vmatmul.bf16.gmra.mxu0 %v4688
        %v4778 = vpop.f32.mrf.mxu0
        %v4779 = vadd.f32 0.0, %v4778
        %v4780 = vpop.f32.mrf.mxu0
        %v4781 = vadd.f32 0.0, %v4780
        %4782 = vmatmul.bf16.gmra.mxu0 %v4691
        %v4783 = vpop.f32.mrf.mxu0
        %v4784 = vadd.f32 0.0, %v4783
        %v4785 = vpop.f32.mrf.mxu0
        %v4786 = vadd.f32 0.0, %v4785
        %4787 = vmatmul.bf16.gmra.mxu0 %v4694
        %v4788 = vpop.f32.mrf.mxu0
        %v4789 = vadd.f32 0.0, %v4788
        %v4790 = vpop.f32.mrf.mxu0
        %v4791 = vadd.f32 0.0, %v4790
        %4792 = vmatmul.bf16.gmra.mxu0 %v4697
        %v4793 = vpop.f32.mrf.mxu0
        %v4794 = vadd.f32 0.0, %v4793
        %v4795 = vpop.f32.mrf.mxu0
        %v4796 = vadd.f32 0.0, %v4795
        %4797 = vdwg.mxu0
        %v4798 = vadd.f32 %v4507, %v4709
        %v4799 = vadd.f32 %v4508, %v4711
        %v4800 = vadd.f32 %v4509, %v4714
        %v4801 = vadd.f32 %v4510, %v4716
        %v4802 = vadd.f32 %v4511, %v4719
        %v4803 = vadd.f32 %v4512, %v4721
        %v4804 = vadd.f32 %v4513, %v4724
        %v4805 = vadd.f32 %v4514, %v4726
        %v4806 = vadd.f32 %v4515, %v4729
        %v4807 = vadd.f32 %v4516, %v4731
        %v4808 = vadd.f32 %v4517, %v4734
        %v4809 = vadd.f32 %v4518, %v4736
        %v4810 = vadd.f32 %v4519, %v4739
        %v4811 = vadd.f32 %v4520, %v4741
        %v4812 = vadd.f32 %v4521, %v4744
        %v4813 = vadd.f32 %v4522, %v4746
        %v4814 = vadd.f32 %v4523, %v4749
        %v4815 = vadd.f32 %v4524, %v4751
        %v4816 = vadd.f32 %v4525, %v4754
        %v4817 = vadd.f32 %v4526, %v4756
        %v4818 = vadd.f32 %v4527, %v4759
        %v4819 = vadd.f32 %v4528, %v4761
        %v4820 = vadd.f32 %v4529, %v4764
        %v4821 = vadd.f32 %v4530, %v4766
        %v4822 = vadd.f32 %v4531, %v4769
        %v4823 = vadd.f32 %v4532, %v4771
        %v4824 = vadd.f32 %v4533, %v4774
        %v4825 = vadd.f32 %v4534, %v4776
        %v4826 = vadd.f32 %v4535, %v4779
        %v4827 = vadd.f32 %v4536, %v4781
        %v4828 = vadd.f32 %v4537, %v4784
        %v4829 = vadd.f32 %v4538, %v4786
        %v4830 = vadd.f32 %v4539, %v4789
        %v4831 = vadd.f32 %v4540, %v4791
        %v4832 = vadd.f32 %v4541, %v4794
        %v4833 = vadd.f32 %v4542, %v4796
        %s4834 = scalar_lea.vmem %s3, 128
        %v4835 = vld [vmem:[%s4834] sm:$0xf]
        %v4836 = vld [vmem:[%s4834 + $0x4] sm:$0xf]
        %v4837 = vld [vmem:[%s4834 + $0x8] sm:$0xf]
        %v4838 = vld [vmem:[%s4834 + $0xc] sm:$0xf]
        %v4839 = vrot.slane %v2929, 3
        %v4840 = vrot.slane %v2930, 3
        %v4841 = vsel %vm2247, %v4839, %v4840
        %v4842 = vrot.slane %v2931, 3
        %v4843 = vsel %vm2247, %v4840, %v4842
        %v4844 = vrot.slane %v2932, 3
        %v4845 = vsel %vm2247, %v4842, %v4844
        %v4846 = vrot.slane %v2933, 3
        %v4847 = vsel %vm2247, %v4844, %v4846
        %v4848 = vrot.slane %v2934, 3
        %v4849 = vsel %vm2247, %v4846, %v4848
        %v4850 = vrot.slane %v2935, 3
        %v4851 = vsel %vm2247, %v4848, %v4850
        %v4852 = vrot.slane %v2936, 3
        %v4853 = vsel %vm2247, %v4850, %v4852
        %v4854 = vrot.slane %v2937, 3
        %v4855 = vsel %vm2247, %v4852, %v4854
        %v4856 = vrot.slane %v2938, 3
        %v4857 = vsel %vm2247, %v4854, %v4856
        %v4858 = vrot.slane %v2939, 3
        %v4859 = vsel %vm2247, %v4856, %v4858
        %v4860 = vrot.slane %v2940, 3
        %v4861 = vsel %vm2247, %v4858, %v4860
        %v4862 = vrot.slane %v2941, 3
        %v4863 = vsel %vm2247, %v4860, %v4862
        %v4864 = vrot.slane %v2942, 3
        %v4865 = vsel %vm2247, %v4862, %v4864
        %v4866 = vrot.slane %v2943, 3
        %v4867 = vsel %vm2247, %v4864, %v4866
        %v4868 = vrot.slane %v2944, 3
        %v4869 = vsel %vm2247, %v4866, %v4868
        %v4870 = vrot.slane %v3677, 3
        %v4871 = vsel %vm2247, %v4868, %v4870
        %v4872 = vrot.slane %v4377, 3
        %v4873 = vsel %vm2247, %v4870, %v4872
        %v4874 = vrot.slane %v4378, 3
        %v4875 = vsel %vm2247, %v4872, %v4874
        %v4880 = vunpack.c.l.b16 %v4835
        %v4881 = vunpack.c.l.b16 %v4836
        %v4882 = vunpack.c.l.b16 %v4837
        %v4883 = vunpack.c.l.b16 %v4838
        %v4884 = vpack.c.b16 %v4881, %v4880
        %v4885 = vpack.c.b16 %v4883, %v4882
        %v4889 = vsel %vm2805, %v4841, 0
        %v4892 = vsel %vm2805, %v4843, 0
        %v4895 = vsel %vm2805, %v4845, 0
        %v4898 = vsel %vm2805, %v4847, 0
        %v4901 = vsel %vm2805, %v4849, 0
        %v4904 = vsel %vm2805, %v4851, 0
        %v4907 = vsel %vm2805, %v4853, 0
        %v4910 = vsel %vm2805, %v4855, 0
        %v4913 = vsel %vm2805, %v4857, 0
        %v4916 = vsel %vm2805, %v4859, 0
        %v4919 = vsel %vm2805, %v4861, 0
        %v4922 = vsel %vm2805, %v4863, 0
        %v4925 = vsel %vm2805, %v4865, 0
        %v4928 = vsel %vm2805, %v4867, 0
        %v4931 = vsel %vm2805, %v4869, 0
        %v4934 = vsel %vm2805, %v4871, 0
        %v4937 = vsel %vm2805, %v4873, 0
        %v4940 = vsel %vm2805, %v4875, 0
        %4942 = vmatpush.bf16.msra.mxu0 0
        %4943 = vmatpush.bf16.msra.mxu0 0
        %4944 = vmatpush.bf16.msra.mxu0 0
        %4945 = vmatpush.bf16.msra.mxu0 0
        %4946 = vmatpush.bf16.msra.mxu0 0
        %4947 = vmatpush.bf16.msra.mxu0 0
        %4948 = vmatpush.bf16.msra.mxu0 %v4885
        %4949 = vmatpush.bf16.msra.mxu0 %v4884
        %4950 = vmatmul.bf16.gmra.mxu0 %v4889
        %v4951 = vpop.f32.mrf.mxu0
        %v4952 = vadd.f32 0.0, %v4951
        %v4953 = vpop.f32.mrf.mxu0
        %v4954 = vadd.f32 0.0, %v4953
        %4955 = vmatmul.bf16.gmra.mxu0 %v4892
        %v4956 = vpop.f32.mrf.mxu0
        %v4957 = vadd.f32 0.0, %v4956
        %v4958 = vpop.f32.mrf.mxu0
        %v4959 = vadd.f32 0.0, %v4958
        %4960 = vmatmul.bf16.gmra.mxu0 %v4895
        %v4961 = vpop.f32.mrf.mxu0
        %v4962 = vadd.f32 0.0, %v4961
        %v4963 = vpop.f32.mrf.mxu0
        %v4964 = vadd.f32 0.0, %v4963
        %4965 = vmatmul.bf16.gmra.mxu0 %v4898
        %v4966 = vpop.f32.mrf.mxu0
        %v4967 = vadd.f32 0.0, %v4966
        %v4968 = vpop.f32.mrf.mxu0
        %v4969 = vadd.f32 0.0, %v4968
        %4970 = vmatmul.bf16.gmra.mxu0 %v4901
        %v4971 = vpop.f32.mrf.mxu0
        %v4972 = vadd.f32 0.0, %v4971
        %v4973 = vpop.f32.mrf.mxu0
        %v4974 = vadd.f32 0.0, %v4973
        %4975 = vmatmul.bf16.gmra.mxu0 %v4904
        %v4976 = vpop.f32.mrf.mxu0
        %v4977 = vadd.f32 0.0, %v4976
        %v4978 = vpop.f32.mrf.mxu0
        %v4979 = vadd.f32 0.0, %v4978
        %4980 = vmatmul.bf16.gmra.mxu0 %v4907
        %v4981 = vpop.f32.mrf.mxu0
        %v4982 = vadd.f32 0.0, %v4981
        %v4983 = vpop.f32.mrf.mxu0
        %v4984 = vadd.f32 0.0, %v4983
        %4985 = vmatmul.bf16.gmra.mxu0 %v4910
        %v4986 = vpop.f32.mrf.mxu0
        %v4987 = vadd.f32 0.0, %v4986
        %v4988 = vpop.f32.mrf.mxu0
        %v4989 = vadd.f32 0.0, %v4988
        %4990 = vmatmul.bf16.gmra.mxu0 %v4913
        %v4991 = vpop.f32.mrf.mxu0
        %v4992 = vadd.f32 0.0, %v4991
        %v4993 = vpop.f32.mrf.mxu0
        %v4994 = vadd.f32 0.0, %v4993
        %4995 = vmatmul.bf16.gmra.mxu0 %v4916
        %v4996 = vpop.f32.mrf.mxu0
        %v4997 = vadd.f32 0.0, %v4996
        %v4998 = vpop.f32.mrf.mxu0
        %v4999 = vadd.f32 0.0, %v4998
        %5000 = vmatmul.bf16.gmra.mxu0 %v4919
        %v5001 = vpop.f32.mrf.mxu0
        %v5002 = vadd.f32 0.0, %v5001
        %v5003 = vpop.f32.mrf.mxu0
        %v5004 = vadd.f32 0.0, %v5003
        %5005 = vmatmul.bf16.gmra.mxu0 %v4922
        %v5006 = vpop.f32.mrf.mxu0
        %v5007 = vadd.f32 0.0, %v5006
        %v5008 = vpop.f32.mrf.mxu0
        %v5009 = vadd.f32 0.0, %v5008
        %5010 = vmatmul.bf16.gmra.mxu0 %v4925
        %v5011 = vpop.f32.mrf.mxu0
        %v5012 = vadd.f32 0.0, %v5011
        %v5013 = vpop.f32.mrf.mxu0
        %v5014 = vadd.f32 0.0, %v5013
        %5015 = vmatmul.bf16.gmra.mxu0 %v4928
        %v5016 = vpop.f32.mrf.mxu0
        %v5017 = vadd.f32 0.0, %v5016
        %v5018 = vpop.f32.mrf.mxu0
        %v5019 = vadd.f32 0.0, %v5018
        %5020 = vmatmul.bf16.gmra.mxu0 %v4931
        %v5021 = vpop.f32.mrf.mxu0
        %v5022 = vadd.f32 0.0, %v5021
        %v5023 = vpop.f32.mrf.mxu0
        %v5024 = vadd.f32 0.0, %v5023
        %5025 = vmatmul.bf16.gmra.mxu0 %v4934
        %v5026 = vpop.f32.mrf.mxu0
        %v5027 = vadd.f32 0.0, %v5026
        %v5028 = vpop.f32.mrf.mxu0
        %v5029 = vadd.f32 0.0, %v5028
        %5030 = vmatmul.bf16.gmra.mxu0 %v4937
        %v5031 = vpop.f32.mrf.mxu0
        %v5032 = vadd.f32 0.0, %v5031
        %v5033 = vpop.f32.mrf.mxu0
        %v5034 = vadd.f32 0.0, %v5033
        %5035 = vmatmul.bf16.gmra.mxu0 %v4940
        %v5036 = vpop.f32.mrf.mxu0
        %v5037 = vadd.f32 0.0, %v5036
        %v5038 = vpop.f32.mrf.mxu0
        %v5039 = vadd.f32 0.0, %v5038
        %5040 = vdwg.mxu0
        %v5041 = vadd.f32 %v4798, %v4952
        %v5042 = vadd.f32 %v4799, %v4954
        %v5043 = vadd.f32 %v4800, %v4957
        %v5044 = vadd.f32 %v4801, %v4959
        %v5045 = vadd.f32 %v4802, %v4962
        %v5046 = vadd.f32 %v4803, %v4964
        %v5047 = vadd.f32 %v4804, %v4967
        %v5048 = vadd.f32 %v4805, %v4969
        %v5049 = vadd.f32 %v4806, %v4972
        %v5050 = vadd.f32 %v4807, %v4974
        %v5051 = vadd.f32 %v4808, %v4977
        %v5052 = vadd.f32 %v4809, %v4979
        %v5053 = vadd.f32 %v4810, %v4982
        %v5054 = vadd.f32 %v4811, %v4984
        %v5055 = vadd.f32 %v4812, %v4987
        %v5056 = vadd.f32 %v4813, %v4989
        %v5057 = vadd.f32 %v4814, %v4992
        %v5058 = vadd.f32 %v4815, %v4994
        %v5059 = vadd.f32 %v4816, %v4997
        %v5060 = vadd.f32 %v4817, %v4999
        %v5061 = vadd.f32 %v4818, %v5002
        %v5062 = vadd.f32 %v4819, %v5004
        %v5063 = vadd.f32 %v4820, %v5007
        %v5064 = vadd.f32 %v4821, %v5009
        %v5065 = vadd.f32 %v4822, %v5012
        %v5066 = vadd.f32 %v4823, %v5014
        %v5067 = vadd.f32 %v4824, %v5017
        %v5068 = vadd.f32 %v4825, %v5019
        %v5069 = vadd.f32 %v4826, %v5022
        %v5070 = vadd.f32 %v4827, %v5024
        %v5071 = vadd.f32 %v4828, %v5027
        %v5072 = vadd.f32 %v4829, %v5029
        %v5073 = vadd.f32 %v4830, %v5032
        %v5074 = vadd.f32 %v4831, %v5034
        %v5075 = vadd.f32 %v4832, %v5037
        %v5076 = vadd.f32 %v4833, %v5039
        %v5077 = vld [vmem:[#allocation5] sm:$0x1]
        %v5079 = vperm.slane %v5077, 0
        %v5081 = vadd.f32 %v5041, %v5079
        %v5082 = vadd.f32 %v5042, %v5079
        %v5083 = vadd.f32 %v5043, %v5079
        %v5084 = vadd.f32 %v5044, %v5079
        %v5085 = vadd.f32 %v5045, %v5079
        %v5086 = vadd.f32 %v5046, %v5079
        %v5087 = vadd.f32 %v5047, %v5079
        %v5088 = vadd.f32 %v5048, %v5079
        %v5089 = vadd.f32 %v5049, %v5079
        %v5090 = vadd.f32 %v5050, %v5079
        %v5091 = vadd.f32 %v5051, %v5079
        %v5092 = vadd.f32 %v5052, %v5079
        %v5093 = vadd.f32 %v5053, %v5079
        %v5094 = vadd.f32 %v5054, %v5079
        %v5095 = vadd.f32 %v5055, %v5079
        %v5096 = vadd.f32 %v5056, %v5079
        %v5097 = vadd.f32 %v5057, %v5079
        %v5098 = vadd.f32 %v5058, %v5079
        %v5099 = vadd.f32 %v5059, %v5079
        %v5100 = vadd.f32 %v5060, %v5079
        %v5101 = vadd.f32 %v5061, %v5079
        %v5102 = vadd.f32 %v5062, %v5079
        %v5103 = vadd.f32 %v5063, %v5079
        %v5104 = vadd.f32 %v5064, %v5079
        %v5105 = vadd.f32 %v5065, %v5079
        %v5106 = vadd.f32 %v5066, %v5079
        %v5107 = vadd.f32 %v5067, %v5079
        %v5108 = vadd.f32 %v5068, %v5079
        %v5109 = vadd.f32 %v5069, %v5079
        %v5110 = vadd.f32 %v5070, %v5079
        %v5111 = vadd.f32 %v5071, %v5079
        %v5112 = vadd.f32 %v5072, %v5079
        %v5113 = vadd.f32 %v5073, %v5079
        %v5114 = vadd.f32 %v5074, %v5079
        %v5115 = vadd.f32 %v5075, %v5079
        %v5116 = vadd.f32 %v5076, %v5079
        %v5117 = vmax.f32 %v5081, 0.0
        %v5118 = vmax.f32 %v5082, 0.0
        %v5119 = vmax.f32 %v5083, 0.0
        %v5120 = vmax.f32 %v5084, 0.0
        %v5121 = vmax.f32 %v5085, 0.0
        %v5122 = vmax.f32 %v5086, 0.0
        %v5123 = vmax.f32 %v5087, 0.0
        %v5124 = vmax.f32 %v5088, 0.0
        %v5125 = vmax.f32 %v5089, 0.0
        %v5126 = vmax.f32 %v5090, 0.0
        %v5127 = vmax.f32 %v5091, 0.0
        %v5128 = vmax.f32 %v5092, 0.0
        %v5129 = vmax.f32 %v5093, 0.0
        %v5130 = vmax.f32 %v5094, 0.0
        %v5131 = vmax.f32 %v5095, 0.0
        %v5132 = vmax.f32 %v5096, 0.0
        %v5133 = vmax.f32 %v5097, 0.0
        %v5134 = vmax.f32 %v5098, 0.0
        %v5135 = vmax.f32 %v5099, 0.0
        %v5136 = vmax.f32 %v5100, 0.0
        %v5137 = vmax.f32 %v5101, 0.0
        %v5138 = vmax.f32 %v5102, 0.0
        %v5139 = vmax.f32 %v5103, 0.0
        %v5140 = vmax.f32 %v5104, 0.0
        %v5141 = vmax.f32 %v5105, 0.0
        %v5142 = vmax.f32 %v5106, 0.0
        %v5143 = vmax.f32 %v5107, 0.0
        %v5144 = vmax.f32 %v5108, 0.0
        %v5145 = vmax.f32 %v5109, 0.0
        %v5146 = vmax.f32 %v5110, 0.0
        %v5147 = vmax.f32 %v5111, 0.0
        %v5148 = vmax.f32 %v5112, 0.0
        %v5149 = vmax.f32 %v5113, 0.0
        %v5150 = vmax.f32 %v5114, 0.0
        %v5151 = vmax.f32 %v5115, 0.0
        %v5152 = vmax.f32 %v5116, 0.0
        %vm5187 = vcmask 1046528
        %v5188 = vrot.slane %v5117, 1
        %v5189 = vrot.slane %v5118, 1
        %v5190 = vsel %vm5187, %v5188, %v5189
        %v5191 = vrot.slane %v5119, 1
        %v5192 = vsel %vm5187, %v5189, %v5191
        %v5193 = vrot.slane %v5120, 1
        %v5194 = vsel %vm5187, %v5191, %v5193
        %v5195 = vrot.slane %v5121, 1
        %v5196 = vsel %vm5187, %v5193, %v5195
        %v5197 = vrot.slane %v5122, 1
        %v5198 = vsel %vm5187, %v5195, %v5197
        %v5199 = vrot.slane %v5123, 1
        %v5200 = vsel %vm5187, %v5197, %v5199
        %v5201 = vrot.slane %v5124, 1
        %v5202 = vsel %vm5187, %v5199, %v5201
        %v5203 = vrot.slane %v5125, 1
        %v5204 = vsel %vm5187, %v5201, %v5203
        %v5205 = vrot.slane %v5126, 1
        %v5206 = vsel %vm5187, %v5203, %v5205
        %v5207 = vrot.slane %v5127, 1
        %v5208 = vsel %vm5187, %v5205, %v5207
        %v5209 = vrot.slane %v5128, 1
        %v5210 = vsel %vm5187, %v5207, %v5209
        %v5211 = vrot.slane %v5129, 1
        %v5212 = vsel %vm5187, %v5209, %v5211
        %v5213 = vrot.slane %v5130, 1
        %v5214 = vsel %vm5187, %v5211, %v5213
        %v5215 = vrot.slane %v5131, 1
        %v5216 = vsel %vm5187, %v5213, %v5215
        %v5217 = vrot.slane %v5132, 1
        %v5218 = vsel %vm5187, %v5215, %v5217
        %v5219 = vrot.slane %v5133, 1
        %v5220 = vsel %vm5187, %v5217, %v5219
        %v5221 = vrot.slane %v5134, 1
        %v5222 = vsel %vm5187, %v5219, %v5221
        %v5223 = vrot.slane %v5135, 1
        %v5224 = vsel %vm5187, %v5221, %v5223
        %v5225 = vrot.slane %v5136, 1
        %v5226 = vsel %vm5187, %v5223, %v5225
        %v5227 = vrot.slane %v5137, 1
        %v5228 = vsel %vm5187, %v5225, %v5227
        %v5229 = vrot.slane %v5138, 1
        %v5230 = vsel %vm5187, %v5227, %v5229
        %v5231 = vrot.slane %v5139, 1
        %v5232 = vsel %vm5187, %v5229, %v5231
        %v5233 = vrot.slane %v5140, 1
        %v5234 = vsel %vm5187, %v5231, %v5233
        %v5235 = vrot.slane %v5141, 1
        %v5236 = vsel %vm5187, %v5233, %v5235
        %v5237 = vrot.slane %v5142, 1
        %v5238 = vsel %vm5187, %v5235, %v5237
        %v5239 = vrot.slane %v5143, 1
        %v5240 = vsel %vm5187, %v5237, %v5239
        %v5241 = vrot.slane %v5144, 1
        %v5242 = vsel %vm5187, %v5239, %v5241
        %v5243 = vrot.slane %v5145, 1
        %v5244 = vsel %vm5187, %v5241, %v5243
        %v5245 = vrot.slane %v5146, 1
        %v5246 = vsel %vm5187, %v5243, %v5245
        %v5247 = vrot.slane %v5147, 1
        %v5248 = vsel %vm5187, %v5245, %v5247
        %v5249 = vrot.slane %v5148, 1
        %v5250 = vsel %vm5187, %v5247, %v5249
        %v5251 = vrot.slane %v5149, 1
        %v5252 = vsel %vm5187, %v5249, %v5251
        %v5253 = vrot.slane %v5150, 1
        %v5254 = vsel %vm5187, %v5251, %v5253
        %v5289 = vmax.f32 %v5117, %v5190
        %v5290 = vmax.f32 %v5118, %v5192
        %v5291 = vmax.f32 %v5119, %v5194
        %v5292 = vmax.f32 %v5120, %v5196
        %v5293 = vmax.f32 %v5121, %v5198
        %v5294 = vmax.f32 %v5122, %v5200
        %v5295 = vmax.f32 %v5123, %v5202
        %v5296 = vmax.f32 %v5124, %v5204
        %v5297 = vmax.f32 %v5125, %v5206
        %v5298 = vmax.f32 %v5126, %v5208
        %v5299 = vmax.f32 %v5127, %v5210
        %v5300 = vmax.f32 %v5128, %v5212
        %v5301 = vmax.f32 %v5129, %v5214
        %v5302 = vmax.f32 %v5130, %v5216
        %v5303 = vmax.f32 %v5131, %v5218
        %v5304 = vmax.f32 %v5132, %v5220
        %v5305 = vmax.f32 %v5133, %v5222
        %v5306 = vmax.f32 %v5134, %v5224
        %v5307 = vmax.f32 %v5135, %v5226
        %v5308 = vmax.f32 %v5136, %v5228
        %v5309 = vmax.f32 %v5137, %v5230
        %v5310 = vmax.f32 %v5138, %v5232
        %v5311 = vmax.f32 %v5139, %v5234
        %v5312 = vmax.f32 %v5140, %v5236
        %v5313 = vmax.f32 %v5141, %v5238
        %v5314 = vmax.f32 %v5142, %v5240
        %v5315 = vmax.f32 %v5143, %v5242
        %v5316 = vmax.f32 %v5144, %v5244
        %v5317 = vmax.f32 %v5145, %v5246
        %v5318 = vmax.f32 %v5146, %v5248
        %v5319 = vmax.f32 %v5147, %v5250
        %v5320 = vmax.f32 %v5148, %v5252
        %v5321 = vmax.f32 %v5149, %v5254
        %v5322 = vmax.f32 %v5150, %v5253
        %v5325 = vrot.slane %v5151, 1
        %v5326 = vsel %vm5187, %v5253, %v5325
        %v5327 = vrot.slane %v5152, 1
        %v5328 = vsel %vm5187, %v5325, %v5327
        %v5332 = vmax.f32 %v5150, %v5326
        %v5333 = vmax.f32 %v5151, %v5328
        %v5334 = vmax.f32 %v5152, %v5327
        %vm5369 = vcmask 1045504
        %v5370 = vrot.slane %v5291, 2
        %v5371 = vrot.slane %v5292, 2
        %v5372 = vsel %vm5369, %v5370, %v5371
        %v5373 = vrot.slane %v5293, 2
        %v5374 = vsel %vm5369, %v5371, %v5373
        %v5375 = vrot.slane %v5294, 2
        %v5376 = vsel %vm5369, %v5373, %v5375
        %v5377 = vrot.slane %v5295, 2
        %v5378 = vsel %vm5369, %v5375, %v5377
        %v5379 = vrot.slane %v5296, 2
        %v5380 = vsel %vm5369, %v5377, %v5379
        %v5381 = vrot.slane %v5297, 2
        %v5382 = vsel %vm5369, %v5379, %v5381
        %v5383 = vrot.slane %v5298, 2
        %v5384 = vsel %vm5369, %v5381, %v5383
        %v5385 = vrot.slane %v5299, 2
        %v5386 = vsel %vm5369, %v5383, %v5385
        %v5387 = vrot.slane %v5300, 2
        %v5388 = vsel %vm5369, %v5385, %v5387
        %v5389 = vrot.slane %v5301, 2
        %v5390 = vsel %vm5369, %v5387, %v5389
        %v5391 = vrot.slane %v5302, 2
        %v5392 = vsel %vm5369, %v5389, %v5391
        %v5393 = vrot.slane %v5303, 2
        %v5394 = vsel %vm5369, %v5391, %v5393
        %v5395 = vrot.slane %v5304, 2
        %v5396 = vsel %vm5369, %v5393, %v5395
        %v5397 = vrot.slane %v5305, 2
        %v5398 = vsel %vm5369, %v5395, %v5397
        %v5399 = vrot.slane %v5306, 2
        %v5400 = vsel %vm5369, %v5397, %v5399
        %v5401 = vrot.slane %v5307, 2
        %v5402 = vsel %vm5369, %v5399, %v5401
        %v5403 = vrot.slane %v5308, 2
        %v5404 = vsel %vm5369, %v5401, %v5403
        %v5405 = vrot.slane %v5309, 2
        %v5406 = vsel %vm5369, %v5403, %v5405
        %v5407 = vrot.slane %v5310, 2
        %v5408 = vsel %vm5369, %v5405, %v5407
        %v5409 = vrot.slane %v5311, 2
        %v5410 = vsel %vm5369, %v5407, %v5409
        %v5411 = vrot.slane %v5312, 2
        %v5412 = vsel %vm5369, %v5409, %v5411
        %v5413 = vrot.slane %v5313, 2
        %v5414 = vsel %vm5369, %v5411, %v5413
        %v5415 = vrot.slane %v5314, 2
        %v5416 = vsel %vm5369, %v5413, %v5415
        %v5417 = vrot.slane %v5315, 2
        %v5418 = vsel %vm5369, %v5415, %v5417
        %v5419 = vrot.slane %v5316, 2
        %v5420 = vsel %vm5369, %v5417, %v5419
        %v5421 = vrot.slane %v5317, 2
        %v5422 = vsel %vm5369, %v5419, %v5421
        %v5423 = vrot.slane %v5318, 2
        %v5424 = vsel %vm5369, %v5421, %v5423
        %v5425 = vrot.slane %v5319, 2
        %v5426 = vsel %vm5369, %v5423, %v5425
        %v5427 = vrot.slane %v5320, 2
        %v5428 = vsel %vm5369, %v5425, %v5427
        %v5429 = vrot.slane %v5321, 2
        %v5430 = vsel %vm5369, %v5427, %v5429
        %v5431 = vrot.slane %v5332, 2
        %v5432 = vsel %vm5369, %v5429, %v5431
        %v5433 = vrot.slane %v5333, 2
        %v5434 = vsel %vm5369, %v5431, %v5433
        %v5435 = vrot.slane %v5334, 2
        %v5436 = vsel %vm5369, %v5433, %v5435
        %v5471 = vmax.f32 %v5289, %v5372
        %v5472 = vmax.f32 %v5290, %v5374
        %v5473 = vmax.f32 %v5291, %v5376
        %v5474 = vmax.f32 %v5292, %v5378
        %v5475 = vmax.f32 %v5293, %v5380
        %v5476 = vmax.f32 %v5294, %v5382
        %v5477 = vmax.f32 %v5295, %v5384
        %v5478 = vmax.f32 %v5296, %v5386
        %v5479 = vmax.f32 %v5297, %v5388
        %v5480 = vmax.f32 %v5298, %v5390
        %v5481 = vmax.f32 %v5299, %v5392
        %v5482 = vmax.f32 %v5300, %v5394
        %v5483 = vmax.f32 %v5301, %v5396
        %v5484 = vmax.f32 %v5302, %v5398
        %v5485 = vmax.f32 %v5303, %v5400
        %v5486 = vmax.f32 %v5304, %v5402
        %v5487 = vmax.f32 %v5305, %v5404
        %v5488 = vmax.f32 %v5306, %v5406
        %v5489 = vmax.f32 %v5307, %v5408
        %v5490 = vmax.f32 %v5308, %v5410
        %v5491 = vmax.f32 %v5309, %v5412
        %v5492 = vmax.f32 %v5310, %v5414
        %v5493 = vmax.f32 %v5311, %v5416
        %v5494 = vmax.f32 %v5312, %v5418
        %v5495 = vmax.f32 %v5313, %v5420
        %v5496 = vmax.f32 %v5314, %v5422
        %v5497 = vmax.f32 %v5315, %v5424
        %v5498 = vmax.f32 %v5316, %v5426
        %v5499 = vmax.f32 %v5317, %v5428
        %v5500 = vmax.f32 %v5318, %v5430
        %v5501 = vmax.f32 %v5319, %v5432
        %v5502 = vmax.f32 %v5320, %v5434
        %v5503 = vmax.f32 %v5321, %v5436
        %v5504 = vmax.f32 %v5322, %v5435
        %v5505 = vld [vmem:[#allocation8] sm:$0xff]
        %v5506 = vld [vmem:[#allocation8 + $0x8] sm:$0xf]
        %v5507 = vld [vmem:[#allocation8 + $0xc] sm:$0xff]
        %v5508 = vld [vmem:[#allocation8 + $0x14] sm:$0xf]
        %v5509 = vld [vmem:[#allocation8 + $0x18] sm:$0xff]
        %v5510 = vld [vmem:[#allocation8 + $0x20] sm:$0xf]
        %v5511 = vld [vmem:[#allocation8 + $0x24] sm:$0xff]
        %v5512 = vld [vmem:[#allocation8 + $0x2c] sm:$0xf]
        %v5513 = vld [vmem:[#allocation8 + $0x30] sm:$0xff]
        %v5514 = vld [vmem:[#allocation8 + $0x38] sm:$0xf]
        %v5515 = vld [vmem:[#allocation8 + $0x3c] sm:$0xff]
        %v5516 = vld [vmem:[#allocation8 + $0x44] sm:$0xf]
        %v5517 = vld [vmem:[#allocation8 + $0x48] sm:$0xff]
        %v5518 = vld [vmem:[#allocation8 + $0x50] sm:$0xf]
        %v5519 = vld [vmem:[#allocation8 + $0x54] sm:$0xff]
        %v5520 = vld [vmem:[#allocation8 + $0x5c] sm:$0xf]
        %v5521 = vpack.c.bf16 %v5472, %v5471
        %v5522 = vpack.c.bf16 %v5474, %v5473
        %v5523 = vpack.c.bf16 %v5476, %v5475
        %v5524 = vpack.c.bf16 %v5478, %v5477
        %v5525 = vpack.c.bf16 %v5480, %v5479
        %v5526 = vpack.c.bf16 %v5482, %v5481
        %v5527 = vpack.c.bf16 %v5484, %v5483
        %v5528 = vpack.c.bf16 %v5486, %v5485
        %v5529 = vpack.c.bf16 %v5488, %v5487
        %v5530 = vpack.c.bf16 %v5490, %v5489
        %v5531 = vpack.c.bf16 %v5492, %v5491
        %v5532 = vpack.c.bf16 %v5494, %v5493
        %v5533 = vpack.c.bf16 %v5496, %v5495
        %v5534 = vpack.c.bf16 %v5498, %v5497
        %v5535 = vpack.c.bf16 %v5500, %v5499
        %v5536 = vpack.c.bf16 %v5502, %v5501
        %v5537 = vpack.c.bf16 %v5504, %v5503
        %v5554 = vunpack.c.l.b16 %v5505
        %v5555 = vunpack.c.h.b16 %v5505
        %v5556 = vunpack.c.l.b16 %v5506
        %v5557 = vunpack.c.l.b16 %v5507
        %v5558 = vunpack.c.h.b16 %v5507
        %v5559 = vunpack.c.l.b16 %v5508
        %v5560 = vunpack.c.l.b16 %v5509
        %v5561 = vunpack.c.h.b16 %v5509
        %v5562 = vunpack.c.l.b16 %v5510
        %v5563 = vunpack.c.l.b16 %v5511
        %v5564 = vunpack.c.h.b16 %v5511
        %v5565 = vunpack.c.l.b16 %v5512
        %v5566 = vunpack.c.l.b16 %v5513
        %v5567 = vunpack.c.h.b16 %v5513
        %v5568 = vunpack.c.l.b16 %v5514
        %v5569 = vunpack.c.l.b16 %v5515
        %v5570 = vunpack.c.h.b16 %v5515
        %v5571 = vunpack.c.l.b16 %v5516
        %v5572 = vunpack.c.l.b16 %v5517
        %v5573 = vunpack.c.h.b16 %v5517
        %v5574 = vunpack.c.l.b16 %v5518
        %v5575 = vunpack.c.l.b16 %v5519
        %v5576 = vunpack.c.h.b16 %v5519
        %v5577 = vunpack.c.l.b16 %v5520
        %v5578 = vpack.c.b16 %v5557, %v5554
        %v5579 = vpack.c.b16 %v5558, %v5555
        %v5580 = vpack.c.b16 %v5559, %v5556
        %v5581 = vpack.c.b16 %v5563, %v5560
        %v5582 = vpack.c.b16 %v5564, %v5561
        %v5583 = vpack.c.b16 %v5565, %v5562
        %v5584 = vpack.c.b16 %v5569, %v5566
        %v5585 = vpack.c.b16 %v5570, %v5567
        %v5586 = vpack.c.b16 %v5571, %v5568
        %v5587 = vpack.c.b16 %v5575, %v5572
        %v5588 = vpack.c.b16 %v5576, %v5573
        %v5589 = vpack.c.b16 %v5577, %v5574
        %vm5598 = vcmask 105472
        %v5600 = vsel %vm5598, %v5580, 0
        %v5603 = vsel %vm5598, %v5583, 0
        %v5606 = vsel %vm5598, %v5586, 0
        %v5609 = vsel %vm5598, %v5589, 0
        %v5611 = vsel %vm5369, 4294967295, 65535
        %v5612 = vsel %vm5187, %v5611, 0
        %v5614 = vand.u32 %v5537, %v5612
        %5616 = vmatpush.bf16.msra.mxu0 %v5528
        %5617 = vmatpush.bf16.msra.mxu0 %v5527
        %5618 = vmatpush.bf16.msra.mxu0 %v5526
        %5619 = vmatpush.bf16.msra.mxu0 %v5525
        %5620 = vmatpush.bf16.msra.mxu0 %v5524
        %5621 = vmatpush.bf16.msra.mxu0 %v5523
        %5622 = vmatpush.bf16.msra.mxu0 %v5522
        %5623 = vmatpush.bf16.msra.mxu0 %v5521
        %5624 = vmatmul.bf16.gmra.mxu0 %v5578
        %v5625 = vpop.f32.mrf.mxu0
        %v5626 = vadd.f32 0.0, %v5625
        %v5627 = vpop.f32.mrf.mxu0
        %v5628 = vadd.f32 0.0, %v5627
        %5629 = vmatmul.bf16.gmra.mxu0 %v5581
        %v5630 = vpop.f32.mrf.mxu0
        %v5631 = vadd.f32 0.0, %v5630
        %v5632 = vpop.f32.mrf.mxu0
        %v5633 = vadd.f32 0.0, %v5632
        %5634 = vmatmul.bf16.gmra.mxu0 %v5584
        %v5635 = vpop.f32.mrf.mxu0
        %v5636 = vadd.f32 0.0, %v5635
        %v5637 = vpop.f32.mrf.mxu0
        %v5638 = vadd.f32 0.0, %v5637
        %5639 = vmatmul.bf16.gmra.mxu0 %v5587
        %v5640 = vpop.f32.mrf.mxu0
        %v5641 = vadd.f32 0.0, %v5640
        %v5642 = vpop.f32.mrf.mxu0
        %v5643 = vadd.f32 0.0, %v5642
        %5644 = vdwg.mxu0
        %5645 = vmatpush.bf16.msra.mxu0 %v5536
        %5646 = vmatpush.bf16.msra.mxu0 %v5535
        %5647 = vmatpush.bf16.msra.mxu0 %v5534
        %5648 = vmatpush.bf16.msra.mxu0 %v5533
        %5649 = vmatpush.bf16.msra.mxu0 %v5532
        %5650 = vmatpush.bf16.msra.mxu0 %v5531
        %5651 = vmatpush.bf16.msra.mxu0 %v5530
        %5652 = vmatpush.bf16.msra.mxu0 %v5529
        %5653 = vmatmul.bf16.gmra.mxu0 %v5579
        %v5654 = vpop.f32.mrf.mxu0
        %v5655 = vadd.f32 %v5626, %v5654
        %v5656 = vpop.f32.mrf.mxu0
        %v5657 = vadd.f32 %v5628, %v5656
        %5658 = vmatmul.bf16.gmra.mxu0 %v5582
        %v5659 = vpop.f32.mrf.mxu0
        %v5660 = vadd.f32 %v5631, %v5659
        %v5661 = vpop.f32.mrf.mxu0
        %v5662 = vadd.f32 %v5633, %v5661
        %5663 = vmatmul.bf16.gmra.mxu0 %v5585
        %v5664 = vpop.f32.mrf.mxu0
        %v5665 = vadd.f32 %v5636, %v5664
        %v5666 = vpop.f32.mrf.mxu0
        %v5667 = vadd.f32 %v5638, %v5666
        %5668 = vmatmul.bf16.gmra.mxu0 %v5588
        %v5669 = vpop.f32.mrf.mxu0
        %v5670 = vadd.f32 %v5641, %v5669
        %v5671 = vpop.f32.mrf.mxu0
        %v5672 = vadd.f32 %v5643, %v5671
        %5673 = vdwg.mxu0
        %5674 = vmatpush.bf16.msra.mxu0 0
        %5675 = vmatpush.bf16.msra.mxu0 0
        %5676 = vmatpush.bf16.msra.mxu0 0
        %5677 = vmatpush.bf16.msra.mxu0 0
        %5678 = vmatpush.bf16.msra.mxu0 0
        %5679 = vmatpush.bf16.msra.mxu0 0
        %5680 = vmatpush.bf16.msra.mxu0 0
        %5681 = vmatpush.bf16.msra.mxu0 %v5614
        %5682 = vmatmul.bf16.gmra.mxu0 %v5600
        %v5683 = vpop.f32.mrf.mxu0
        %v5684 = vadd.f32 %v5655, %v5683
        %v5685 = vpop.f32.mrf.mxu0
        %v5686 = vadd.f32 %v5657, %v5685
        %5687 = vmatmul.bf16.gmra.mxu0 %v5603
        %v5688 = vpop.f32.mrf.mxu0
        %v5689 = vadd.f32 %v5660, %v5688
        %v5690 = vpop.f32.mrf.mxu0
        %v5691 = vadd.f32 %v5662, %v5690
        %5692 = vmatmul.bf16.gmra.mxu0 %v5606
        %v5693 = vpop.f32.mrf.mxu0
        %v5694 = vadd.f32 %v5665, %v5693
        %v5695 = vpop.f32.mrf.mxu0
        %v5696 = vadd.f32 %v5667, %v5695
        %5697 = vmatmul.bf16.gmra.mxu0 %v5609
        %v5698 = vpop.f32.mrf.mxu0
        %v5699 = vadd.f32 %v5670, %v5698
        %v5700 = vpop.f32.mrf.mxu0
        %v5701 = vadd.f32 %v5672, %v5700
        %5702 = vdwg.mxu0
        %v5703 = vpack.c.bf16 %v5684, %v5684
        %v5704 = vpack.c.bf16 %v5686, %v5686
        %v5705 = vpack.c.bf16 %v5689, %v5689
        %v5706 = vpack.c.bf16 %v5691, %v5691
        %v5707 = vpack.c.bf16 %v5694, %v5694
        %v5708 = vpack.c.bf16 %v5696, %v5696
        %v5709 = vpack.c.bf16 %v5699, %v5699
        %v5710 = vpack.c.bf16 %v5701, %v5701
        %vm5711 = vcmask 257024
        %5712 = vst.msk [vmem:[%s343] sm:$0xf] %vm5711, %v5703
        %5713 = vst.msk [vmem:[%s343 + $0x4] sm:$0xf] %vm5711, %v5704
        %5714 = vst.msk [vmem:[%s343 + $0x8] sm:$0xf] %vm5711, %v5705
        %5715 = vst.msk [vmem:[%s343 + $0xc] sm:$0xf] %vm5711, %v5706
        %5716 = vst.msk [vmem:[%s343 + $0x10] sm:$0xf] %vm5711, %v5707
        %5717 = vst.msk [vmem:[%s343 + $0x14] sm:$0xf] %vm5711, %v5708
        %5718 = vst.msk [vmem:[%s343 + $0x18] sm:$0xf] %vm5711, %v5709
        %5719 = vst.msk [vmem:[%s343 + $0x1c] sm:$0xf] %vm5711, %v5710
        %p5720 = scmp.lt.s32.totalorder %s21, 1
        %s5721 = scalar_select %p5720, %s21, 1
        %s5722 = smul.addr %s5721, 8
        %s5723 = smul.addr %s5722, 4
        %s5724 = scalar_lea.vmem %s7, %s5723
        // Predicated region
        $region65: #{conv_net_forward.4} parent=47 // pred_check
          %p5725 = pneg %p191
        $region66: #{conv_net_forward.4} parent=47 // pred_check_branch
          %5727 = sbr.rel (%p5725) target = $region68
        $region67: #{conv_net_forward.4} parent=47 // pred_region
          _
        $region68: #{conv_net_forward.4} parent=47 // pred_fallthru
          _
      $region48: #{conv_net_forward.4} parent=5 // pred_fallthru
        _
      %p5728 = scmp.le.s32.totalorder 2, %s16
      // Predicated region
      $region69: #{conv_net_forward.4} parent=5 // pred_check
        %p5729 = pneg %p5728
      $region70: #{conv_net_forward.4} parent=5 // pred_check_branch
        %5731 = sbr.rel (%p5729) target = $region72
      $region71: #{conv_net_forward.4} parent=5 // pred_region
        %s5732 = ssub.s32 %s16, 2
        // Predicated region
        $region73: #{conv_net_forward.4} parent=71 // pred_check
          %p5733 = pneg %p197
        $region74: #{conv_net_forward.4} parent=71 // pred_check_branch
          %5735 = sbr.rel (%p5733) target = $region76
        $region75: #{conv_net_forward.4} parent=71 // pred_region
          %p5736 = scmp.lt.s32.totalorder %s22, 1
          %s5737 = scalar_select %p5736, %s22, 1
          %s5738 = smul.addr %s5737, 8
          %s5739 = smul.addr %s5738, 4
          %s5740 = scalar_lea.vmem %s7, %s5739
        $region76: #{conv_net_forward.4} parent=71 // pred_fallthru
          _
      $region72: #{conv_net_forward.4} parent=5 // pred_fallthru
        _
    $region6: #{conv_net_forward.4} parent=1 // loop_footer
      %s20 = sadd.s32 1, %s16
    $region7: #{conv_net_forward.4} parent=1 // loop_footer_branch
      %15 = sbr.rel target = $region3
    $region8: #{conv_net_forward.4} parent=1 // loop_exit
      _
    %5741 = vsyncpa [#allocation4], 1
    %s5742 = scalar_lea.sflag [#allocation4], 1
    %5743 = vsyncpa %s5742, 1
    %5744 = vsyncpa [#allocation6], 1
    %5745 = vsyncpa [#allocation9], 1

</llo_original>
